<compile_context>
chip_gen: v6e
topology: v6e:2x2x1
jax: 0.10.0
libtpu: 0.0.40
codegen_flags: <defaults>
</compile_context>

<pallas_src>
import math

import jax
import jax.numpy as jnp
import numpy as np
from jax.experimental import pallas as pl
from jax.experimental.pallas import tpu as pltpu

T_SEQ = 150      # hard-coded in the torch module: x.reshape(-1, 150, 768)
D_BERT = 768     # hard-coded BERT hidden size


# ---------------------------------------------------------------------------
# Fused kernel: per time-chunk input projection + GRU recurrence
#               + gather hidden at t == length-1 + output_fc (on last chunk)
# ---------------------------------------------------------------------------
def _fused_gru_kernel(x_ref, len_ref, wc_ref, bc_ref, whh_ref, bhh_ref,
                      wout_ref, bout_ref, out_ref, xp_ref, h_ref, sel_ref):
    c = pl.program_id(0)
    Tc, Bp, D = x_ref.shape
    Hp = h_ref.shape[-1]

    @pl.when(c == 0)
    def _():
        h_ref[...] = jnp.zeros_like(h_ref)
        sel_ref[...] = jnp.zeros_like(sel_ref)

    # ---- fused embed_fc + GRU input projection for the whole chunk ----
    # (Tc*Bp, 768) @ (768, 3*Hp): single K=768 MXU matmul, no HBM intermediate.
    x2 = x_ref[...].reshape(Tc * Bp, D)
    xp = jnp.dot(x2, wc_ref[...], preferred_element_type=jnp.float32) + bc_ref[...]
    xp_ref[...] = xp.reshape(Tc, Bp, 3 * Hp)

    whh = whh_ref[...]
    bhh = bhh_ref[...]
    lens = len_ref[...]                          # (Bp, 1) int32
    t0 = c * Tc

    h = h_ref[...]                               # (Bp, Hp)
    sel = sel_ref[...]                           # (Bp, Hp)

    # statically unrolled recurrence over the chunk (tiny per-step tensors)
    for i in range(Tc):
        xpt = xp_ref[i]                          # (Bp, 3Hp)  = W_ih x_t + b_ih (folded)
        hh = jnp.dot(h, whh, preferred_element_type=jnp.float32) + bhh  # (Bp, 3Hp)
        # PyTorch GRU gate order: r, z, n  (b_hn stays inside the r* term)
        r = jax.nn.sigmoid(xpt[:, 0:Hp] + hh[:, 0:Hp])
        z = jax.nn.sigmoid(xpt[:, Hp:2 * Hp] + hh[:, Hp:2 * Hp])
        n = jnp.tanh(xpt[:, 2 * Hp:3 * Hp] + r * hh[:, 2 * Hp:3 * Hp])
        h = (1.0 - z) * n + z * h
        # pack_padded_sequence + output_seq[i, lengths-1] == hidden at t == length-1
        sel = jnp.where(lens == t0 + i + 1, h, sel)

    h_ref[...] = h
    sel_ref[...] = sel

    @pl.when(c == pl.num_programs(0) - 1)
    def _():
        out_ref[...] = (jnp.dot(sel, wout_ref[...],
                                preferred_element_type=jnp.float32)
                        + bout_ref[...]).astype(out_ref.dtype)


# ---------------------------------------------------------------------------
# Padding helpers (gate-aware: 3H is laid out as [r | z | n], each padded to Hp)
# ---------------------------------------------------------------------------
def _pad_last(a, new):
    return jnp.pad(a, [(0, 0)] * (a.ndim - 1) + [(0, new - a.shape[-1])])


def _pad_gates(a, H, Hp):
    r, z, n = jnp.split(a, 3, axis=-1)
    return jnp.concatenate([_pad_last(r, Hp), _pad_last(z, Hp), _pad_last(n, Hp)],
                           axis=-1)


# ---------------------------------------------------------------------------
# Wrapper: fold weights, pad to lane/sublane-dense shapes, one pallas_call
# ---------------------------------------------------------------------------
def post_predictive_forward(x, lengths, params, *, time_chunk=30):
    B, T, D = x.shape
    H = params["Whh_T"].shape[0]
    O = params["Wout_T"].shape[1]

    LANE, SUB = 128, 8
    Bp = max(SUB, -(-B // SUB) * SUB)            # pad batch to sublane width
    Hp = -(-H // LANE) * LANE                    # pad hidden to lane width
    Op = -(-O // LANE) * LANE                    # pad output to lane width
    Tc = time_chunk
    Tp = -(-T // Tc) * Tc                        # pad time to a chunk multiple
    G = 3 * Hp

    # contract: 1 <= lengths <= T (same as torch pack_padded_sequence);
    # out-of-range lengths would silently select the zero initial state.
    lens = lengths.reshape(B).astype(jnp.int32)

    # ---- fold embed_fc into the GRU input projection, pad per gate ----
    Wc = params["We_T"] @ params["Wih_T"]                  # (768, 3H)
    bc = params["be"] @ params["Wih_T"] + params["bih"]    # (1, 3H)
    Wc = _pad_gates(Wc, H, Hp)                             # (768, 3Hp)
    bc = _pad_gates(bc, H, Hp)                             # (1, 3Hp)
    Whh = _pad_gates(jnp.pad(params["Whh_T"], ((0, Hp - H), (0, 0))), H, Hp)
    bhh = _pad_gates(params["bhh"], H, Hp)
    Wout = jnp.pad(params["Wout_T"], ((0, Hp - H), (0, Op - O)))
    bout = jnp.pad(params["bout"], ((0, 0), (0, Op - O)))

    # ---- pad x and put it time-major once (padded steps/rows are inert) ----
    x_pad = jnp.pad(x, ((0, Bp - B), (0, Tp - T), (0, 0)))
    x_tm = jnp.transpose(x_pad, (1, 0, 2))                 # (Tp, Bp, 768)
    lens_p = jnp.pad(lens, (0, Bp - B), constant_values=1).reshape(Bp, 1)

    out = pl.pallas_call(
        _fused_gru_kernel,
        out_shape=jax.ShapeDtypeStruct((Bp, Op), jnp.float32),
        grid=(Tp // Tc,),
        in_specs=[
            pl.BlockSpec((Tc, Bp, D), lambda c: (c, 0, 0)),   # x chunk (time-major)
            pl.BlockSpec((Bp, 1), lambda c: (0, 0)),          # lengths
            pl.BlockSpec((D, G), lambda c: (0, 0)),           # Wc (folded proj)
            pl.BlockSpec((1, G), lambda c: (0, 0)),           # bc
            pl.BlockSpec((Hp, G), lambda c: (0, 0)),          # Whh
            pl.BlockSpec((1, G), lambda c: (0, 0)),           # bhh
            pl.BlockSpec((Hp, Op), lambda c: (0, 0)),         # Wout
            pl.BlockSpec((1, Op), lambda c: (0, 0)),          # bout
        ],
        out_specs=pl.BlockSpec((Bp, Op), lambda c: (0, 0)),
        scratch_shapes=[
            pltpu.VMEM((Tc, Bp, G), jnp.float32),  # per-chunk input projection
            pltpu.VMEM((Bp, Hp), jnp.float32),     # h_t
            pltpu.VMEM((Bp, Hp), jnp.float32),     # gathered h at length-1
        ],
        compiler_params=pltpu.CompilerParams(
            # recurrence axis is sequential; scratch carries state across it
            dimension_semantics=("arbitrary",),
            vmem_limit_bytes=32 * 1024 * 1024,     # ~4 MB used; safe on v7x too
        ),
    )(x_tm, lens_p, Wc, bc, Whh, bhh, Wout, bout)

    return out[:B, :O]


# ---------------------------------------------------------------------------
# Pure-JAX reference (unfused, unpadded) for correctness check
# ---------------------------------------------------------------------------
def ref_forward(x, lengths, params):
    B, T, D = x.shape
    H = params["Whh_T"].shape[0]
    lengths = lengths.reshape(B).astype(jnp.int32)
    emb = x @ params["We_T"] + params["be"]
    xp = emb @ params["Wih_T"] + params["bih"]          # (B, T, 3H)

    def step(h, xt):
        hh = h @ params["Whh_T"] + params["bhh"]
        xr, xz, xn = jnp.split(xt, 3, axis=-1)
        hr, hz, hn = jnp.split(hh, 3, axis=-1)
        r = jax.nn.sigmoid(xr + hr)
        z = jax.nn.sigmoid(xz + hz)
        n = jnp.tanh(xn + r * hn)
        h_new = (1.0 - z) * n + z * h
        return h_new, h_new

    h0 = jnp.zeros((B, H), jnp.float32)
    _, hs = jax.lax.scan(step, h0, jnp.transpose(xp, (1, 0, 2)))  # (T, B, H)
    sel = hs[lengths - 1, jnp.arange(B)]                          # (B, H)
    return sel @ params["Wout_T"] + params["bout"]


if __name__ == "__main__":
    B, E, H, O = 2, 32, 32, 8          # batch, embedding_dim, hidden_dim, output_size

    key = jax.random.PRNGKey(0)
    ks = jax.random.split(key, 12)

    def u(k, shape, fan_in):
        bound = 1.0 / math.sqrt(fan_in)
        return jax.random.uniform(k, shape, jnp.float32, -bound, bound)

    params = {
        # embed_fc: Linear(768, E)  (stored transposed: y = x @ W^T + b)
        "We_T":  u(ks[0], (D_BERT, E), D_BERT),
        "be":    u(ks[1], (1, E), D_BERT),
        # GRU weight_ih_l0 (3H, E) / weight_hh_l0 (3H, H) / biases (3H,)
        "Wih_T": u(ks[2], (E, 3 * H), H),
        "bih":   u(ks[3], (1, 3 * H), H),
        "Whh_T": u(ks[4], (H, 3 * H), H),
        "bhh":   u(ks[5], (1, 3 * H), H),
        # output_fc: Linear(H, O)
        "Wout_T": u(ks[6], (H, O), H),
        "bout":  u(ks[7], (1, O), H),
    }

    # x stands for the ClinicalBERT pooled outputs already reshaped to (-1, 150, 768)
    x = jax.random.normal(ks[8], (B, T_SEQ, D_BERT), jnp.float32)
    lengths = jnp.array([[150], [87]], dtype=jnp.int32)   # (B, 1), like the torch input

    fwd = jax.jit(post_predictive_forward)
    out = jax.block_until_ready(fwd(x, lengths, params))
    ref = jax.block_until_ready(ref_forward(x, lengths, params))

    assert out.shape == (B, O)
    np.testing.assert_allclose(np.asarray(out), np.asarray(ref),
                               rtol=1e-3, atol=1e-3)
    print("KERNEL_OK")
</pallas_src>

<mosaic_0001>
module attributes {stable_mosaic.version = 11 : i64} {
  func.func @_fused_gru_kernel(%arg0: i32, %arg1: memref<30x8x768xf32, #tpu.memory_space<vmem>>, %arg2: memref<8x1xi32, #tpu.memory_space<vmem>>, %arg3: memref<768x384xf32, #tpu.memory_space<vmem>>, %arg4: memref<1x384xf32, #tpu.memory_space<vmem>>, %arg5: memref<128x384xf32, #tpu.memory_space<vmem>>, %arg6: memref<1x384xf32, #tpu.memory_space<vmem>>, %arg7: memref<128x128xf32, #tpu.memory_space<vmem>>, %arg8: memref<1x128xf32, #tpu.memory_space<vmem>>, %arg9: memref<8x128xf32, #tpu.memory_space<vmem>>, %arg10: memref<30x8x384xf32, #tpu.memory_space<vmem>>, %arg11: memref<8x128xf32, #tpu.memory_space<vmem>>, %arg12: memref<8x128xf32, #tpu.memory_space<vmem>>) attributes {dimension_semantics = [#tpu.dimension_semantics<arbitrary>], iteration_bounds = array<i64: 5>, scalar_prefetch = 0 : i64, scratch_operands = 3 : i64, tpu.core_type = #tpu.core_type<tc>, window_params = [{transform_indices = @transform_0, window_bounds = array<i64: 30, 8, 768>}, {pipeline_mode = #tpu.pipeline_mode<synchronous>, transform_indices = @transform_1, window_bounds = array<i64: 8, 1>}, {pipeline_mode = #tpu.pipeline_mode<synchronous>, transform_indices = @transform_2, window_bounds = array<i64: 768, 384>}, {pipeline_mode = #tpu.pipeline_mode<synchronous>, transform_indices = @transform_3, window_bounds = array<i64: 1, 384>}, {pipeline_mode = #tpu.pipeline_mode<synchronous>, transform_indices = @transform_4, window_bounds = array<i64: 128, 384>}, {pipeline_mode = #tpu.pipeline_mode<synchronous>, transform_indices = @transform_5, window_bounds = array<i64: 1, 384>}, {pipeline_mode = #tpu.pipeline_mode<synchronous>, transform_indices = @transform_6, window_bounds = array<i64: 128, 128>}, {pipeline_mode = #tpu.pipeline_mode<synchronous>, transform_indices = @transform_7, window_bounds = array<i64: 1, 128>}, {pipeline_mode = #tpu.pipeline_mode<synchronous>, transform_indices = @transform_8, window_bounds = array<i64: 8, 128>}]} {
    %c0_i32 = arith.constant 0 : i32
    %0 = arith.cmpi eq, %arg0, %c0_i32 : i32
    %1 = arith.extui %0 : i1 to i32
    %c0_i32_0 = arith.constant 0 : i32
    %2 = arith.cmpi ne, %1, %c0_i32_0 : i32
    scf.if %2 {
      %cst_238 = arith.constant 0.000000e+00 : f32
      %1163 = vector.broadcast %cst_238 : f32 to vector<8x128xf32>
      %c0_239 = arith.constant 0 : index
      %c0_240 = arith.constant 0 : index
      %1164 = vector.load %arg11[%c0_239, %c0_240] : memref<8x128xf32, #tpu.memory_space<vmem>>, vector<8x128xf32>
      tpu.vector_store %arg11[%c0_239, %c0_240], %1163 {strides = array<i32>} : memref<8x128xf32, #tpu.memory_space<vmem>>, vector<8x128xf32>,
      %cst_241 = arith.constant 0.000000e+00 : f32
      %1165 = vector.broadcast %cst_241 : f32 to vector<8x128xf32>
      %c0_242 = arith.constant 0 : index
      %c0_243 = arith.constant 0 : index
      %1166 = vector.load %arg12[%c0_242, %c0_243] : memref<8x128xf32, #tpu.memory_space<vmem>>, vector<8x128xf32>
      tpu.vector_store %arg12[%c0_242, %c0_243], %1165 {strides = array<i32>} : memref<8x128xf32, #tpu.memory_space<vmem>>, vector<8x128xf32>,
    } else {
    }
    %c0 = arith.constant 0 : index
    %c0_1 = arith.constant 0 : index
    %c0_2 = arith.constant 0 : index
    %3 = vector.load %arg1[%c0, %c0_1, %c0_2] : memref<30x8x768xf32, #tpu.memory_space<vmem>>, vector<30x8x768xf32>
    %4 = vector.shape_cast %3 : vector<30x8x768xf32> to vector<240x768xf32>
    %c0_3 = arith.constant 0 : index
    %c0_4 = arith.constant 0 : index
    %5 = vector.load %arg3[%c0_3, %c0_4] : memref<768x384xf32, #tpu.memory_space<vmem>>, vector<768x384xf32>
    %cst = arith.constant dense<0.000000e+00> : vector<240x384xf32>
    %6 = tpu.matmul %4, %5, %cst {dimension_numbers = #tpu.dot_dimension_numbers<[1], [0], [0], [1], [0, 0, 1, 1], [], []>} : vector<240x768xf32>, vector<768x384xf32>, vector<240x384xf32> -> vector<240x384xf32>
    %c0_5 = arith.constant 0 : index
    %c0_6 = arith.constant 0 : index
    %7 = vector.load %arg4[%c0_5, %c0_6] : memref<1x384xf32, #tpu.memory_space<vmem>>, vector<1x384xf32>
    %8 = vector.broadcast %7 : vector<1x384xf32> to vector<240x384xf32>
    %9 = arith.addf %6, %8 : vector<240x384xf32>
    %10 = vector.shape_cast %9 : vector<240x384xf32> to vector<30x8x384xf32>
    %c0_7 = arith.constant 0 : index
    %c0_8 = arith.constant 0 : index
    %c0_9 = arith.constant 0 : index
    %11 = vector.load %arg10[%c0_7, %c0_8, %c0_9] : memref<30x8x384xf32, #tpu.memory_space<vmem>>, vector<30x8x384xf32>
    tpu.vector_store %arg10[%c0_7, %c0_8, %c0_9], %10 {strides = array<i32>} : memref<30x8x384xf32, #tpu.memory_space<vmem>>, vector<30x8x384xf32>,
    %c0_10 = arith.constant 0 : index
    %c0_11 = arith.constant 0 : index
    %12 = vector.load %arg5[%c0_10, %c0_11] : memref<128x384xf32, #tpu.memory_space<vmem>>, vector<128x384xf32>
    %c0_12 = arith.constant 0 : index
    %c0_13 = arith.constant 0 : index
    %13 = vector.load %arg6[%c0_12, %c0_13] : memref<1x384xf32, #tpu.memory_space<vmem>>, vector<1x384xf32>
    %c0_14 = arith.constant 0 : index
    %c0_15 = arith.constant 0 : index
    %14 = vector.load %arg2[%c0_14, %c0_15] : memref<8x1xi32, #tpu.memory_space<vmem>>, vector<8x1xi32>
    %c30_i32 = arith.constant 30 : i32
    %15 = arith.muli %arg0, %c30_i32 : i32
    %c0_16 = arith.constant 0 : index
    %c0_17 = arith.constant 0 : index
    %16 = vector.load %arg11[%c0_16, %c0_17] : memref<8x128xf32, #tpu.memory_space<vmem>>, vector<8x128xf32>
    %c0_18 = arith.constant 0 : index
    %c0_19 = arith.constant 0 : index
    %17 = vector.load %arg12[%c0_18, %c0_19] : memref<8x128xf32, #tpu.memory_space<vmem>>, vector<8x128xf32>
    %c0_20 = arith.constant 0 : index
    %c0_21 = arith.constant 0 : index
    %c0_22 = arith.constant 0 : index
    %18 = vector.load %arg10[%c0_20, %c0_21, %c0_22] : memref<30x8x384xf32, #tpu.memory_space<vmem>>, vector<1x8x384xf32>
    %19 = vector.shape_cast %18 : vector<1x8x384xf32> to vector<8x384xf32>
    %cst_23 = arith.constant dense<0.000000e+00> : vector<8x384xf32>
    %20 = tpu.matmul %16, %12, %cst_23 {dimension_numbers = #tpu.dot_dimension_numbers<[1], [0], [0], [1], [0, 0, 1, 1], [], []>} : vector<8x128xf32>, vector<128x384xf32>, vector<8x384xf32> -> vector<8x384xf32>
    %21 = vector.broadcast %13 : vector<1x384xf32> to vector<8x384xf32>
    %22 = arith.addf %20, %21 : vector<8x384xf32>
    %23 = vector.extract_strided_slice %19 {offsets = [0, 0], sizes = [8, 128], strides = [1, 1]} : vector<8x384xf32> to vector<8x128xf32>
    %24 = vector.extract_strided_slice %22 {offsets = [0, 0], sizes = [8, 128], strides = [1, 1]} : vector<8x384xf32> to vector<8x128xf32>
    %25 = arith.addf %23, %24 : vector<8x128xf32>
    %26 = arith.negf %25 : vector<8x128xf32>
    %27 = math.exp %26 : vector<8x128xf32>
    %cst_24 = arith.constant 1.000000e+00 : f32
    %28 = vector.broadcast %cst_24 : f32 to vector<8x128xf32>
    %29 = arith.addf %28, %27 : vector<8x128xf32>
    %30 = arith.divf %28, %29 : vector<8x128xf32>
    %31 = vector.extract_strided_slice %19 {offsets = [0, 128], sizes = [8, 128], strides = [1, 1]} : vector<8x384xf32> to vector<8x128xf32>
    %32 = vector.extract_strided_slice %22 {offsets = [0, 128], sizes = [8, 128], strides = [1, 1]} : vector<8x384xf32> to vector<8x128xf32>
    %33 = arith.addf %31, %32 : vector<8x128xf32>
    %34 = arith.negf %33 : vector<8x128xf32>
    %35 = math.exp %34 : vector<8x128xf32>
    %cst_25 = arith.constant 1.000000e+00 : f32
    %36 = vector.broadcast %cst_25 : f32 to vector<8x128xf32>
    %37 = arith.addf %36, %35 : vector<8x128xf32>
    %38 = arith.divf %36, %37 : vector<8x128xf32>
    %39 = vector.extract_strided_slice %19 {offsets = [0, 256], sizes = [8, 128], strides = [1, 1]} : vector<8x384xf32> to vector<8x128xf32>
    %40 = vector.extract_strided_slice %22 {offsets = [0, 256], sizes = [8, 128], strides = [1, 1]} : vector<8x384xf32> to vector<8x128xf32>
    %41 = arith.mulf %30, %40 : vector<8x128xf32>
    %42 = arith.addf %39, %41 : vector<8x128xf32>
    %43 = math.tanh %42 : vector<8x128xf32>
    %cst_26 = arith.constant 1.000000e+00 : f32
    %44 = vector.broadcast %cst_26 : f32 to vector<8x128xf32>
    %45 = arith.subf %44, %38 : vector<8x128xf32>
    %46 = arith.mulf %45, %43 : vector<8x128xf32>
    %47 = arith.mulf %38, %16 : vector<8x128xf32>
    %48 = arith.addf %46, %47 : vector<8x128xf32>
    %c0_i32_27 = arith.constant 0 : i32
    %49 = arith.addi %15, %c0_i32_27 : i32
    %c1_i32 = arith.constant 1 : i32
    %50 = arith.addi %49, %c1_i32 : i32
    %51 = vector.broadcast %50 : i32 to vector<8x1xi32>
    %52 = arith.cmpi eq, %14, %51 : vector<8x1xi32>
    %53 = vector.shape_cast %52 : vector<8x1xi1> to vector<8x1xi1>
    %54 = vector.broadcast %53 : vector<8x1xi1> to vector<8x128xi1>
    %55 = arith.select %54, %48, %17 : vector<8x128xi1>, vector<8x128xf32>
    %c1 = arith.constant 1 : index
    %c0_28 = arith.constant 0 : index
    %c0_29 = arith.constant 0 : index
    %56 = vector.load %arg10[%c1, %c0_28, %c0_29] : memref<30x8x384xf32, #tpu.memory_space<vmem>>, vector<1x8x384xf32>
    %57 = vector.shape_cast %56 : vector<1x8x384xf32> to vector<8x384xf32>
    %cst_30 = arith.constant dense<0.000000e+00> : vector<8x384xf32>
    %58 = tpu.matmul %48, %12, %cst_30 {dimension_numbers = #tpu.dot_dimension_numbers<[1], [0], [0], [1], [0, 0, 1, 1], [], []>} : vector<8x128xf32>, vector<128x384xf32>, vector<8x384xf32> -> vector<8x384xf32>
    %59 = vector.broadcast %13 : vector<1x384xf32> to vector<8x384xf32>
    %60 = arith.addf %58, %59 : vector<8x384xf32>
    %61 = vector.extract_strided_slice %57 {offsets = [0, 0], sizes = [8, 128], strides = [1, 1]} : vector<8x384xf32> to vector<8x128xf32>
    %62 = vector.extract_strided_slice %60 {offsets = [0, 0], sizes = [8, 128], strides = [1, 1]} : vector<8x384xf32> to vector<8x128xf32>
    %63 = arith.addf %61, %62 : vector<8x128xf32>
    %64 = arith.negf %63 : vector<8x128xf32>
    %65 = math.exp %64 : vector<8x128xf32>
    %cst_31 = arith.constant 1.000000e+00 : f32
    %66 = vector.broadcast %cst_31 : f32 to vector<8x128xf32>
    %67 = arith.addf %66, %65 : vector<8x128xf32>
    %68 = arith.divf %66, %67 : vector<8x128xf32>
    %69 = vector.extract_strided_slice %57 {offsets = [0, 128], sizes = [8, 128], strides = [1, 1]} : vector<8x384xf32> to vector<8x128xf32>
    %70 = vector.extract_strided_slice %60 {offsets = [0, 128], sizes = [8, 128], strides = [1, 1]} : vector<8x384xf32> to vector<8x128xf32>
    %71 = arith.addf %69, %70 : vector<8x128xf32>
    %72 = arith.negf %71 : vector<8x128xf32>
    %73 = math.exp %72 : vector<8x128xf32>
    %cst_32 = arith.constant 1.000000e+00 : f32
    %74 = vector.broadcast %cst_32 : f32 to vector<8x128xf32>
    %75 = arith.addf %74, %73 : vector<8x128xf32>
    %76 = arith.divf %74, %75 : vector<8x128xf32>
    %77 = vector.extract_strided_slice %57 {offsets = [0, 256], sizes = [8, 128], strides = [1, 1]} : vector<8x384xf32> to vector<8x128xf32>
    %78 = vector.extract_strided_slice %60 {offsets = [0, 256], sizes = [8, 128], strides = [1, 1]} : vector<8x384xf32> to vector<8x128xf32>
    %79 = arith.mulf %68, %78 : vector<8x128xf32>
    %80 = arith.addf %77, %79 : vector<8x128xf32>
    %81 = math.tanh %80 : vector<8x128xf32>
    %cst_33 = arith.constant 1.000000e+00 : f32
    %82 = vector.broadcast %cst_33 : f32 to vector<8x128xf32>
    %83 = arith.subf %82, %76 : vector<8x128xf32>
    %84 = arith.mulf %83, %81 : vector<8x128xf32>
    %85 = arith.mulf %76, %48 : vector<8x128xf32>
    %86 = arith.addf %84, %85 : vector<8x128xf32>
    %c1_i32_34 = arith.constant 1 : i32
    %87 = arith.addi %15, %c1_i32_34 : i32
    %c1_i32_35 = arith.constant 1 : i32
    %88 = arith.addi %87, %c1_i32_35 : i32
    %89 = vector.broadcast %88 : i32 to vector<8x1xi32>
    %90 = arith.cmpi eq, %14, %89 : vector<8x1xi32>
    %91 = vector.shape_cast %90 : vector<8x1xi1> to vector<8x1xi1>
    %92 = vector.broadcast %91 : vector<8x1xi1> to vector<8x128xi1>
    %93 = arith.select %92, %86, %55 : vector<8x128xi1>, vector<8x128xf32>
    %c2 = arith.constant 2 : index
    %c0_36 = arith.constant 0 : index
    %c0_37 = arith.constant 0 : index
    %94 = vector.load %arg10[%c2, %c0_36, %c0_37] : memref<30x8x384xf32, #tpu.memory_space<vmem>>, vector<1x8x384xf32>
    %95 = vector.shape_cast %94 : vector<1x8x384xf32> to vector<8x384xf32>
    %cst_38 = arith.constant dense<0.000000e+00> : vector<8x384xf32>
    %96 = tpu.matmul %86, %12, %cst_38 {dimension_numbers = #tpu.dot_dimension_numbers<[1], [0], [0], [1], [0, 0, 1, 1], [], []>} : vector<8x128xf32>, vector<128x384xf32>, vector<8x384xf32> -> vector<8x384xf32>
    %97 = vector.broadcast %13 : vector<1x384xf32> to vector<8x384xf32>
    %98 = arith.addf %96, %97 : vector<8x384xf32>
    %99 = vector.extract_strided_slice %95 {offsets = [0, 0], sizes = [8, 128], strides = [1, 1]} : vector<8x384xf32> to vector<8x128xf32>
    %100 = vector.extract_strided_slice %98 {offsets = [0, 0], sizes = [8, 128], strides = [1, 1]} : vector<8x384xf32> to vector<8x128xf32>
    %101 = arith.addf %99, %100 : vector<8x128xf32>
    %102 = arith.negf %101 : vector<8x128xf32>
    %103 = math.exp %102 : vector<8x128xf32>
    %cst_39 = arith.constant 1.000000e+00 : f32
    %104 = vector.broadcast %cst_39 : f32 to vector<8x128xf32>
    %105 = arith.addf %104, %103 : vector<8x128xf32>
    %106 = arith.divf %104, %105 : vector<8x128xf32>
    %107 = vector.extract_strided_slice %95 {offsets = [0, 128], sizes = [8, 128], strides = [1, 1]} : vector<8x384xf32> to vector<8x128xf32>
    %108 = vector.extract_strided_slice %98 {offsets = [0, 128], sizes = [8, 128], strides = [1, 1]} : vector<8x384xf32> to vector<8x128xf32>
    %109 = arith.addf %107, %108 : vector<8x128xf32>
    %110 = arith.negf %109 : vector<8x128xf32>
    %111 = math.exp %110 : vector<8x128xf32>
    %cst_40 = arith.constant 1.000000e+00 : f32
    %112 = vector.broadcast %cst_40 : f32 to vector<8x128xf32>
    %113 = arith.addf %112, %111 : vector<8x128xf32>
    %114 = arith.divf %112, %113 : vector<8x128xf32>
    %115 = vector.extract_strided_slice %95 {offsets = [0, 256], sizes = [8, 128], strides = [1, 1]} : vector<8x384xf32> to vector<8x128xf32>
    %116 = vector.extract_strided_slice %98 {offsets = [0, 256], sizes = [8, 128], strides = [1, 1]} : vector<8x384xf32> to vector<8x128xf32>
    %117 = arith.mulf %106, %116 : vector<8x128xf32>
    %118 = arith.addf %115, %117 : vector<8x128xf32>
    %119 = math.tanh %118 : vector<8x128xf32>
    %cst_41 = arith.constant 1.000000e+00 : f32
    %120 = vector.broadcast %cst_41 : f32 to vector<8x128xf32>
    %121 = arith.subf %120, %114 : vector<8x128xf32>
    %122 = arith.mulf %121, %119 : vector<8x128xf32>
    %123 = arith.mulf %114, %86 : vector<8x128xf32>
    %124 = arith.addf %122, %123 : vector<8x128xf32>
    %c2_i32 = arith.constant 2 : i32
    %125 = arith.addi %15, %c2_i32 : i32
    %c1_i32_42 = arith.constant 1 : i32
    %126 = arith.addi %125, %c1_i32_42 : i32
    %127 = vector.broadcast %126 : i32 to vector<8x1xi32>
    %128 = arith.cmpi eq, %14, %127 : vector<8x1xi32>
    %129 = vector.shape_cast %128 : vector<8x1xi1> to vector<8x1xi1>
    %130 = vector.broadcast %129 : vector<8x1xi1> to vector<8x128xi1>
    %131 = arith.select %130, %124, %93 : vector<8x128xi1>, vector<8x128xf32>
    %c3 = arith.constant 3 : index
    %c0_43 = arith.constant 0 : index
    %c0_44 = arith.constant 0 : index
    %132 = vector.load %arg10[%c3, %c0_43, %c0_44] : memref<30x8x384xf32, #tpu.memory_space<vmem>>, vector<1x8x384xf32>
    %133 = vector.shape_cast %132 : vector<1x8x384xf32> to vector<8x384xf32>
    %cst_45 = arith.constant dense<0.000000e+00> : vector<8x384xf32>
    %134 = tpu.matmul %124, %12, %cst_45 {dimension_numbers = #tpu.dot_dimension_numbers<[1], [0], [0], [1], [0, 0, 1, 1], [], []>} : vector<8x128xf32>, vector<128x384xf32>, vector<8x384xf32> -> vector<8x384xf32>
    %135 = vector.broadcast %13 : vector<1x384xf32> to vector<8x384xf32>
    %136 = arith.addf %134, %135 : vector<8x384xf32>
    %137 = vector.extract_strided_slice %133 {offsets = [0, 0], sizes = [8, 128], strides = [1, 1]} : vector<8x384xf32> to vector<8x128xf32>
    %138 = vector.extract_strided_slice %136 {offsets = [0, 0], sizes = [8, 128], strides = [1, 1]} : vector<8x384xf32> to vector<8x128xf32>
    %139 = arith.addf %137, %138 : vector<8x128xf32>
    %140 = arith.negf %139 : vector<8x128xf32>
    %141 = math.exp %140 : vector<8x128xf32>
    %cst_46 = arith.constant 1.000000e+00 : f32
    %142 = vector.broadcast %cst_46 : f32 to vector<8x128xf32>
    %143 = arith.addf %142, %141 : vector<8x128xf32>
    %144 = arith.divf %142, %143 : vector<8x128xf32>
    %145 = vector.extract_strided_slice %133 {offsets = [0, 128], sizes = [8, 128], strides = [1, 1]} : vector<8x384xf32> to vector<8x128xf32>
    %146 = vector.extract_strided_slice %136 {offsets = [0, 128], sizes = [8, 128], strides = [1, 1]} : vector<8x384xf32> to vector<8x128xf32>
    %147 = arith.addf %145, %146 : vector<8x128xf32>
    %148 = arith.negf %147 : vector<8x128xf32>
    %149 = math.exp %148 : vector<8x128xf32>
    %cst_47 = arith.constant 1.000000e+00 : f32
    %150 = vector.broadcast %cst_47 : f32 to vector<8x128xf32>
    %151 = arith.addf %150, %149 : vector<8x128xf32>
    %152 = arith.divf %150, %151 : vector<8x128xf32>
    %153 = vector.extract_strided_slice %133 {offsets = [0, 256], sizes = [8, 128], strides = [1, 1]} : vector<8x384xf32> to vector<8x128xf32>
    %154 = vector.extract_strided_slice %136 {offsets = [0, 256], sizes = [8, 128], strides = [1, 1]} : vector<8x384xf32> to vector<8x128xf32>
    %155 = arith.mulf %144, %154 : vector<8x128xf32>
    %156 = arith.addf %153, %155 : vector<8x128xf32>
    %157 = math.tanh %156 : vector<8x128xf32>
    %cst_48 = arith.constant 1.000000e+00 : f32
    %158 = vector.broadcast %cst_48 : f32 to vector<8x128xf32>
    %159 = arith.subf %158, %152 : vector<8x128xf32>
    %160 = arith.mulf %159, %157 : vector<8x128xf32>
    %161 = arith.mulf %152, %124 : vector<8x128xf32>
    %162 = arith.addf %160, %161 : vector<8x128xf32>
    %c3_i32 = arith.constant 3 : i32
    %163 = arith.addi %15, %c3_i32 : i32
    %c1_i32_49 = arith.constant 1 : i32
    %164 = arith.addi %163, %c1_i32_49 : i32
    %165 = vector.broadcast %164 : i32 to vector<8x1xi32>
    %166 = arith.cmpi eq, %14, %165 : vector<8x1xi32>
    %167 = vector.shape_cast %166 : vector<8x1xi1> to vector<8x1xi1>
    %168 = vector.broadcast %167 : vector<8x1xi1> to vector<8x128xi1>
    %169 = arith.select %168, %162, %131 : vector<8x128xi1>, vector<8x128xf32>
    %c4 = arith.constant 4 : index
    %c0_50 = arith.constant 0 : index
    %c0_51 = arith.constant 0 : index
    %170 = vector.load %arg10[%c4, %c0_50, %c0_51] : memref<30x8x384xf32, #tpu.memory_space<vmem>>, vector<1x8x384xf32>
    %171 = vector.shape_cast %170 : vector<1x8x384xf32> to vector<8x384xf32>
    %cst_52 = arith.constant dense<0.000000e+00> : vector<8x384xf32>
    %172 = tpu.matmul %162, %12, %cst_52 {dimension_numbers = #tpu.dot_dimension_numbers<[1], [0], [0], [1], [0, 0, 1, 1], [], []>} : vector<8x128xf32>, vector<128x384xf32>, vector<8x384xf32> -> vector<8x384xf32>
    %173 = vector.broadcast %13 : vector<1x384xf32> to vector<8x384xf32>
    %174 = arith.addf %172, %173 : vector<8x384xf32>
    %175 = vector.extract_strided_slice %171 {offsets = [0, 0], sizes = [8, 128], strides = [1, 1]} : vector<8x384xf32> to vector<8x128xf32>
    %176 = vector.extract_strided_slice %174 {offsets = [0, 0], sizes = [8, 128], strides = [1, 1]} : vector<8x384xf32> to vector<8x128xf32>
    %177 = arith.addf %175, %176 : vector<8x128xf32>
    %178 = arith.negf %177 : vector<8x128xf32>
    %179 = math.exp %178 : vector<8x128xf32>
    %cst_53 = arith.constant 1.000000e+00 : f32
    %180 = vector.broadcast %cst_53 : f32 to vector<8x128xf32>
    %181 = arith.addf %180, %179 : vector<8x128xf32>
    %182 = arith.divf %180, %181 : vector<8x128xf32>
    %183 = vector.extract_strided_slice %171 {offsets = [0, 128], sizes = [8, 128], strides = [1, 1]} : vector<8x384xf32> to vector<8x128xf32>
    %184 = vector.extract_strided_slice %174 {offsets = [0, 128], sizes = [8, 128], strides = [1, 1]} : vector<8x384xf32> to vector<8x128xf32>
    %185 = arith.addf %183, %184 : vector<8x128xf32>
    %186 = arith.negf %185 : vector<8x128xf32>
    %187 = math.exp %186 : vector<8x128xf32>
    %cst_54 = arith.constant 1.000000e+00 : f32
    %188 = vector.broadcast %cst_54 : f32 to vector<8x128xf32>
    %189 = arith.addf %188, %187 : vector<8x128xf32>
    %190 = arith.divf %188, %189 : vector<8x128xf32>
    %191 = vector.extract_strided_slice %171 {offsets = [0, 256], sizes = [8, 128], strides = [1, 1]} : vector<8x384xf32> to vector<8x128xf32>
    %192 = vector.extract_strided_slice %174 {offsets = [0, 256], sizes = [8, 128], strides = [1, 1]} : vector<8x384xf32> to vector<8x128xf32>
    %193 = arith.mulf %182, %192 : vector<8x128xf32>
    %194 = arith.addf %191, %193 : vector<8x128xf32>
    %195 = math.tanh %194 : vector<8x128xf32>
    %cst_55 = arith.constant 1.000000e+00 : f32
    %196 = vector.broadcast %cst_55 : f32 to vector<8x128xf32>
    %197 = arith.subf %196, %190 : vector<8x128xf32>
    %198 = arith.mulf %197, %195 : vector<8x128xf32>
    %199 = arith.mulf %190, %162 : vector<8x128xf32>
    %200 = arith.addf %198, %199 : vector<8x128xf32>
    %c4_i32 = arith.constant 4 : i32
    %201 = arith.addi %15, %c4_i32 : i32
    %c1_i32_56 = arith.constant 1 : i32
    %202 = arith.addi %201, %c1_i32_56 : i32
    %203 = vector.broadcast %202 : i32 to vector<8x1xi32>
    %204 = arith.cmpi eq, %14, %203 : vector<8x1xi32>
    %205 = vector.shape_cast %204 : vector<8x1xi1> to vector<8x1xi1>
    %206 = vector.broadcast %205 : vector<8x1xi1> to vector<8x128xi1>
    %207 = arith.select %206, %200, %169 : vector<8x128xi1>, vector<8x128xf32>
    %c5 = arith.constant 5 : index
    %c0_57 = arith.constant 0 : index
    %c0_58 = arith.constant 0 : index
    %208 = vector.load %arg10[%c5, %c0_57, %c0_58] : memref<30x8x384xf32, #tpu.memory_space<vmem>>, vector<1x8x384xf32>
    %209 = vector.shape_cast %208 : vector<1x8x384xf32> to vector<8x384xf32>
    %cst_59 = arith.constant dense<0.000000e+00> : vector<8x384xf32>
    %210 = tpu.matmul %200, %12, %cst_59 {dimension_numbers = #tpu.dot_dimension_numbers<[1], [0], [0], [1], [0, 0, 1, 1], [], []>} : vector<8x128xf32>, vector<128x384xf32>, vector<8x384xf32> -> vector<8x384xf32>
    %211 = vector.broadcast %13 : vector<1x384xf32> to vector<8x384xf32>
    %212 = arith.addf %210, %211 : vector<8x384xf32>
    %213 = vector.extract_strided_slice %209 {offsets = [0, 0], sizes = [8, 128], strides = [1, 1]} : vector<8x384xf32> to vector<8x128xf32>
    %214 = vector.extract_strided_slice %212 {offsets = [0, 0], sizes = [8, 128], strides = [1, 1]} : vector<8x384xf32> to vector<8x128xf32>
    %215 = arith.addf %213, %214 : vector<8x128xf32>
    %216 = arith.negf %215 : vector<8x128xf32>
    %217 = math.exp %216 : vector<8x128xf32>
    %cst_60 = arith.constant 1.000000e+00 : f32
    %218 = vector.broadcast %cst_60 : f32 to vector<8x128xf32>
    %219 = arith.addf %218, %217 : vector<8x128xf32>
    %220 = arith.divf %218, %219 : vector<8x128xf32>
    %221 = vector.extract_strided_slice %209 {offsets = [0, 128], sizes = [8, 128], strides = [1, 1]} : vector<8x384xf32> to vector<8x128xf32>
    %222 = vector.extract_strided_slice %212 {offsets = [0, 128], sizes = [8, 128], strides = [1, 1]} : vector<8x384xf32> to vector<8x128xf32>
    %223 = arith.addf %221, %222 : vector<8x128xf32>
    %224 = arith.negf %223 : vector<8x128xf32>
    %225 = math.exp %224 : vector<8x128xf32>
    %cst_61 = arith.constant 1.000000e+00 : f32
    %226 = vector.broadcast %cst_61 : f32 to vector<8x128xf32>
    %227 = arith.addf %226, %225 : vector<8x128xf32>
    %228 = arith.divf %226, %227 : vector<8x128xf32>
    %229 = vector.extract_strided_slice %209 {offsets = [0, 256], sizes = [8, 128], strides = [1, 1]} : vector<8x384xf32> to vector<8x128xf32>
    %230 = vector.extract_strided_slice %212 {offsets = [0, 256], sizes = [8, 128], strides = [1, 1]} : vector<8x384xf32> to vector<8x128xf32>
    %231 = arith.mulf %220, %230 : vector<8x128xf32>
    %232 = arith.addf %229, %231 : vector<8x128xf32>
    %233 = math.tanh %232 : vector<8x128xf32>
    %cst_62 = arith.constant 1.000000e+00 : f32
    %234 = vector.broadcast %cst_62 : f32 to vector<8x128xf32>
    %235 = arith.subf %234, %228 : vector<8x128xf32>
    %236 = arith.mulf %235, %233 : vector<8x128xf32>
    %237 = arith.mulf %228, %200 : vector<8x128xf32>
    %238 = arith.addf %236, %237 : vector<8x128xf32>
    %c5_i32 = arith.constant 5 : i32
    %239 = arith.addi %15, %c5_i32 : i32
    %c1_i32_63 = arith.constant 1 : i32
    %240 = arith.addi %239, %c1_i32_63 : i32
    %241 = vector.broadcast %240 : i32 to vector<8x1xi32>
    %242 = arith.cmpi eq, %14, %241 : vector<8x1xi32>
    %243 = vector.shape_cast %242 : vector<8x1xi1> to vector<8x1xi1>
    %244 = vector.broadcast %243 : vector<8x1xi1> to vector<8x128xi1>
    %245 = arith.select %244, %238, %207 : vector<8x128xi1>, vector<8x128xf32>
    %c6 = arith.constant 6 : index
    %c0_64 = arith.constant 0 : index
    %c0_65 = arith.constant 0 : index
    %246 = vector.load %arg10[%c6, %c0_64, %c0_65] : memref<30x8x384xf32, #tpu.memory_space<vmem>>, vector<1x8x384xf32>
    %247 = vector.shape_cast %246 : vector<1x8x384xf32> to vector<8x384xf32>
    %cst_66 = arith.constant dense<0.000000e+00> : vector<8x384xf32>
    %248 = tpu.matmul %238, %12, %cst_66 {dimension_numbers = #tpu.dot_dimension_numbers<[1], [0], [0], [1], [0, 0, 1, 1], [], []>} : vector<8x128xf32>, vector<128x384xf32>, vector<8x384xf32> -> vector<8x384xf32>
    %249 = vector.broadcast %13 : vector<1x384xf32> to vector<8x384xf32>
    %250 = arith.addf %248, %249 : vector<8x384xf32>
    %251 = vector.extract_strided_slice %247 {offsets = [0, 0], sizes = [8, 128], strides = [1, 1]} : vector<8x384xf32> to vector<8x128xf32>
    %252 = vector.extract_strided_slice %250 {offsets = [0, 0], sizes = [8, 128], strides = [1, 1]} : vector<8x384xf32> to vector<8x128xf32>
    %253 = arith.addf %251, %252 : vector<8x128xf32>
    %254 = arith.negf %253 : vector<8x128xf32>
    %255 = math.exp %254 : vector<8x128xf32>
    %cst_67 = arith.constant 1.000000e+00 : f32
    %256 = vector.broadcast %cst_67 : f32 to vector<8x128xf32>
    %257 = arith.addf %256, %255 : vector<8x128xf32>
    %258 = arith.divf %256, %257 : vector<8x128xf32>
    %259 = vector.extract_strided_slice %247 {offsets = [0, 128], sizes = [8, 128], strides = [1, 1]} : vector<8x384xf32> to vector<8x128xf32>
    %260 = vector.extract_strided_slice %250 {offsets = [0, 128], sizes = [8, 128], strides = [1, 1]} : vector<8x384xf32> to vector<8x128xf32>
    %261 = arith.addf %259, %260 : vector<8x128xf32>
    %262 = arith.negf %261 : vector<8x128xf32>
    %263 = math.exp %262 : vector<8x128xf32>
    %cst_68 = arith.constant 1.000000e+00 : f32
    %264 = vector.broadcast %cst_68 : f32 to vector<8x128xf32>
    %265 = arith.addf %264, %263 : vector<8x128xf32>
    %266 = arith.divf %264, %265 : vector<8x128xf32>
    %267 = vector.extract_strided_slice %247 {offsets = [0, 256], sizes = [8, 128], strides = [1, 1]} : vector<8x384xf32> to vector<8x128xf32>
    %268 = vector.extract_strided_slice %250 {offsets = [0, 256], sizes = [8, 128], strides = [1, 1]} : vector<8x384xf32> to vector<8x128xf32>
    %269 = arith.mulf %258, %268 : vector<8x128xf32>
    %270 = arith.addf %267, %269 : vector<8x128xf32>
    %271 = math.tanh %270 : vector<8x128xf32>
    %cst_69 = arith.constant 1.000000e+00 : f32
    %272 = vector.broadcast %cst_69 : f32 to vector<8x128xf32>
    %273 = arith.subf %272, %266 : vector<8x128xf32>
    %274 = arith.mulf %273, %271 : vector<8x128xf32>
    %275 = arith.mulf %266, %238 : vector<8x128xf32>
    %276 = arith.addf %274, %275 : vector<8x128xf32>
    %c6_i32 = arith.constant 6 : i32
    %277 = arith.addi %15, %c6_i32 : i32
    %c1_i32_70 = arith.constant 1 : i32
    %278 = arith.addi %277, %c1_i32_70 : i32
    %279 = vector.broadcast %278 : i32 to vector<8x1xi32>
    %280 = arith.cmpi eq, %14, %279 : vector<8x1xi32>
    %281 = vector.shape_cast %280 : vector<8x1xi1> to vector<8x1xi1>
    %282 = vector.broadcast %281 : vector<8x1xi1> to vector<8x128xi1>
    %283 = arith.select %282, %276, %245 : vector<8x128xi1>, vector<8x128xf32>
    %c7 = arith.constant 7 : index
    %c0_71 = arith.constant 0 : index
    %c0_72 = arith.constant 0 : index
    %284 = vector.load %arg10[%c7, %c0_71, %c0_72] : memref<30x8x384xf32, #tpu.memory_space<vmem>>, vector<1x8x384xf32>
    %285 = vector.shape_cast %284 : vector<1x8x384xf32> to vector<8x384xf32>
    %cst_73 = arith.constant dense<0.000000e+00> : vector<8x384xf32>
    %286 = tpu.matmul %276, %12, %cst_73 {dimension_numbers = #tpu.dot_dimension_numbers<[1], [0], [0], [1], [0, 0, 1, 1], [], []>} : vector<8x128xf32>, vector<128x384xf32>, vector<8x384xf32> -> vector<8x384xf32>
    %287 = vector.broadcast %13 : vector<1x384xf32> to vector<8x384xf32>
    %288 = arith.addf %286, %287 : vector<8x384xf32>
    %289 = vector.extract_strided_slice %285 {offsets = [0, 0], sizes = [8, 128], strides = [1, 1]} : vector<8x384xf32> to vector<8x128xf32>
    %290 = vector.extract_strided_slice %288 {offsets = [0, 0], sizes = [8, 128], strides = [1, 1]} : vector<8x384xf32> to vector<8x128xf32>
    %291 = arith.addf %289, %290 : vector<8x128xf32>
    %292 = arith.negf %291 : vector<8x128xf32>
    %293 = math.exp %292 : vector<8x128xf32>
    %cst_74 = arith.constant 1.000000e+00 : f32
    %294 = vector.broadcast %cst_74 : f32 to vector<8x128xf32>
    %295 = arith.addf %294, %293 : vector<8x128xf32>
    %296 = arith.divf %294, %295 : vector<8x128xf32>
    %297 = vector.extract_strided_slice %285 {offsets = [0, 128], sizes = [8, 128], strides = [1, 1]} : vector<8x384xf32> to vector<8x128xf32>
    %298 = vector.extract_strided_slice %288 {offsets = [0, 128], sizes = [8, 128], strides = [1, 1]} : vector<8x384xf32> to vector<8x128xf32>
    %299 = arith.addf %297, %298 : vector<8x128xf32>
    %300 = arith.negf %299 : vector<8x128xf32>
    %301 = math.exp %300 : vector<8x128xf32>
    %cst_75 = arith.constant 1.000000e+00 : f32
    %302 = vector.broadcast %cst_75 : f32 to vector<8x128xf32>
    %303 = arith.addf %302, %301 : vector<8x128xf32>
    %304 = arith.divf %302, %303 : vector<8x128xf32>
    %305 = vector.extract_strided_slice %285 {offsets = [0, 256], sizes = [8, 128], strides = [1, 1]} : vector<8x384xf32> to vector<8x128xf32>
    %306 = vector.extract_strided_slice %288 {offsets = [0, 256], sizes = [8, 128], strides = [1, 1]} : vector<8x384xf32> to vector<8x128xf32>
    %307 = arith.mulf %296, %306 : vector<8x128xf32>
    %308 = arith.addf %305, %307 : vector<8x128xf32>
    %309 = math.tanh %308 : vector<8x128xf32>
    %cst_76 = arith.constant 1.000000e+00 : f32
    %310 = vector.broadcast %cst_76 : f32 to vector<8x128xf32>
    %311 = arith.subf %310, %304 : vector<8x128xf32>
    %312 = arith.mulf %311, %309 : vector<8x128xf32>
    %313 = arith.mulf %304, %276 : vector<8x128xf32>
    %314 = arith.addf %312, %313 : vector<8x128xf32>
    %c7_i32 = arith.constant 7 : i32
    %315 = arith.addi %15, %c7_i32 : i32
    %c1_i32_77 = arith.constant 1 : i32
    %316 = arith.addi %315, %c1_i32_77 : i32
    %317 = vector.broadcast %316 : i32 to vector<8x1xi32>
    %318 = arith.cmpi eq, %14, %317 : vector<8x1xi32>
    %319 = vector.shape_cast %318 : vector<8x1xi1> to vector<8x1xi1>
    %320 = vector.broadcast %319 : vector<8x1xi1> to vector<8x128xi1>
    %321 = arith.select %320, %314, %283 : vector<8x128xi1>, vector<8x128xf32>
    %c8 = arith.constant 8 : index
    %c0_78 = arith.constant 0 : index
    %c0_79 = arith.constant 0 : index
    %322 = vector.load %arg10[%c8, %c0_78, %c0_79] : memref<30x8x384xf32, #tpu.memory_space<vmem>>, vector<1x8x384xf32>
    %323 = vector.shape_cast %322 : vector<1x8x384xf32> to vector<8x384xf32>
    %cst_80 = arith.constant dense<0.000000e+00> : vector<8x384xf32>
    %324 = tpu.matmul %314, %12, %cst_80 {dimension_numbers = #tpu.dot_dimension_numbers<[1], [0], [0], [1], [0, 0, 1, 1], [], []>} : vector<8x128xf32>, vector<128x384xf32>, vector<8x384xf32> -> vector<8x384xf32>
    %325 = vector.broadcast %13 : vector<1x384xf32> to vector<8x384xf32>
    %326 = arith.addf %324, %325 : vector<8x384xf32>
    %327 = vector.extract_strided_slice %323 {offsets = [0, 0], sizes = [8, 128], strides = [1, 1]} : vector<8x384xf32> to vector<8x128xf32>
    %328 = vector.extract_strided_slice %326 {offsets = [0, 0], sizes = [8, 128], strides = [1, 1]} : vector<8x384xf32> to vector<8x128xf32>
    %329 = arith.addf %327, %328 : vector<8x128xf32>
    %330 = arith.negf %329 : vector<8x128xf32>
    %331 = math.exp %330 : vector<8x128xf32>
    %cst_81 = arith.constant 1.000000e+00 : f32
    %332 = vector.broadcast %cst_81 : f32 to vector<8x128xf32>
    %333 = arith.addf %332, %331 : vector<8x128xf32>
    %334 = arith.divf %332, %333 : vector<8x128xf32>
    %335 = vector.extract_strided_slice %323 {offsets = [0, 128], sizes = [8, 128], strides = [1, 1]} : vector<8x384xf32> to vector<8x128xf32>
    %336 = vector.extract_strided_slice %326 {offsets = [0, 128], sizes = [8, 128], strides = [1, 1]} : vector<8x384xf32> to vector<8x128xf32>
    %337 = arith.addf %335, %336 : vector<8x128xf32>
    %338 = arith.negf %337 : vector<8x128xf32>
    %339 = math.exp %338 : vector<8x128xf32>
    %cst_82 = arith.constant 1.000000e+00 : f32
    %340 = vector.broadcast %cst_82 : f32 to vector<8x128xf32>
    %341 = arith.addf %340, %339 : vector<8x128xf32>
    %342 = arith.divf %340, %341 : vector<8x128xf32>
    %343 = vector.extract_strided_slice %323 {offsets = [0, 256], sizes = [8, 128], strides = [1, 1]} : vector<8x384xf32> to vector<8x128xf32>
    %344 = vector.extract_strided_slice %326 {offsets = [0, 256], sizes = [8, 128], strides = [1, 1]} : vector<8x384xf32> to vector<8x128xf32>
    %345 = arith.mulf %334, %344 : vector<8x128xf32>
    %346 = arith.addf %343, %345 : vector<8x128xf32>
    %347 = math.tanh %346 : vector<8x128xf32>
    %cst_83 = arith.constant 1.000000e+00 : f32
    %348 = vector.broadcast %cst_83 : f32 to vector<8x128xf32>
    %349 = arith.subf %348, %342 : vector<8x128xf32>
    %350 = arith.mulf %349, %347 : vector<8x128xf32>
    %351 = arith.mulf %342, %314 : vector<8x128xf32>
    %352 = arith.addf %350, %351 : vector<8x128xf32>
    %c8_i32 = arith.constant 8 : i32
    %353 = arith.addi %15, %c8_i32 : i32
    %c1_i32_84 = arith.constant 1 : i32
    %354 = arith.addi %353, %c1_i32_84 : i32
    %355 = vector.broadcast %354 : i32 to vector<8x1xi32>
    %356 = arith.cmpi eq, %14, %355 : vector<8x1xi32>
    %357 = vector.shape_cast %356 : vector<8x1xi1> to vector<8x1xi1>
    %358 = vector.broadcast %357 : vector<8x1xi1> to vector<8x128xi1>
    %359 = arith.select %358, %352, %321 : vector<8x128xi1>, vector<8x128xf32>
    %c9 = arith.constant 9 : index
    %c0_85 = arith.constant 0 : index
    %c0_86 = arith.constant 0 : index
    %360 = vector.load %arg10[%c9, %c0_85, %c0_86] : memref<30x8x384xf32, #tpu.memory_space<vmem>>, vector<1x8x384xf32>
    %361 = vector.shape_cast %360 : vector<1x8x384xf32> to vector<8x384xf32>
    %cst_87 = arith.constant dense<0.000000e+00> : vector<8x384xf32>
    %362 = tpu.matmul %352, %12, %cst_87 {dimension_numbers = #tpu.dot_dimension_numbers<[1], [0], [0], [1], [0, 0, 1, 1], [], []>} : vector<8x128xf32>, vector<128x384xf32>, vector<8x384xf32> -> vector<8x384xf32>
    %363 = vector.broadcast %13 : vector<1x384xf32> to vector<8x384xf32>
    %364 = arith.addf %362, %363 : vector<8x384xf32>
    %365 = vector.extract_strided_slice %361 {offsets = [0, 0], sizes = [8, 128], strides = [1, 1]} : vector<8x384xf32> to vector<8x128xf32>
    %366 = vector.extract_strided_slice %364 {offsets = [0, 0], sizes = [8, 128], strides = [1, 1]} : vector<8x384xf32> to vector<8x128xf32>
    %367 = arith.addf %365, %366 : vector<8x128xf32>
    %368 = arith.negf %367 : vector<8x128xf32>
    %369 = math.exp %368 : vector<8x128xf32>
    %cst_88 = arith.constant 1.000000e+00 : f32
    %370 = vector.broadcast %cst_88 : f32 to vector<8x128xf32>
    %371 = arith.addf %370, %369 : vector<8x128xf32>
    %372 = arith.divf %370, %371 : vector<8x128xf32>
    %373 = vector.extract_strided_slice %361 {offsets = [0, 128], sizes = [8, 128], strides = [1, 1]} : vector<8x384xf32> to vector<8x128xf32>
    %374 = vector.extract_strided_slice %364 {offsets = [0, 128], sizes = [8, 128], strides = [1, 1]} : vector<8x384xf32> to vector<8x128xf32>
    %375 = arith.addf %373, %374 : vector<8x128xf32>
    %376 = arith.negf %375 : vector<8x128xf32>
    %377 = math.exp %376 : vector<8x128xf32>
    %cst_89 = arith.constant 1.000000e+00 : f32
    %378 = vector.broadcast %cst_89 : f32 to vector<8x128xf32>
    %379 = arith.addf %378, %377 : vector<8x128xf32>
    %380 = arith.divf %378, %379 : vector<8x128xf32>
    %381 = vector.extract_strided_slice %361 {offsets = [0, 256], sizes = [8, 128], strides = [1, 1]} : vector<8x384xf32> to vector<8x128xf32>
    %382 = vector.extract_strided_slice %364 {offsets = [0, 256], sizes = [8, 128], strides = [1, 1]} : vector<8x384xf32> to vector<8x128xf32>
    %383 = arith.mulf %372, %382 : vector<8x128xf32>
    %384 = arith.addf %381, %383 : vector<8x128xf32>
    %385 = math.tanh %384 : vector<8x128xf32>
    %cst_90 = arith.constant 1.000000e+00 : f32
    %386 = vector.broadcast %cst_90 : f32 to vector<8x128xf32>
    %387 = arith.subf %386, %380 : vector<8x128xf32>
    %388 = arith.mulf %387, %385 : vector<8x128xf32>
    %389 = arith.mulf %380, %352 : vector<8x128xf32>
    %390 = arith.addf %388, %389 : vector<8x128xf32>
    %c9_i32 = arith.constant 9 : i32
    %391 = arith.addi %15, %c9_i32 : i32
    %c1_i32_91 = arith.constant 1 : i32
    %392 = arith.addi %391, %c1_i32_91 : i32
    %393 = vector.broadcast %392 : i32 to vector<8x1xi32>
    %394 = arith.cmpi eq, %14, %393 : vector<8x1xi32>
    %395 = vector.shape_cast %394 : vector<8x1xi1> to vector<8x1xi1>
    %396 = vector.broadcast %395 : vector<8x1xi1> to vector<8x128xi1>
    %397 = arith.select %396, %390, %359 : vector<8x128xi1>, vector<8x128xf32>
    %c10 = arith.constant 10 : index
    %c0_92 = arith.constant 0 : index
    %c0_93 = arith.constant 0 : index
    %398 = vector.load %arg10[%c10, %c0_92, %c0_93] : memref<30x8x384xf32, #tpu.memory_space<vmem>>, vector<1x8x384xf32>
    %399 = vector.shape_cast %398 : vector<1x8x384xf32> to vector<8x384xf32>
    %cst_94 = arith.constant dense<0.000000e+00> : vector<8x384xf32>
    %400 = tpu.matmul %390, %12, %cst_94 {dimension_numbers = #tpu.dot_dimension_numbers<[1], [0], [0], [1], [0, 0, 1, 1], [], []>} : vector<8x128xf32>, vector<128x384xf32>, vector<8x384xf32> -> vector<8x384xf32>
    %401 = vector.broadcast %13 : vector<1x384xf32> to vector<8x384xf32>
    %402 = arith.addf %400, %401 : vector<8x384xf32>
    %403 = vector.extract_strided_slice %399 {offsets = [0, 0], sizes = [8, 128], strides = [1, 1]} : vector<8x384xf32> to vector<8x128xf32>
    %404 = vector.extract_strided_slice %402 {offsets = [0, 0], sizes = [8, 128], strides = [1, 1]} : vector<8x384xf32> to vector<8x128xf32>
    %405 = arith.addf %403, %404 : vector<8x128xf32>
    %406 = arith.negf %405 : vector<8x128xf32>
    %407 = math.exp %406 : vector<8x128xf32>
    %cst_95 = arith.constant 1.000000e+00 : f32
    %408 = vector.broadcast %cst_95 : f32 to vector<8x128xf32>
    %409 = arith.addf %408, %407 : vector<8x128xf32>
    %410 = arith.divf %408, %409 : vector<8x128xf32>
    %411 = vector.extract_strided_slice %399 {offsets = [0, 128], sizes = [8, 128], strides = [1, 1]} : vector<8x384xf32> to vector<8x128xf32>
    %412 = vector.extract_strided_slice %402 {offsets = [0, 128], sizes = [8, 128], strides = [1, 1]} : vector<8x384xf32> to vector<8x128xf32>
    %413 = arith.addf %411, %412 : vector<8x128xf32>
    %414 = arith.negf %413 : vector<8x128xf32>
    %415 = math.exp %414 : vector<8x128xf32>
    %cst_96 = arith.constant 1.000000e+00 : f32
    %416 = vector.broadcast %cst_96 : f32 to vector<8x128xf32>
    %417 = arith.addf %416, %415 : vector<8x128xf32>
    %418 = arith.divf %416, %417 : vector<8x128xf32>
    %419 = vector.extract_strided_slice %399 {offsets = [0, 256], sizes = [8, 128], strides = [1, 1]} : vector<8x384xf32> to vector<8x128xf32>
    %420 = vector.extract_strided_slice %402 {offsets = [0, 256], sizes = [8, 128], strides = [1, 1]} : vector<8x384xf32> to vector<8x128xf32>
    %421 = arith.mulf %410, %420 : vector<8x128xf32>
    %422 = arith.addf %419, %421 : vector<8x128xf32>
    %423 = math.tanh %422 : vector<8x128xf32>
    %cst_97 = arith.constant 1.000000e+00 : f32
    %424 = vector.broadcast %cst_97 : f32 to vector<8x128xf32>
    %425 = arith.subf %424, %418 : vector<8x128xf32>
    %426 = arith.mulf %425, %423 : vector<8x128xf32>
    %427 = arith.mulf %418, %390 : vector<8x128xf32>
    %428 = arith.addf %426, %427 : vector<8x128xf32>
    %c10_i32 = arith.constant 10 : i32
    %429 = arith.addi %15, %c10_i32 : i32
    %c1_i32_98 = arith.constant 1 : i32
    %430 = arith.addi %429, %c1_i32_98 : i32
    %431 = vector.broadcast %430 : i32 to vector<8x1xi32>
    %432 = arith.cmpi eq, %14, %431 : vector<8x1xi32>
    %433 = vector.shape_cast %432 : vector<8x1xi1> to vector<8x1xi1>
    %434 = vector.broadcast %433 : vector<8x1xi1> to vector<8x128xi1>
    %435 = arith.select %434, %428, %397 : vector<8x128xi1>, vector<8x128xf32>
    %c11 = arith.constant 11 : index
    %c0_99 = arith.constant 0 : index
    %c0_100 = arith.constant 0 : index
    %436 = vector.load %arg10[%c11, %c0_99, %c0_100] : memref<30x8x384xf32, #tpu.memory_space<vmem>>, vector<1x8x384xf32>
    %437 = vector.shape_cast %436 : vector<1x8x384xf32> to vector<8x384xf32>
    %cst_101 = arith.constant dense<0.000000e+00> : vector<8x384xf32>
    %438 = tpu.matmul %428, %12, %cst_101 {dimension_numbers = #tpu.dot_dimension_numbers<[1], [0], [0], [1], [0, 0, 1, 1], [], []>} : vector<8x128xf32>, vector<128x384xf32>, vector<8x384xf32> -> vector<8x384xf32>
    %439 = vector.broadcast %13 : vector<1x384xf32> to vector<8x384xf32>
    %440 = arith.addf %438, %439 : vector<8x384xf32>
    %441 = vector.extract_strided_slice %437 {offsets = [0, 0], sizes = [8, 128], strides = [1, 1]} : vector<8x384xf32> to vector<8x128xf32>
    %442 = vector.extract_strided_slice %440 {offsets = [0, 0], sizes = [8, 128], strides = [1, 1]} : vector<8x384xf32> to vector<8x128xf32>
    %443 = arith.addf %441, %442 : vector<8x128xf32>
    %444 = arith.negf %443 : vector<8x128xf32>
    %445 = math.exp %444 : vector<8x128xf32>
    %cst_102 = arith.constant 1.000000e+00 : f32
    %446 = vector.broadcast %cst_102 : f32 to vector<8x128xf32>
    %447 = arith.addf %446, %445 : vector<8x128xf32>
    %448 = arith.divf %446, %447 : vector<8x128xf32>
    %449 = vector.extract_strided_slice %437 {offsets = [0, 128], sizes = [8, 128], strides = [1, 1]} : vector<8x384xf32> to vector<8x128xf32>
    %450 = vector.extract_strided_slice %440 {offsets = [0, 128], sizes = [8, 128], strides = [1, 1]} : vector<8x384xf32> to vector<8x128xf32>
    %451 = arith.addf %449, %450 : vector<8x128xf32>
    %452 = arith.negf %451 : vector<8x128xf32>
    %453 = math.exp %452 : vector<8x128xf32>
    %cst_103 = arith.constant 1.000000e+00 : f32
    %454 = vector.broadcast %cst_103 : f32 to vector<8x128xf32>
    %455 = arith.addf %454, %453 : vector<8x128xf32>
    %456 = arith.divf %454, %455 : vector<8x128xf32>
    %457 = vector.extract_strided_slice %437 {offsets = [0, 256], sizes = [8, 128], strides = [1, 1]} : vector<8x384xf32> to vector<8x128xf32>
    %458 = vector.extract_strided_slice %440 {offsets = [0, 256], sizes = [8, 128], strides = [1, 1]} : vector<8x384xf32> to vector<8x128xf32>
    %459 = arith.mulf %448, %458 : vector<8x128xf32>
    %460 = arith.addf %457, %459 : vector<8x128xf32>
    %461 = math.tanh %460 : vector<8x128xf32>
    %cst_104 = arith.constant 1.000000e+00 : f32
    %462 = vector.broadcast %cst_104 : f32 to vector<8x128xf32>
    %463 = arith.subf %462, %456 : vector<8x128xf32>
    %464 = arith.mulf %463, %461 : vector<8x128xf32>
    %465 = arith.mulf %456, %428 : vector<8x128xf32>
    %466 = arith.addf %464, %465 : vector<8x128xf32>
    %c11_i32 = arith.constant 11 : i32
    %467 = arith.addi %15, %c11_i32 : i32
    %c1_i32_105 = arith.constant 1 : i32
    %468 = arith.addi %467, %c1_i32_105 : i32
    %469 = vector.broadcast %468 : i32 to vector<8x1xi32>
    %470 = arith.cmpi eq, %14, %469 : vector<8x1xi32>
    %471 = vector.shape_cast %470 : vector<8x1xi1> to vector<8x1xi1>
    %472 = vector.broadcast %471 : vector<8x1xi1> to vector<8x128xi1>
    %473 = arith.select %472, %466, %435 : vector<8x128xi1>, vector<8x128xf32>
    %c12 = arith.constant 12 : index
    %c0_106 = arith.constant 0 : index
    %c0_107 = arith.constant 0 : index
    %474 = vector.load %arg10[%c12, %c0_106, %c0_107] : memref<30x8x384xf32, #tpu.memory_space<vmem>>, vector<1x8x384xf32>
    %475 = vector.shape_cast %474 : vector<1x8x384xf32> to vector<8x384xf32>
    %cst_108 = arith.constant dense<0.000000e+00> : vector<8x384xf32>
    %476 = tpu.matmul %466, %12, %cst_108 {dimension_numbers = #tpu.dot_dimension_numbers<[1], [0], [0], [1], [0, 0, 1, 1], [], []>} : vector<8x128xf32>, vector<128x384xf32>, vector<8x384xf32> -> vector<8x384xf32>
    %477 = vector.broadcast %13 : vector<1x384xf32> to vector<8x384xf32>
    %478 = arith.addf %476, %477 : vector<8x384xf32>
    %479 = vector.extract_strided_slice %475 {offsets = [0, 0], sizes = [8, 128], strides = [1, 1]} : vector<8x384xf32> to vector<8x128xf32>
    %480 = vector.extract_strided_slice %478 {offsets = [0, 0], sizes = [8, 128], strides = [1, 1]} : vector<8x384xf32> to vector<8x128xf32>
    %481 = arith.addf %479, %480 : vector<8x128xf32>
    %482 = arith.negf %481 : vector<8x128xf32>
    %483 = math.exp %482 : vector<8x128xf32>
    %cst_109 = arith.constant 1.000000e+00 : f32
    %484 = vector.broadcast %cst_109 : f32 to vector<8x128xf32>
    %485 = arith.addf %484, %483 : vector<8x128xf32>
    %486 = arith.divf %484, %485 : vector<8x128xf32>
    %487 = vector.extract_strided_slice %475 {offsets = [0, 128], sizes = [8, 128], strides = [1, 1]} : vector<8x384xf32> to vector<8x128xf32>
    %488 = vector.extract_strided_slice %478 {offsets = [0, 128], sizes = [8, 128], strides = [1, 1]} : vector<8x384xf32> to vector<8x128xf32>
    %489 = arith.addf %487, %488 : vector<8x128xf32>
    %490 = arith.negf %489 : vector<8x128xf32>
    %491 = math.exp %490 : vector<8x128xf32>
    %cst_110 = arith.constant 1.000000e+00 : f32
    %492 = vector.broadcast %cst_110 : f32 to vector<8x128xf32>
    %493 = arith.addf %492, %491 : vector<8x128xf32>
    %494 = arith.divf %492, %493 : vector<8x128xf32>
    %495 = vector.extract_strided_slice %475 {offsets = [0, 256], sizes = [8, 128], strides = [1, 1]} : vector<8x384xf32> to vector<8x128xf32>
    %496 = vector.extract_strided_slice %478 {offsets = [0, 256], sizes = [8, 128], strides = [1, 1]} : vector<8x384xf32> to vector<8x128xf32>
    %497 = arith.mulf %486, %496 : vector<8x128xf32>
    %498 = arith.addf %495, %497 : vector<8x128xf32>
    %499 = math.tanh %498 : vector<8x128xf32>
    %cst_111 = arith.constant 1.000000e+00 : f32
    %500 = vector.broadcast %cst_111 : f32 to vector<8x128xf32>
    %501 = arith.subf %500, %494 : vector<8x128xf32>
    %502 = arith.mulf %501, %499 : vector<8x128xf32>
    %503 = arith.mulf %494, %466 : vector<8x128xf32>
    %504 = arith.addf %502, %503 : vector<8x128xf32>
    %c12_i32 = arith.constant 12 : i32
    %505 = arith.addi %15, %c12_i32 : i32
    %c1_i32_112 = arith.constant 1 : i32
    %506 = arith.addi %505, %c1_i32_112 : i32
    %507 = vector.broadcast %506 : i32 to vector<8x1xi32>
    %508 = arith.cmpi eq, %14, %507 : vector<8x1xi32>
    %509 = vector.shape_cast %508 : vector<8x1xi1> to vector<8x1xi1>
    %510 = vector.broadcast %509 : vector<8x1xi1> to vector<8x128xi1>
    %511 = arith.select %510, %504, %473 : vector<8x128xi1>, vector<8x128xf32>
    %c13 = arith.constant 13 : index
    %c0_113 = arith.constant 0 : index
    %c0_114 = arith.constant 0 : index
    %512 = vector.load %arg10[%c13, %c0_113, %c0_114] : memref<30x8x384xf32, #tpu.memory_space<vmem>>, vector<1x8x384xf32>
    %513 = vector.shape_cast %512 : vector<1x8x384xf32> to vector<8x384xf32>
    %cst_115 = arith.constant dense<0.000000e+00> : vector<8x384xf32>
    %514 = tpu.matmul %504, %12, %cst_115 {dimension_numbers = #tpu.dot_dimension_numbers<[1], [0], [0], [1], [0, 0, 1, 1], [], []>} : vector<8x128xf32>, vector<128x384xf32>, vector<8x384xf32> -> vector<8x384xf32>
    %515 = vector.broadcast %13 : vector<1x384xf32> to vector<8x384xf32>
    %516 = arith.addf %514, %515 : vector<8x384xf32>
    %517 = vector.extract_strided_slice %513 {offsets = [0, 0], sizes = [8, 128], strides = [1, 1]} : vector<8x384xf32> to vector<8x128xf32>
    %518 = vector.extract_strided_slice %516 {offsets = [0, 0], sizes = [8, 128], strides = [1, 1]} : vector<8x384xf32> to vector<8x128xf32>
    %519 = arith.addf %517, %518 : vector<8x128xf32>
    %520 = arith.negf %519 : vector<8x128xf32>
    %521 = math.exp %520 : vector<8x128xf32>
    %cst_116 = arith.constant 1.000000e+00 : f32
    %522 = vector.broadcast %cst_116 : f32 to vector<8x128xf32>
    %523 = arith.addf %522, %521 : vector<8x128xf32>
    %524 = arith.divf %522, %523 : vector<8x128xf32>
    %525 = vector.extract_strided_slice %513 {offsets = [0, 128], sizes = [8, 128], strides = [1, 1]} : vector<8x384xf32> to vector<8x128xf32>
    %526 = vector.extract_strided_slice %516 {offsets = [0, 128], sizes = [8, 128], strides = [1, 1]} : vector<8x384xf32> to vector<8x128xf32>
    %527 = arith.addf %525, %526 : vector<8x128xf32>
    %528 = arith.negf %527 : vector<8x128xf32>
    %529 = math.exp %528 : vector<8x128xf32>
    %cst_117 = arith.constant 1.000000e+00 : f32
    %530 = vector.broadcast %cst_117 : f32 to vector<8x128xf32>
    %531 = arith.addf %530, %529 : vector<8x128xf32>
    %532 = arith.divf %530, %531 : vector<8x128xf32>
    %533 = vector.extract_strided_slice %513 {offsets = [0, 256], sizes = [8, 128], strides = [1, 1]} : vector<8x384xf32> to vector<8x128xf32>
    %534 = vector.extract_strided_slice %516 {offsets = [0, 256], sizes = [8, 128], strides = [1, 1]} : vector<8x384xf32> to vector<8x128xf32>
    %535 = arith.mulf %524, %534 : vector<8x128xf32>
    %536 = arith.addf %533, %535 : vector<8x128xf32>
    %537 = math.tanh %536 : vector<8x128xf32>
    %cst_118 = arith.constant 1.000000e+00 : f32
    %538 = vector.broadcast %cst_118 : f32 to vector<8x128xf32>
    %539 = arith.subf %538, %532 : vector<8x128xf32>
    %540 = arith.mulf %539, %537 : vector<8x128xf32>
    %541 = arith.mulf %532, %504 : vector<8x128xf32>
    %542 = arith.addf %540, %541 : vector<8x128xf32>
    %c13_i32 = arith.constant 13 : i32
    %543 = arith.addi %15, %c13_i32 : i32
    %c1_i32_119 = arith.constant 1 : i32
    %544 = arith.addi %543, %c1_i32_119 : i32
    %545 = vector.broadcast %544 : i32 to vector<8x1xi32>
    %546 = arith.cmpi eq, %14, %545 : vector<8x1xi32>
    %547 = vector.shape_cast %546 : vector<8x1xi1> to vector<8x1xi1>
    %548 = vector.broadcast %547 : vector<8x1xi1> to vector<8x128xi1>
    %549 = arith.select %548, %542, %511 : vector<8x128xi1>, vector<8x128xf32>
    %c14 = arith.constant 14 : index
    %c0_120 = arith.constant 0 : index
    %c0_121 = arith.constant 0 : index
    %550 = vector.load %arg10[%c14, %c0_120, %c0_121] : memref<30x8x384xf32, #tpu.memory_space<vmem>>, vector<1x8x384xf32>
    %551 = vector.shape_cast %550 : vector<1x8x384xf32> to vector<8x384xf32>
    %cst_122 = arith.constant dense<0.000000e+00> : vector<8x384xf32>
    %552 = tpu.matmul %542, %12, %cst_122 {dimension_numbers = #tpu.dot_dimension_numbers<[1], [0], [0], [1], [0, 0, 1, 1], [], []>} : vector<8x128xf32>, vector<128x384xf32>, vector<8x384xf32> -> vector<8x384xf32>
    %553 = vector.broadcast %13 : vector<1x384xf32> to vector<8x384xf32>
    %554 = arith.addf %552, %553 : vector<8x384xf32>
    %555 = vector.extract_strided_slice %551 {offsets = [0, 0], sizes = [8, 128], strides = [1, 1]} : vector<8x384xf32> to vector<8x128xf32>
    %556 = vector.extract_strided_slice %554 {offsets = [0, 0], sizes = [8, 128], strides = [1, 1]} : vector<8x384xf32> to vector<8x128xf32>
    %557 = arith.addf %555, %556 : vector<8x128xf32>
    %558 = arith.negf %557 : vector<8x128xf32>
    %559 = math.exp %558 : vector<8x128xf32>
    %cst_123 = arith.constant 1.000000e+00 : f32
    %560 = vector.broadcast %cst_123 : f32 to vector<8x128xf32>
    %561 = arith.addf %560, %559 : vector<8x128xf32>
    %562 = arith.divf %560, %561 : vector<8x128xf32>
    %563 = vector.extract_strided_slice %551 {offsets = [0, 128], sizes = [8, 128], strides = [1, 1]} : vector<8x384xf32> to vector<8x128xf32>
    %564 = vector.extract_strided_slice %554 {offsets = [0, 128], sizes = [8, 128], strides = [1, 1]} : vector<8x384xf32> to vector<8x128xf32>
    %565 = arith.addf %563, %564 : vector<8x128xf32>
    %566 = arith.negf %565 : vector<8x128xf32>
    %567 = math.exp %566 : vector<8x128xf32>
    %cst_124 = arith.constant 1.000000e+00 : f32
    %568 = vector.broadcast %cst_124 : f32 to vector<8x128xf32>
    %569 = arith.addf %568, %567 : vector<8x128xf32>
    %570 = arith.divf %568, %569 : vector<8x128xf32>
    %571 = vector.extract_strided_slice %551 {offsets = [0, 256], sizes = [8, 128], strides = [1, 1]} : vector<8x384xf32> to vector<8x128xf32>
    %572 = vector.extract_strided_slice %554 {offsets = [0, 256], sizes = [8, 128], strides = [1, 1]} : vector<8x384xf32> to vector<8x128xf32>
    %573 = arith.mulf %562, %572 : vector<8x128xf32>
    %574 = arith.addf %571, %573 : vector<8x128xf32>
    %575 = math.tanh %574 : vector<8x128xf32>
    %cst_125 = arith.constant 1.000000e+00 : f32
    %576 = vector.broadcast %cst_125 : f32 to vector<8x128xf32>
    %577 = arith.subf %576, %570 : vector<8x128xf32>
    %578 = arith.mulf %577, %575 : vector<8x128xf32>
    %579 = arith.mulf %570, %542 : vector<8x128xf32>
    %580 = arith.addf %578, %579 : vector<8x128xf32>
    %c14_i32 = arith.constant 14 : i32
    %581 = arith.addi %15, %c14_i32 : i32
    %c1_i32_126 = arith.constant 1 : i32
    %582 = arith.addi %581, %c1_i32_126 : i32
    %583 = vector.broadcast %582 : i32 to vector<8x1xi32>
    %584 = arith.cmpi eq, %14, %583 : vector<8x1xi32>
    %585 = vector.shape_cast %584 : vector<8x1xi1> to vector<8x1xi1>
    %586 = vector.broadcast %585 : vector<8x1xi1> to vector<8x128xi1>
    %587 = arith.select %586, %580, %549 : vector<8x128xi1>, vector<8x128xf32>
    %c15 = arith.constant 15 : index
    %c0_127 = arith.constant 0 : index
    %c0_128 = arith.constant 0 : index
    %588 = vector.load %arg10[%c15, %c0_127, %c0_128] : memref<30x8x384xf32, #tpu.memory_space<vmem>>, vector<1x8x384xf32>
    %589 = vector.shape_cast %588 : vector<1x8x384xf32> to vector<8x384xf32>
    %cst_129 = arith.constant dense<0.000000e+00> : vector<8x384xf32>
    %590 = tpu.matmul %580, %12, %cst_129 {dimension_numbers = #tpu.dot_dimension_numbers<[1], [0], [0], [1], [0, 0, 1, 1], [], []>} : vector<8x128xf32>, vector<128x384xf32>, vector<8x384xf32> -> vector<8x384xf32>
    %591 = vector.broadcast %13 : vector<1x384xf32> to vector<8x384xf32>
    %592 = arith.addf %590, %591 : vector<8x384xf32>
    %593 = vector.extract_strided_slice %589 {offsets = [0, 0], sizes = [8, 128], strides = [1, 1]} : vector<8x384xf32> to vector<8x128xf32>
    %594 = vector.extract_strided_slice %592 {offsets = [0, 0], sizes = [8, 128], strides = [1, 1]} : vector<8x384xf32> to vector<8x128xf32>
    %595 = arith.addf %593, %594 : vector<8x128xf32>
    %596 = arith.negf %595 : vector<8x128xf32>
    %597 = math.exp %596 : vector<8x128xf32>
    %cst_130 = arith.constant 1.000000e+00 : f32
    %598 = vector.broadcast %cst_130 : f32 to vector<8x128xf32>
    %599 = arith.addf %598, %597 : vector<8x128xf32>
    %600 = arith.divf %598, %599 : vector<8x128xf32>
    %601 = vector.extract_strided_slice %589 {offsets = [0, 128], sizes = [8, 128], strides = [1, 1]} : vector<8x384xf32> to vector<8x128xf32>
    %602 = vector.extract_strided_slice %592 {offsets = [0, 128], sizes = [8, 128], strides = [1, 1]} : vector<8x384xf32> to vector<8x128xf32>
    %603 = arith.addf %601, %602 : vector<8x128xf32>
    %604 = arith.negf %603 : vector<8x128xf32>
    %605 = math.exp %604 : vector<8x128xf32>
    %cst_131 = arith.constant 1.000000e+00 : f32
    %606 = vector.broadcast %cst_131 : f32 to vector<8x128xf32>
    %607 = arith.addf %606, %605 : vector<8x128xf32>
    %608 = arith.divf %606, %607 : vector<8x128xf32>
    %609 = vector.extract_strided_slice %589 {offsets = [0, 256], sizes = [8, 128], strides = [1, 1]} : vector<8x384xf32> to vector<8x128xf32>
    %610 = vector.extract_strided_slice %592 {offsets = [0, 256], sizes = [8, 128], strides = [1, 1]} : vector<8x384xf32> to vector<8x128xf32>
    %611 = arith.mulf %600, %610 : vector<8x128xf32>
    %612 = arith.addf %609, %611 : vector<8x128xf32>
    %613 = math.tanh %612 : vector<8x128xf32>
    %cst_132 = arith.constant 1.000000e+00 : f32
    %614 = vector.broadcast %cst_132 : f32 to vector<8x128xf32>
    %615 = arith.subf %614, %608 : vector<8x128xf32>
    %616 = arith.mulf %615, %613 : vector<8x128xf32>
    %617 = arith.mulf %608, %580 : vector<8x128xf32>
    %618 = arith.addf %616, %617 : vector<8x128xf32>
    %c15_i32 = arith.constant 15 : i32
    %619 = arith.addi %15, %c15_i32 : i32
    %c1_i32_133 = arith.constant 1 : i32
    %620 = arith.addi %619, %c1_i32_133 : i32
    %621 = vector.broadcast %620 : i32 to vector<8x1xi32>
    %622 = arith.cmpi eq, %14, %621 : vector<8x1xi32>
    %623 = vector.shape_cast %622 : vector<8x1xi1> to vector<8x1xi1>
    %624 = vector.broadcast %623 : vector<8x1xi1> to vector<8x128xi1>
    %625 = arith.select %624, %618, %587 : vector<8x128xi1>, vector<8x128xf32>
    %c16 = arith.constant 16 : index
    %c0_134 = arith.constant 0 : index
    %c0_135 = arith.constant 0 : index
    %626 = vector.load %arg10[%c16, %c0_134, %c0_135] : memref<30x8x384xf32, #tpu.memory_space<vmem>>, vector<1x8x384xf32>
    %627 = vector.shape_cast %626 : vector<1x8x384xf32> to vector<8x384xf32>
    %cst_136 = arith.constant dense<0.000000e+00> : vector<8x384xf32>
    %628 = tpu.matmul %618, %12, %cst_136 {dimension_numbers = #tpu.dot_dimension_numbers<[1], [0], [0], [1], [0, 0, 1, 1], [], []>} : vector<8x128xf32>, vector<128x384xf32>, vector<8x384xf32> -> vector<8x384xf32>
    %629 = vector.broadcast %13 : vector<1x384xf32> to vector<8x384xf32>
    %630 = arith.addf %628, %629 : vector<8x384xf32>
    %631 = vector.extract_strided_slice %627 {offsets = [0, 0], sizes = [8, 128], strides = [1, 1]} : vector<8x384xf32> to vector<8x128xf32>
    %632 = vector.extract_strided_slice %630 {offsets = [0, 0], sizes = [8, 128], strides = [1, 1]} : vector<8x384xf32> to vector<8x128xf32>
    %633 = arith.addf %631, %632 : vector<8x128xf32>
    %634 = arith.negf %633 : vector<8x128xf32>
    %635 = math.exp %634 : vector<8x128xf32>
    %cst_137 = arith.constant 1.000000e+00 : f32
    %636 = vector.broadcast %cst_137 : f32 to vector<8x128xf32>
    %637 = arith.addf %636, %635 : vector<8x128xf32>
    %638 = arith.divf %636, %637 : vector<8x128xf32>
    %639 = vector.extract_strided_slice %627 {offsets = [0, 128], sizes = [8, 128], strides = [1, 1]} : vector<8x384xf32> to vector<8x128xf32>
    %640 = vector.extract_strided_slice %630 {offsets = [0, 128], sizes = [8, 128], strides = [1, 1]} : vector<8x384xf32> to vector<8x128xf32>
    %641 = arith.addf %639, %640 : vector<8x128xf32>
    %642 = arith.negf %641 : vector<8x128xf32>
    %643 = math.exp %642 : vector<8x128xf32>
    %cst_138 = arith.constant 1.000000e+00 : f32
    %644 = vector.broadcast %cst_138 : f32 to vector<8x128xf32>
    %645 = arith.addf %644, %643 : vector<8x128xf32>
    %646 = arith.divf %644, %645 : vector<8x128xf32>
    %647 = vector.extract_strided_slice %627 {offsets = [0, 256], sizes = [8, 128], strides = [1, 1]} : vector<8x384xf32> to vector<8x128xf32>
    %648 = vector.extract_strided_slice %630 {offsets = [0, 256], sizes = [8, 128], strides = [1, 1]} : vector<8x384xf32> to vector<8x128xf32>
    %649 = arith.mulf %638, %648 : vector<8x128xf32>
    %650 = arith.addf %647, %649 : vector<8x128xf32>
    %651 = math.tanh %650 : vector<8x128xf32>
    %cst_139 = arith.constant 1.000000e+00 : f32
    %652 = vector.broadcast %cst_139 : f32 to vector<8x128xf32>
    %653 = arith.subf %652, %646 : vector<8x128xf32>
    %654 = arith.mulf %653, %651 : vector<8x128xf32>
    %655 = arith.mulf %646, %618 : vector<8x128xf32>
    %656 = arith.addf %654, %655 : vector<8x128xf32>
    %c16_i32 = arith.constant 16 : i32
    %657 = arith.addi %15, %c16_i32 : i32
    %c1_i32_140 = arith.constant 1 : i32
    %658 = arith.addi %657, %c1_i32_140 : i32
    %659 = vector.broadcast %658 : i32 to vector<8x1xi32>
    %660 = arith.cmpi eq, %14, %659 : vector<8x1xi32>
    %661 = vector.shape_cast %660 : vector<8x1xi1> to vector<8x1xi1>
    %662 = vector.broadcast %661 : vector<8x1xi1> to vector<8x128xi1>
    %663 = arith.select %662, %656, %625 : vector<8x128xi1>, vector<8x128xf32>
    %c17 = arith.constant 17 : index
    %c0_141 = arith.constant 0 : index
    %c0_142 = arith.constant 0 : index
    %664 = vector.load %arg10[%c17, %c0_141, %c0_142] : memref<30x8x384xf32, #tpu.memory_space<vmem>>, vector<1x8x384xf32>
    %665 = vector.shape_cast %664 : vector<1x8x384xf32> to vector<8x384xf32>
    %cst_143 = arith.constant dense<0.000000e+00> : vector<8x384xf32>
    %666 = tpu.matmul %656, %12, %cst_143 {dimension_numbers = #tpu.dot_dimension_numbers<[1], [0], [0], [1], [0, 0, 1, 1], [], []>} : vector<8x128xf32>, vector<128x384xf32>, vector<8x384xf32> -> vector<8x384xf32>
    %667 = vector.broadcast %13 : vector<1x384xf32> to vector<8x384xf32>
    %668 = arith.addf %666, %667 : vector<8x384xf32>
    %669 = vector.extract_strided_slice %665 {offsets = [0, 0], sizes = [8, 128], strides = [1, 1]} : vector<8x384xf32> to vector<8x128xf32>
    %670 = vector.extract_strided_slice %668 {offsets = [0, 0], sizes = [8, 128], strides = [1, 1]} : vector<8x384xf32> to vector<8x128xf32>
    %671 = arith.addf %669, %670 : vector<8x128xf32>
    %672 = arith.negf %671 : vector<8x128xf32>
    %673 = math.exp %672 : vector<8x128xf32>
    %cst_144 = arith.constant 1.000000e+00 : f32
    %674 = vector.broadcast %cst_144 : f32 to vector<8x128xf32>
    %675 = arith.addf %674, %673 : vector<8x128xf32>
    %676 = arith.divf %674, %675 : vector<8x128xf32>
    %677 = vector.extract_strided_slice %665 {offsets = [0, 128], sizes = [8, 128], strides = [1, 1]} : vector<8x384xf32> to vector<8x128xf32>
    %678 = vector.extract_strided_slice %668 {offsets = [0, 128], sizes = [8, 128], strides = [1, 1]} : vector<8x384xf32> to vector<8x128xf32>
    %679 = arith.addf %677, %678 : vector<8x128xf32>
    %680 = arith.negf %679 : vector<8x128xf32>
    %681 = math.exp %680 : vector<8x128xf32>
    %cst_145 = arith.constant 1.000000e+00 : f32
    %682 = vector.broadcast %cst_145 : f32 to vector<8x128xf32>
    %683 = arith.addf %682, %681 : vector<8x128xf32>
    %684 = arith.divf %682, %683 : vector<8x128xf32>
    %685 = vector.extract_strided_slice %665 {offsets = [0, 256], sizes = [8, 128], strides = [1, 1]} : vector<8x384xf32> to vector<8x128xf32>
    %686 = vector.extract_strided_slice %668 {offsets = [0, 256], sizes = [8, 128], strides = [1, 1]} : vector<8x384xf32> to vector<8x128xf32>
    %687 = arith.mulf %676, %686 : vector<8x128xf32>
    %688 = arith.addf %685, %687 : vector<8x128xf32>
    %689 = math.tanh %688 : vector<8x128xf32>
    %cst_146 = arith.constant 1.000000e+00 : f32
    %690 = vector.broadcast %cst_146 : f32 to vector<8x128xf32>
    %691 = arith.subf %690, %684 : vector<8x128xf32>
    %692 = arith.mulf %691, %689 : vector<8x128xf32>
    %693 = arith.mulf %684, %656 : vector<8x128xf32>
    %694 = arith.addf %692, %693 : vector<8x128xf32>
    %c17_i32 = arith.constant 17 : i32
    %695 = arith.addi %15, %c17_i32 : i32
    %c1_i32_147 = arith.constant 1 : i32
    %696 = arith.addi %695, %c1_i32_147 : i32
    %697 = vector.broadcast %696 : i32 to vector<8x1xi32>
    %698 = arith.cmpi eq, %14, %697 : vector<8x1xi32>
    %699 = vector.shape_cast %698 : vector<8x1xi1> to vector<8x1xi1>
    %700 = vector.broadcast %699 : vector<8x1xi1> to vector<8x128xi1>
    %701 = arith.select %700, %694, %663 : vector<8x128xi1>, vector<8x128xf32>
    %c18 = arith.constant 18 : index
    %c0_148 = arith.constant 0 : index
    %c0_149 = arith.constant 0 : index
    %702 = vector.load %arg10[%c18, %c0_148, %c0_149] : memref<30x8x384xf32, #tpu.memory_space<vmem>>, vector<1x8x384xf32>
    %703 = vector.shape_cast %702 : vector<1x8x384xf32> to vector<8x384xf32>
    %cst_150 = arith.constant dense<0.000000e+00> : vector<8x384xf32>
    %704 = tpu.matmul %694, %12, %cst_150 {dimension_numbers = #tpu.dot_dimension_numbers<[1], [0], [0], [1], [0, 0, 1, 1], [], []>} : vector<8x128xf32>, vector<128x384xf32>, vector<8x384xf32> -> vector<8x384xf32>
    %705 = vector.broadcast %13 : vector<1x384xf32> to vector<8x384xf32>
    %706 = arith.addf %704, %705 : vector<8x384xf32>
    %707 = vector.extract_strided_slice %703 {offsets = [0, 0], sizes = [8, 128], strides = [1, 1]} : vector<8x384xf32> to vector<8x128xf32>
    %708 = vector.extract_strided_slice %706 {offsets = [0, 0], sizes = [8, 128], strides = [1, 1]} : vector<8x384xf32> to vector<8x128xf32>
    %709 = arith.addf %707, %708 : vector<8x128xf32>
    %710 = arith.negf %709 : vector<8x128xf32>
    %711 = math.exp %710 : vector<8x128xf32>
    %cst_151 = arith.constant 1.000000e+00 : f32
    %712 = vector.broadcast %cst_151 : f32 to vector<8x128xf32>
    %713 = arith.addf %712, %711 : vector<8x128xf32>
    %714 = arith.divf %712, %713 : vector<8x128xf32>
    %715 = vector.extract_strided_slice %703 {offsets = [0, 128], sizes = [8, 128], strides = [1, 1]} : vector<8x384xf32> to vector<8x128xf32>
    %716 = vector.extract_strided_slice %706 {offsets = [0, 128], sizes = [8, 128], strides = [1, 1]} : vector<8x384xf32> to vector<8x128xf32>
    %717 = arith.addf %715, %716 : vector<8x128xf32>
    %718 = arith.negf %717 : vector<8x128xf32>
    %719 = math.exp %718 : vector<8x128xf32>
    %cst_152 = arith.constant 1.000000e+00 : f32
    %720 = vector.broadcast %cst_152 : f32 to vector<8x128xf32>
    %721 = arith.addf %720, %719 : vector<8x128xf32>
    %722 = arith.divf %720, %721 : vector<8x128xf32>
    %723 = vector.extract_strided_slice %703 {offsets = [0, 256], sizes = [8, 128], strides = [1, 1]} : vector<8x384xf32> to vector<8x128xf32>
    %724 = vector.extract_strided_slice %706 {offsets = [0, 256], sizes = [8, 128], strides = [1, 1]} : vector<8x384xf32> to vector<8x128xf32>
    %725 = arith.mulf %714, %724 : vector<8x128xf32>
    %726 = arith.addf %723, %725 : vector<8x128xf32>
    %727 = math.tanh %726 : vector<8x128xf32>
    %cst_153 = arith.constant 1.000000e+00 : f32
    %728 = vector.broadcast %cst_153 : f32 to vector<8x128xf32>
    %729 = arith.subf %728, %722 : vector<8x128xf32>
    %730 = arith.mulf %729, %727 : vector<8x128xf32>
    %731 = arith.mulf %722, %694 : vector<8x128xf32>
    %732 = arith.addf %730, %731 : vector<8x128xf32>
    %c18_i32 = arith.constant 18 : i32
    %733 = arith.addi %15, %c18_i32 : i32
    %c1_i32_154 = arith.constant 1 : i32
    %734 = arith.addi %733, %c1_i32_154 : i32
    %735 = vector.broadcast %734 : i32 to vector<8x1xi32>
    %736 = arith.cmpi eq, %14, %735 : vector<8x1xi32>
    %737 = vector.shape_cast %736 : vector<8x1xi1> to vector<8x1xi1>
    %738 = vector.broadcast %737 : vector<8x1xi1> to vector<8x128xi1>
    %739 = arith.select %738, %732, %701 : vector<8x128xi1>, vector<8x128xf32>
    %c19 = arith.constant 19 : index
    %c0_155 = arith.constant 0 : index
    %c0_156 = arith.constant 0 : index
    %740 = vector.load %arg10[%c19, %c0_155, %c0_156] : memref<30x8x384xf32, #tpu.memory_space<vmem>>, vector<1x8x384xf32>
    %741 = vector.shape_cast %740 : vector<1x8x384xf32> to vector<8x384xf32>
    %cst_157 = arith.constant dense<0.000000e+00> : vector<8x384xf32>
    %742 = tpu.matmul %732, %12, %cst_157 {dimension_numbers = #tpu.dot_dimension_numbers<[1], [0], [0], [1], [0, 0, 1, 1], [], []>} : vector<8x128xf32>, vector<128x384xf32>, vector<8x384xf32> -> vector<8x384xf32>
    %743 = vector.broadcast %13 : vector<1x384xf32> to vector<8x384xf32>
    %744 = arith.addf %742, %743 : vector<8x384xf32>
    %745 = vector.extract_strided_slice %741 {offsets = [0, 0], sizes = [8, 128], strides = [1, 1]} : vector<8x384xf32> to vector<8x128xf32>
    %746 = vector.extract_strided_slice %744 {offsets = [0, 0], sizes = [8, 128], strides = [1, 1]} : vector<8x384xf32> to vector<8x128xf32>
    %747 = arith.addf %745, %746 : vector<8x128xf32>
    %748 = arith.negf %747 : vector<8x128xf32>
    %749 = math.exp %748 : vector<8x128xf32>
    %cst_158 = arith.constant 1.000000e+00 : f32
    %750 = vector.broadcast %cst_158 : f32 to vector<8x128xf32>
    %751 = arith.addf %750, %749 : vector<8x128xf32>
    %752 = arith.divf %750, %751 : vector<8x128xf32>
    %753 = vector.extract_strided_slice %741 {offsets = [0, 128], sizes = [8, 128], strides = [1, 1]} : vector<8x384xf32> to vector<8x128xf32>
    %754 = vector.extract_strided_slice %744 {offsets = [0, 128], sizes = [8, 128], strides = [1, 1]} : vector<8x384xf32> to vector<8x128xf32>
    %755 = arith.addf %753, %754 : vector<8x128xf32>
    %756 = arith.negf %755 : vector<8x128xf32>
    %757 = math.exp %756 : vector<8x128xf32>
    %cst_159 = arith.constant 1.000000e+00 : f32
    %758 = vector.broadcast %cst_159 : f32 to vector<8x128xf32>
    %759 = arith.addf %758, %757 : vector<8x128xf32>
    %760 = arith.divf %758, %759 : vector<8x128xf32>
    %761 = vector.extract_strided_slice %741 {offsets = [0, 256], sizes = [8, 128], strides = [1, 1]} : vector<8x384xf32> to vector<8x128xf32>
    %762 = vector.extract_strided_slice %744 {offsets = [0, 256], sizes = [8, 128], strides = [1, 1]} : vector<8x384xf32> to vector<8x128xf32>
    %763 = arith.mulf %752, %762 : vector<8x128xf32>
    %764 = arith.addf %761, %763 : vector<8x128xf32>
    %765 = math.tanh %764 : vector<8x128xf32>
    %cst_160 = arith.constant 1.000000e+00 : f32
    %766 = vector.broadcast %cst_160 : f32 to vector<8x128xf32>
    %767 = arith.subf %766, %760 : vector<8x128xf32>
    %768 = arith.mulf %767, %765 : vector<8x128xf32>
    %769 = arith.mulf %760, %732 : vector<8x128xf32>
    %770 = arith.addf %768, %769 : vector<8x128xf32>
    %c19_i32 = arith.constant 19 : i32
    %771 = arith.addi %15, %c19_i32 : i32
    %c1_i32_161 = arith.constant 1 : i32
    %772 = arith.addi %771, %c1_i32_161 : i32
    %773 = vector.broadcast %772 : i32 to vector<8x1xi32>
    %774 = arith.cmpi eq, %14, %773 : vector<8x1xi32>
    %775 = vector.shape_cast %774 : vector<8x1xi1> to vector<8x1xi1>
    %776 = vector.broadcast %775 : vector<8x1xi1> to vector<8x128xi1>
    %777 = arith.select %776, %770, %739 : vector<8x128xi1>, vector<8x128xf32>
    %c20 = arith.constant 20 : index
    %c0_162 = arith.constant 0 : index
    %c0_163 = arith.constant 0 : index
    %778 = vector.load %arg10[%c20, %c0_162, %c0_163] : memref<30x8x384xf32, #tpu.memory_space<vmem>>, vector<1x8x384xf32>
    %779 = vector.shape_cast %778 : vector<1x8x384xf32> to vector<8x384xf32>
    %cst_164 = arith.constant dense<0.000000e+00> : vector<8x384xf32>
    %780 = tpu.matmul %770, %12, %cst_164 {dimension_numbers = #tpu.dot_dimension_numbers<[1], [0], [0], [1], [0, 0, 1, 1], [], []>} : vector<8x128xf32>, vector<128x384xf32>, vector<8x384xf32> -> vector<8x384xf32>
    %781 = vector.broadcast %13 : vector<1x384xf32> to vector<8x384xf32>
    %782 = arith.addf %780, %781 : vector<8x384xf32>
    %783 = vector.extract_strided_slice %779 {offsets = [0, 0], sizes = [8, 128], strides = [1, 1]} : vector<8x384xf32> to vector<8x128xf32>
    %784 = vector.extract_strided_slice %782 {offsets = [0, 0], sizes = [8, 128], strides = [1, 1]} : vector<8x384xf32> to vector<8x128xf32>
    %785 = arith.addf %783, %784 : vector<8x128xf32>
    %786 = arith.negf %785 : vector<8x128xf32>
    %787 = math.exp %786 : vector<8x128xf32>
    %cst_165 = arith.constant 1.000000e+00 : f32
    %788 = vector.broadcast %cst_165 : f32 to vector<8x128xf32>
    %789 = arith.addf %788, %787 : vector<8x128xf32>
    %790 = arith.divf %788, %789 : vector<8x128xf32>
    %791 = vector.extract_strided_slice %779 {offsets = [0, 128], sizes = [8, 128], strides = [1, 1]} : vector<8x384xf32> to vector<8x128xf32>
    %792 = vector.extract_strided_slice %782 {offsets = [0, 128], sizes = [8, 128], strides = [1, 1]} : vector<8x384xf32> to vector<8x128xf32>
    %793 = arith.addf %791, %792 : vector<8x128xf32>
    %794 = arith.negf %793 : vector<8x128xf32>
    %795 = math.exp %794 : vector<8x128xf32>
    %cst_166 = arith.constant 1.000000e+00 : f32
    %796 = vector.broadcast %cst_166 : f32 to vector<8x128xf32>
    %797 = arith.addf %796, %795 : vector<8x128xf32>
    %798 = arith.divf %796, %797 : vector<8x128xf32>
    %799 = vector.extract_strided_slice %779 {offsets = [0, 256], sizes = [8, 128], strides = [1, 1]} : vector<8x384xf32> to vector<8x128xf32>
    %800 = vector.extract_strided_slice %782 {offsets = [0, 256], sizes = [8, 128], strides = [1, 1]} : vector<8x384xf32> to vector<8x128xf32>
    %801 = arith.mulf %790, %800 : vector<8x128xf32>
    %802 = arith.addf %799, %801 : vector<8x128xf32>
    %803 = math.tanh %802 : vector<8x128xf32>
    %cst_167 = arith.constant 1.000000e+00 : f32
    %804 = vector.broadcast %cst_167 : f32 to vector<8x128xf32>
    %805 = arith.subf %804, %798 : vector<8x128xf32>
    %806 = arith.mulf %805, %803 : vector<8x128xf32>
    %807 = arith.mulf %798, %770 : vector<8x128xf32>
    %808 = arith.addf %806, %807 : vector<8x128xf32>
    %c20_i32 = arith.constant 20 : i32
    %809 = arith.addi %15, %c20_i32 : i32
    %c1_i32_168 = arith.constant 1 : i32
    %810 = arith.addi %809, %c1_i32_168 : i32
    %811 = vector.broadcast %810 : i32 to vector<8x1xi32>
    %812 = arith.cmpi eq, %14, %811 : vector<8x1xi32>
    %813 = vector.shape_cast %812 : vector<8x1xi1> to vector<8x1xi1>
    %814 = vector.broadcast %813 : vector<8x1xi1> to vector<8x128xi1>
    %815 = arith.select %814, %808, %777 : vector<8x128xi1>, vector<8x128xf32>
    %c21 = arith.constant 21 : index
    %c0_169 = arith.constant 0 : index
    %c0_170 = arith.constant 0 : index
    %816 = vector.load %arg10[%c21, %c0_169, %c0_170] : memref<30x8x384xf32, #tpu.memory_space<vmem>>, vector<1x8x384xf32>
    %817 = vector.shape_cast %816 : vector<1x8x384xf32> to vector<8x384xf32>
    %cst_171 = arith.constant dense<0.000000e+00> : vector<8x384xf32>
    %818 = tpu.matmul %808, %12, %cst_171 {dimension_numbers = #tpu.dot_dimension_numbers<[1], [0], [0], [1], [0, 0, 1, 1], [], []>} : vector<8x128xf32>, vector<128x384xf32>, vector<8x384xf32> -> vector<8x384xf32>
    %819 = vector.broadcast %13 : vector<1x384xf32> to vector<8x384xf32>
    %820 = arith.addf %818, %819 : vector<8x384xf32>
    %821 = vector.extract_strided_slice %817 {offsets = [0, 0], sizes = [8, 128], strides = [1, 1]} : vector<8x384xf32> to vector<8x128xf32>
    %822 = vector.extract_strided_slice %820 {offsets = [0, 0], sizes = [8, 128], strides = [1, 1]} : vector<8x384xf32> to vector<8x128xf32>
    %823 = arith.addf %821, %822 : vector<8x128xf32>
    %824 = arith.negf %823 : vector<8x128xf32>
    %825 = math.exp %824 : vector<8x128xf32>
    %cst_172 = arith.constant 1.000000e+00 : f32
    %826 = vector.broadcast %cst_172 : f32 to vector<8x128xf32>
    %827 = arith.addf %826, %825 : vector<8x128xf32>
    %828 = arith.divf %826, %827 : vector<8x128xf32>
    %829 = vector.extract_strided_slice %817 {offsets = [0, 128], sizes = [8, 128], strides = [1, 1]} : vector<8x384xf32> to vector<8x128xf32>
    %830 = vector.extract_strided_slice %820 {offsets = [0, 128], sizes = [8, 128], strides = [1, 1]} : vector<8x384xf32> to vector<8x128xf32>
    %831 = arith.addf %829, %830 : vector<8x128xf32>
    %832 = arith.negf %831 : vector<8x128xf32>
    %833 = math.exp %832 : vector<8x128xf32>
    %cst_173 = arith.constant 1.000000e+00 : f32
    %834 = vector.broadcast %cst_173 : f32 to vector<8x128xf32>
    %835 = arith.addf %834, %833 : vector<8x128xf32>
    %836 = arith.divf %834, %835 : vector<8x128xf32>
    %837 = vector.extract_strided_slice %817 {offsets = [0, 256], sizes = [8, 128], strides = [1, 1]} : vector<8x384xf32> to vector<8x128xf32>
    %838 = vector.extract_strided_slice %820 {offsets = [0, 256], sizes = [8, 128], strides = [1, 1]} : vector<8x384xf32> to vector<8x128xf32>
    %839 = arith.mulf %828, %838 : vector<8x128xf32>
    %840 = arith.addf %837, %839 : vector<8x128xf32>
    %841 = math.tanh %840 : vector<8x128xf32>
    %cst_174 = arith.constant 1.000000e+00 : f32
    %842 = vector.broadcast %cst_174 : f32 to vector<8x128xf32>
    %843 = arith.subf %842, %836 : vector<8x128xf32>
    %844 = arith.mulf %843, %841 : vector<8x128xf32>
    %845 = arith.mulf %836, %808 : vector<8x128xf32>
    %846 = arith.addf %844, %845 : vector<8x128xf32>
    %c21_i32 = arith.constant 21 : i32
    %847 = arith.addi %15, %c21_i32 : i32
    %c1_i32_175 = arith.constant 1 : i32
    %848 = arith.addi %847, %c1_i32_175 : i32
    %849 = vector.broadcast %848 : i32 to vector<8x1xi32>
    %850 = arith.cmpi eq, %14, %849 : vector<8x1xi32>
    %851 = vector.shape_cast %850 : vector<8x1xi1> to vector<8x1xi1>
    %852 = vector.broadcast %851 : vector<8x1xi1> to vector<8x128xi1>
    %853 = arith.select %852, %846, %815 : vector<8x128xi1>, vector<8x128xf32>
    %c22 = arith.constant 22 : index
    %c0_176 = arith.constant 0 : index
    %c0_177 = arith.constant 0 : index
    %854 = vector.load %arg10[%c22, %c0_176, %c0_177] : memref<30x8x384xf32, #tpu.memory_space<vmem>>, vector<1x8x384xf32>
    %855 = vector.shape_cast %854 : vector<1x8x384xf32> to vector<8x384xf32>
    %cst_178 = arith.constant dense<0.000000e+00> : vector<8x384xf32>
    %856 = tpu.matmul %846, %12, %cst_178 {dimension_numbers = #tpu.dot_dimension_numbers<[1], [0], [0], [1], [0, 0, 1, 1], [], []>} : vector<8x128xf32>, vector<128x384xf32>, vector<8x384xf32> -> vector<8x384xf32>
    %857 = vector.broadcast %13 : vector<1x384xf32> to vector<8x384xf32>
    %858 = arith.addf %856, %857 : vector<8x384xf32>
    %859 = vector.extract_strided_slice %855 {offsets = [0, 0], sizes = [8, 128], strides = [1, 1]} : vector<8x384xf32> to vector<8x128xf32>
    %860 = vector.extract_strided_slice %858 {offsets = [0, 0], sizes = [8, 128], strides = [1, 1]} : vector<8x384xf32> to vector<8x128xf32>
    %861 = arith.addf %859, %860 : vector<8x128xf32>
    %862 = arith.negf %861 : vector<8x128xf32>
    %863 = math.exp %862 : vector<8x128xf32>
    %cst_179 = arith.constant 1.000000e+00 : f32
    %864 = vector.broadcast %cst_179 : f32 to vector<8x128xf32>
    %865 = arith.addf %864, %863 : vector<8x128xf32>
    %866 = arith.divf %864, %865 : vector<8x128xf32>
    %867 = vector.extract_strided_slice %855 {offsets = [0, 128], sizes = [8, 128], strides = [1, 1]} : vector<8x384xf32> to vector<8x128xf32>
    %868 = vector.extract_strided_slice %858 {offsets = [0, 128], sizes = [8, 128], strides = [1, 1]} : vector<8x384xf32> to vector<8x128xf32>
    %869 = arith.addf %867, %868 : vector<8x128xf32>
    %870 = arith.negf %869 : vector<8x128xf32>
    %871 = math.exp %870 : vector<8x128xf32>
    %cst_180 = arith.constant 1.000000e+00 : f32
    %872 = vector.broadcast %cst_180 : f32 to vector<8x128xf32>
    %873 = arith.addf %872, %871 : vector<8x128xf32>
    %874 = arith.divf %872, %873 : vector<8x128xf32>
    %875 = vector.extract_strided_slice %855 {offsets = [0, 256], sizes = [8, 128], strides = [1, 1]} : vector<8x384xf32> to vector<8x128xf32>
    %876 = vector.extract_strided_slice %858 {offsets = [0, 256], sizes = [8, 128], strides = [1, 1]} : vector<8x384xf32> to vector<8x128xf32>
    %877 = arith.mulf %866, %876 : vector<8x128xf32>
    %878 = arith.addf %875, %877 : vector<8x128xf32>
    %879 = math.tanh %878 : vector<8x128xf32>
    %cst_181 = arith.constant 1.000000e+00 : f32
    %880 = vector.broadcast %cst_181 : f32 to vector<8x128xf32>
    %881 = arith.subf %880, %874 : vector<8x128xf32>
    %882 = arith.mulf %881, %879 : vector<8x128xf32>
    %883 = arith.mulf %874, %846 : vector<8x128xf32>
    %884 = arith.addf %882, %883 : vector<8x128xf32>
    %c22_i32 = arith.constant 22 : i32
    %885 = arith.addi %15, %c22_i32 : i32
    %c1_i32_182 = arith.constant 1 : i32
    %886 = arith.addi %885, %c1_i32_182 : i32
    %887 = vector.broadcast %886 : i32 to vector<8x1xi32>
    %888 = arith.cmpi eq, %14, %887 : vector<8x1xi32>
    %889 = vector.shape_cast %888 : vector<8x1xi1> to vector<8x1xi1>
    %890 = vector.broadcast %889 : vector<8x1xi1> to vector<8x128xi1>
    %891 = arith.select %890, %884, %853 : vector<8x128xi1>, vector<8x128xf32>
    %c23 = arith.constant 23 : index
    %c0_183 = arith.constant 0 : index
    %c0_184 = arith.constant 0 : index
    %892 = vector.load %arg10[%c23, %c0_183, %c0_184] : memref<30x8x384xf32, #tpu.memory_space<vmem>>, vector<1x8x384xf32>
    %893 = vector.shape_cast %892 : vector<1x8x384xf32> to vector<8x384xf32>
    %cst_185 = arith.constant dense<0.000000e+00> : vector<8x384xf32>
    %894 = tpu.matmul %884, %12, %cst_185 {dimension_numbers = #tpu.dot_dimension_numbers<[1], [0], [0], [1], [0, 0, 1, 1], [], []>} : vector<8x128xf32>, vector<128x384xf32>, vector<8x384xf32> -> vector<8x384xf32>
    %895 = vector.broadcast %13 : vector<1x384xf32> to vector<8x384xf32>
    %896 = arith.addf %894, %895 : vector<8x384xf32>
    %897 = vector.extract_strided_slice %893 {offsets = [0, 0], sizes = [8, 128], strides = [1, 1]} : vector<8x384xf32> to vector<8x128xf32>
    %898 = vector.extract_strided_slice %896 {offsets = [0, 0], sizes = [8, 128], strides = [1, 1]} : vector<8x384xf32> to vector<8x128xf32>
    %899 = arith.addf %897, %898 : vector<8x128xf32>
    %900 = arith.negf %899 : vector<8x128xf32>
    %901 = math.exp %900 : vector<8x128xf32>
    %cst_186 = arith.constant 1.000000e+00 : f32
    %902 = vector.broadcast %cst_186 : f32 to vector<8x128xf32>
    %903 = arith.addf %902, %901 : vector<8x128xf32>
    %904 = arith.divf %902, %903 : vector<8x128xf32>
    %905 = vector.extract_strided_slice %893 {offsets = [0, 128], sizes = [8, 128], strides = [1, 1]} : vector<8x384xf32> to vector<8x128xf32>
    %906 = vector.extract_strided_slice %896 {offsets = [0, 128], sizes = [8, 128], strides = [1, 1]} : vector<8x384xf32> to vector<8x128xf32>
    %907 = arith.addf %905, %906 : vector<8x128xf32>
    %908 = arith.negf %907 : vector<8x128xf32>
    %909 = math.exp %908 : vector<8x128xf32>
    %cst_187 = arith.constant 1.000000e+00 : f32
    %910 = vector.broadcast %cst_187 : f32 to vector<8x128xf32>
    %911 = arith.addf %910, %909 : vector<8x128xf32>
    %912 = arith.divf %910, %911 : vector<8x128xf32>
    %913 = vector.extract_strided_slice %893 {offsets = [0, 256], sizes = [8, 128], strides = [1, 1]} : vector<8x384xf32> to vector<8x128xf32>
    %914 = vector.extract_strided_slice %896 {offsets = [0, 256], sizes = [8, 128], strides = [1, 1]} : vector<8x384xf32> to vector<8x128xf32>
    %915 = arith.mulf %904, %914 : vector<8x128xf32>
    %916 = arith.addf %913, %915 : vector<8x128xf32>
    %917 = math.tanh %916 : vector<8x128xf32>
    %cst_188 = arith.constant 1.000000e+00 : f32
    %918 = vector.broadcast %cst_188 : f32 to vector<8x128xf32>
    %919 = arith.subf %918, %912 : vector<8x128xf32>
    %920 = arith.mulf %919, %917 : vector<8x128xf32>
    %921 = arith.mulf %912, %884 : vector<8x128xf32>
    %922 = arith.addf %920, %921 : vector<8x128xf32>
    %c23_i32 = arith.constant 23 : i32
    %923 = arith.addi %15, %c23_i32 : i32
    %c1_i32_189 = arith.constant 1 : i32
    %924 = arith.addi %923, %c1_i32_189 : i32
    %925 = vector.broadcast %924 : i32 to vector<8x1xi32>
    %926 = arith.cmpi eq, %14, %925 : vector<8x1xi32>
    %927 = vector.shape_cast %926 : vector<8x1xi1> to vector<8x1xi1>
    %928 = vector.broadcast %927 : vector<8x1xi1> to vector<8x128xi1>
    %929 = arith.select %928, %922, %891 : vector<8x128xi1>, vector<8x128xf32>
    %c24 = arith.constant 24 : index
    %c0_190 = arith.constant 0 : index
    %c0_191 = arith.constant 0 : index
    %930 = vector.load %arg10[%c24, %c0_190, %c0_191] : memref<30x8x384xf32, #tpu.memory_space<vmem>>, vector<1x8x384xf32>
    %931 = vector.shape_cast %930 : vector<1x8x384xf32> to vector<8x384xf32>
    %cst_192 = arith.constant dense<0.000000e+00> : vector<8x384xf32>
    %932 = tpu.matmul %922, %12, %cst_192 {dimension_numbers = #tpu.dot_dimension_numbers<[1], [0], [0], [1], [0, 0, 1, 1], [], []>} : vector<8x128xf32>, vector<128x384xf32>, vector<8x384xf32> -> vector<8x384xf32>
    %933 = vector.broadcast %13 : vector<1x384xf32> to vector<8x384xf32>
    %934 = arith.addf %932, %933 : vector<8x384xf32>
    %935 = vector.extract_strided_slice %931 {offsets = [0, 0], sizes = [8, 128], strides = [1, 1]} : vector<8x384xf32> to vector<8x128xf32>
    %936 = vector.extract_strided_slice %934 {offsets = [0, 0], sizes = [8, 128], strides = [1, 1]} : vector<8x384xf32> to vector<8x128xf32>
    %937 = arith.addf %935, %936 : vector<8x128xf32>
    %938 = arith.negf %937 : vector<8x128xf32>
    %939 = math.exp %938 : vector<8x128xf32>
    %cst_193 = arith.constant 1.000000e+00 : f32
    %940 = vector.broadcast %cst_193 : f32 to vector<8x128xf32>
    %941 = arith.addf %940, %939 : vector<8x128xf32>
    %942 = arith.divf %940, %941 : vector<8x128xf32>
    %943 = vector.extract_strided_slice %931 {offsets = [0, 128], sizes = [8, 128], strides = [1, 1]} : vector<8x384xf32> to vector<8x128xf32>
    %944 = vector.extract_strided_slice %934 {offsets = [0, 128], sizes = [8, 128], strides = [1, 1]} : vector<8x384xf32> to vector<8x128xf32>
    %945 = arith.addf %943, %944 : vector<8x128xf32>
    %946 = arith.negf %945 : vector<8x128xf32>
    %947 = math.exp %946 : vector<8x128xf32>
    %cst_194 = arith.constant 1.000000e+00 : f32
    %948 = vector.broadcast %cst_194 : f32 to vector<8x128xf32>
    %949 = arith.addf %948, %947 : vector<8x128xf32>
    %950 = arith.divf %948, %949 : vector<8x128xf32>
    %951 = vector.extract_strided_slice %931 {offsets = [0, 256], sizes = [8, 128], strides = [1, 1]} : vector<8x384xf32> to vector<8x128xf32>
    %952 = vector.extract_strided_slice %934 {offsets = [0, 256], sizes = [8, 128], strides = [1, 1]} : vector<8x384xf32> to vector<8x128xf32>
    %953 = arith.mulf %942, %952 : vector<8x128xf32>
    %954 = arith.addf %951, %953 : vector<8x128xf32>
    %955 = math.tanh %954 : vector<8x128xf32>
    %cst_195 = arith.constant 1.000000e+00 : f32
    %956 = vector.broadcast %cst_195 : f32 to vector<8x128xf32>
    %957 = arith.subf %956, %950 : vector<8x128xf32>
    %958 = arith.mulf %957, %955 : vector<8x128xf32>
    %959 = arith.mulf %950, %922 : vector<8x128xf32>
    %960 = arith.addf %958, %959 : vector<8x128xf32>
    %c24_i32 = arith.constant 24 : i32
    %961 = arith.addi %15, %c24_i32 : i32
    %c1_i32_196 = arith.constant 1 : i32
    %962 = arith.addi %961, %c1_i32_196 : i32
    %963 = vector.broadcast %962 : i32 to vector<8x1xi32>
    %964 = arith.cmpi eq, %14, %963 : vector<8x1xi32>
    %965 = vector.shape_cast %964 : vector<8x1xi1> to vector<8x1xi1>
    %966 = vector.broadcast %965 : vector<8x1xi1> to vector<8x128xi1>
    %967 = arith.select %966, %960, %929 : vector<8x128xi1>, vector<8x128xf32>
    %c25 = arith.constant 25 : index
    %c0_197 = arith.constant 0 : index
    %c0_198 = arith.constant 0 : index
    %968 = vector.load %arg10[%c25, %c0_197, %c0_198] : memref<30x8x384xf32, #tpu.memory_space<vmem>>, vector<1x8x384xf32>
    %969 = vector.shape_cast %968 : vector<1x8x384xf32> to vector<8x384xf32>
    %cst_199 = arith.constant dense<0.000000e+00> : vector<8x384xf32>
    %970 = tpu.matmul %960, %12, %cst_199 {dimension_numbers = #tpu.dot_dimension_numbers<[1], [0], [0], [1], [0, 0, 1, 1], [], []>} : vector<8x128xf32>, vector<128x384xf32>, vector<8x384xf32> -> vector<8x384xf32>
    %971 = vector.broadcast %13 : vector<1x384xf32> to vector<8x384xf32>
    %972 = arith.addf %970, %971 : vector<8x384xf32>
    %973 = vector.extract_strided_slice %969 {offsets = [0, 0], sizes = [8, 128], strides = [1, 1]} : vector<8x384xf32> to vector<8x128xf32>
    %974 = vector.extract_strided_slice %972 {offsets = [0, 0], sizes = [8, 128], strides = [1, 1]} : vector<8x384xf32> to vector<8x128xf32>
    %975 = arith.addf %973, %974 : vector<8x128xf32>
    %976 = arith.negf %975 : vector<8x128xf32>
    %977 = math.exp %976 : vector<8x128xf32>
    %cst_200 = arith.constant 1.000000e+00 : f32
    %978 = vector.broadcast %cst_200 : f32 to vector<8x128xf32>
    %979 = arith.addf %978, %977 : vector<8x128xf32>
    %980 = arith.divf %978, %979 : vector<8x128xf32>
    %981 = vector.extract_strided_slice %969 {offsets = [0, 128], sizes = [8, 128], strides = [1, 1]} : vector<8x384xf32> to vector<8x128xf32>
    %982 = vector.extract_strided_slice %972 {offsets = [0, 128], sizes = [8, 128], strides = [1, 1]} : vector<8x384xf32> to vector<8x128xf32>
    %983 = arith.addf %981, %982 : vector<8x128xf32>
    %984 = arith.negf %983 : vector<8x128xf32>
    %985 = math.exp %984 : vector<8x128xf32>
    %cst_201 = arith.constant 1.000000e+00 : f32
    %986 = vector.broadcast %cst_201 : f32 to vector<8x128xf32>
    %987 = arith.addf %986, %985 : vector<8x128xf32>
    %988 = arith.divf %986, %987 : vector<8x128xf32>
    %989 = vector.extract_strided_slice %969 {offsets = [0, 256], sizes = [8, 128], strides = [1, 1]} : vector<8x384xf32> to vector<8x128xf32>
    %990 = vector.extract_strided_slice %972 {offsets = [0, 256], sizes = [8, 128], strides = [1, 1]} : vector<8x384xf32> to vector<8x128xf32>
    %991 = arith.mulf %980, %990 : vector<8x128xf32>
    %992 = arith.addf %989, %991 : vector<8x128xf32>
    %993 = math.tanh %992 : vector<8x128xf32>
    %cst_202 = arith.constant 1.000000e+00 : f32
    %994 = vector.broadcast %cst_202 : f32 to vector<8x128xf32>
    %995 = arith.subf %994, %988 : vector<8x128xf32>
    %996 = arith.mulf %995, %993 : vector<8x128xf32>
    %997 = arith.mulf %988, %960 : vector<8x128xf32>
    %998 = arith.addf %996, %997 : vector<8x128xf32>
    %c25_i32 = arith.constant 25 : i32
    %999 = arith.addi %15, %c25_i32 : i32
    %c1_i32_203 = arith.constant 1 : i32
    %1000 = arith.addi %999, %c1_i32_203 : i32
    %1001 = vector.broadcast %1000 : i32 to vector<8x1xi32>
    %1002 = arith.cmpi eq, %14, %1001 : vector<8x1xi32>
    %1003 = vector.shape_cast %1002 : vector<8x1xi1> to vector<8x1xi1>
    %1004 = vector.broadcast %1003 : vector<8x1xi1> to vector<8x128xi1>
    %1005 = arith.select %1004, %998, %967 : vector<8x128xi1>, vector<8x128xf32>
    %c26 = arith.constant 26 : index
    %c0_204 = arith.constant 0 : index
    %c0_205 = arith.constant 0 : index
    %1006 = vector.load %arg10[%c26, %c0_204, %c0_205] : memref<30x8x384xf32, #tpu.memory_space<vmem>>, vector<1x8x384xf32>
    %1007 = vector.shape_cast %1006 : vector<1x8x384xf32> to vector<8x384xf32>
    %cst_206 = arith.constant dense<0.000000e+00> : vector<8x384xf32>
    %1008 = tpu.matmul %998, %12, %cst_206 {dimension_numbers = #tpu.dot_dimension_numbers<[1], [0], [0], [1], [0, 0, 1, 1], [], []>} : vector<8x128xf32>, vector<128x384xf32>, vector<8x384xf32> -> vector<8x384xf32>
    %1009 = vector.broadcast %13 : vector<1x384xf32> to vector<8x384xf32>
    %1010 = arith.addf %1008, %1009 : vector<8x384xf32>
    %1011 = vector.extract_strided_slice %1007 {offsets = [0, 0], sizes = [8, 128], strides = [1, 1]} : vector<8x384xf32> to vector<8x128xf32>
    %1012 = vector.extract_strided_slice %1010 {offsets = [0, 0], sizes = [8, 128], strides = [1, 1]} : vector<8x384xf32> to vector<8x128xf32>
    %1013 = arith.addf %1011, %1012 : vector<8x128xf32>
    %1014 = arith.negf %1013 : vector<8x128xf32>
    %1015 = math.exp %1014 : vector<8x128xf32>
    %cst_207 = arith.constant 1.000000e+00 : f32
    %1016 = vector.broadcast %cst_207 : f32 to vector<8x128xf32>
    %1017 = arith.addf %1016, %1015 : vector<8x128xf32>
    %1018 = arith.divf %1016, %1017 : vector<8x128xf32>
    %1019 = vector.extract_strided_slice %1007 {offsets = [0, 128], sizes = [8, 128], strides = [1, 1]} : vector<8x384xf32> to vector<8x128xf32>
    %1020 = vector.extract_strided_slice %1010 {offsets = [0, 128], sizes = [8, 128], strides = [1, 1]} : vector<8x384xf32> to vector<8x128xf32>
    %1021 = arith.addf %1019, %1020 : vector<8x128xf32>
    %1022 = arith.negf %1021 : vector<8x128xf32>
    %1023 = math.exp %1022 : vector<8x128xf32>
    %cst_208 = arith.constant 1.000000e+00 : f32
    %1024 = vector.broadcast %cst_208 : f32 to vector<8x128xf32>
    %1025 = arith.addf %1024, %1023 : vector<8x128xf32>
    %1026 = arith.divf %1024, %1025 : vector<8x128xf32>
    %1027 = vector.extract_strided_slice %1007 {offsets = [0, 256], sizes = [8, 128], strides = [1, 1]} : vector<8x384xf32> to vector<8x128xf32>
    %1028 = vector.extract_strided_slice %1010 {offsets = [0, 256], sizes = [8, 128], strides = [1, 1]} : vector<8x384xf32> to vector<8x128xf32>
    %1029 = arith.mulf %1018, %1028 : vector<8x128xf32>
    %1030 = arith.addf %1027, %1029 : vector<8x128xf32>
    %1031 = math.tanh %1030 : vector<8x128xf32>
    %cst_209 = arith.constant 1.000000e+00 : f32
    %1032 = vector.broadcast %cst_209 : f32 to vector<8x128xf32>
    %1033 = arith.subf %1032, %1026 : vector<8x128xf32>
    %1034 = arith.mulf %1033, %1031 : vector<8x128xf32>
    %1035 = arith.mulf %1026, %998 : vector<8x128xf32>
    %1036 = arith.addf %1034, %1035 : vector<8x128xf32>
    %c26_i32 = arith.constant 26 : i32
    %1037 = arith.addi %15, %c26_i32 : i32
    %c1_i32_210 = arith.constant 1 : i32
    %1038 = arith.addi %1037, %c1_i32_210 : i32
    %1039 = vector.broadcast %1038 : i32 to vector<8x1xi32>
    %1040 = arith.cmpi eq, %14, %1039 : vector<8x1xi32>
    %1041 = vector.shape_cast %1040 : vector<8x1xi1> to vector<8x1xi1>
    %1042 = vector.broadcast %1041 : vector<8x1xi1> to vector<8x128xi1>
    %1043 = arith.select %1042, %1036, %1005 : vector<8x128xi1>, vector<8x128xf32>
    %c27 = arith.constant 27 : index
    %c0_211 = arith.constant 0 : index
    %c0_212 = arith.constant 0 : index
    %1044 = vector.load %arg10[%c27, %c0_211, %c0_212] : memref<30x8x384xf32, #tpu.memory_space<vmem>>, vector<1x8x384xf32>
    %1045 = vector.shape_cast %1044 : vector<1x8x384xf32> to vector<8x384xf32>
    %cst_213 = arith.constant dense<0.000000e+00> : vector<8x384xf32>
    %1046 = tpu.matmul %1036, %12, %cst_213 {dimension_numbers = #tpu.dot_dimension_numbers<[1], [0], [0], [1], [0, 0, 1, 1], [], []>} : vector<8x128xf32>, vector<128x384xf32>, vector<8x384xf32> -> vector<8x384xf32>
    %1047 = vector.broadcast %13 : vector<1x384xf32> to vector<8x384xf32>
    %1048 = arith.addf %1046, %1047 : vector<8x384xf32>
    %1049 = vector.extract_strided_slice %1045 {offsets = [0, 0], sizes = [8, 128], strides = [1, 1]} : vector<8x384xf32> to vector<8x128xf32>
    %1050 = vector.extract_strided_slice %1048 {offsets = [0, 0], sizes = [8, 128], strides = [1, 1]} : vector<8x384xf32> to vector<8x128xf32>
    %1051 = arith.addf %1049, %1050 : vector<8x128xf32>
    %1052 = arith.negf %1051 : vector<8x128xf32>
    %1053 = math.exp %1052 : vector<8x128xf32>
    %cst_214 = arith.constant 1.000000e+00 : f32
    %1054 = vector.broadcast %cst_214 : f32 to vector<8x128xf32>
    %1055 = arith.addf %1054, %1053 : vector<8x128xf32>
    %1056 = arith.divf %1054, %1055 : vector<8x128xf32>
    %1057 = vector.extract_strided_slice %1045 {offsets = [0, 128], sizes = [8, 128], strides = [1, 1]} : vector<8x384xf32> to vector<8x128xf32>
    %1058 = vector.extract_strided_slice %1048 {offsets = [0, 128], sizes = [8, 128], strides = [1, 1]} : vector<8x384xf32> to vector<8x128xf32>
    %1059 = arith.addf %1057, %1058 : vector<8x128xf32>
    %1060 = arith.negf %1059 : vector<8x128xf32>
    %1061 = math.exp %1060 : vector<8x128xf32>
    %cst_215 = arith.constant 1.000000e+00 : f32
    %1062 = vector.broadcast %cst_215 : f32 to vector<8x128xf32>
    %1063 = arith.addf %1062, %1061 : vector<8x128xf32>
    %1064 = arith.divf %1062, %1063 : vector<8x128xf32>
    %1065 = vector.extract_strided_slice %1045 {offsets = [0, 256], sizes = [8, 128], strides = [1, 1]} : vector<8x384xf32> to vector<8x128xf32>
    %1066 = vector.extract_strided_slice %1048 {offsets = [0, 256], sizes = [8, 128], strides = [1, 1]} : vector<8x384xf32> to vector<8x128xf32>
    %1067 = arith.mulf %1056, %1066 : vector<8x128xf32>
    %1068 = arith.addf %1065, %1067 : vector<8x128xf32>
    %1069 = math.tanh %1068 : vector<8x128xf32>
    %cst_216 = arith.constant 1.000000e+00 : f32
    %1070 = vector.broadcast %cst_216 : f32 to vector<8x128xf32>
    %1071 = arith.subf %1070, %1064 : vector<8x128xf32>
    %1072 = arith.mulf %1071, %1069 : vector<8x128xf32>
    %1073 = arith.mulf %1064, %1036 : vector<8x128xf32>
    %1074 = arith.addf %1072, %1073 : vector<8x128xf32>
    %c27_i32 = arith.constant 27 : i32
    %1075 = arith.addi %15, %c27_i32 : i32
    %c1_i32_217 = arith.constant 1 : i32
    %1076 = arith.addi %1075, %c1_i32_217 : i32
    %1077 = vector.broadcast %1076 : i32 to vector<8x1xi32>
    %1078 = arith.cmpi eq, %14, %1077 : vector<8x1xi32>
    %1079 = vector.shape_cast %1078 : vector<8x1xi1> to vector<8x1xi1>
    %1080 = vector.broadcast %1079 : vector<8x1xi1> to vector<8x128xi1>
    %1081 = arith.select %1080, %1074, %1043 : vector<8x128xi1>, vector<8x128xf32>
    %c28 = arith.constant 28 : index
    %c0_218 = arith.constant 0 : index
    %c0_219 = arith.constant 0 : index
    %1082 = vector.load %arg10[%c28, %c0_218, %c0_219] : memref<30x8x384xf32, #tpu.memory_space<vmem>>, vector<1x8x384xf32>
    %1083 = vector.shape_cast %1082 : vector<1x8x384xf32> to vector<8x384xf32>
    %cst_220 = arith.constant dense<0.000000e+00> : vector<8x384xf32>
    %1084 = tpu.matmul %1074, %12, %cst_220 {dimension_numbers = #tpu.dot_dimension_numbers<[1], [0], [0], [1], [0, 0, 1, 1], [], []>} : vector<8x128xf32>, vector<128x384xf32>, vector<8x384xf32> -> vector<8x384xf32>
    %1085 = vector.broadcast %13 : vector<1x384xf32> to vector<8x384xf32>
    %1086 = arith.addf %1084, %1085 : vector<8x384xf32>
    %1087 = vector.extract_strided_slice %1083 {offsets = [0, 0], sizes = [8, 128], strides = [1, 1]} : vector<8x384xf32> to vector<8x128xf32>
    %1088 = vector.extract_strided_slice %1086 {offsets = [0, 0], sizes = [8, 128], strides = [1, 1]} : vector<8x384xf32> to vector<8x128xf32>
    %1089 = arith.addf %1087, %1088 : vector<8x128xf32>
    %1090 = arith.negf %1089 : vector<8x128xf32>
    %1091 = math.exp %1090 : vector<8x128xf32>
    %cst_221 = arith.constant 1.000000e+00 : f32
    %1092 = vector.broadcast %cst_221 : f32 to vector<8x128xf32>
    %1093 = arith.addf %1092, %1091 : vector<8x128xf32>
    %1094 = arith.divf %1092, %1093 : vector<8x128xf32>
    %1095 = vector.extract_strided_slice %1083 {offsets = [0, 128], sizes = [8, 128], strides = [1, 1]} : vector<8x384xf32> to vector<8x128xf32>
    %1096 = vector.extract_strided_slice %1086 {offsets = [0, 128], sizes = [8, 128], strides = [1, 1]} : vector<8x384xf32> to vector<8x128xf32>
    %1097 = arith.addf %1095, %1096 : vector<8x128xf32>
    %1098 = arith.negf %1097 : vector<8x128xf32>
    %1099 = math.exp %1098 : vector<8x128xf32>
    %cst_222 = arith.constant 1.000000e+00 : f32
    %1100 = vector.broadcast %cst_222 : f32 to vector<8x128xf32>
    %1101 = arith.addf %1100, %1099 : vector<8x128xf32>
    %1102 = arith.divf %1100, %1101 : vector<8x128xf32>
    %1103 = vector.extract_strided_slice %1083 {offsets = [0, 256], sizes = [8, 128], strides = [1, 1]} : vector<8x384xf32> to vector<8x128xf32>
    %1104 = vector.extract_strided_slice %1086 {offsets = [0, 256], sizes = [8, 128], strides = [1, 1]} : vector<8x384xf32> to vector<8x128xf32>
    %1105 = arith.mulf %1094, %1104 : vector<8x128xf32>
    %1106 = arith.addf %1103, %1105 : vector<8x128xf32>
    %1107 = math.tanh %1106 : vector<8x128xf32>
    %cst_223 = arith.constant 1.000000e+00 : f32
    %1108 = vector.broadcast %cst_223 : f32 to vector<8x128xf32>
    %1109 = arith.subf %1108, %1102 : vector<8x128xf32>
    %1110 = arith.mulf %1109, %1107 : vector<8x128xf32>
    %1111 = arith.mulf %1102, %1074 : vector<8x128xf32>
    %1112 = arith.addf %1110, %1111 : vector<8x128xf32>
    %c28_i32 = arith.constant 28 : i32
    %1113 = arith.addi %15, %c28_i32 : i32
    %c1_i32_224 = arith.constant 1 : i32
    %1114 = arith.addi %1113, %c1_i32_224 : i32
    %1115 = vector.broadcast %1114 : i32 to vector<8x1xi32>
    %1116 = arith.cmpi eq, %14, %1115 : vector<8x1xi32>
    %1117 = vector.shape_cast %1116 : vector<8x1xi1> to vector<8x1xi1>
    %1118 = vector.broadcast %1117 : vector<8x1xi1> to vector<8x128xi1>
    %1119 = arith.select %1118, %1112, %1081 : vector<8x128xi1>, vector<8x128xf32>
    %c29 = arith.constant 29 : index
    %c0_225 = arith.constant 0 : index
    %c0_226 = arith.constant 0 : index
    %1120 = vector.load %arg10[%c29, %c0_225, %c0_226] : memref<30x8x384xf32, #tpu.memory_space<vmem>>, vector<1x8x384xf32>
    %1121 = vector.shape_cast %1120 : vector<1x8x384xf32> to vector<8x384xf32>
    %cst_227 = arith.constant dense<0.000000e+00> : vector<8x384xf32>
    %1122 = tpu.matmul %1112, %12, %cst_227 {dimension_numbers = #tpu.dot_dimension_numbers<[1], [0], [0], [1], [0, 0, 1, 1], [], []>} : vector<8x128xf32>, vector<128x384xf32>, vector<8x384xf32> -> vector<8x384xf32>
    %1123 = vector.broadcast %13 : vector<1x384xf32> to vector<8x384xf32>
    %1124 = arith.addf %1122, %1123 : vector<8x384xf32>
    %1125 = vector.extract_strided_slice %1121 {offsets = [0, 0], sizes = [8, 128], strides = [1, 1]} : vector<8x384xf32> to vector<8x128xf32>
    %1126 = vector.extract_strided_slice %1124 {offsets = [0, 0], sizes = [8, 128], strides = [1, 1]} : vector<8x384xf32> to vector<8x128xf32>
    %1127 = arith.addf %1125, %1126 : vector<8x128xf32>
    %1128 = arith.negf %1127 : vector<8x128xf32>
    %1129 = math.exp %1128 : vector<8x128xf32>
    %cst_228 = arith.constant 1.000000e+00 : f32
    %1130 = vector.broadcast %cst_228 : f32 to vector<8x128xf32>
    %1131 = arith.addf %1130, %1129 : vector<8x128xf32>
    %1132 = arith.divf %1130, %1131 : vector<8x128xf32>
    %1133 = vector.extract_strided_slice %1121 {offsets = [0, 128], sizes = [8, 128], strides = [1, 1]} : vector<8x384xf32> to vector<8x128xf32>
    %1134 = vector.extract_strided_slice %1124 {offsets = [0, 128], sizes = [8, 128], strides = [1, 1]} : vector<8x384xf32> to vector<8x128xf32>
    %1135 = arith.addf %1133, %1134 : vector<8x128xf32>
    %1136 = arith.negf %1135 : vector<8x128xf32>
    %1137 = math.exp %1136 : vector<8x128xf32>
    %cst_229 = arith.constant 1.000000e+00 : f32
    %1138 = vector.broadcast %cst_229 : f32 to vector<8x128xf32>
    %1139 = arith.addf %1138, %1137 : vector<8x128xf32>
    %1140 = arith.divf %1138, %1139 : vector<8x128xf32>
    %1141 = vector.extract_strided_slice %1121 {offsets = [0, 256], sizes = [8, 128], strides = [1, 1]} : vector<8x384xf32> to vector<8x128xf32>
    %1142 = vector.extract_strided_slice %1124 {offsets = [0, 256], sizes = [8, 128], strides = [1, 1]} : vector<8x384xf32> to vector<8x128xf32>
    %1143 = arith.mulf %1132, %1142 : vector<8x128xf32>
    %1144 = arith.addf %1141, %1143 : vector<8x128xf32>
    %1145 = math.tanh %1144 : vector<8x128xf32>
    %cst_230 = arith.constant 1.000000e+00 : f32
    %1146 = vector.broadcast %cst_230 : f32 to vector<8x128xf32>
    %1147 = arith.subf %1146, %1140 : vector<8x128xf32>
    %1148 = arith.mulf %1147, %1145 : vector<8x128xf32>
    %1149 = arith.mulf %1140, %1112 : vector<8x128xf32>
    %1150 = arith.addf %1148, %1149 : vector<8x128xf32>
    %c29_i32 = arith.constant 29 : i32
    %1151 = arith.addi %15, %c29_i32 : i32
    %c1_i32_231 = arith.constant 1 : i32
    %1152 = arith.addi %1151, %c1_i32_231 : i32
    %1153 = vector.broadcast %1152 : i32 to vector<8x1xi32>
    %1154 = arith.cmpi eq, %14, %1153 : vector<8x1xi32>
    %1155 = vector.shape_cast %1154 : vector<8x1xi1> to vector<8x1xi1>
    %1156 = vector.broadcast %1155 : vector<8x1xi1> to vector<8x128xi1>
    %1157 = arith.select %1156, %1150, %1119 : vector<8x128xi1>, vector<8x128xf32>
    %c0_232 = arith.constant 0 : index
    %c0_233 = arith.constant 0 : index
    %1158 = vector.load %arg11[%c0_232, %c0_233] : memref<8x128xf32, #tpu.memory_space<vmem>>, vector<8x128xf32>
    tpu.vector_store %arg11[%c0_232, %c0_233], %1150 {strides = array<i32>} : memref<8x128xf32, #tpu.memory_space<vmem>>, vector<8x128xf32>,
    %c0_234 = arith.constant 0 : index
    %c0_235 = arith.constant 0 : index
    %1159 = vector.load %arg12[%c0_234, %c0_235] : memref<8x128xf32, #tpu.memory_space<vmem>>, vector<8x128xf32>
    tpu.vector_store %arg12[%c0_234, %c0_235], %1157 {strides = array<i32>} : memref<8x128xf32, #tpu.memory_space<vmem>>, vector<8x128xf32>,
    %c4_i32_236 = arith.constant 4 : i32
    %1160 = arith.cmpi eq, %arg0, %c4_i32_236 : i32
    %1161 = arith.extui %1160 : i1 to i32
    %c0_i32_237 = arith.constant 0 : i32
    %1162 = arith.cmpi ne, %1161, %c0_i32_237 : i32
    scf.if %1162 {
      %c0_238 = arith.constant 0 : index
      %c0_239 = arith.constant 0 : index
      %1163 = vector.load %arg7[%c0_238, %c0_239] : memref<128x128xf32, #tpu.memory_space<vmem>>, vector<128x128xf32>
      %cst_240 = arith.constant dense<0.000000e+00> : vector<8x128xf32>
      %1164 = tpu.matmul %1157, %1163, %cst_240 {dimension_numbers = #tpu.dot_dimension_numbers<[1], [0], [0], [1], [0, 0, 1, 1], [], []>} : vector<8x128xf32>, vector<128x128xf32>, vector<8x128xf32> -> vector<8x128xf32>
      %c0_241 = arith.constant 0 : index
      %c0_242 = arith.constant 0 : index
      %1165 = vector.load %arg8[%c0_241, %c0_242] : memref<1x128xf32, #tpu.memory_space<vmem>>, vector<1x128xf32>
      %1166 = vector.broadcast %1165 : vector<1x128xf32> to vector<8x128xf32>
      %1167 = arith.addf %1164, %1166 : vector<8x128xf32>
      %c0_243 = arith.constant 0 : index
      %c0_244 = arith.constant 0 : index
      %1168 = vector.load %arg9[%c0_243, %c0_244] : memref<8x128xf32, #tpu.memory_space<vmem>>, vector<8x128xf32>
      tpu.vector_store %arg9[%c0_243, %c0_244], %1167 {strides = array<i32>} : memref<8x128xf32, #tpu.memory_space<vmem>>, vector<8x128xf32>,
    } else {
    }
    return
  }
  func.func @transform_0(%arg0: i32) -> (i32, i32, i32) {
    %c0_i32 = arith.constant 0 : i32
    %c0_i32_0 = arith.constant 0 : i32
    %c0_i32_1 = arith.constant 0 : i32
    return %arg0, %c0_i32, %c0_i32_0 : i32, i32, i32
  }
  func.func @transform_1(%arg0: i32) -> (i32, i32) {
    %c0_i32 = arith.constant 0 : i32
    %c0_i32_0 = arith.constant 0 : i32
    %c0_i32_1 = arith.constant 0 : i32
    return %c0_i32, %c0_i32_0 : i32, i32
  }
  func.func @transform_2(%arg0: i32) -> (i32, i32) {
    %c0_i32 = arith.constant 0 : i32
    %c0_i32_0 = arith.constant 0 : i32
    %c0_i32_1 = arith.constant 0 : i32
    return %c0_i32, %c0_i32_0 : i32, i32
  }
  func.func @transform_3(%arg0: i32) -> (i32, i32) {
    %c0_i32 = arith.constant 0 : i32
    %c0_i32_0 = arith.constant 0 : i32
    %c0_i32_1 = arith.constant 0 : i32
    return %c0_i32, %c0_i32_0 : i32, i32
  }
  func.func @transform_4(%arg0: i32) -> (i32, i32) {
    %c0_i32 = arith.constant 0 : i32
    %c0_i32_0 = arith.constant 0 : i32
    %c0_i32_1 = arith.constant 0 : i32
    return %c0_i32, %c0_i32_0 : i32, i32
  }
  func.func @transform_5(%arg0: i32) -> (i32, i32) {
    %c0_i32 = arith.constant 0 : i32
    %c0_i32_0 = arith.constant 0 : i32
    %c0_i32_1 = arith.constant 0 : i32
    return %c0_i32, %c0_i32_0 : i32, i32
  }
  func.func @transform_6(%arg0: i32) -> (i32, i32) {
    %c0_i32 = arith.constant 0 : i32
    %c0_i32_0 = arith.constant 0 : i32
    %c0_i32_1 = arith.constant 0 : i32
    return %c0_i32, %c0_i32_0 : i32, i32
  }
  func.func @transform_7(%arg0: i32) -> (i32, i32) {
    %c0_i32 = arith.constant 0 : i32
    %c0_i32_0 = arith.constant 0 : i32
    %c0_i32_1 = arith.constant 0 : i32
    return %c0_i32, %c0_i32_0 : i32, i32
  }
  func.func @transform_8(%arg0: i32) -> (i32, i32) {
    %c0_i32 = arith.constant 0 : i32
    %c0_i32_0 = arith.constant 0 : i32
    %c0_i32_1 = arith.constant 0 : i32
    return %c0_i32, %c0_i32_0 : i32, i32
  }
}

</mosaic_0001>

<llo_original>
// kernel: post_predictive_forward.1
$region0: #{post_predictive_forward.1}
  #allocation0 [shape = 'u32[]', space=smem, size = 0x4, offset = 0x4, fixed_abs, tag = 'smem constant byte address 0x4 - core index']
  #allocation1 [shape = 'u32[144,128]{1,0:T(1,128)}', space=vmem, size = 0x12000, scoped, tag = 'internal scratch']
  #allocation2 [shape = 'f32[30,8,384]{2,1,0:T(8,128)}', space=vmem, size = 0x5a000, scoped, tag = 'scratch operand']
  #allocation3 [shape = 'f32[8,128]{1,0:T(8,128)}', space=vmem, size = 0x1000, scoped, tag = 'scratch operand']
  #allocation4 [shape = 'f32[8,128]{1,0:T(8,128)}', space=vmem, size = 0x1000, scoped, tag = 'scratch operand']
  %s0 = inlined_call_operand.vmem [shape: f32[150,8,768], index: 0, kind: input, shape index: {}]
  %s1 = inlined_call_operand.vmem [shape: s32[8,1], index: 1, kind: input, shape index: {}]
  %s2 = inlined_call_operand.vmem [shape: f32[768,384], index: 2, kind: input, shape index: {}]
  %s3 = inlined_call_operand.vmem [shape: f32[1,384], index: 3, kind: input, shape index: {}]
  %s4 = inlined_call_operand.vmem [shape: f32[128,384], index: 4, kind: input, shape index: {}]
  %s5 = inlined_call_operand.vmem [shape: f32[1,384], index: 5, kind: input, shape index: {}]
  %s6 = inlined_call_operand.vmem [shape: f32[128,128], index: 6, kind: input, shape index: {}]
  %s7 = inlined_call_operand.vmem [shape: f32[1,128], index: 7, kind: input, shape index: {}]
  %s8 = inlined_call_operand.vmem [shape: f32[8,128], index: 8, kind: output, shape index: {}]
  %s9 = sld [smem:[#allocation0]]
  $region73: #{post_predictive_forward.1} parent=0
    _
  %s11 = ssub.s32 1, %s9
  %s12 = scalar_select 0, %s11, %s9
  loop: start=0, step=1, limit=7
  $region2: #{post_predictive_forward.1} parent=0 // loop_pre_header
    _
  $region3: #{post_predictive_forward.1} parent=0 // loop_header
    %s14 = sphi 0, %s18
    %p15 = scmp.ge.s32.totalorder %s14, 7
    %s24 = sphi 0, %s26
    %s27 = sphi 0, %s24
    %s28 = sphi 0, %s27
    %s44 = sphi 0, %s28
    %s48 = sphi 0, %s48
    %s50 = sphi 0, %s48
    %s51 = sphi 0, %s50
    %s65 = sphi 0, %s51
    %s69 = sphi 0, %s69
    %s71 = sphi 0, %s69
    %s72 = sphi 0, %s71
    %s86 = sphi 0, %s72
    %s90 = sphi 0, %s90
    %s92 = sphi 0, %s90
    %s93 = sphi 0, %s92
    %s107 = sphi 0, %s93
    %s111 = sphi 0, %s111
    %s113 = sphi 0, %s111
    %s114 = sphi 0, %s113
    %s128 = sphi 0, %s114
    %s132 = sphi 0, %s132
    %s134 = sphi 0, %s132
    %s135 = sphi 0, %s134
    %s149 = sphi 0, %s135
    %s153 = sphi 0, %s153
    %s155 = sphi 0, %s153
    %s156 = sphi 0, %s155
    %s170 = sphi 0, %s156
    %s174 = sphi 0, %s174
    %s176 = sphi 0, %s174
    %s177 = sphi 0, %s176
    %s191 = sphi 0, %s177
    %s195 = sphi 0, %s195
    %s197 = sphi 0, %s195
    %s198 = sphi 0, %s197
    %s212 = sphi 0, %s198
  $region4: #{post_predictive_forward.1} parent=0 // loop_header_branch
    %17 = sbr.rel (%p15) target = $region8
  $region5: #{post_predictive_forward.1} parent=0 // loop_body
    %s19 = ssub.s32 %s14, 1
    %s20 = ssub.s32 %s14, 2
    %s21 = sadd.s32 %s14, 1
    %s22 = ssub.s32 %s14, %s21
    %p23 = scmp.eq.s32.totalorder %s22, 0
    %s25 = sadd.s32 %s24, 1
    %s26 = scalar_select %p23, %s24, %s25
    %p29 = pneg %p23
    %p30 = scmp.eq.s32.totalorder %s14, 4
    %p31 = por %p29, %p30
    %p32 = scmp.ne.s32.totalorder %s24, %s27
    %p33 = scmp.eq.s32.totalorder %s14, 0
    %p34 = por %p32, %p33
    %p35 = scmp.ne.s32.totalorder %s24, %s27
    %p36 = scmp.eq.s32.totalorder %s19, 4
    %p37 = por %p35, %p36
    %p38 = scmp.ne.s32.totalorder %s27, %s28
    %p39 = scmp.eq.s32.totalorder %s19, 0
    %p40 = por %p38, %p39
    %p41 = scmp.ne.s32.totalorder %s27, %s28
    %p42 = scmp.eq.s32.totalorder %s20, 4
    %p43 = por %p41, %p42
    %p45 = scmp.ne.s32.totalorder %s28, %s44
    %p46 = scmp.eq.s32.totalorder %s20, 0
    %p47 = por %p45, %p46
    %s49 = sadd.s32 %s48, 1
    %p52 = scmp.eq.s32.totalorder %s14, 4
    %p53 = scmp.ne.s32.totalorder %s48, %s50
    %p54 = scmp.eq.s32.totalorder %s14, 0
    %p55 = por %p53, %p54
    %p56 = scmp.ne.s32.totalorder %s48, %s50
    %p57 = scmp.eq.s32.totalorder %s19, 4
    %p58 = por %p56, %p57
    %p59 = scmp.ne.s32.totalorder %s50, %s51
    %p60 = scmp.eq.s32.totalorder %s19, 0
    %p61 = por %p59, %p60
    %p62 = scmp.ne.s32.totalorder %s50, %s51
    %p63 = scmp.eq.s32.totalorder %s20, 4
    %p64 = por %p62, %p63
    %p66 = scmp.ne.s32.totalorder %s51, %s65
    %p67 = scmp.eq.s32.totalorder %s20, 0
    %p68 = por %p66, %p67
    %s70 = sadd.s32 %s69, 1
    %p73 = scmp.eq.s32.totalorder %s14, 4
    %p74 = scmp.ne.s32.totalorder %s69, %s71
    %p75 = scmp.eq.s32.totalorder %s14, 0
    %p76 = por %p74, %p75
    %p77 = scmp.ne.s32.totalorder %s69, %s71
    %p78 = scmp.eq.s32.totalorder %s19, 4
    %p79 = por %p77, %p78
    %p80 = scmp.ne.s32.totalorder %s71, %s72
    %p81 = scmp.eq.s32.totalorder %s19, 0
    %p82 = por %p80, %p81
    %p83 = scmp.ne.s32.totalorder %s71, %s72
    %p84 = scmp.eq.s32.totalorder %s20, 4
    %p85 = por %p83, %p84
    %p87 = scmp.ne.s32.totalorder %s72, %s86
    %p88 = scmp.eq.s32.totalorder %s20, 0
    %p89 = por %p87, %p88
    %s91 = sadd.s32 %s90, 1
    %p94 = scmp.eq.s32.totalorder %s14, 4
    %p95 = scmp.ne.s32.totalorder %s90, %s92
    %p96 = scmp.eq.s32.totalorder %s14, 0
    %p97 = por %p95, %p96
    %p98 = scmp.ne.s32.totalorder %s90, %s92
    %p99 = scmp.eq.s32.totalorder %s19, 4
    %p100 = por %p98, %p99
    %p101 = scmp.ne.s32.totalorder %s92, %s93
    %p102 = scmp.eq.s32.totalorder %s19, 0
    %p103 = por %p101, %p102
    %p104 = scmp.ne.s32.totalorder %s92, %s93
    %p105 = scmp.eq.s32.totalorder %s20, 4
    %p106 = por %p104, %p105
    %p108 = scmp.ne.s32.totalorder %s93, %s107
    %p109 = scmp.eq.s32.totalorder %s20, 0
    %p110 = por %p108, %p109
    %s112 = sadd.s32 %s111, 1
    %p115 = scmp.eq.s32.totalorder %s14, 4
    %p116 = scmp.ne.s32.totalorder %s111, %s113
    %p117 = scmp.eq.s32.totalorder %s14, 0
    %p118 = por %p116, %p117
    %p119 = scmp.ne.s32.totalorder %s111, %s113
    %p120 = scmp.eq.s32.totalorder %s19, 4
    %p121 = por %p119, %p120
    %p122 = scmp.ne.s32.totalorder %s113, %s114
    %p123 = scmp.eq.s32.totalorder %s19, 0
    %p124 = por %p122, %p123
    %p125 = scmp.ne.s32.totalorder %s113, %s114
    %p126 = scmp.eq.s32.totalorder %s20, 4
    %p127 = por %p125, %p126
    %p129 = scmp.ne.s32.totalorder %s114, %s128
    %p130 = scmp.eq.s32.totalorder %s20, 0
    %p131 = por %p129, %p130
    %s133 = sadd.s32 %s132, 1
    %p136 = scmp.eq.s32.totalorder %s14, 4
    %p137 = scmp.ne.s32.totalorder %s132, %s134
    %p138 = scmp.eq.s32.totalorder %s14, 0
    %p139 = por %p137, %p138
    %p140 = scmp.ne.s32.totalorder %s132, %s134
    %p141 = scmp.eq.s32.totalorder %s19, 4
    %p142 = por %p140, %p141
    %p143 = scmp.ne.s32.totalorder %s134, %s135
    %p144 = scmp.eq.s32.totalorder %s19, 0
    %p145 = por %p143, %p144
    %p146 = scmp.ne.s32.totalorder %s134, %s135
    %p147 = scmp.eq.s32.totalorder %s20, 4
    %p148 = por %p146, %p147
    %p150 = scmp.ne.s32.totalorder %s135, %s149
    %p151 = scmp.eq.s32.totalorder %s20, 0
    %p152 = por %p150, %p151
    %s154 = sadd.s32 %s153, 1
    %p157 = scmp.eq.s32.totalorder %s14, 4
    %p158 = scmp.ne.s32.totalorder %s153, %s155
    %p159 = scmp.eq.s32.totalorder %s14, 0
    %p160 = por %p158, %p159
    %p161 = scmp.ne.s32.totalorder %s153, %s155
    %p162 = scmp.eq.s32.totalorder %s19, 4
    %p163 = por %p161, %p162
    %p164 = scmp.ne.s32.totalorder %s155, %s156
    %p165 = scmp.eq.s32.totalorder %s19, 0
    %p166 = por %p164, %p165
    %p167 = scmp.ne.s32.totalorder %s155, %s156
    %p168 = scmp.eq.s32.totalorder %s20, 4
    %p169 = por %p167, %p168
    %p171 = scmp.ne.s32.totalorder %s156, %s170
    %p172 = scmp.eq.s32.totalorder %s20, 0
    %p173 = por %p171, %p172
    %s175 = sadd.s32 %s174, 1
    %p178 = scmp.eq.s32.totalorder %s14, 4
    %p179 = scmp.ne.s32.totalorder %s174, %s176
    %p180 = scmp.eq.s32.totalorder %s14, 0
    %p181 = por %p179, %p180
    %p182 = scmp.ne.s32.totalorder %s174, %s176
    %p183 = scmp.eq.s32.totalorder %s19, 4
    %p184 = por %p182, %p183
    %p185 = scmp.ne.s32.totalorder %s176, %s177
    %p186 = scmp.eq.s32.totalorder %s19, 0
    %p187 = por %p185, %p186
    %p188 = scmp.ne.s32.totalorder %s176, %s177
    %p189 = scmp.eq.s32.totalorder %s20, 4
    %p190 = por %p188, %p189
    %p192 = scmp.ne.s32.totalorder %s177, %s191
    %p193 = scmp.eq.s32.totalorder %s20, 0
    %p194 = por %p192, %p193
    %s196 = sadd.s32 %s195, 1
    %p199 = scmp.eq.s32.totalorder %s14, 4
    %p200 = scmp.ne.s32.totalorder %s195, %s197
    %p201 = scmp.eq.s32.totalorder %s14, 0
    %p202 = por %p200, %p201
    %p203 = scmp.ne.s32.totalorder %s195, %s197
    %p204 = scmp.eq.s32.totalorder %s19, 4
    %p205 = por %p203, %p204
    %p206 = scmp.ne.s32.totalorder %s197, %s198
    %p207 = scmp.eq.s32.totalorder %s19, 0
    %p208 = por %p206, %p207
    %p209 = scmp.ne.s32.totalorder %s197, %s198
    %p210 = scmp.eq.s32.totalorder %s20, 4
    %p211 = por %p209, %p210
    %p213 = scmp.ne.s32.totalorder %s198, %s212
    %p214 = scmp.eq.s32.totalorder %s20, 0
    %p215 = por %p213, %p214
    %p216 = scmp.le.s32.totalorder 1, %s14
    %p217 = scmp.lt.s32.totalorder %s14, 6
    %p218 = pnand %p216, %p217
    %p219 = pneg %p218
    // Predicated region
    $region9: #{post_predictive_forward.1} parent=5 // pred_check
      _
    $region10: #{post_predictive_forward.1} parent=5 // pred_check_branch
      %221 = sbr.rel (%p218) target = $region12
    $region11: #{post_predictive_forward.1} parent=5 // pred_region
      %s222 = ssub.s32 %s14, 1
      // Predicated region
      $region13: #{post_predictive_forward.1} parent=11 // pred_check
        %p223 = pneg %p61
      $region14: #{post_predictive_forward.1} parent=11 // pred_check_branch
        %225 = sbr.rel (%p223) target = $region16
      $region15: #{post_predictive_forward.1} parent=11 // pred_region
        _
      $region16: #{post_predictive_forward.1} parent=11 // pred_fallthru
        _
      // Predicated region
      $region17: #{post_predictive_forward.1} parent=11 // pred_check
        %p226 = pneg %p82
      $region18: #{post_predictive_forward.1} parent=11 // pred_check_branch
        %228 = sbr.rel (%p226) target = $region20
      $region19: #{post_predictive_forward.1} parent=11 // pred_region
        _
      $region20: #{post_predictive_forward.1} parent=11 // pred_fallthru
        _
      // Predicated region
      $region21: #{post_predictive_forward.1} parent=11 // pred_check
        %p229 = pneg %p103
      $region22: #{post_predictive_forward.1} parent=11 // pred_check_branch
        %231 = sbr.rel (%p229) target = $region24
      $region23: #{post_predictive_forward.1} parent=11 // pred_region
        _
      $region24: #{post_predictive_forward.1} parent=11 // pred_fallthru
        _
      // Predicated region
      $region25: #{post_predictive_forward.1} parent=11 // pred_check
        %p232 = pneg %p124
      $region26: #{post_predictive_forward.1} parent=11 // pred_check_branch
        %234 = sbr.rel (%p232) target = $region28
      $region27: #{post_predictive_forward.1} parent=11 // pred_region
        _
      $region28: #{post_predictive_forward.1} parent=11 // pred_fallthru
        _
      // Predicated region
      $region29: #{post_predictive_forward.1} parent=11 // pred_check
        %p235 = pneg %p145
      $region30: #{post_predictive_forward.1} parent=11 // pred_check_branch
        %237 = sbr.rel (%p235) target = $region32
      $region31: #{post_predictive_forward.1} parent=11 // pred_region
        _
      $region32: #{post_predictive_forward.1} parent=11 // pred_fallthru
        _
      // Predicated region
      $region33: #{post_predictive_forward.1} parent=11 // pred_check
        %p238 = pneg %p166
      $region34: #{post_predictive_forward.1} parent=11 // pred_check_branch
        %240 = sbr.rel (%p238) target = $region36
      $region35: #{post_predictive_forward.1} parent=11 // pred_region
        _
      $region36: #{post_predictive_forward.1} parent=11 // pred_fallthru
        _
      // Predicated region
      $region37: #{post_predictive_forward.1} parent=11 // pred_check
        %p241 = pneg %p187
      $region38: #{post_predictive_forward.1} parent=11 // pred_check_branch
        %243 = sbr.rel (%p241) target = $region40
      $region39: #{post_predictive_forward.1} parent=11 // pred_region
        _
      $region40: #{post_predictive_forward.1} parent=11 // pred_fallthru
        _
    $region12: #{post_predictive_forward.1} parent=5 // pred_fallthru
      _
    %p244 = scmp.lt.s32.totalorder %s14, 5
    // Predicated region
    $region41: #{post_predictive_forward.1} parent=5 // pred_check
      %p245 = pneg %p244
    $region42: #{post_predictive_forward.1} parent=5 // pred_check_branch
      %247 = sbr.rel (%p245) target = $region44
    $region43: #{post_predictive_forward.1} parent=5 // pred_region
      // Predicated region
      $region45: #{post_predictive_forward.1} parent=43 // pred_check
        %p248 = pneg %p34
      $region46: #{post_predictive_forward.1} parent=43 // pred_check_branch
        %250 = sbr.rel (%p248) target = $region48
      $region47: #{post_predictive_forward.1} parent=43 // pred_region
        %s251 = smul.u32 30, %s14
        %p252 = scmp.lt.s32.totalorder %s251, 149
        %s253 = scalar_select %p252, %s251, 149
        %s254 = smul.addr %s253, 6
        %s255 = smul.addr %s254, 8
        %s256 = scalar_lea.vmem %s0, %s255
        %s257 = smul.u32 30, %s14
      $region48: #{post_predictive_forward.1} parent=43 // pred_fallthru
        _
    $region44: #{post_predictive_forward.1} parent=5 // pred_fallthru
      _
    %p258 = scmp.le.s32.totalorder 1, %s14
    %p259 = scmp.lt.s32.totalorder %s14, 6
    %p260 = pnand %p258, %p259
    %p261 = pneg %p260
    // Predicated region
    $region49: #{post_predictive_forward.1} parent=5 // pred_check
      _
    $region50: #{post_predictive_forward.1} parent=5 // pred_check_branch
      %263 = sbr.rel (%p260) target = $region52
    $region51: #{post_predictive_forward.1} parent=5 // pred_region
      %s264 = ssub.s32 %s14, 1
      %s265 = smul.u32 30, %s19
      %p266 = scmp.lt.s32.totalorder %s265, 149
      %s267 = scalar_select %p266, %s265, 149
      %s268 = smul.addr %s267, 6
      %s269 = smul.addr %s268, 8
      %s270 = scalar_lea.vmem %s0, %s269
      %p271 = pneg %p40
      %p272 = pneg %p37
      %p273 = pneg %p61
      %p274 = pneg %p58
      %p275 = pneg %p82
      %p276 = pneg %p79
      %p277 = pneg %p103
      %p278 = pneg %p100
      %p279 = pneg %p124
      %p280 = pneg %p121
      %p281 = pneg %p145
      %p282 = pneg %p142
      %p283 = pneg %p166
      %p284 = pneg %p163
      %p285 = pneg %p187
      %p286 = pneg %p184
      %p287 = pneg %p208
      %p288 = pneg %p205
      %s289 = smul.u32 30, %s19
      %p290 = scmp.lt.s32.totalorder %s289, 149
      %s291 = scalar_select %p290, %s289, 149
      %s292 = smul.addr %s291, 6
      %s293 = smul.addr %s292, 8
      %s294 = scalar_lea.vmem %s0, %s293
      %s295 = smul.u32 30, %s19
      %p296 = scmp.eq.s32.totalorder %s19, 0
      // Predicated region
      $region53: #{post_predictive_forward.1} parent=51 // pred_check
        %p297 = pneg %p296
      $region54: #{post_predictive_forward.1} parent=51 // pred_check_branch
        %299 = sbr.rel (%p297) target = $region56
      $region55: #{post_predictive_forward.1} parent=51 // pred_region
        %300 = vst [vmem:[#allocation3] sm:$0xff] 0.0
        %301 = vst [vmem:[#allocation4] sm:$0xff] 0.0
      $region56: #{post_predictive_forward.1} parent=51 // pred_fallthru
        _
      %v302 = vld [vmem:[%s294] sm:$0xff]
      %v303 = vld [vmem:[%s294 + $0x8] sm:$0xff]
      %v304 = vld [vmem:[%s294 + $0x10] sm:$0xff]
      %v305 = vld [vmem:[%s294 + $0x18] sm:$0xff]
      %v306 = vld [vmem:[%s294 + $0x20] sm:$0xff]
      %v307 = vld [vmem:[%s294 + $0x28] sm:$0xff]
      %v308 = vld [vmem:[%s294 + $0x30] sm:$0xff]
      %v309 = vld [vmem:[%s294 + $0x38] sm:$0xff]
      %v310 = vld [vmem:[%s294 + $0x40] sm:$0xff]
      %v311 = vld [vmem:[%s294 + $0x48] sm:$0xff]
      %v312 = vld [vmem:[%s294 + $0x50] sm:$0xff]
      %v313 = vld [vmem:[%s294 + $0x58] sm:$0xff]
      %v314 = vld [vmem:[%s294 + $0x60] sm:$0xff]
      %v315 = vld [vmem:[%s294 + $0x68] sm:$0xff]
      %v316 = vld [vmem:[%s294 + $0x70] sm:$0xff]
      %v317 = vld [vmem:[%s294 + $0x78] sm:$0xff]
      %v318 = vld [vmem:[%s294 + $0x80] sm:$0xff]
      %v319 = vld [vmem:[%s294 + $0x88] sm:$0xff]
      %v320 = vld [vmem:[%s294 + $0x90] sm:$0xff]
      %v321 = vld [vmem:[%s294 + $0x98] sm:$0xff]
      %v322 = vld [vmem:[%s294 + $0xa0] sm:$0xff]
      %v323 = vld [vmem:[%s294 + $0xa8] sm:$0xff]
      %v324 = vld [vmem:[%s294 + $0xb0] sm:$0xff]
      %v325 = vld [vmem:[%s294 + $0xb8] sm:$0xff]
      %v326 = vld [vmem:[%s294 + $0xc0] sm:$0xff]
      %v327 = vld [vmem:[%s294 + $0xc8] sm:$0xff]
      %v328 = vld [vmem:[%s294 + $0xd0] sm:$0xff]
      %v329 = vld [vmem:[%s294 + $0xd8] sm:$0xff]
      %v330 = vld [vmem:[%s294 + $0xe0] sm:$0xff]
      %v331 = vld [vmem:[%s294 + $0xe8] sm:$0xff]
      %v332 = vld [vmem:[%s294 + $0xf0] sm:$0xff]
      %v333 = vld [vmem:[%s294 + $0xf8] sm:$0xff]
      %v334 = vld [vmem:[%s294 + $0x100] sm:$0xff]
      %v335 = vld [vmem:[%s294 + $0x108] sm:$0xff]
      %v336 = vld [vmem:[%s294 + $0x110] sm:$0xff]
      %v337 = vld [vmem:[%s294 + $0x118] sm:$0xff]
      %v338 = vld [vmem:[%s294 + $0x120] sm:$0xff]
      %v339 = vld [vmem:[%s294 + $0x128] sm:$0xff]
      %v340 = vld [vmem:[%s294 + $0x130] sm:$0xff]
      %v341 = vld [vmem:[%s294 + $0x138] sm:$0xff]
      %v342 = vld [vmem:[%s294 + $0x140] sm:$0xff]
      %v343 = vld [vmem:[%s294 + $0x148] sm:$0xff]
      %v344 = vld [vmem:[%s294 + $0x150] sm:$0xff]
      %v345 = vld [vmem:[%s294 + $0x158] sm:$0xff]
      %v346 = vld [vmem:[%s294 + $0x160] sm:$0xff]
      %v347 = vld [vmem:[%s294 + $0x168] sm:$0xff]
      %v348 = vld [vmem:[%s294 + $0x170] sm:$0xff]
      %v349 = vld [vmem:[%s294 + $0x178] sm:$0xff]
      %v350 = vld [vmem:[%s294 + $0x180] sm:$0xff]
      %v351 = vld [vmem:[%s294 + $0x188] sm:$0xff]
      %v352 = vld [vmem:[%s294 + $0x190] sm:$0xff]
      %v353 = vld [vmem:[%s294 + $0x198] sm:$0xff]
      %v354 = vld [vmem:[%s294 + $0x1a0] sm:$0xff]
      %v355 = vld [vmem:[%s294 + $0x1a8] sm:$0xff]
      %v356 = vld [vmem:[%s294 + $0x1b0] sm:$0xff]
      %v357 = vld [vmem:[%s294 + $0x1b8] sm:$0xff]
      %v358 = vld [vmem:[%s294 + $0x1c0] sm:$0xff]
      %v359 = vld [vmem:[%s294 + $0x1c8] sm:$0xff]
      %v360 = vld [vmem:[%s294 + $0x1d0] sm:$0xff]
      %v361 = vld [vmem:[%s294 + $0x1d8] sm:$0xff]
      %v362 = vld [vmem:[%s294 + $0x1e0] sm:$0xff]
      %v363 = vld [vmem:[%s294 + $0x1e8] sm:$0xff]
      %v364 = vld [vmem:[%s294 + $0x1f0] sm:$0xff]
      %v365 = vld [vmem:[%s294 + $0x1f8] sm:$0xff]
      %v366 = vld [vmem:[%s294 + $0x200] sm:$0xff]
      %v367 = vld [vmem:[%s294 + $0x208] sm:$0xff]
      %v368 = vld [vmem:[%s294 + $0x210] sm:$0xff]
      %v369 = vld [vmem:[%s294 + $0x218] sm:$0xff]
      %v370 = vld [vmem:[%s294 + $0x220] sm:$0xff]
      %v371 = vld [vmem:[%s294 + $0x228] sm:$0xff]
      %v372 = vld [vmem:[%s294 + $0x230] sm:$0xff]
      %v373 = vld [vmem:[%s294 + $0x238] sm:$0xff]
      %v374 = vld [vmem:[%s294 + $0x240] sm:$0xff]
      %v375 = vld [vmem:[%s294 + $0x248] sm:$0xff]
      %v376 = vld [vmem:[%s294 + $0x250] sm:$0xff]
      %v377 = vld [vmem:[%s294 + $0x258] sm:$0xff]
      %v378 = vld [vmem:[%s294 + $0x260] sm:$0xff]
      %v379 = vld [vmem:[%s294 + $0x268] sm:$0xff]
      %v380 = vld [vmem:[%s294 + $0x270] sm:$0xff]
      %v381 = vld [vmem:[%s294 + $0x278] sm:$0xff]
      %v382 = vld [vmem:[%s294 + $0x280] sm:$0xff]
      %v383 = vld [vmem:[%s294 + $0x288] sm:$0xff]
      %v384 = vld [vmem:[%s294 + $0x290] sm:$0xff]
      %v385 = vld [vmem:[%s294 + $0x298] sm:$0xff]
      %v386 = vld [vmem:[%s294 + $0x2a0] sm:$0xff]
      %v387 = vld [vmem:[%s294 + $0x2a8] sm:$0xff]
      %v388 = vld [vmem:[%s294 + $0x2b0] sm:$0xff]
      %v389 = vld [vmem:[%s294 + $0x2b8] sm:$0xff]
      %v390 = vld [vmem:[%s294 + $0x2c0] sm:$0xff]
      %v391 = vld [vmem:[%s294 + $0x2c8] sm:$0xff]
      %v392 = vld [vmem:[%s294 + $0x2d0] sm:$0xff]
      %v393 = vld [vmem:[%s294 + $0x2d8] sm:$0xff]
      %v394 = vld [vmem:[%s294 + $0x2e0] sm:$0xff]
      %v395 = vld [vmem:[%s294 + $0x2e8] sm:$0xff]
      %v396 = vld [vmem:[%s294 + $0x2f0] sm:$0xff]
      %v397 = vld [vmem:[%s294 + $0x2f8] sm:$0xff]
      %v398 = vld [vmem:[%s294 + $0x300] sm:$0xff]
      %v399 = vld [vmem:[%s294 + $0x308] sm:$0xff]
      %v400 = vld [vmem:[%s294 + $0x310] sm:$0xff]
      %v401 = vld [vmem:[%s294 + $0x318] sm:$0xff]
      %v402 = vld [vmem:[%s294 + $0x320] sm:$0xff]
      %v403 = vld [vmem:[%s294 + $0x328] sm:$0xff]
      %v404 = vld [vmem:[%s294 + $0x330] sm:$0xff]
      %v405 = vld [vmem:[%s294 + $0x338] sm:$0xff]
      %v406 = vld [vmem:[%s294 + $0x340] sm:$0xff]
      %v407 = vld [vmem:[%s294 + $0x348] sm:$0xff]
      %v408 = vld [vmem:[%s294 + $0x350] sm:$0xff]
      %v409 = vld [vmem:[%s294 + $0x358] sm:$0xff]
      %v410 = vld [vmem:[%s294 + $0x360] sm:$0xff]
      %v411 = vld [vmem:[%s294 + $0x368] sm:$0xff]
      %v412 = vld [vmem:[%s294 + $0x370] sm:$0xff]
      %v413 = vld [vmem:[%s294 + $0x378] sm:$0xff]
      %v414 = vld [vmem:[%s294 + $0x380] sm:$0xff]
      %v415 = vld [vmem:[%s294 + $0x388] sm:$0xff]
      %v416 = vld [vmem:[%s294 + $0x390] sm:$0xff]
      %v417 = vld [vmem:[%s294 + $0x398] sm:$0xff]
      %v418 = vld [vmem:[%s294 + $0x3a0] sm:$0xff]
      %v419 = vld [vmem:[%s294 + $0x3a8] sm:$0xff]
      %v420 = vld [vmem:[%s294 + $0x3b0] sm:$0xff]
      %v421 = vld [vmem:[%s294 + $0x3b8] sm:$0xff]
      %v422 = vld [vmem:[%s294 + $0x3c0] sm:$0xff]
      %v423 = vld [vmem:[%s294 + $0x3c8] sm:$0xff]
      %v424 = vld [vmem:[%s294 + $0x3d0] sm:$0xff]
      %v425 = vld [vmem:[%s294 + $0x3d8] sm:$0xff]
      %v426 = vld [vmem:[%s294 + $0x3e0] sm:$0xff]
      %v427 = vld [vmem:[%s294 + $0x3e8] sm:$0xff]
      %v428 = vld [vmem:[%s294 + $0x3f0] sm:$0xff]
      %v429 = vld [vmem:[%s294 + $0x3f8] sm:$0xff]
      %v430 = vld [vmem:[%s294 + $0x400] sm:$0xff]
      %v431 = vld [vmem:[%s294 + $0x408] sm:$0xff]
      %v432 = vld [vmem:[%s294 + $0x410] sm:$0xff]
      %v433 = vld [vmem:[%s294 + $0x418] sm:$0xff]
      %v434 = vld [vmem:[%s294 + $0x420] sm:$0xff]
      %v435 = vld [vmem:[%s294 + $0x428] sm:$0xff]
      %v436 = vld [vmem:[%s294 + $0x430] sm:$0xff]
      %v437 = vld [vmem:[%s294 + $0x438] sm:$0xff]
      %v438 = vld [vmem:[%s294 + $0x440] sm:$0xff]
      %v439 = vld [vmem:[%s294 + $0x448] sm:$0xff]
      %v440 = vld [vmem:[%s294 + $0x450] sm:$0xff]
      %v441 = vld [vmem:[%s294 + $0x458] sm:$0xff]
      %v442 = vld [vmem:[%s294 + $0x460] sm:$0xff]
      %v443 = vld [vmem:[%s294 + $0x468] sm:$0xff]
      %v444 = vld [vmem:[%s294 + $0x470] sm:$0xff]
      %v445 = vld [vmem:[%s294 + $0x478] sm:$0xff]
      %v446 = vld [vmem:[%s294 + $0x480] sm:$0xff]
      %v447 = vld [vmem:[%s294 + $0x488] sm:$0xff]
      %v448 = vld [vmem:[%s294 + $0x490] sm:$0xff]
      %v449 = vld [vmem:[%s294 + $0x498] sm:$0xff]
      %v450 = vld [vmem:[%s294 + $0x4a0] sm:$0xff]
      %v451 = vld [vmem:[%s294 + $0x4a8] sm:$0xff]
      %v452 = vld [vmem:[%s294 + $0x4b0] sm:$0xff]
      %v453 = vld [vmem:[%s294 + $0x4b8] sm:$0xff]
      %v454 = vld [vmem:[%s294 + $0x4c0] sm:$0xff]
      %v455 = vld [vmem:[%s294 + $0x4c8] sm:$0xff]
      %v456 = vld [vmem:[%s294 + $0x4d0] sm:$0xff]
      %v457 = vld [vmem:[%s294 + $0x4d8] sm:$0xff]
      %v458 = vld [vmem:[%s294 + $0x4e0] sm:$0xff]
      %v459 = vld [vmem:[%s294 + $0x4e8] sm:$0xff]
      %v460 = vld [vmem:[%s294 + $0x4f0] sm:$0xff]
      %v461 = vld [vmem:[%s294 + $0x4f8] sm:$0xff]
      %v462 = vld [vmem:[%s294 + $0x500] sm:$0xff]
      %v463 = vld [vmem:[%s294 + $0x508] sm:$0xff]
      %v464 = vld [vmem:[%s294 + $0x510] sm:$0xff]
      %v465 = vld [vmem:[%s294 + $0x518] sm:$0xff]
      %v466 = vld [vmem:[%s294 + $0x520] sm:$0xff]
      %v467 = vld [vmem:[%s294 + $0x528] sm:$0xff]
      %v468 = vld [vmem:[%s294 + $0x530] sm:$0xff]
      %v469 = vld [vmem:[%s294 + $0x538] sm:$0xff]
      %v470 = vld [vmem:[%s294 + $0x540] sm:$0xff]
      %v471 = vld [vmem:[%s294 + $0x548] sm:$0xff]
      %v472 = vld [vmem:[%s294 + $0x550] sm:$0xff]
      %v473 = vld [vmem:[%s294 + $0x558] sm:$0xff]
      %v474 = vld [vmem:[%s294 + $0x560] sm:$0xff]
      %v475 = vld [vmem:[%s294 + $0x568] sm:$0xff]
      %v476 = vld [vmem:[%s294 + $0x570] sm:$0xff]
      %v477 = vld [vmem:[%s294 + $0x578] sm:$0xff]
      %v478 = vld [vmem:[%s294 + $0x580] sm:$0xff]
      %v479 = vld [vmem:[%s294 + $0x588] sm:$0xff]
      %v480 = vld [vmem:[%s294 + $0x590] sm:$0xff]
      %v481 = vld [vmem:[%s294 + $0x598] sm:$0xff]
      %v482 = vld [vmem:[%s2] sm:$0xff]
      %v483 = vld [vmem:[%s2 + $0x8] sm:$0xff]
      %v484 = vld [vmem:[%s2 + $0x10] sm:$0xff]
      %v485 = vld [vmem:[%s2 + $0x18] sm:$0xff]
      %v486 = vld [vmem:[%s2 + $0x20] sm:$0xff]
      %v487 = vld [vmem:[%s2 + $0x28] sm:$0xff]
      %v488 = vld [vmem:[%s2 + $0x30] sm:$0xff]
      %v489 = vld [vmem:[%s2 + $0x38] sm:$0xff]
      %v490 = vld [vmem:[%s2 + $0x40] sm:$0xff]
      %v491 = vld [vmem:[%s2 + $0x48] sm:$0xff]
      %v492 = vld [vmem:[%s2 + $0x50] sm:$0xff]
      %v493 = vld [vmem:[%s2 + $0x58] sm:$0xff]
      %v494 = vld [vmem:[%s2 + $0x60] sm:$0xff]
      %v495 = vld [vmem:[%s2 + $0x68] sm:$0xff]
      %v496 = vld [vmem:[%s2 + $0x70] sm:$0xff]
      %v497 = vld [vmem:[%s2 + $0x78] sm:$0xff]
      %v498 = vld [vmem:[%s2 + $0x80] sm:$0xff]
      %v499 = vld [vmem:[%s2 + $0x88] sm:$0xff]
      %v500 = vld [vmem:[%s2 + $0x90] sm:$0xff]
      %v501 = vld [vmem:[%s2 + $0x98] sm:$0xff]
      %v502 = vld [vmem:[%s2 + $0xa0] sm:$0xff]
      %v503 = vld [vmem:[%s2 + $0xa8] sm:$0xff]
      %v504 = vld [vmem:[%s2 + $0xb0] sm:$0xff]
      %v505 = vld [vmem:[%s2 + $0xb8] sm:$0xff]
      %v506 = vld [vmem:[%s2 + $0xc0] sm:$0xff]
      %v507 = vld [vmem:[%s2 + $0xc8] sm:$0xff]
      %v508 = vld [vmem:[%s2 + $0xd0] sm:$0xff]
      %v509 = vld [vmem:[%s2 + $0xd8] sm:$0xff]
      %v510 = vld [vmem:[%s2 + $0xe0] sm:$0xff]
      %v511 = vld [vmem:[%s2 + $0xe8] sm:$0xff]
      %v512 = vld [vmem:[%s2 + $0xf0] sm:$0xff]
      %v513 = vld [vmem:[%s2 + $0xf8] sm:$0xff]
      %v514 = vld [vmem:[%s2 + $0x100] sm:$0xff]
      %v515 = vld [vmem:[%s2 + $0x108] sm:$0xff]
      %v516 = vld [vmem:[%s2 + $0x110] sm:$0xff]
      %v517 = vld [vmem:[%s2 + $0x118] sm:$0xff]
      %v518 = vld [vmem:[%s2 + $0x120] sm:$0xff]
      %v519 = vld [vmem:[%s2 + $0x128] sm:$0xff]
      %v520 = vld [vmem:[%s2 + $0x130] sm:$0xff]
      %v521 = vld [vmem:[%s2 + $0x138] sm:$0xff]
      %v522 = vld [vmem:[%s2 + $0x140] sm:$0xff]
      %v523 = vld [vmem:[%s2 + $0x148] sm:$0xff]
      %v524 = vld [vmem:[%s2 + $0x150] sm:$0xff]
      %v525 = vld [vmem:[%s2 + $0x158] sm:$0xff]
      %v526 = vld [vmem:[%s2 + $0x160] sm:$0xff]
      %v527 = vld [vmem:[%s2 + $0x168] sm:$0xff]
      %v528 = vld [vmem:[%s2 + $0x170] sm:$0xff]
      %v529 = vld [vmem:[%s2 + $0x178] sm:$0xff]
      %v530 = vld [vmem:[%s2 + $0x180] sm:$0xff]
      %v531 = vld [vmem:[%s2 + $0x188] sm:$0xff]
      %v532 = vld [vmem:[%s2 + $0x190] sm:$0xff]
      %v533 = vld [vmem:[%s2 + $0x198] sm:$0xff]
      %v534 = vld [vmem:[%s2 + $0x1a0] sm:$0xff]
      %v535 = vld [vmem:[%s2 + $0x1a8] sm:$0xff]
      %v536 = vld [vmem:[%s2 + $0x1b0] sm:$0xff]
      %v537 = vld [vmem:[%s2 + $0x1b8] sm:$0xff]
      %v538 = vld [vmem:[%s2 + $0x1c0] sm:$0xff]
      %v539 = vld [vmem:[%s2 + $0x1c8] sm:$0xff]
      %v540 = vld [vmem:[%s2 + $0x1d0] sm:$0xff]
      %v541 = vld [vmem:[%s2 + $0x1d8] sm:$0xff]
      %v542 = vld [vmem:[%s2 + $0x1e0] sm:$0xff]
      %v543 = vld [vmem:[%s2 + $0x1e8] sm:$0xff]
      %v544 = vld [vmem:[%s2 + $0x1f0] sm:$0xff]
      %v545 = vld [vmem:[%s2 + $0x1f8] sm:$0xff]
      %v546 = vld [vmem:[%s2 + $0x200] sm:$0xff]
      %v547 = vld [vmem:[%s2 + $0x208] sm:$0xff]
      %v548 = vld [vmem:[%s2 + $0x210] sm:$0xff]
      %v549 = vld [vmem:[%s2 + $0x218] sm:$0xff]
      %v550 = vld [vmem:[%s2 + $0x220] sm:$0xff]
      %v551 = vld [vmem:[%s2 + $0x228] sm:$0xff]
      %v552 = vld [vmem:[%s2 + $0x230] sm:$0xff]
      %v553 = vld [vmem:[%s2 + $0x238] sm:$0xff]
      %v554 = vld [vmem:[%s2 + $0x240] sm:$0xff]
      %v555 = vld [vmem:[%s2 + $0x248] sm:$0xff]
      %v556 = vld [vmem:[%s2 + $0x250] sm:$0xff]
      %v557 = vld [vmem:[%s2 + $0x258] sm:$0xff]
      %v558 = vld [vmem:[%s2 + $0x260] sm:$0xff]
      %v559 = vld [vmem:[%s2 + $0x268] sm:$0xff]
      %v560 = vld [vmem:[%s2 + $0x270] sm:$0xff]
      %v561 = vld [vmem:[%s2 + $0x278] sm:$0xff]
      %v562 = vld [vmem:[%s2 + $0x280] sm:$0xff]
      %v563 = vld [vmem:[%s2 + $0x288] sm:$0xff]
      %v564 = vld [vmem:[%s2 + $0x290] sm:$0xff]
      %v565 = vld [vmem:[%s2 + $0x298] sm:$0xff]
      %v566 = vld [vmem:[%s2 + $0x2a0] sm:$0xff]
      %v567 = vld [vmem:[%s2 + $0x2a8] sm:$0xff]
      %v568 = vld [vmem:[%s2 + $0x2b0] sm:$0xff]
      %v569 = vld [vmem:[%s2 + $0x2b8] sm:$0xff]
      %v570 = vld [vmem:[%s2 + $0x2c0] sm:$0xff]
      %v571 = vld [vmem:[%s2 + $0x2c8] sm:$0xff]
      %v572 = vld [vmem:[%s2 + $0x2d0] sm:$0xff]
      %v573 = vld [vmem:[%s2 + $0x2d8] sm:$0xff]
      %v574 = vld [vmem:[%s2 + $0x2e0] sm:$0xff]
      %v575 = vld [vmem:[%s2 + $0x2e8] sm:$0xff]
      %v576 = vld [vmem:[%s2 + $0x2f0] sm:$0xff]
      %v577 = vld [vmem:[%s2 + $0x2f8] sm:$0xff]
      %v578 = vld [vmem:[%s2 + $0x300] sm:$0xff]
      %v579 = vld [vmem:[%s2 + $0x308] sm:$0xff]
      %v580 = vld [vmem:[%s2 + $0x310] sm:$0xff]
      %v581 = vld [vmem:[%s2 + $0x318] sm:$0xff]
      %v582 = vld [vmem:[%s2 + $0x320] sm:$0xff]
      %v583 = vld [vmem:[%s2 + $0x328] sm:$0xff]
      %v584 = vld [vmem:[%s2 + $0x330] sm:$0xff]
      %v585 = vld [vmem:[%s2 + $0x338] sm:$0xff]
      %v586 = vld [vmem:[%s2 + $0x340] sm:$0xff]
      %v587 = vld [vmem:[%s2 + $0x348] sm:$0xff]
      %v588 = vld [vmem:[%s2 + $0x350] sm:$0xff]
      %v589 = vld [vmem:[%s2 + $0x358] sm:$0xff]
      %v590 = vld [vmem:[%s2 + $0x360] sm:$0xff]
      %v591 = vld [vmem:[%s2 + $0x368] sm:$0xff]
      %v592 = vld [vmem:[%s2 + $0x370] sm:$0xff]
      %v593 = vld [vmem:[%s2 + $0x378] sm:$0xff]
      %v594 = vld [vmem:[%s2 + $0x380] sm:$0xff]
      %v595 = vld [vmem:[%s2 + $0x388] sm:$0xff]
      %v596 = vld [vmem:[%s2 + $0x390] sm:$0xff]
      %v597 = vld [vmem:[%s2 + $0x398] sm:$0xff]
      %v598 = vld [vmem:[%s2 + $0x3a0] sm:$0xff]
      %v599 = vld [vmem:[%s2 + $0x3a8] sm:$0xff]
      %v600 = vld [vmem:[%s2 + $0x3b0] sm:$0xff]
      %v601 = vld [vmem:[%s2 + $0x3b8] sm:$0xff]
      %v602 = vld [vmem:[%s2 + $0x3c0] sm:$0xff]
      %v603 = vld [vmem:[%s2 + $0x3c8] sm:$0xff]
      %v604 = vld [vmem:[%s2 + $0x3d0] sm:$0xff]
      %v605 = vld [vmem:[%s2 + $0x3d8] sm:$0xff]
      %v606 = vld [vmem:[%s2 + $0x3e0] sm:$0xff]
      %v607 = vld [vmem:[%s2 + $0x3e8] sm:$0xff]
      %v608 = vld [vmem:[%s2 + $0x3f0] sm:$0xff]
      %v609 = vld [vmem:[%s2 + $0x3f8] sm:$0xff]
      %v610 = vld [vmem:[%s2 + $0x400] sm:$0xff]
      %v611 = vld [vmem:[%s2 + $0x408] sm:$0xff]
      %v612 = vld [vmem:[%s2 + $0x410] sm:$0xff]
      %v613 = vld [vmem:[%s2 + $0x418] sm:$0xff]
      %v614 = vld [vmem:[%s2 + $0x420] sm:$0xff]
      %v615 = vld [vmem:[%s2 + $0x428] sm:$0xff]
      %v616 = vld [vmem:[%s2 + $0x430] sm:$0xff]
      %v617 = vld [vmem:[%s2 + $0x438] sm:$0xff]
      %v618 = vld [vmem:[%s2 + $0x440] sm:$0xff]
      %v619 = vld [vmem:[%s2 + $0x448] sm:$0xff]
      %v620 = vld [vmem:[%s2 + $0x450] sm:$0xff]
      %v621 = vld [vmem:[%s2 + $0x458] sm:$0xff]
      %v622 = vld [vmem:[%s2 + $0x460] sm:$0xff]
      %v623 = vld [vmem:[%s2 + $0x468] sm:$0xff]
      %v624 = vld [vmem:[%s2 + $0x470] sm:$0xff]
      %v625 = vld [vmem:[%s2 + $0x478] sm:$0xff]
      %v626 = vld [vmem:[%s2 + $0x480] sm:$0xff]
      %v627 = vld [vmem:[%s2 + $0x488] sm:$0xff]
      %v628 = vld [vmem:[%s2 + $0x490] sm:$0xff]
      %v629 = vld [vmem:[%s2 + $0x498] sm:$0xff]
      %v630 = vld [vmem:[%s2 + $0x4a0] sm:$0xff]
      %v631 = vld [vmem:[%s2 + $0x4a8] sm:$0xff]
      %v632 = vld [vmem:[%s2 + $0x4b0] sm:$0xff]
      %v633 = vld [vmem:[%s2 + $0x4b8] sm:$0xff]
      %v634 = vld [vmem:[%s2 + $0x4c0] sm:$0xff]
      %v635 = vld [vmem:[%s2 + $0x4c8] sm:$0xff]
      %v636 = vld [vmem:[%s2 + $0x4d0] sm:$0xff]
      %v637 = vld [vmem:[%s2 + $0x4d8] sm:$0xff]
      %v638 = vld [vmem:[%s2 + $0x4e0] sm:$0xff]
      %v639 = vld [vmem:[%s2 + $0x4e8] sm:$0xff]
      %v640 = vld [vmem:[%s2 + $0x4f0] sm:$0xff]
      %v641 = vld [vmem:[%s2 + $0x4f8] sm:$0xff]
      %v642 = vld [vmem:[%s2 + $0x500] sm:$0xff]
      %v643 = vld [vmem:[%s2 + $0x508] sm:$0xff]
      %v644 = vld [vmem:[%s2 + $0x510] sm:$0xff]
      %v645 = vld [vmem:[%s2 + $0x518] sm:$0xff]
      %v646 = vld [vmem:[%s2 + $0x520] sm:$0xff]
      %v647 = vld [vmem:[%s2 + $0x528] sm:$0xff]
      %v648 = vld [vmem:[%s2 + $0x530] sm:$0xff]
      %v649 = vld [vmem:[%s2 + $0x538] sm:$0xff]
      %v650 = vld [vmem:[%s2 + $0x540] sm:$0xff]
      %v651 = vld [vmem:[%s2 + $0x548] sm:$0xff]
      %v652 = vld [vmem:[%s2 + $0x550] sm:$0xff]
      %v653 = vld [vmem:[%s2 + $0x558] sm:$0xff]
      %v654 = vld [vmem:[%s2 + $0x560] sm:$0xff]
      %v655 = vld [vmem:[%s2 + $0x568] sm:$0xff]
      %v656 = vld [vmem:[%s2 + $0x570] sm:$0xff]
      %v657 = vld [vmem:[%s2 + $0x578] sm:$0xff]
      %v658 = vld [vmem:[%s2 + $0x580] sm:$0xff]
      %v659 = vld [vmem:[%s2 + $0x588] sm:$0xff]
      %v660 = vld [vmem:[%s2 + $0x590] sm:$0xff]
      %v661 = vld [vmem:[%s2 + $0x598] sm:$0xff]
      %v662 = vld [vmem:[%s2 + $0x5a0] sm:$0xff]
      %v663 = vld [vmem:[%s2 + $0x5a8] sm:$0xff]
      %v664 = vld [vmem:[%s2 + $0x5b0] sm:$0xff]
      %v665 = vld [vmem:[%s2 + $0x5b8] sm:$0xff]
      %v666 = vld [vmem:[%s2 + $0x5c0] sm:$0xff]
      %v667 = vld [vmem:[%s2 + $0x5c8] sm:$0xff]
      %v668 = vld [vmem:[%s2 + $0x5d0] sm:$0xff]
      %v669 = vld [vmem:[%s2 + $0x5d8] sm:$0xff]
      %v670 = vld [vmem:[%s2 + $0x5e0] sm:$0xff]
      %v671 = vld [vmem:[%s2 + $0x5e8] sm:$0xff]
      %v672 = vld [vmem:[%s2 + $0x5f0] sm:$0xff]
      %v673 = vld [vmem:[%s2 + $0x5f8] sm:$0xff]
      %v674 = vld [vmem:[%s2 + $0x600] sm:$0xff]
      %v675 = vld [vmem:[%s2 + $0x608] sm:$0xff]
      %v676 = vld [vmem:[%s2 + $0x610] sm:$0xff]
      %v677 = vld [vmem:[%s2 + $0x618] sm:$0xff]
      %v678 = vld [vmem:[%s2 + $0x620] sm:$0xff]
      %v679 = vld [vmem:[%s2 + $0x628] sm:$0xff]
      %v680 = vld [vmem:[%s2 + $0x630] sm:$0xff]
      %v681 = vld [vmem:[%s2 + $0x638] sm:$0xff]
      %v682 = vld [vmem:[%s2 + $0x640] sm:$0xff]
      %v683 = vld [vmem:[%s2 + $0x648] sm:$0xff]
      %v684 = vld [vmem:[%s2 + $0x650] sm:$0xff]
      %v685 = vld [vmem:[%s2 + $0x658] sm:$0xff]
      %v686 = vld [vmem:[%s2 + $0x660] sm:$0xff]
      %v687 = vld [vmem:[%s2 + $0x668] sm:$0xff]
      %v688 = vld [vmem:[%s2 + $0x670] sm:$0xff]
      %v689 = vld [vmem:[%s2 + $0x678] sm:$0xff]
      %v690 = vld [vmem:[%s2 + $0x680] sm:$0xff]
      %v691 = vld [vmem:[%s2 + $0x688] sm:$0xff]
      %v692 = vld [vmem:[%s2 + $0x690] sm:$0xff]
      %v693 = vld [vmem:[%s2 + $0x698] sm:$0xff]
      %v694 = vld [vmem:[%s2 + $0x6a0] sm:$0xff]
      %v695 = vld [vmem:[%s2 + $0x6a8] sm:$0xff]
      %v696 = vld [vmem:[%s2 + $0x6b0] sm:$0xff]
      %v697 = vld [vmem:[%s2 + $0x6b8] sm:$0xff]
      %v698 = vld [vmem:[%s2 + $0x6c0] sm:$0xff]
      %v699 = vld [vmem:[%s2 + $0x6c8] sm:$0xff]
      %v700 = vld [vmem:[%s2 + $0x6d0] sm:$0xff]
      %v701 = vld [vmem:[%s2 + $0x6d8] sm:$0xff]
      %v702 = vld [vmem:[%s2 + $0x6e0] sm:$0xff]
      %v703 = vld [vmem:[%s2 + $0x6e8] sm:$0xff]
      %v704 = vld [vmem:[%s2 + $0x6f0] sm:$0xff]
      %v705 = vld [vmem:[%s2 + $0x6f8] sm:$0xff]
      %v706 = vld [vmem:[%s2 + $0x700] sm:$0xff]
      %v707 = vld [vmem:[%s2 + $0x708] sm:$0xff]
      %v708 = vld [vmem:[%s2 + $0x710] sm:$0xff]
      %v709 = vld [vmem:[%s2 + $0x718] sm:$0xff]
      %v710 = vld [vmem:[%s2 + $0x720] sm:$0xff]
      %v711 = vld [vmem:[%s2 + $0x728] sm:$0xff]
      %v712 = vld [vmem:[%s2 + $0x730] sm:$0xff]
      %v713 = vld [vmem:[%s2 + $0x738] sm:$0xff]
      %v714 = vld [vmem:[%s2 + $0x740] sm:$0xff]
      %v715 = vld [vmem:[%s2 + $0x748] sm:$0xff]
      %v716 = vld [vmem:[%s2 + $0x750] sm:$0xff]
      %v717 = vld [vmem:[%s2 + $0x758] sm:$0xff]
      %v718 = vld [vmem:[%s2 + $0x760] sm:$0xff]
      %v719 = vld [vmem:[%s2 + $0x768] sm:$0xff]
      %v720 = vld [vmem:[%s2 + $0x770] sm:$0xff]
      %v721 = vld [vmem:[%s2 + $0x778] sm:$0xff]
      %v722 = vld [vmem:[%s2 + $0x780] sm:$0xff]
      %v723 = vld [vmem:[%s2 + $0x788] sm:$0xff]
      %v724 = vld [vmem:[%s2 + $0x790] sm:$0xff]
      %v725 = vld [vmem:[%s2 + $0x798] sm:$0xff]
      %v726 = vld [vmem:[%s2 + $0x7a0] sm:$0xff]
      %v727 = vld [vmem:[%s2 + $0x7a8] sm:$0xff]
      %v728 = vld [vmem:[%s2 + $0x7b0] sm:$0xff]
      %v729 = vld [vmem:[%s2 + $0x7b8] sm:$0xff]
      %v730 = vld [vmem:[%s2 + $0x7c0] sm:$0xff]
      %v731 = vld [vmem:[%s2 + $0x7c8] sm:$0xff]
      %v732 = vld [vmem:[%s2 + $0x7d0] sm:$0xff]
      %v733 = vld [vmem:[%s2 + $0x7d8] sm:$0xff]
      %v734 = vld [vmem:[%s2 + $0x7e0] sm:$0xff]
      %v735 = vld [vmem:[%s2 + $0x7e8] sm:$0xff]
      %v736 = vld [vmem:[%s2 + $0x7f0] sm:$0xff]
      %v737 = vld [vmem:[%s2 + $0x7f8] sm:$0xff]
      %v738 = vld [vmem:[%s2 + $0x800] sm:$0xff]
      %v739 = vld [vmem:[%s2 + $0x808] sm:$0xff]
      %v740 = vld [vmem:[%s2 + $0x810] sm:$0xff]
      %v741 = vld [vmem:[%s2 + $0x818] sm:$0xff]
      %v742 = vld [vmem:[%s2 + $0x820] sm:$0xff]
      %v743 = vld [vmem:[%s2 + $0x828] sm:$0xff]
      %v744 = vld [vmem:[%s2 + $0x830] sm:$0xff]
      %v745 = vld [vmem:[%s2 + $0x838] sm:$0xff]
      %v746 = vld [vmem:[%s2 + $0x840] sm:$0xff]
      %v747 = vld [vmem:[%s2 + $0x848] sm:$0xff]
      %v748 = vld [vmem:[%s2 + $0x850] sm:$0xff]
      %v749 = vld [vmem:[%s2 + $0x858] sm:$0xff]
      %v750 = vld [vmem:[%s2 + $0x860] sm:$0xff]
      %v751 = vld [vmem:[%s2 + $0x868] sm:$0xff]
      %v752 = vld [vmem:[%s2 + $0x870] sm:$0xff]
      %v753 = vld [vmem:[%s2 + $0x878] sm:$0xff]
      %v754 = vld [vmem:[%s2 + $0x880] sm:$0xff]
      %v755 = vld [vmem:[%s2 + $0x888] sm:$0xff]
      %v756 = vld [vmem:[%s2 + $0x890] sm:$0xff]
      %v757 = vld [vmem:[%s2 + $0x898] sm:$0xff]
      %v758 = vld [vmem:[%s2 + $0x8a0] sm:$0xff]
      %v759 = vld [vmem:[%s2 + $0x8a8] sm:$0xff]
      %v760 = vld [vmem:[%s2 + $0x8b0] sm:$0xff]
      %v761 = vld [vmem:[%s2 + $0x8b8] sm:$0xff]
      %v762 = vld [vmem:[%s2 + $0x8c0] sm:$0xff]
      %v763 = vld [vmem:[%s2 + $0x8c8] sm:$0xff]
      %v764 = vld [vmem:[%s2 + $0x8d0] sm:$0xff]
      %v765 = vld [vmem:[%s2 + $0x8d8] sm:$0xff]
      %v766 = vld [vmem:[%s2 + $0x8e0] sm:$0xff]
      %v767 = vld [vmem:[%s2 + $0x8e8] sm:$0xff]
      %v768 = vld [vmem:[%s2 + $0x8f0] sm:$0xff]
      %v769 = vld [vmem:[%s2 + $0x8f8] sm:$0xff]
      %v770 = vld [vmem:[%s3] sm:$0x7]
      %v772 = vlaneseq
      %v773 = vshrl.u32 %v772, 7
      %v774 = vsub.s32 0, %v773
      %v775 = vrot.slane %v770, %v774
      %v776 = vlaneseq
      %v777 = vshrl.u32 %v776, 7
      %v778 = vsub.s32 1, %v777
      %v779 = vrot.slane %v770, %v778
      %v780 = vlaneseq
      %v781 = vshrl.u32 %v780, 7
      %v782 = vsub.s32 2, %v781
      %v783 = vrot.slane %v770, %v782
      %787 = vmatprep.subr.mxu0 %v528
      %788 = vmatpush1.msra.mxu0 %v527
      %789 = vmatprep.subr.mxu0 %v525
      %790 = vmatpush1.msra.mxu0 %v524
      %791 = vmatprep.subr.mxu0 %v522
      %792 = vmatpush1.msra.mxu0 %v521
      %793 = vmatprep.subr.mxu0 %v519
      %794 = vmatpush1.msra.mxu0 %v518
      %795 = vmatprep.subr.mxu0 %v516
      %796 = vmatpush1.msra.mxu0 %v515
      %797 = vmatprep.subr.mxu0 %v513
      %798 = vmatpush1.msra.mxu0 %v512
      %799 = vmatprep.subr.mxu0 %v510
      %800 = vmatpush1.msra.mxu0 %v509
      %801 = vmatprep.subr.mxu0 %v507
      %802 = vmatpush1.msra.mxu0 %v506
      %803 = vmatprep.subr.mxu0 %v504
      %804 = vmatpush1.msra.mxu0 %v503
      %805 = vmatprep.subr.mxu0 %v501
      %806 = vmatpush1.msra.mxu0 %v500
      %807 = vmatprep.subr.mxu0 %v498
      %808 = vmatpush1.msra.mxu0 %v497
      %809 = vmatprep.subr.mxu0 %v495
      %810 = vmatpush1.msra.mxu0 %v494
      %811 = vmatprep.subr.mxu0 %v492
      %812 = vmatpush1.msra.mxu0 %v491
      %813 = vmatprep.subr.mxu0 %v489
      %814 = vmatpush1.msra.mxu0 %v488
      %815 = vmatprep.subr.mxu0 %v486
      %816 = vmatpush1.msra.mxu0 %v485
      %817 = vmatprep.subr.mxu0 %v483
      %818 = vmatpush1.msra.mxu0 %v482
      %819 = vmatprep.subr.mxu0 %v576
      %820 = vmatpush2.msra.mxu0 %v575
      %821 = vmatprep.subr.mxu0 %v573
      %822 = vmatpush2.msra.mxu0 %v572
      %823 = vmatprep.subr.mxu0 %v570
      %824 = vmatpush2.msra.mxu0 %v569
      %825 = vmatprep.subr.mxu0 %v567
      %826 = vmatpush2.msra.mxu0 %v566
      %827 = vmatprep.subr.mxu0 %v564
      %828 = vmatpush2.msra.mxu0 %v563
      %829 = vmatprep.subr.mxu0 %v561
      %830 = vmatpush2.msra.mxu0 %v560
      %831 = vmatprep.subr.mxu0 %v558
      %832 = vmatpush2.msra.mxu0 %v557
      %833 = vmatprep.subr.mxu0 %v555
      %834 = vmatpush2.msra.mxu0 %v554
      %835 = vmatprep.subr.mxu0 %v552
      %836 = vmatpush2.msra.mxu0 %v551
      %837 = vmatprep.subr.mxu0 %v549
      %838 = vmatpush2.msra.mxu0 %v548
      %839 = vmatprep.subr.mxu0 %v546
      %840 = vmatpush2.msra.mxu0 %v545
      %841 = vmatprep.subr.mxu0 %v543
      %842 = vmatpush2.msra.mxu0 %v542
      %843 = vmatprep.subr.mxu0 %v540
      %844 = vmatpush2.msra.mxu0 %v539
      %845 = vmatprep.subr.mxu0 %v537
      %846 = vmatpush2.msra.mxu0 %v536
      %847 = vmatprep.subr.mxu0 %v534
      %848 = vmatpush2.msra.mxu0 %v533
      %849 = vmatprep.subr.mxu0 %v531
      %850 = vmatpush2.msra.mxu0 %v530
      %851 = vmatprep.mubr.f32.mxu0 %v303
      %852 = vmatmul.mubr.f32.gmra.mxu0 %v302
      %v853 = vpop.f32.mrf.mxu0
      %v854 = vadd.f32 %v775, %v853
      %v855 = vpop.f32.mrf.mxu0
      %v856 = vadd.f32 %v779, %v855
      %857 = vmatprep.mubr.f32.mxu0 %v309
      %858 = vmatmul.mubr.f32.gmra.mxu0 %v308
      %v859 = vpop.f32.mrf.mxu0
      %v860 = vadd.f32 %v775, %v859
      %v861 = vpop.f32.mrf.mxu0
      %v862 = vadd.f32 %v779, %v861
      %863 = vmatprep.mubr.f32.mxu0 %v315
      %864 = vmatmul.mubr.f32.gmra.mxu0 %v314
      %v865 = vpop.f32.mrf.mxu0
      %v866 = vadd.f32 %v775, %v865
      %v867 = vpop.f32.mrf.mxu0
      %v868 = vadd.f32 %v779, %v867
      %869 = vmatprep.mubr.f32.mxu0 %v321
      %870 = vmatmul.mubr.f32.gmra.mxu0 %v320
      %v871 = vpop.f32.mrf.mxu0
      %v872 = vadd.f32 %v775, %v871
      %v873 = vpop.f32.mrf.mxu0
      %v874 = vadd.f32 %v779, %v873
      %875 = vmatprep.mubr.f32.mxu0 %v327
      %876 = vmatmul.mubr.f32.gmra.mxu0 %v326
      %v877 = vpop.f32.mrf.mxu0
      %v878 = vadd.f32 %v775, %v877
      %v879 = vpop.f32.mrf.mxu0
      %v880 = vadd.f32 %v779, %v879
      %881 = vmatprep.mubr.f32.mxu0 %v333
      %882 = vmatmul.mubr.f32.gmra.mxu0 %v332
      %v883 = vpop.f32.mrf.mxu0
      %v884 = vadd.f32 %v775, %v883
      %v885 = vpop.f32.mrf.mxu0
      %v886 = vadd.f32 %v779, %v885
      %887 = vmatprep.mubr.f32.mxu0 %v339
      %888 = vmatmul.mubr.f32.gmra.mxu0 %v338
      %v889 = vpop.f32.mrf.mxu0
      %v890 = vadd.f32 %v775, %v889
      %v891 = vpop.f32.mrf.mxu0
      %v892 = vadd.f32 %v779, %v891
      %893 = vmatprep.mubr.f32.mxu0 %v345
      %894 = vmatmul.mubr.f32.gmra.mxu0 %v344
      %v895 = vpop.f32.mrf.mxu0
      %v896 = vadd.f32 %v775, %v895
      %v897 = vpop.f32.mrf.mxu0
      %v898 = vadd.f32 %v779, %v897
      %899 = vmatprep.mubr.f32.mxu0 %v351
      %900 = vmatmul.mubr.f32.gmra.mxu0 %v350
      %v901 = vpop.f32.mrf.mxu0
      %v902 = vadd.f32 %v775, %v901
      %v903 = vpop.f32.mrf.mxu0
      %v904 = vadd.f32 %v779, %v903
      %905 = vmatprep.mubr.f32.mxu0 %v357
      %906 = vmatmul.mubr.f32.gmra.mxu0 %v356
      %v907 = vpop.f32.mrf.mxu0
      %v908 = vadd.f32 %v775, %v907
      %v909 = vpop.f32.mrf.mxu0
      %v910 = vadd.f32 %v779, %v909
      %911 = vmatprep.mubr.f32.mxu0 %v363
      %912 = vmatmul.mubr.f32.gmra.mxu0 %v362
      %v913 = vpop.f32.mrf.mxu0
      %v914 = vadd.f32 %v775, %v913
      %v915 = vpop.f32.mrf.mxu0
      %v916 = vadd.f32 %v779, %v915
      %917 = vmatprep.mubr.f32.mxu0 %v369
      %918 = vmatmul.mubr.f32.gmra.mxu0 %v368
      %v919 = vpop.f32.mrf.mxu0
      %v920 = vadd.f32 %v775, %v919
      %v921 = vpop.f32.mrf.mxu0
      %v922 = vadd.f32 %v779, %v921
      %923 = vmatprep.mubr.f32.mxu0 %v375
      %924 = vmatmul.mubr.f32.gmra.mxu0 %v374
      %v925 = vpop.f32.mrf.mxu0
      %v926 = vadd.f32 %v775, %v925
      %v927 = vpop.f32.mrf.mxu0
      %v928 = vadd.f32 %v779, %v927
      %929 = vmatprep.mubr.f32.mxu0 %v381
      %930 = vmatmul.mubr.f32.gmra.mxu0 %v380
      %v931 = vpop.f32.mrf.mxu0
      %v932 = vadd.f32 %v775, %v931
      %v933 = vpop.f32.mrf.mxu0
      %v934 = vadd.f32 %v779, %v933
      %935 = vmatprep.mubr.f32.mxu0 %v387
      %936 = vmatmul.mubr.f32.gmra.mxu0 %v386
      %v937 = vpop.f32.mrf.mxu0
      %v938 = vadd.f32 %v775, %v937
      %v939 = vpop.f32.mrf.mxu0
      %v940 = vadd.f32 %v779, %v939
      %941 = vmatprep.mubr.f32.mxu0 %v393
      %942 = vmatmul.mubr.f32.gmra.mxu0 %v392
      %v943 = vpop.f32.mrf.mxu0
      %v944 = vadd.f32 %v775, %v943
      %v945 = vpop.f32.mrf.mxu0
      %v946 = vadd.f32 %v779, %v945
      %947 = vmatprep.mubr.f32.mxu0 %v399
      %948 = vmatmul.mubr.f32.gmra.mxu0 %v398
      %v949 = vpop.f32.mrf.mxu0
      %v950 = vadd.f32 %v775, %v949
      %v951 = vpop.f32.mrf.mxu0
      %v952 = vadd.f32 %v779, %v951
      %953 = vmatprep.mubr.f32.mxu0 %v405
      %954 = vmatmul.mubr.f32.gmra.mxu0 %v404
      %v955 = vpop.f32.mrf.mxu0
      %v956 = vadd.f32 %v775, %v955
      %v957 = vpop.f32.mrf.mxu0
      %v958 = vadd.f32 %v779, %v957
      %959 = vmatprep.mubr.f32.mxu0 %v411
      %960 = vmatmul.mubr.f32.gmra.mxu0 %v410
      %v961 = vpop.f32.mrf.mxu0
      %v962 = vadd.f32 %v775, %v961
      %v963 = vpop.f32.mrf.mxu0
      %v964 = vadd.f32 %v779, %v963
      %965 = vmatprep.mubr.f32.mxu0 %v417
      %966 = vmatmul.mubr.f32.gmra.mxu0 %v416
      %v967 = vpop.f32.mrf.mxu0
      %v968 = vadd.f32 %v775, %v967
      %v969 = vpop.f32.mrf.mxu0
      %v970 = vadd.f32 %v779, %v969
      %971 = vmatprep.mubr.f32.mxu0 %v423
      %972 = vmatmul.mubr.f32.gmra.mxu0 %v422
      %v973 = vpop.f32.mrf.mxu0
      %v974 = vadd.f32 %v775, %v973
      %v975 = vpop.f32.mrf.mxu0
      %v976 = vadd.f32 %v779, %v975
      %977 = vmatprep.mubr.f32.mxu0 %v429
      %978 = vmatmul.mubr.f32.gmra.mxu0 %v428
      %v979 = vpop.f32.mrf.mxu0
      %v980 = vadd.f32 %v775, %v979
      %v981 = vpop.f32.mrf.mxu0
      %v982 = vadd.f32 %v779, %v981
      %983 = vmatprep.mubr.f32.mxu0 %v435
      %984 = vmatmul.mubr.f32.gmra.mxu0 %v434
      %v985 = vpop.f32.mrf.mxu0
      %v986 = vadd.f32 %v775, %v985
      %v987 = vpop.f32.mrf.mxu0
      %v988 = vadd.f32 %v779, %v987
      %989 = vmatprep.mubr.f32.mxu0 %v441
      %990 = vmatmul.mubr.f32.gmra.mxu0 %v440
      %v991 = vpop.f32.mrf.mxu0
      %v992 = vadd.f32 %v775, %v991
      %v993 = vpop.f32.mrf.mxu0
      %v994 = vadd.f32 %v779, %v993
      %995 = vmatprep.mubr.f32.mxu0 %v447
      %996 = vmatmul.mubr.f32.gmra.mxu0 %v446
      %v997 = vpop.f32.mrf.mxu0
      %v998 = vadd.f32 %v775, %v997
      %v999 = vpop.f32.mrf.mxu0
      %v1000 = vadd.f32 %v779, %v999
      %1001 = vmatprep.mubr.f32.mxu0 %v453
      %1002 = vmatmul.mubr.f32.gmra.mxu0 %v452
      %v1003 = vpop.f32.mrf.mxu0
      %v1004 = vadd.f32 %v775, %v1003
      %v1005 = vpop.f32.mrf.mxu0
      %v1006 = vadd.f32 %v779, %v1005
      %1007 = vmatprep.mubr.f32.mxu0 %v459
      %1008 = vmatmul.mubr.f32.gmra.mxu0 %v458
      %v1009 = vpop.f32.mrf.mxu0
      %v1010 = vadd.f32 %v775, %v1009
      %v1011 = vpop.f32.mrf.mxu0
      %v1012 = vadd.f32 %v779, %v1011
      %1013 = vmatprep.mubr.f32.mxu0 %v465
      %1014 = vmatmul.mubr.f32.gmra.mxu0 %v464
      %v1015 = vpop.f32.mrf.mxu0
      %v1016 = vadd.f32 %v775, %v1015
      %v1017 = vpop.f32.mrf.mxu0
      %v1018 = vadd.f32 %v779, %v1017
      %1019 = vmatprep.mubr.f32.mxu0 %v471
      %1020 = vmatmul.mubr.f32.gmra.mxu0 %v470
      %v1021 = vpop.f32.mrf.mxu0
      %v1022 = vadd.f32 %v775, %v1021
      %v1023 = vpop.f32.mrf.mxu0
      %v1024 = vadd.f32 %v779, %v1023
      %1025 = vmatprep.mubr.f32.mxu0 %v477
      %1026 = vmatmul.mubr.f32.gmra.mxu0 %v476
      %v1027 = vpop.f32.mrf.mxu0
      %v1028 = vadd.f32 %v775, %v1027
      %v1029 = vpop.f32.mrf.mxu0
      %v1030 = vadd.f32 %v779, %v1029
      %1031 = vdwg.mxu0
      %1032 = vmatprep.subr.mxu0 %v624
      %1033 = vmatpush1.msra.mxu0 %v623
      %1034 = vmatprep.subr.mxu0 %v621
      %1035 = vmatpush1.msra.mxu0 %v620
      %1036 = vmatprep.subr.mxu0 %v618
      %1037 = vmatpush1.msra.mxu0 %v617
      %1038 = vmatprep.subr.mxu0 %v615
      %1039 = vmatpush1.msra.mxu0 %v614
      %1040 = vmatprep.subr.mxu0 %v612
      %1041 = vmatpush1.msra.mxu0 %v611
      %1042 = vmatprep.subr.mxu0 %v609
      %1043 = vmatpush1.msra.mxu0 %v608
      %1044 = vmatprep.subr.mxu0 %v606
      %1045 = vmatpush1.msra.mxu0 %v605
      %1046 = vmatprep.subr.mxu0 %v603
      %1047 = vmatpush1.msra.mxu0 %v602
      %1048 = vmatprep.subr.mxu0 %v600
      %1049 = vmatpush1.msra.mxu0 %v599
      %1050 = vmatprep.subr.mxu0 %v597
      %1051 = vmatpush1.msra.mxu0 %v596
      %1052 = vmatprep.subr.mxu0 %v594
      %1053 = vmatpush1.msra.mxu0 %v593
      %1054 = vmatprep.subr.mxu0 %v591
      %1055 = vmatpush1.msra.mxu0 %v590
      %1056 = vmatprep.subr.mxu0 %v588
      %1057 = vmatpush1.msra.mxu0 %v587
      %1058 = vmatprep.subr.mxu0 %v585
      %1059 = vmatpush1.msra.mxu0 %v584
      %1060 = vmatprep.subr.mxu0 %v582
      %1061 = vmatpush1.msra.mxu0 %v581
      %1062 = vmatprep.subr.mxu0 %v579
      %1063 = vmatpush1.msra.mxu0 %v578
      %1064 = vmatprep.subr.mxu0 %v672
      %1065 = vmatpush2.msra.mxu0 %v671
      %1066 = vmatprep.subr.mxu0 %v669
      %1067 = vmatpush2.msra.mxu0 %v668
      %1068 = vmatprep.subr.mxu0 %v666
      %1069 = vmatpush2.msra.mxu0 %v665
      %1070 = vmatprep.subr.mxu0 %v663
      %1071 = vmatpush2.msra.mxu0 %v662
      %1072 = vmatprep.subr.mxu0 %v660
      %1073 = vmatpush2.msra.mxu0 %v659
      %1074 = vmatprep.subr.mxu0 %v657
      %1075 = vmatpush2.msra.mxu0 %v656
      %1076 = vmatprep.subr.mxu0 %v654
      %1077 = vmatpush2.msra.mxu0 %v653
      %1078 = vmatprep.subr.mxu0 %v651
      %1079 = vmatpush2.msra.mxu0 %v650
      %1080 = vmatprep.subr.mxu0 %v648
      %1081 = vmatpush2.msra.mxu0 %v647
      %1082 = vmatprep.subr.mxu0 %v645
      %1083 = vmatpush2.msra.mxu0 %v644
      %1084 = vmatprep.subr.mxu0 %v642
      %1085 = vmatpush2.msra.mxu0 %v641
      %1086 = vmatprep.subr.mxu0 %v639
      %1087 = vmatpush2.msra.mxu0 %v638
      %1088 = vmatprep.subr.mxu0 %v636
      %1089 = vmatpush2.msra.mxu0 %v635
      %1090 = vmatprep.subr.mxu0 %v633
      %1091 = vmatpush2.msra.mxu0 %v632
      %1092 = vmatprep.subr.mxu0 %v630
      %1093 = vmatpush2.msra.mxu0 %v629
      %1094 = vmatprep.subr.mxu0 %v627
      %1095 = vmatpush2.msra.mxu0 %v626
      %1096 = vmatprep.mubr.f32.mxu0 %v305
      %1097 = vmatmul.mubr.f32.gmra.mxu0 %v304
      %v1098 = vpop.f32.mrf.mxu0
      %v1099 = vadd.f32 %v854, %v1098
      %v1100 = vpop.f32.mrf.mxu0
      %v1101 = vadd.f32 %v856, %v1100
      %1102 = vmatprep.mubr.f32.mxu0 %v311
      %1103 = vmatmul.mubr.f32.gmra.mxu0 %v310
      %v1104 = vpop.f32.mrf.mxu0
      %v1105 = vadd.f32 %v860, %v1104
      %v1106 = vpop.f32.mrf.mxu0
      %v1107 = vadd.f32 %v862, %v1106
      %1108 = vmatprep.mubr.f32.mxu0 %v317
      %1109 = vmatmul.mubr.f32.gmra.mxu0 %v316
      %v1110 = vpop.f32.mrf.mxu0
      %v1111 = vadd.f32 %v866, %v1110
      %v1112 = vpop.f32.mrf.mxu0
      %v1113 = vadd.f32 %v868, %v1112
      %1114 = vmatprep.mubr.f32.mxu0 %v323
      %1115 = vmatmul.mubr.f32.gmra.mxu0 %v322
      %v1116 = vpop.f32.mrf.mxu0
      %v1117 = vadd.f32 %v872, %v1116
      %v1118 = vpop.f32.mrf.mxu0
      %v1119 = vadd.f32 %v874, %v1118
      %1120 = vmatprep.mubr.f32.mxu0 %v329
      %1121 = vmatmul.mubr.f32.gmra.mxu0 %v328
      %v1122 = vpop.f32.mrf.mxu0
      %v1123 = vadd.f32 %v878, %v1122
      %v1124 = vpop.f32.mrf.mxu0
      %v1125 = vadd.f32 %v880, %v1124
      %1126 = vmatprep.mubr.f32.mxu0 %v335
      %1127 = vmatmul.mubr.f32.gmra.mxu0 %v334
      %v1128 = vpop.f32.mrf.mxu0
      %v1129 = vadd.f32 %v884, %v1128
      %v1130 = vpop.f32.mrf.mxu0
      %v1131 = vadd.f32 %v886, %v1130
      %1132 = vmatprep.mubr.f32.mxu0 %v341
      %1133 = vmatmul.mubr.f32.gmra.mxu0 %v340
      %v1134 = vpop.f32.mrf.mxu0
      %v1135 = vadd.f32 %v890, %v1134
      %v1136 = vpop.f32.mrf.mxu0
      %v1137 = vadd.f32 %v892, %v1136
      %1138 = vmatprep.mubr.f32.mxu0 %v347
      %1139 = vmatmul.mubr.f32.gmra.mxu0 %v346
      %v1140 = vpop.f32.mrf.mxu0
      %v1141 = vadd.f32 %v896, %v1140
      %v1142 = vpop.f32.mrf.mxu0
      %v1143 = vadd.f32 %v898, %v1142
      %1144 = vmatprep.mubr.f32.mxu0 %v353
      %1145 = vmatmul.mubr.f32.gmra.mxu0 %v352
      %v1146 = vpop.f32.mrf.mxu0
      %v1147 = vadd.f32 %v902, %v1146
      %v1148 = vpop.f32.mrf.mxu0
      %v1149 = vadd.f32 %v904, %v1148
      %1150 = vmatprep.mubr.f32.mxu0 %v359
      %1151 = vmatmul.mubr.f32.gmra.mxu0 %v358
      %v1152 = vpop.f32.mrf.mxu0
      %v1153 = vadd.f32 %v908, %v1152
      %v1154 = vpop.f32.mrf.mxu0
      %v1155 = vadd.f32 %v910, %v1154
      %1156 = vmatprep.mubr.f32.mxu0 %v365
      %1157 = vmatmul.mubr.f32.gmra.mxu0 %v364
      %v1158 = vpop.f32.mrf.mxu0
      %v1159 = vadd.f32 %v914, %v1158
      %v1160 = vpop.f32.mrf.mxu0
      %v1161 = vadd.f32 %v916, %v1160
      %1162 = vmatprep.mubr.f32.mxu0 %v371
      %1163 = vmatmul.mubr.f32.gmra.mxu0 %v370
      %v1164 = vpop.f32.mrf.mxu0
      %v1165 = vadd.f32 %v920, %v1164
      %v1166 = vpop.f32.mrf.mxu0
      %v1167 = vadd.f32 %v922, %v1166
      %1168 = vmatprep.mubr.f32.mxu0 %v377
      %1169 = vmatmul.mubr.f32.gmra.mxu0 %v376
      %v1170 = vpop.f32.mrf.mxu0
      %v1171 = vadd.f32 %v926, %v1170
      %v1172 = vpop.f32.mrf.mxu0
      %v1173 = vadd.f32 %v928, %v1172
      %1174 = vmatprep.mubr.f32.mxu0 %v383
      %1175 = vmatmul.mubr.f32.gmra.mxu0 %v382
      %v1176 = vpop.f32.mrf.mxu0
      %v1177 = vadd.f32 %v932, %v1176
      %v1178 = vpop.f32.mrf.mxu0
      %v1179 = vadd.f32 %v934, %v1178
      %1180 = vmatprep.mubr.f32.mxu0 %v389
      %1181 = vmatmul.mubr.f32.gmra.mxu0 %v388
      %v1182 = vpop.f32.mrf.mxu0
      %v1183 = vadd.f32 %v938, %v1182
      %v1184 = vpop.f32.mrf.mxu0
      %v1185 = vadd.f32 %v940, %v1184
      %1186 = vmatprep.mubr.f32.mxu0 %v395
      %1187 = vmatmul.mubr.f32.gmra.mxu0 %v394
      %v1188 = vpop.f32.mrf.mxu0
      %v1189 = vadd.f32 %v944, %v1188
      %v1190 = vpop.f32.mrf.mxu0
      %v1191 = vadd.f32 %v946, %v1190
      %1192 = vmatprep.mubr.f32.mxu0 %v401
      %1193 = vmatmul.mubr.f32.gmra.mxu0 %v400
      %v1194 = vpop.f32.mrf.mxu0
      %v1195 = vadd.f32 %v950, %v1194
      %v1196 = vpop.f32.mrf.mxu0
      %v1197 = vadd.f32 %v952, %v1196
      %1198 = vmatprep.mubr.f32.mxu0 %v407
      %1199 = vmatmul.mubr.f32.gmra.mxu0 %v406
      %v1200 = vpop.f32.mrf.mxu0
      %v1201 = vadd.f32 %v956, %v1200
      %v1202 = vpop.f32.mrf.mxu0
      %v1203 = vadd.f32 %v958, %v1202
      %1204 = vmatprep.mubr.f32.mxu0 %v413
      %1205 = vmatmul.mubr.f32.gmra.mxu0 %v412
      %v1206 = vpop.f32.mrf.mxu0
      %v1207 = vadd.f32 %v962, %v1206
      %v1208 = vpop.f32.mrf.mxu0
      %v1209 = vadd.f32 %v964, %v1208
      %1210 = vmatprep.mubr.f32.mxu0 %v419
      %1211 = vmatmul.mubr.f32.gmra.mxu0 %v418
      %v1212 = vpop.f32.mrf.mxu0
      %v1213 = vadd.f32 %v968, %v1212
      %v1214 = vpop.f32.mrf.mxu0
      %v1215 = vadd.f32 %v970, %v1214
      %1216 = vmatprep.mubr.f32.mxu0 %v425
      %1217 = vmatmul.mubr.f32.gmra.mxu0 %v424
      %v1218 = vpop.f32.mrf.mxu0
      %v1219 = vadd.f32 %v974, %v1218
      %v1220 = vpop.f32.mrf.mxu0
      %v1221 = vadd.f32 %v976, %v1220
      %1222 = vmatprep.mubr.f32.mxu0 %v431
      %1223 = vmatmul.mubr.f32.gmra.mxu0 %v430
      %v1224 = vpop.f32.mrf.mxu0
      %v1225 = vadd.f32 %v980, %v1224
      %v1226 = vpop.f32.mrf.mxu0
      %v1227 = vadd.f32 %v982, %v1226
      %1228 = vmatprep.mubr.f32.mxu0 %v437
      %1229 = vmatmul.mubr.f32.gmra.mxu0 %v436
      %v1230 = vpop.f32.mrf.mxu0
      %v1231 = vadd.f32 %v986, %v1230
      %v1232 = vpop.f32.mrf.mxu0
      %v1233 = vadd.f32 %v988, %v1232
      %1234 = vmatprep.mubr.f32.mxu0 %v443
      %1235 = vmatmul.mubr.f32.gmra.mxu0 %v442
      %v1236 = vpop.f32.mrf.mxu0
      %v1237 = vadd.f32 %v992, %v1236
      %v1238 = vpop.f32.mrf.mxu0
      %v1239 = vadd.f32 %v994, %v1238
      %1240 = vmatprep.mubr.f32.mxu0 %v449
      %1241 = vmatmul.mubr.f32.gmra.mxu0 %v448
      %v1242 = vpop.f32.mrf.mxu0
      %v1243 = vadd.f32 %v998, %v1242
      %v1244 = vpop.f32.mrf.mxu0
      %v1245 = vadd.f32 %v1000, %v1244
      %1246 = vmatprep.mubr.f32.mxu0 %v455
      %1247 = vmatmul.mubr.f32.gmra.mxu0 %v454
      %v1248 = vpop.f32.mrf.mxu0
      %v1249 = vadd.f32 %v1004, %v1248
      %v1250 = vpop.f32.mrf.mxu0
      %v1251 = vadd.f32 %v1006, %v1250
      %1252 = vmatprep.mubr.f32.mxu0 %v461
      %1253 = vmatmul.mubr.f32.gmra.mxu0 %v460
      %v1254 = vpop.f32.mrf.mxu0
      %v1255 = vadd.f32 %v1010, %v1254
      %v1256 = vpop.f32.mrf.mxu0
      %v1257 = vadd.f32 %v1012, %v1256
      %1258 = vmatprep.mubr.f32.mxu0 %v467
      %1259 = vmatmul.mubr.f32.gmra.mxu0 %v466
      %v1260 = vpop.f32.mrf.mxu0
      %v1261 = vadd.f32 %v1016, %v1260
      %v1262 = vpop.f32.mrf.mxu0
      %v1263 = vadd.f32 %v1018, %v1262
      %1264 = vmatprep.mubr.f32.mxu0 %v473
      %1265 = vmatmul.mubr.f32.gmra.mxu0 %v472
      %v1266 = vpop.f32.mrf.mxu0
      %v1267 = vadd.f32 %v1022, %v1266
      %v1268 = vpop.f32.mrf.mxu0
      %v1269 = vadd.f32 %v1024, %v1268
      %1270 = vmatprep.mubr.f32.mxu0 %v479
      %1271 = vmatmul.mubr.f32.gmra.mxu0 %v478
      %v1272 = vpop.f32.mrf.mxu0
      %v1273 = vadd.f32 %v1028, %v1272
      %v1274 = vpop.f32.mrf.mxu0
      %v1275 = vadd.f32 %v1030, %v1274
      %1276 = vdwg.mxu0
      %1277 = vmatprep.subr.mxu0 %v720
      %1278 = vmatpush1.msra.mxu0 %v719
      %1279 = vmatprep.subr.mxu0 %v717
      %1280 = vmatpush1.msra.mxu0 %v716
      %1281 = vmatprep.subr.mxu0 %v714
      %1282 = vmatpush1.msra.mxu0 %v713
      %1283 = vmatprep.subr.mxu0 %v711
      %1284 = vmatpush1.msra.mxu0 %v710
      %1285 = vmatprep.subr.mxu0 %v708
      %1286 = vmatpush1.msra.mxu0 %v707
      %1287 = vmatprep.subr.mxu0 %v705
      %1288 = vmatpush1.msra.mxu0 %v704
      %1289 = vmatprep.subr.mxu0 %v702
      %1290 = vmatpush1.msra.mxu0 %v701
      %1291 = vmatprep.subr.mxu0 %v699
      %1292 = vmatpush1.msra.mxu0 %v698
      %1293 = vmatprep.subr.mxu0 %v696
      %1294 = vmatpush1.msra.mxu0 %v695
      %1295 = vmatprep.subr.mxu0 %v693
      %1296 = vmatpush1.msra.mxu0 %v692
      %1297 = vmatprep.subr.mxu0 %v690
      %1298 = vmatpush1.msra.mxu0 %v689
      %1299 = vmatprep.subr.mxu0 %v687
      %1300 = vmatpush1.msra.mxu0 %v686
      %1301 = vmatprep.subr.mxu0 %v684
      %1302 = vmatpush1.msra.mxu0 %v683
      %1303 = vmatprep.subr.mxu0 %v681
      %1304 = vmatpush1.msra.mxu0 %v680
      %1305 = vmatprep.subr.mxu0 %v678
      %1306 = vmatpush1.msra.mxu0 %v677
      %1307 = vmatprep.subr.mxu0 %v675
      %1308 = vmatpush1.msra.mxu0 %v674
      %1309 = vmatprep.subr.mxu0 %v768
      %1310 = vmatpush2.msra.mxu0 %v767
      %1311 = vmatprep.subr.mxu0 %v765
      %1312 = vmatpush2.msra.mxu0 %v764
      %1313 = vmatprep.subr.mxu0 %v762
      %1314 = vmatpush2.msra.mxu0 %v761
      %1315 = vmatprep.subr.mxu0 %v759
      %1316 = vmatpush2.msra.mxu0 %v758
      %1317 = vmatprep.subr.mxu0 %v756
      %1318 = vmatpush2.msra.mxu0 %v755
      %1319 = vmatprep.subr.mxu0 %v753
      %1320 = vmatpush2.msra.mxu0 %v752
      %1321 = vmatprep.subr.mxu0 %v750
      %1322 = vmatpush2.msra.mxu0 %v749
      %1323 = vmatprep.subr.mxu0 %v747
      %1324 = vmatpush2.msra.mxu0 %v746
      %1325 = vmatprep.subr.mxu0 %v744
      %1326 = vmatpush2.msra.mxu0 %v743
      %1327 = vmatprep.subr.mxu0 %v741
      %1328 = vmatpush2.msra.mxu0 %v740
      %1329 = vmatprep.subr.mxu0 %v738
      %1330 = vmatpush2.msra.mxu0 %v737
      %1331 = vmatprep.subr.mxu0 %v735
      %1332 = vmatpush2.msra.mxu0 %v734
      %1333 = vmatprep.subr.mxu0 %v732
      %1334 = vmatpush2.msra.mxu0 %v731
      %1335 = vmatprep.subr.mxu0 %v729
      %1336 = vmatpush2.msra.mxu0 %v728
      %1337 = vmatprep.subr.mxu0 %v726
      %1338 = vmatpush2.msra.mxu0 %v725
      %1339 = vmatprep.subr.mxu0 %v723
      %1340 = vmatpush2.msra.mxu0 %v722
      %1341 = vmatprep.mubr.f32.mxu0 %v307
      %1342 = vmatmul.mubr.f32.gmra.mxu0 %v306
      %v1343 = vpop.f32.mrf.mxu0
      %v1344 = vadd.f32 %v1099, %v1343
      %v1345 = vpop.f32.mrf.mxu0
      %v1346 = vadd.f32 %v1101, %v1345
      %1347 = vmatprep.mubr.f32.mxu0 %v313
      %1348 = vmatmul.mubr.f32.gmra.mxu0 %v312
      %v1349 = vpop.f32.mrf.mxu0
      %v1350 = vadd.f32 %v1105, %v1349
      %v1351 = vpop.f32.mrf.mxu0
      %v1352 = vadd.f32 %v1107, %v1351
      %1353 = vmatprep.mubr.f32.mxu0 %v319
      %1354 = vmatmul.mubr.f32.gmra.mxu0 %v318
      %v1355 = vpop.f32.mrf.mxu0
      %v1356 = vadd.f32 %v1111, %v1355
      %v1357 = vpop.f32.mrf.mxu0
      %v1358 = vadd.f32 %v1113, %v1357
      %1359 = vmatprep.mubr.f32.mxu0 %v325
      %1360 = vmatmul.mubr.f32.gmra.mxu0 %v324
      %v1361 = vpop.f32.mrf.mxu0
      %v1362 = vadd.f32 %v1117, %v1361
      %v1363 = vpop.f32.mrf.mxu0
      %v1364 = vadd.f32 %v1119, %v1363
      %1365 = vmatprep.mubr.f32.mxu0 %v331
      %1366 = vmatmul.mubr.f32.gmra.mxu0 %v330
      %v1367 = vpop.f32.mrf.mxu0
      %v1368 = vadd.f32 %v1123, %v1367
      %v1369 = vpop.f32.mrf.mxu0
      %v1370 = vadd.f32 %v1125, %v1369
      %1371 = vmatprep.mubr.f32.mxu0 %v337
      %1372 = vmatmul.mubr.f32.gmra.mxu0 %v336
      %v1373 = vpop.f32.mrf.mxu0
      %v1374 = vadd.f32 %v1129, %v1373
      %v1375 = vpop.f32.mrf.mxu0
      %v1376 = vadd.f32 %v1131, %v1375
      %1377 = vmatprep.mubr.f32.mxu0 %v343
      %1378 = vmatmul.mubr.f32.gmra.mxu0 %v342
      %v1379 = vpop.f32.mrf.mxu0
      %v1380 = vadd.f32 %v1135, %v1379
      %v1381 = vpop.f32.mrf.mxu0
      %v1382 = vadd.f32 %v1137, %v1381
      %1383 = vmatprep.mubr.f32.mxu0 %v349
      %1384 = vmatmul.mubr.f32.gmra.mxu0 %v348
      %v1385 = vpop.f32.mrf.mxu0
      %v1386 = vadd.f32 %v1141, %v1385
      %v1387 = vpop.f32.mrf.mxu0
      %v1388 = vadd.f32 %v1143, %v1387
      %1389 = vmatprep.mubr.f32.mxu0 %v355
      %1390 = vmatmul.mubr.f32.gmra.mxu0 %v354
      %v1391 = vpop.f32.mrf.mxu0
      %v1392 = vadd.f32 %v1147, %v1391
      %v1393 = vpop.f32.mrf.mxu0
      %v1394 = vadd.f32 %v1149, %v1393
      %1395 = vmatprep.mubr.f32.mxu0 %v361
      %1396 = vmatmul.mubr.f32.gmra.mxu0 %v360
      %v1397 = vpop.f32.mrf.mxu0
      %v1398 = vadd.f32 %v1153, %v1397
      %v1399 = vpop.f32.mrf.mxu0
      %v1400 = vadd.f32 %v1155, %v1399
      %1401 = vmatprep.mubr.f32.mxu0 %v367
      %1402 = vmatmul.mubr.f32.gmra.mxu0 %v366
      %v1403 = vpop.f32.mrf.mxu0
      %v1404 = vadd.f32 %v1159, %v1403
      %v1405 = vpop.f32.mrf.mxu0
      %v1406 = vadd.f32 %v1161, %v1405
      %1407 = vmatprep.mubr.f32.mxu0 %v373
      %1408 = vmatmul.mubr.f32.gmra.mxu0 %v372
      %v1409 = vpop.f32.mrf.mxu0
      %v1410 = vadd.f32 %v1165, %v1409
      %v1411 = vpop.f32.mrf.mxu0
      %v1412 = vadd.f32 %v1167, %v1411
      %1413 = vmatprep.mubr.f32.mxu0 %v379
      %1414 = vmatmul.mubr.f32.gmra.mxu0 %v378
      %v1415 = vpop.f32.mrf.mxu0
      %v1416 = vadd.f32 %v1171, %v1415
      %v1417 = vpop.f32.mrf.mxu0
      %v1418 = vadd.f32 %v1173, %v1417
      %1419 = vmatprep.mubr.f32.mxu0 %v385
      %1420 = vmatmul.mubr.f32.gmra.mxu0 %v384
      %v1421 = vpop.f32.mrf.mxu0
      %v1422 = vadd.f32 %v1177, %v1421
      %v1423 = vpop.f32.mrf.mxu0
      %v1424 = vadd.f32 %v1179, %v1423
      %1425 = vmatprep.mubr.f32.mxu0 %v391
      %1426 = vmatmul.mubr.f32.gmra.mxu0 %v390
      %v1427 = vpop.f32.mrf.mxu0
      %v1428 = vadd.f32 %v1183, %v1427
      %v1429 = vpop.f32.mrf.mxu0
      %v1430 = vadd.f32 %v1185, %v1429
      %1431 = vmatprep.mubr.f32.mxu0 %v397
      %1432 = vmatmul.mubr.f32.gmra.mxu0 %v396
      %v1433 = vpop.f32.mrf.mxu0
      %v1434 = vadd.f32 %v1189, %v1433
      %v1435 = vpop.f32.mrf.mxu0
      %v1436 = vadd.f32 %v1191, %v1435
      %1437 = vmatprep.mubr.f32.mxu0 %v403
      %1438 = vmatmul.mubr.f32.gmra.mxu0 %v402
      %v1439 = vpop.f32.mrf.mxu0
      %v1440 = vadd.f32 %v1195, %v1439
      %v1441 = vpop.f32.mrf.mxu0
      %v1442 = vadd.f32 %v1197, %v1441
      %1443 = vmatprep.mubr.f32.mxu0 %v409
      %1444 = vmatmul.mubr.f32.gmra.mxu0 %v408
      %v1445 = vpop.f32.mrf.mxu0
      %v1446 = vadd.f32 %v1201, %v1445
      %v1447 = vpop.f32.mrf.mxu0
      %v1448 = vadd.f32 %v1203, %v1447
      %1449 = vmatprep.mubr.f32.mxu0 %v415
      %1450 = vmatmul.mubr.f32.gmra.mxu0 %v414
      %v1451 = vpop.f32.mrf.mxu0
      %v1452 = vadd.f32 %v1207, %v1451
      %v1453 = vpop.f32.mrf.mxu0
      %v1454 = vadd.f32 %v1209, %v1453
      %1455 = vmatprep.mubr.f32.mxu0 %v421
      %1456 = vmatmul.mubr.f32.gmra.mxu0 %v420
      %v1457 = vpop.f32.mrf.mxu0
      %v1458 = vadd.f32 %v1213, %v1457
      %v1459 = vpop.f32.mrf.mxu0
      %v1460 = vadd.f32 %v1215, %v1459
      %1461 = vmatprep.mubr.f32.mxu0 %v427
      %1462 = vmatmul.mubr.f32.gmra.mxu0 %v426
      %v1463 = vpop.f32.mrf.mxu0
      %v1464 = vadd.f32 %v1219, %v1463
      %v1465 = vpop.f32.mrf.mxu0
      %v1466 = vadd.f32 %v1221, %v1465
      %1467 = vmatprep.mubr.f32.mxu0 %v433
      %1468 = vmatmul.mubr.f32.gmra.mxu0 %v432
      %v1469 = vpop.f32.mrf.mxu0
      %v1470 = vadd.f32 %v1225, %v1469
      %v1471 = vpop.f32.mrf.mxu0
      %v1472 = vadd.f32 %v1227, %v1471
      %1473 = vmatprep.mubr.f32.mxu0 %v439
      %1474 = vmatmul.mubr.f32.gmra.mxu0 %v438
      %v1475 = vpop.f32.mrf.mxu0
      %v1476 = vadd.f32 %v1231, %v1475
      %v1477 = vpop.f32.mrf.mxu0
      %v1478 = vadd.f32 %v1233, %v1477
      %1479 = vmatprep.mubr.f32.mxu0 %v445
      %1480 = vmatmul.mubr.f32.gmra.mxu0 %v444
      %v1481 = vpop.f32.mrf.mxu0
      %v1482 = vadd.f32 %v1237, %v1481
      %v1483 = vpop.f32.mrf.mxu0
      %v1484 = vadd.f32 %v1239, %v1483
      %1485 = vmatprep.mubr.f32.mxu0 %v451
      %1486 = vmatmul.mubr.f32.gmra.mxu0 %v450
      %v1487 = vpop.f32.mrf.mxu0
      %v1488 = vadd.f32 %v1243, %v1487
      %v1489 = vpop.f32.mrf.mxu0
      %v1490 = vadd.f32 %v1245, %v1489
      %1491 = vmatprep.mubr.f32.mxu0 %v457
      %1492 = vmatmul.mubr.f32.gmra.mxu0 %v456
      %v1493 = vpop.f32.mrf.mxu0
      %v1494 = vadd.f32 %v1249, %v1493
      %v1495 = vpop.f32.mrf.mxu0
      %v1496 = vadd.f32 %v1251, %v1495
      %1497 = vmatprep.mubr.f32.mxu0 %v463
      %1498 = vmatmul.mubr.f32.gmra.mxu0 %v462
      %v1499 = vpop.f32.mrf.mxu0
      %v1500 = vadd.f32 %v1255, %v1499
      %v1501 = vpop.f32.mrf.mxu0
      %v1502 = vadd.f32 %v1257, %v1501
      %1503 = vmatprep.mubr.f32.mxu0 %v469
      %1504 = vmatmul.mubr.f32.gmra.mxu0 %v468
      %v1505 = vpop.f32.mrf.mxu0
      %v1506 = vadd.f32 %v1261, %v1505
      %v1507 = vpop.f32.mrf.mxu0
      %v1508 = vadd.f32 %v1263, %v1507
      %1509 = vmatprep.mubr.f32.mxu0 %v475
      %1510 = vmatmul.mubr.f32.gmra.mxu0 %v474
      %v1511 = vpop.f32.mrf.mxu0
      %v1512 = vadd.f32 %v1267, %v1511
      %v1513 = vpop.f32.mrf.mxu0
      %v1514 = vadd.f32 %v1269, %v1513
      %1515 = vmatprep.mubr.f32.mxu0 %v481
      %1516 = vmatmul.mubr.f32.gmra.mxu0 %v480
      %v1517 = vpop.f32.mrf.mxu0
      %v1518 = vadd.f32 %v1273, %v1517
      %v1519 = vpop.f32.mrf.mxu0
      %v1520 = vadd.f32 %v1275, %v1519
      %1521 = vdwg.mxu0
      %1522 = vmatprep.subr.mxu0 0.0
      %1523 = vmatpush1.msra.mxu0 %v529
      %1524 = vmatprep.subr.mxu0 0.0
      %1525 = vmatpush1.msra.mxu0 %v526
      %1526 = vmatprep.subr.mxu0 0.0
      %1527 = vmatpush1.msra.mxu0 %v523
      %1528 = vmatprep.subr.mxu0 0.0
      %1529 = vmatpush1.msra.mxu0 %v520
      %1530 = vmatprep.subr.mxu0 0.0
      %1531 = vmatpush1.msra.mxu0 %v517
      %1532 = vmatprep.subr.mxu0 0.0
      %1533 = vmatpush1.msra.mxu0 %v514
      %1534 = vmatprep.subr.mxu0 0.0
      %1535 = vmatpush1.msra.mxu0 %v511
      %1536 = vmatprep.subr.mxu0 0.0
      %1537 = vmatpush1.msra.mxu0 %v508
      %1538 = vmatprep.subr.mxu0 0.0
      %1539 = vmatpush1.msra.mxu0 %v505
      %1540 = vmatprep.subr.mxu0 0.0
      %1541 = vmatpush1.msra.mxu0 %v502
      %1542 = vmatprep.subr.mxu0 0.0
      %1543 = vmatpush1.msra.mxu0 %v499
      %1544 = vmatprep.subr.mxu0 0.0
      %1545 = vmatpush1.msra.mxu0 %v496
      %1546 = vmatprep.subr.mxu0 0.0
      %1547 = vmatpush1.msra.mxu0 %v493
      %1548 = vmatprep.subr.mxu0 0.0
      %1549 = vmatpush1.msra.mxu0 %v490
      %1550 = vmatprep.subr.mxu0 0.0
      %1551 = vmatpush1.msra.mxu0 %v487
      %1552 = vmatprep.subr.mxu0 0.0
      %1553 = vmatpush1.msra.mxu0 %v484
      %1554 = vmatprep.subr.mxu0 0.0
      %1555 = vmatpush2.msra.mxu0 %v577
      %1556 = vmatprep.subr.mxu0 0.0
      %1557 = vmatpush2.msra.mxu0 %v574
      %1558 = vmatprep.subr.mxu0 0.0
      %1559 = vmatpush2.msra.mxu0 %v571
      %1560 = vmatprep.subr.mxu0 0.0
      %1561 = vmatpush2.msra.mxu0 %v568
      %1562 = vmatprep.subr.mxu0 0.0
      %1563 = vmatpush2.msra.mxu0 %v565
      %1564 = vmatprep.subr.mxu0 0.0
      %1565 = vmatpush2.msra.mxu0 %v562
      %1566 = vmatprep.subr.mxu0 0.0
      %1567 = vmatpush2.msra.mxu0 %v559
      %1568 = vmatprep.subr.mxu0 0.0
      %1569 = vmatpush2.msra.mxu0 %v556
      %1570 = vmatprep.subr.mxu0 0.0
      %1571 = vmatpush2.msra.mxu0 %v553
      %1572 = vmatprep.subr.mxu0 0.0
      %1573 = vmatpush2.msra.mxu0 %v550
      %1574 = vmatprep.subr.mxu0 0.0
      %1575 = vmatpush2.msra.mxu0 %v547
      %1576 = vmatprep.subr.mxu0 0.0
      %1577 = vmatpush2.msra.mxu0 %v544
      %1578 = vmatprep.subr.mxu0 0.0
      %1579 = vmatpush2.msra.mxu0 %v541
      %1580 = vmatprep.subr.mxu0 0.0
      %1581 = vmatpush2.msra.mxu0 %v538
      %1582 = vmatprep.subr.mxu0 0.0
      %1583 = vmatpush2.msra.mxu0 %v535
      %1584 = vmatprep.subr.mxu0 0.0
      %1585 = vmatpush2.msra.mxu0 %v532
      %1586 = vmatprep.mubr.f32.mxu0 %v303
      %1587 = vmatmul.mubr.f32.gmra.mxu0 %v302
      %v1588 = vpop.f32.mrf.mxu0
      %v1589 = vadd.f32 %v783, %v1588
      %v1590 = vpop.f32.mrf.mxu0
      %1591 = vmatprep.mubr.f32.mxu0 %v309
      %1592 = vmatmul.mubr.f32.gmra.mxu0 %v308
      %v1593 = vpop.f32.mrf.mxu0
      %v1594 = vadd.f32 %v783, %v1593
      %v1595 = vpop.f32.mrf.mxu0
      %1596 = vmatprep.mubr.f32.mxu0 %v315
      %1597 = vmatmul.mubr.f32.gmra.mxu0 %v314
      %v1598 = vpop.f32.mrf.mxu0
      %v1599 = vadd.f32 %v783, %v1598
      %v1600 = vpop.f32.mrf.mxu0
      %1601 = vmatprep.mubr.f32.mxu0 %v321
      %1602 = vmatmul.mubr.f32.gmra.mxu0 %v320
      %v1603 = vpop.f32.mrf.mxu0
      %v1604 = vadd.f32 %v783, %v1603
      %v1605 = vpop.f32.mrf.mxu0
      %1606 = vmatprep.mubr.f32.mxu0 %v327
      %1607 = vmatmul.mubr.f32.gmra.mxu0 %v326
      %v1608 = vpop.f32.mrf.mxu0
      %v1609 = vadd.f32 %v783, %v1608
      %v1610 = vpop.f32.mrf.mxu0
      %1611 = vmatprep.mubr.f32.mxu0 %v333
      %1612 = vmatmul.mubr.f32.gmra.mxu0 %v332
      %v1613 = vpop.f32.mrf.mxu0
      %v1614 = vadd.f32 %v783, %v1613
      %v1615 = vpop.f32.mrf.mxu0
      %1616 = vmatprep.mubr.f32.mxu0 %v339
      %1617 = vmatmul.mubr.f32.gmra.mxu0 %v338
      %v1618 = vpop.f32.mrf.mxu0
      %v1619 = vadd.f32 %v783, %v1618
      %v1620 = vpop.f32.mrf.mxu0
      %1621 = vmatprep.mubr.f32.mxu0 %v345
      %1622 = vmatmul.mubr.f32.gmra.mxu0 %v344
      %v1623 = vpop.f32.mrf.mxu0
      %v1624 = vadd.f32 %v783, %v1623
      %v1625 = vpop.f32.mrf.mxu0
      %1626 = vmatprep.mubr.f32.mxu0 %v351
      %1627 = vmatmul.mubr.f32.gmra.mxu0 %v350
      %v1628 = vpop.f32.mrf.mxu0
      %v1629 = vadd.f32 %v783, %v1628
      %v1630 = vpop.f32.mrf.mxu0
      %1631 = vmatprep.mubr.f32.mxu0 %v357
      %1632 = vmatmul.mubr.f32.gmra.mxu0 %v356
      %v1633 = vpop.f32.mrf.mxu0
      %v1634 = vadd.f32 %v783, %v1633
      %v1635 = vpop.f32.mrf.mxu0
      %1636 = vmatprep.mubr.f32.mxu0 %v363
      %1637 = vmatmul.mubr.f32.gmra.mxu0 %v362
      %v1638 = vpop.f32.mrf.mxu0
      %v1639 = vadd.f32 %v783, %v1638
      %v1640 = vpop.f32.mrf.mxu0
      %1641 = vmatprep.mubr.f32.mxu0 %v369
      %1642 = vmatmul.mubr.f32.gmra.mxu0 %v368
      %v1643 = vpop.f32.mrf.mxu0
      %v1644 = vadd.f32 %v783, %v1643
      %v1645 = vpop.f32.mrf.mxu0
      %1646 = vmatprep.mubr.f32.mxu0 %v375
      %1647 = vmatmul.mubr.f32.gmra.mxu0 %v374
      %v1648 = vpop.f32.mrf.mxu0
      %v1649 = vadd.f32 %v783, %v1648
      %v1650 = vpop.f32.mrf.mxu0
      %1651 = vmatprep.mubr.f32.mxu0 %v381
      %1652 = vmatmul.mubr.f32.gmra.mxu0 %v380
      %v1653 = vpop.f32.mrf.mxu0
      %v1654 = vadd.f32 %v783, %v1653
      %v1655 = vpop.f32.mrf.mxu0
      %1656 = vmatprep.mubr.f32.mxu0 %v387
      %1657 = vmatmul.mubr.f32.gmra.mxu0 %v386
      %v1658 = vpop.f32.mrf.mxu0
      %v1659 = vadd.f32 %v783, %v1658
      %v1660 = vpop.f32.mrf.mxu0
      %1661 = vmatprep.mubr.f32.mxu0 %v393
      %1662 = vmatmul.mubr.f32.gmra.mxu0 %v392
      %v1663 = vpop.f32.mrf.mxu0
      %v1664 = vadd.f32 %v783, %v1663
      %v1665 = vpop.f32.mrf.mxu0
      %1666 = vmatprep.mubr.f32.mxu0 %v399
      %1667 = vmatmul.mubr.f32.gmra.mxu0 %v398
      %v1668 = vpop.f32.mrf.mxu0
      %v1669 = vadd.f32 %v783, %v1668
      %v1670 = vpop.f32.mrf.mxu0
      %1671 = vmatprep.mubr.f32.mxu0 %v405
      %1672 = vmatmul.mubr.f32.gmra.mxu0 %v404
      %v1673 = vpop.f32.mrf.mxu0
      %v1674 = vadd.f32 %v783, %v1673
      %v1675 = vpop.f32.mrf.mxu0
      %1676 = vmatprep.mubr.f32.mxu0 %v411
      %1677 = vmatmul.mubr.f32.gmra.mxu0 %v410
      %v1678 = vpop.f32.mrf.mxu0
      %v1679 = vadd.f32 %v783, %v1678
      %v1680 = vpop.f32.mrf.mxu0
      %1681 = vmatprep.mubr.f32.mxu0 %v417
      %1682 = vmatmul.mubr.f32.gmra.mxu0 %v416
      %v1683 = vpop.f32.mrf.mxu0
      %v1684 = vadd.f32 %v783, %v1683
      %v1685 = vpop.f32.mrf.mxu0
      %1686 = vmatprep.mubr.f32.mxu0 %v423
      %1687 = vmatmul.mubr.f32.gmra.mxu0 %v422
      %v1688 = vpop.f32.mrf.mxu0
      %v1689 = vadd.f32 %v783, %v1688
      %v1690 = vpop.f32.mrf.mxu0
      %1691 = vmatprep.mubr.f32.mxu0 %v429
      %1692 = vmatmul.mubr.f32.gmra.mxu0 %v428
      %v1693 = vpop.f32.mrf.mxu0
      %v1694 = vadd.f32 %v783, %v1693
      %v1695 = vpop.f32.mrf.mxu0
      %1696 = vmatprep.mubr.f32.mxu0 %v435
      %1697 = vmatmul.mubr.f32.gmra.mxu0 %v434
      %v1698 = vpop.f32.mrf.mxu0
      %v1699 = vadd.f32 %v783, %v1698
      %v1700 = vpop.f32.mrf.mxu0
      %1701 = vmatprep.mubr.f32.mxu0 %v441
      %1702 = vmatmul.mubr.f32.gmra.mxu0 %v440
      %v1703 = vpop.f32.mrf.mxu0
      %v1704 = vadd.f32 %v783, %v1703
      %v1705 = vpop.f32.mrf.mxu0
      %1706 = vmatprep.mubr.f32.mxu0 %v447
      %1707 = vmatmul.mubr.f32.gmra.mxu0 %v446
      %v1708 = vpop.f32.mrf.mxu0
      %v1709 = vadd.f32 %v783, %v1708
      %v1710 = vpop.f32.mrf.mxu0
      %1711 = vmatprep.mubr.f32.mxu0 %v453
      %1712 = vmatmul.mubr.f32.gmra.mxu0 %v452
      %v1713 = vpop.f32.mrf.mxu0
      %v1714 = vadd.f32 %v783, %v1713
      %v1715 = vpop.f32.mrf.mxu0
      %1716 = vmatprep.mubr.f32.mxu0 %v459
      %1717 = vmatmul.mubr.f32.gmra.mxu0 %v458
      %v1718 = vpop.f32.mrf.mxu0
      %v1719 = vadd.f32 %v783, %v1718
      %v1720 = vpop.f32.mrf.mxu0
      %1721 = vmatprep.mubr.f32.mxu0 %v465
      %1722 = vmatmul.mubr.f32.gmra.mxu0 %v464
      %v1723 = vpop.f32.mrf.mxu0
      %v1724 = vadd.f32 %v783, %v1723
      %v1725 = vpop.f32.mrf.mxu0
      %1726 = vmatprep.mubr.f32.mxu0 %v471
      %1727 = vmatmul.mubr.f32.gmra.mxu0 %v470
      %v1728 = vpop.f32.mrf.mxu0
      %v1729 = vadd.f32 %v783, %v1728
      %v1730 = vpop.f32.mrf.mxu0
      %1731 = vmatprep.mubr.f32.mxu0 %v477
      %1732 = vmatmul.mubr.f32.gmra.mxu0 %v476
      %v1733 = vpop.f32.mrf.mxu0
      %v1734 = vadd.f32 %v783, %v1733
      %v1735 = vpop.f32.mrf.mxu0
      %1736 = vdwg.mxu0
      %1737 = vmatprep.subr.mxu0 0.0
      %1738 = vmatpush1.msra.mxu0 %v625
      %1739 = vmatprep.subr.mxu0 0.0
      %1740 = vmatpush1.msra.mxu0 %v622
      %1741 = vmatprep.subr.mxu0 0.0
      %1742 = vmatpush1.msra.mxu0 %v619
      %1743 = vmatprep.subr.mxu0 0.0
      %1744 = vmatpush1.msra.mxu0 %v616
      %1745 = vmatprep.subr.mxu0 0.0
      %1746 = vmatpush1.msra.mxu0 %v613
      %1747 = vmatprep.subr.mxu0 0.0
      %1748 = vmatpush1.msra.mxu0 %v610
      %1749 = vmatprep.subr.mxu0 0.0
      %1750 = vmatpush1.msra.mxu0 %v607
      %1751 = vmatprep.subr.mxu0 0.0
      %1752 = vmatpush1.msra.mxu0 %v604
      %1753 = vmatprep.subr.mxu0 0.0
      %1754 = vmatpush1.msra.mxu0 %v601
      %1755 = vmatprep.subr.mxu0 0.0
      %1756 = vmatpush1.msra.mxu0 %v598
      %1757 = vmatprep.subr.mxu0 0.0
      %1758 = vmatpush1.msra.mxu0 %v595
      %1759 = vmatprep.subr.mxu0 0.0
      %1760 = vmatpush1.msra.mxu0 %v592
      %1761 = vmatprep.subr.mxu0 0.0
      %1762 = vmatpush1.msra.mxu0 %v589
      %1763 = vmatprep.subr.mxu0 0.0
      %1764 = vmatpush1.msra.mxu0 %v586
      %1765 = vmatprep.subr.mxu0 0.0
      %1766 = vmatpush1.msra.mxu0 %v583
      %1767 = vmatprep.subr.mxu0 0.0
      %1768 = vmatpush1.msra.mxu0 %v580
      %1769 = vmatprep.subr.mxu0 0.0
      %1770 = vmatpush2.msra.mxu0 %v673
      %1771 = vmatprep.subr.mxu0 0.0
      %1772 = vmatpush2.msra.mxu0 %v670
      %1773 = vmatprep.subr.mxu0 0.0
      %1774 = vmatpush2.msra.mxu0 %v667
      %1775 = vmatprep.subr.mxu0 0.0
      %1776 = vmatpush2.msra.mxu0 %v664
      %1777 = vmatprep.subr.mxu0 0.0
      %1778 = vmatpush2.msra.mxu0 %v661
      %1779 = vmatprep.subr.mxu0 0.0
      %1780 = vmatpush2.msra.mxu0 %v658
      %1781 = vmatprep.subr.mxu0 0.0
      %1782 = vmatpush2.msra.mxu0 %v655
      %1783 = vmatprep.subr.mxu0 0.0
      %1784 = vmatpush2.msra.mxu0 %v652
      %1785 = vmatprep.subr.mxu0 0.0
      %1786 = vmatpush2.msra.mxu0 %v649
      %1787 = vmatprep.subr.mxu0 0.0
      %1788 = vmatpush2.msra.mxu0 %v646
      %1789 = vmatprep.subr.mxu0 0.0
      %1790 = vmatpush2.msra.mxu0 %v643
      %1791 = vmatprep.subr.mxu0 0.0
      %1792 = vmatpush2.msra.mxu0 %v640
      %1793 = vmatprep.subr.mxu0 0.0
      %1794 = vmatpush2.msra.mxu0 %v637
      %1795 = vmatprep.subr.mxu0 0.0
      %1796 = vmatpush2.msra.mxu0 %v634
      %1797 = vmatprep.subr.mxu0 0.0
      %1798 = vmatpush2.msra.mxu0 %v631
      %1799 = vmatprep.subr.mxu0 0.0
      %1800 = vmatpush2.msra.mxu0 %v628
      %1801 = vmatprep.mubr.f32.mxu0 %v305
      %1802 = vmatmul.mubr.f32.gmra.mxu0 %v304
      %v1803 = vpop.f32.mrf.mxu0
      %v1804 = vadd.f32 %v1589, %v1803
      %v1805 = vpop.f32.mrf.mxu0
      %1806 = vmatprep.mubr.f32.mxu0 %v311
      %1807 = vmatmul.mubr.f32.gmra.mxu0 %v310
      %v1808 = vpop.f32.mrf.mxu0
      %v1809 = vadd.f32 %v1594, %v1808
      %v1810 = vpop.f32.mrf.mxu0
      %1811 = vmatprep.mubr.f32.mxu0 %v317
      %1812 = vmatmul.mubr.f32.gmra.mxu0 %v316
      %v1813 = vpop.f32.mrf.mxu0
      %v1814 = vadd.f32 %v1599, %v1813
      %v1815 = vpop.f32.mrf.mxu0
      %1816 = vmatprep.mubr.f32.mxu0 %v323
      %1817 = vmatmul.mubr.f32.gmra.mxu0 %v322
      %v1818 = vpop.f32.mrf.mxu0
      %v1819 = vadd.f32 %v1604, %v1818
      %v1820 = vpop.f32.mrf.mxu0
      %1821 = vmatprep.mubr.f32.mxu0 %v329
      %1822 = vmatmul.mubr.f32.gmra.mxu0 %v328
      %v1823 = vpop.f32.mrf.mxu0
      %v1824 = vadd.f32 %v1609, %v1823
      %v1825 = vpop.f32.mrf.mxu0
      %1826 = vmatprep.mubr.f32.mxu0 %v335
      %1827 = vmatmul.mubr.f32.gmra.mxu0 %v334
      %v1828 = vpop.f32.mrf.mxu0
      %v1829 = vadd.f32 %v1614, %v1828
      %v1830 = vpop.f32.mrf.mxu0
      %1831 = vmatprep.mubr.f32.mxu0 %v341
      %1832 = vmatmul.mubr.f32.gmra.mxu0 %v340
      %v1833 = vpop.f32.mrf.mxu0
      %v1834 = vadd.f32 %v1619, %v1833
      %v1835 = vpop.f32.mrf.mxu0
      %1836 = vmatprep.mubr.f32.mxu0 %v347
      %1837 = vmatmul.mubr.f32.gmra.mxu0 %v346
      %v1838 = vpop.f32.mrf.mxu0
      %v1839 = vadd.f32 %v1624, %v1838
      %v1840 = vpop.f32.mrf.mxu0
      %1841 = vmatprep.mubr.f32.mxu0 %v353
      %1842 = vmatmul.mubr.f32.gmra.mxu0 %v352
      %v1843 = vpop.f32.mrf.mxu0
      %v1844 = vadd.f32 %v1629, %v1843
      %v1845 = vpop.f32.mrf.mxu0
      %1846 = vmatprep.mubr.f32.mxu0 %v359
      %1847 = vmatmul.mubr.f32.gmra.mxu0 %v358
      %v1848 = vpop.f32.mrf.mxu0
      %v1849 = vadd.f32 %v1634, %v1848
      %v1850 = vpop.f32.mrf.mxu0
      %1851 = vmatprep.mubr.f32.mxu0 %v365
      %1852 = vmatmul.mubr.f32.gmra.mxu0 %v364
      %v1853 = vpop.f32.mrf.mxu0
      %v1854 = vadd.f32 %v1639, %v1853
      %v1855 = vpop.f32.mrf.mxu0
      %1856 = vmatprep.mubr.f32.mxu0 %v371
      %1857 = vmatmul.mubr.f32.gmra.mxu0 %v370
      %v1858 = vpop.f32.mrf.mxu0
      %v1859 = vadd.f32 %v1644, %v1858
      %v1860 = vpop.f32.mrf.mxu0
      %1861 = vmatprep.mubr.f32.mxu0 %v377
      %1862 = vmatmul.mubr.f32.gmra.mxu0 %v376
      %v1863 = vpop.f32.mrf.mxu0
      %v1864 = vadd.f32 %v1649, %v1863
      %v1865 = vpop.f32.mrf.mxu0
      %1866 = vmatprep.mubr.f32.mxu0 %v383
      %1867 = vmatmul.mubr.f32.gmra.mxu0 %v382
      %v1868 = vpop.f32.mrf.mxu0
      %v1869 = vadd.f32 %v1654, %v1868
      %v1870 = vpop.f32.mrf.mxu0
      %1871 = vmatprep.mubr.f32.mxu0 %v389
      %1872 = vmatmul.mubr.f32.gmra.mxu0 %v388
      %v1873 = vpop.f32.mrf.mxu0
      %v1874 = vadd.f32 %v1659, %v1873
      %v1875 = vpop.f32.mrf.mxu0
      %1876 = vmatprep.mubr.f32.mxu0 %v395
      %1877 = vmatmul.mubr.f32.gmra.mxu0 %v394
      %v1878 = vpop.f32.mrf.mxu0
      %v1879 = vadd.f32 %v1664, %v1878
      %v1880 = vpop.f32.mrf.mxu0
      %1881 = vmatprep.mubr.f32.mxu0 %v401
      %1882 = vmatmul.mubr.f32.gmra.mxu0 %v400
      %v1883 = vpop.f32.mrf.mxu0
      %v1884 = vadd.f32 %v1669, %v1883
      %v1885 = vpop.f32.mrf.mxu0
      %1886 = vmatprep.mubr.f32.mxu0 %v407
      %1887 = vmatmul.mubr.f32.gmra.mxu0 %v406
      %v1888 = vpop.f32.mrf.mxu0
      %v1889 = vadd.f32 %v1674, %v1888
      %v1890 = vpop.f32.mrf.mxu0
      %1891 = vmatprep.mubr.f32.mxu0 %v413
      %1892 = vmatmul.mubr.f32.gmra.mxu0 %v412
      %v1893 = vpop.f32.mrf.mxu0
      %v1894 = vadd.f32 %v1679, %v1893
      %v1895 = vpop.f32.mrf.mxu0
      %1896 = vmatprep.mubr.f32.mxu0 %v419
      %1897 = vmatmul.mubr.f32.gmra.mxu0 %v418
      %v1898 = vpop.f32.mrf.mxu0
      %v1899 = vadd.f32 %v1684, %v1898
      %v1900 = vpop.f32.mrf.mxu0
      %1901 = vmatprep.mubr.f32.mxu0 %v425
      %1902 = vmatmul.mubr.f32.gmra.mxu0 %v424
      %v1903 = vpop.f32.mrf.mxu0
      %v1904 = vadd.f32 %v1689, %v1903
      %v1905 = vpop.f32.mrf.mxu0
      %1906 = vmatprep.mubr.f32.mxu0 %v431
      %1907 = vmatmul.mubr.f32.gmra.mxu0 %v430
      %v1908 = vpop.f32.mrf.mxu0
      %v1909 = vadd.f32 %v1694, %v1908
      %v1910 = vpop.f32.mrf.mxu0
      %1911 = vmatprep.mubr.f32.mxu0 %v437
      %1912 = vmatmul.mubr.f32.gmra.mxu0 %v436
      %v1913 = vpop.f32.mrf.mxu0
      %v1914 = vadd.f32 %v1699, %v1913
      %v1915 = vpop.f32.mrf.mxu0
      %1916 = vmatprep.mubr.f32.mxu0 %v443
      %1917 = vmatmul.mubr.f32.gmra.mxu0 %v442
      %v1918 = vpop.f32.mrf.mxu0
      %v1919 = vadd.f32 %v1704, %v1918
      %v1920 = vpop.f32.mrf.mxu0
      %1921 = vmatprep.mubr.f32.mxu0 %v449
      %1922 = vmatmul.mubr.f32.gmra.mxu0 %v448
      %v1923 = vpop.f32.mrf.mxu0
      %v1924 = vadd.f32 %v1709, %v1923
      %v1925 = vpop.f32.mrf.mxu0
      %1926 = vmatprep.mubr.f32.mxu0 %v455
      %1927 = vmatmul.mubr.f32.gmra.mxu0 %v454
      %v1928 = vpop.f32.mrf.mxu0
      %v1929 = vadd.f32 %v1714, %v1928
      %v1930 = vpop.f32.mrf.mxu0
      %1931 = vmatprep.mubr.f32.mxu0 %v461
      %1932 = vmatmul.mubr.f32.gmra.mxu0 %v460
      %v1933 = vpop.f32.mrf.mxu0
      %v1934 = vadd.f32 %v1719, %v1933
      %v1935 = vpop.f32.mrf.mxu0
      %1936 = vmatprep.mubr.f32.mxu0 %v467
      %1937 = vmatmul.mubr.f32.gmra.mxu0 %v466
      %v1938 = vpop.f32.mrf.mxu0
      %v1939 = vadd.f32 %v1724, %v1938
      %v1940 = vpop.f32.mrf.mxu0
      %1941 = vmatprep.mubr.f32.mxu0 %v473
      %1942 = vmatmul.mubr.f32.gmra.mxu0 %v472
      %v1943 = vpop.f32.mrf.mxu0
      %v1944 = vadd.f32 %v1729, %v1943
      %v1945 = vpop.f32.mrf.mxu0
      %1946 = vmatprep.mubr.f32.mxu0 %v479
      %1947 = vmatmul.mubr.f32.gmra.mxu0 %v478
      %v1948 = vpop.f32.mrf.mxu0
      %v1949 = vadd.f32 %v1734, %v1948
      %v1950 = vpop.f32.mrf.mxu0
      %1951 = vdwg.mxu0
      %1952 = vmatprep.subr.mxu0 0.0
      %1953 = vmatpush1.msra.mxu0 %v721
      %1954 = vmatprep.subr.mxu0 0.0
      %1955 = vmatpush1.msra.mxu0 %v718
      %1956 = vmatprep.subr.mxu0 0.0
      %1957 = vmatpush1.msra.mxu0 %v715
      %1958 = vmatprep.subr.mxu0 0.0
      %1959 = vmatpush1.msra.mxu0 %v712
      %1960 = vmatprep.subr.mxu0 0.0
      %1961 = vmatpush1.msra.mxu0 %v709
      %1962 = vmatprep.subr.mxu0 0.0
      %1963 = vmatpush1.msra.mxu0 %v706
      %1964 = vmatprep.subr.mxu0 0.0
      %1965 = vmatpush1.msra.mxu0 %v703
      %1966 = vmatprep.subr.mxu0 0.0
      %1967 = vmatpush1.msra.mxu0 %v700
      %1968 = vmatprep.subr.mxu0 0.0
      %1969 = vmatpush1.msra.mxu0 %v697
      %1970 = vmatprep.subr.mxu0 0.0
      %1971 = vmatpush1.msra.mxu0 %v694
      %1972 = vmatprep.subr.mxu0 0.0
      %1973 = vmatpush1.msra.mxu0 %v691
      %1974 = vmatprep.subr.mxu0 0.0
      %1975 = vmatpush1.msra.mxu0 %v688
      %1976 = vmatprep.subr.mxu0 0.0
      %1977 = vmatpush1.msra.mxu0 %v685
      %1978 = vmatprep.subr.mxu0 0.0
      %1979 = vmatpush1.msra.mxu0 %v682
      %1980 = vmatprep.subr.mxu0 0.0
      %1981 = vmatpush1.msra.mxu0 %v679
      %1982 = vmatprep.subr.mxu0 0.0
      %1983 = vmatpush1.msra.mxu0 %v676
      %1984 = vmatprep.subr.mxu0 0.0
      %1985 = vmatpush2.msra.mxu0 %v769
      %1986 = vmatprep.subr.mxu0 0.0
      %1987 = vmatpush2.msra.mxu0 %v766
      %1988 = vmatprep.subr.mxu0 0.0
      %1989 = vmatpush2.msra.mxu0 %v763
      %1990 = vmatprep.subr.mxu0 0.0
      %1991 = vmatpush2.msra.mxu0 %v760
      %1992 = vmatprep.subr.mxu0 0.0
      %1993 = vmatpush2.msra.mxu0 %v757
      %1994 = vmatprep.subr.mxu0 0.0
      %1995 = vmatpush2.msra.mxu0 %v754
      %1996 = vmatprep.subr.mxu0 0.0
      %1997 = vmatpush2.msra.mxu0 %v751
      %1998 = vmatprep.subr.mxu0 0.0
      %1999 = vmatpush2.msra.mxu0 %v748
      %2000 = vmatprep.subr.mxu0 0.0
      %2001 = vmatpush2.msra.mxu0 %v745
      %2002 = vmatprep.subr.mxu0 0.0
      %2003 = vmatpush2.msra.mxu0 %v742
      %2004 = vmatprep.subr.mxu0 0.0
      %2005 = vmatpush2.msra.mxu0 %v739
      %2006 = vmatprep.subr.mxu0 0.0
      %2007 = vmatpush2.msra.mxu0 %v736
      %2008 = vmatprep.subr.mxu0 0.0
      %2009 = vmatpush2.msra.mxu0 %v733
      %2010 = vmatprep.subr.mxu0 0.0
      %2011 = vmatpush2.msra.mxu0 %v730
      %2012 = vmatprep.subr.mxu0 0.0
      %2013 = vmatpush2.msra.mxu0 %v727
      %2014 = vmatprep.subr.mxu0 0.0
      %2015 = vmatpush2.msra.mxu0 %v724
      %2016 = vmatprep.mubr.f32.mxu0 %v307
      %2017 = vmatmul.mubr.f32.gmra.mxu0 %v306
      %v2018 = vpop.f32.mrf.mxu0
      %v2019 = vadd.f32 %v1804, %v2018
      %v2020 = vpop.f32.mrf.mxu0
      %2021 = vmatprep.mubr.f32.mxu0 %v313
      %2022 = vmatmul.mubr.f32.gmra.mxu0 %v312
      %v2023 = vpop.f32.mrf.mxu0
      %v2024 = vadd.f32 %v1809, %v2023
      %v2025 = vpop.f32.mrf.mxu0
      %2026 = vmatprep.mubr.f32.mxu0 %v319
      %2027 = vmatmul.mubr.f32.gmra.mxu0 %v318
      %v2028 = vpop.f32.mrf.mxu0
      %v2029 = vadd.f32 %v1814, %v2028
      %v2030 = vpop.f32.mrf.mxu0
      %2031 = vmatprep.mubr.f32.mxu0 %v325
      %2032 = vmatmul.mubr.f32.gmra.mxu0 %v324
      %v2033 = vpop.f32.mrf.mxu0
      %v2034 = vadd.f32 %v1819, %v2033
      %v2035 = vpop.f32.mrf.mxu0
      %2036 = vmatprep.mubr.f32.mxu0 %v331
      %2037 = vmatmul.mubr.f32.gmra.mxu0 %v330
      %v2038 = vpop.f32.mrf.mxu0
      %v2039 = vadd.f32 %v1824, %v2038
      %v2040 = vpop.f32.mrf.mxu0
      %2041 = vmatprep.mubr.f32.mxu0 %v337
      %2042 = vmatmul.mubr.f32.gmra.mxu0 %v336
      %v2043 = vpop.f32.mrf.mxu0
      %v2044 = vadd.f32 %v1829, %v2043
      %v2045 = vpop.f32.mrf.mxu0
      %2046 = vmatprep.mubr.f32.mxu0 %v343
      %2047 = vmatmul.mubr.f32.gmra.mxu0 %v342
      %v2048 = vpop.f32.mrf.mxu0
      %v2049 = vadd.f32 %v1834, %v2048
      %v2050 = vpop.f32.mrf.mxu0
      %2051 = vmatprep.mubr.f32.mxu0 %v349
      %2052 = vmatmul.mubr.f32.gmra.mxu0 %v348
      %v2053 = vpop.f32.mrf.mxu0
      %v2054 = vadd.f32 %v1839, %v2053
      %v2055 = vpop.f32.mrf.mxu0
      %2056 = vmatprep.mubr.f32.mxu0 %v355
      %2057 = vmatmul.mubr.f32.gmra.mxu0 %v354
      %v2058 = vpop.f32.mrf.mxu0
      %v2059 = vadd.f32 %v1844, %v2058
      %v2060 = vpop.f32.mrf.mxu0
      %2061 = vmatprep.mubr.f32.mxu0 %v361
      %2062 = vmatmul.mubr.f32.gmra.mxu0 %v360
      %v2063 = vpop.f32.mrf.mxu0
      %v2064 = vadd.f32 %v1849, %v2063
      %v2065 = vpop.f32.mrf.mxu0
      %2066 = vmatprep.mubr.f32.mxu0 %v367
      %2067 = vmatmul.mubr.f32.gmra.mxu0 %v366
      %v2068 = vpop.f32.mrf.mxu0
      %v2069 = vadd.f32 %v1854, %v2068
      %v2070 = vpop.f32.mrf.mxu0
      %2071 = vmatprep.mubr.f32.mxu0 %v373
      %2072 = vmatmul.mubr.f32.gmra.mxu0 %v372
      %v2073 = vpop.f32.mrf.mxu0
      %v2074 = vadd.f32 %v1859, %v2073
      %v2075 = vpop.f32.mrf.mxu0
      %2076 = vmatprep.mubr.f32.mxu0 %v379
      %2077 = vmatmul.mubr.f32.gmra.mxu0 %v378
      %v2078 = vpop.f32.mrf.mxu0
      %v2079 = vadd.f32 %v1864, %v2078
      %v2080 = vpop.f32.mrf.mxu0
      %2081 = vmatprep.mubr.f32.mxu0 %v385
      %2082 = vmatmul.mubr.f32.gmra.mxu0 %v384
      %v2083 = vpop.f32.mrf.mxu0
      %v2084 = vadd.f32 %v1869, %v2083
      %v2085 = vpop.f32.mrf.mxu0
      %2086 = vmatprep.mubr.f32.mxu0 %v391
      %2087 = vmatmul.mubr.f32.gmra.mxu0 %v390
      %v2088 = vpop.f32.mrf.mxu0
      %v2089 = vadd.f32 %v1874, %v2088
      %v2090 = vpop.f32.mrf.mxu0
      %2091 = vmatprep.mubr.f32.mxu0 %v397
      %2092 = vmatmul.mubr.f32.gmra.mxu0 %v396
      %v2093 = vpop.f32.mrf.mxu0
      %v2094 = vadd.f32 %v1879, %v2093
      %v2095 = vpop.f32.mrf.mxu0
      %2096 = vmatprep.mubr.f32.mxu0 %v403
      %2097 = vmatmul.mubr.f32.gmra.mxu0 %v402
      %v2098 = vpop.f32.mrf.mxu0
      %v2099 = vadd.f32 %v1884, %v2098
      %v2100 = vpop.f32.mrf.mxu0
      %2101 = vmatprep.mubr.f32.mxu0 %v409
      %2102 = vmatmul.mubr.f32.gmra.mxu0 %v408
      %v2103 = vpop.f32.mrf.mxu0
      %v2104 = vadd.f32 %v1889, %v2103
      %v2105 = vpop.f32.mrf.mxu0
      %2106 = vmatprep.mubr.f32.mxu0 %v415
      %2107 = vmatmul.mubr.f32.gmra.mxu0 %v414
      %v2108 = vpop.f32.mrf.mxu0
      %v2109 = vadd.f32 %v1894, %v2108
      %v2110 = vpop.f32.mrf.mxu0
      %2111 = vmatprep.mubr.f32.mxu0 %v421
      %2112 = vmatmul.mubr.f32.gmra.mxu0 %v420
      %v2113 = vpop.f32.mrf.mxu0
      %v2114 = vadd.f32 %v1899, %v2113
      %v2115 = vpop.f32.mrf.mxu0
      %2116 = vmatprep.mubr.f32.mxu0 %v427
      %2117 = vmatmul.mubr.f32.gmra.mxu0 %v426
      %v2118 = vpop.f32.mrf.mxu0
      %v2119 = vadd.f32 %v1904, %v2118
      %v2120 = vpop.f32.mrf.mxu0
      %2121 = vmatprep.mubr.f32.mxu0 %v433
      %2122 = vmatmul.mubr.f32.gmra.mxu0 %v432
      %v2123 = vpop.f32.mrf.mxu0
      %v2124 = vadd.f32 %v1909, %v2123
      %v2125 = vpop.f32.mrf.mxu0
      %2126 = vmatprep.mubr.f32.mxu0 %v439
      %2127 = vmatmul.mubr.f32.gmra.mxu0 %v438
      %v2128 = vpop.f32.mrf.mxu0
      %v2129 = vadd.f32 %v1914, %v2128
      %v2130 = vpop.f32.mrf.mxu0
      %2131 = vmatprep.mubr.f32.mxu0 %v445
      %2132 = vmatmul.mubr.f32.gmra.mxu0 %v444
      %v2133 = vpop.f32.mrf.mxu0
      %v2134 = vadd.f32 %v1919, %v2133
      %v2135 = vpop.f32.mrf.mxu0
      %2136 = vmatprep.mubr.f32.mxu0 %v451
      %2137 = vmatmul.mubr.f32.gmra.mxu0 %v450
      %v2138 = vpop.f32.mrf.mxu0
      %v2139 = vadd.f32 %v1924, %v2138
      %v2140 = vpop.f32.mrf.mxu0
      %2141 = vmatprep.mubr.f32.mxu0 %v457
      %2142 = vmatmul.mubr.f32.gmra.mxu0 %v456
      %v2143 = vpop.f32.mrf.mxu0
      %v2144 = vadd.f32 %v1929, %v2143
      %v2145 = vpop.f32.mrf.mxu0
      %2146 = vmatprep.mubr.f32.mxu0 %v463
      %2147 = vmatmul.mubr.f32.gmra.mxu0 %v462
      %v2148 = vpop.f32.mrf.mxu0
      %v2149 = vadd.f32 %v1934, %v2148
      %v2150 = vpop.f32.mrf.mxu0
      %2151 = vmatprep.mubr.f32.mxu0 %v469
      %2152 = vmatmul.mubr.f32.gmra.mxu0 %v468
      %v2153 = vpop.f32.mrf.mxu0
      %v2154 = vadd.f32 %v1939, %v2153
      %v2155 = vpop.f32.mrf.mxu0
      %2156 = vmatprep.mubr.f32.mxu0 %v475
      %2157 = vmatmul.mubr.f32.gmra.mxu0 %v474
      %v2158 = vpop.f32.mrf.mxu0
      %v2159 = vadd.f32 %v1944, %v2158
      %v2160 = vpop.f32.mrf.mxu0
      %2161 = vmatprep.mubr.f32.mxu0 %v481
      %2162 = vmatmul.mubr.f32.gmra.mxu0 %v480
      %v2163 = vpop.f32.mrf.mxu0
      %v2164 = vadd.f32 %v1949, %v2163
      %v2165 = vpop.f32.mrf.mxu0
      %2166 = vdwg.mxu0
      %2167 = vst [vmem:[#allocation2] sm:$0xff] %v1344
      %2168 = vst [vmem:[#allocation2 + $0x8] sm:$0xff] %v1346
      %2169 = vst [vmem:[#allocation2 + $0x10] sm:$0xff] %v2019
      %2170 = vst [vmem:[#allocation2 + $0x18] sm:$0xff] %v1350
      %2171 = vst [vmem:[#allocation2 + $0x20] sm:$0xff] %v1352
      %2172 = vst [vmem:[#allocation2 + $0x28] sm:$0xff] %v2024
      %2173 = vst [vmem:[#allocation2 + $0x30] sm:$0xff] %v1356
      %2174 = vst [vmem:[#allocation2 + $0x38] sm:$0xff] %v1358
      %2175 = vst [vmem:[#allocation2 + $0x40] sm:$0xff] %v2029
      %2176 = vst [vmem:[#allocation2 + $0x48] sm:$0xff] %v1362
      %2177 = vst [vmem:[#allocation2 + $0x50] sm:$0xff] %v1364
      %2178 = vst [vmem:[#allocation2 + $0x58] sm:$0xff] %v2034
      %2179 = vst [vmem:[#allocation2 + $0x60] sm:$0xff] %v1368
      %2180 = vst [vmem:[#allocation2 + $0x68] sm:$0xff] %v1370
      %2181 = vst [vmem:[#allocation2 + $0x70] sm:$0xff] %v2039
      %2182 = vst [vmem:[#allocation2 + $0x78] sm:$0xff] %v1374
      %2183 = vst [vmem:[#allocation2 + $0x80] sm:$0xff] %v1376
      %2184 = vst [vmem:[#allocation2 + $0x88] sm:$0xff] %v2044
      %2185 = vst [vmem:[#allocation2 + $0x90] sm:$0xff] %v1380
      %2186 = vst [vmem:[#allocation2 + $0x98] sm:$0xff] %v1382
      %2187 = vst [vmem:[#allocation2 + $0xa0] sm:$0xff] %v2049
      %2188 = vst [vmem:[#allocation2 + $0xa8] sm:$0xff] %v1386
      %2189 = vst [vmem:[#allocation2 + $0xb0] sm:$0xff] %v1388
      %2190 = vst [vmem:[#allocation2 + $0xb8] sm:$0xff] %v2054
      %2191 = vst [vmem:[#allocation2 + $0xc0] sm:$0xff] %v1392
      %2192 = vst [vmem:[#allocation2 + $0xc8] sm:$0xff] %v1394
      %2193 = vst [vmem:[#allocation2 + $0xd0] sm:$0xff] %v2059
      %2194 = vst [vmem:[#allocation2 + $0xd8] sm:$0xff] %v1398
      %2195 = vst [vmem:[#allocation2 + $0xe0] sm:$0xff] %v1400
      %2196 = vst [vmem:[#allocation2 + $0xe8] sm:$0xff] %v2064
      %2197 = vst [vmem:[#allocation2 + $0xf0] sm:$0xff] %v1404
      %2198 = vst [vmem:[#allocation2 + $0xf8] sm:$0xff] %v1406
      %2199 = vst [vmem:[#allocation2 + $0x100] sm:$0xff] %v2069
      %2200 = vst [vmem:[#allocation2 + $0x108] sm:$0xff] %v1410
      %2201 = vst [vmem:[#allocation2 + $0x110] sm:$0xff] %v1412
      %2202 = vst [vmem:[#allocation2 + $0x118] sm:$0xff] %v2074
      %2203 = vst [vmem:[#allocation2 + $0x120] sm:$0xff] %v1416
      %2204 = vst [vmem:[#allocation2 + $0x128] sm:$0xff] %v1418
      %2205 = vst [vmem:[#allocation2 + $0x130] sm:$0xff] %v2079
      %2206 = vst [vmem:[#allocation2 + $0x138] sm:$0xff] %v1422
      %2207 = vst [vmem:[#allocation2 + $0x140] sm:$0xff] %v1424
      %2208 = vst [vmem:[#allocation2 + $0x148] sm:$0xff] %v2084
      %2209 = vst [vmem:[#allocation2 + $0x150] sm:$0xff] %v1428
      %2210 = vst [vmem:[#allocation2 + $0x158] sm:$0xff] %v1430
      %2211 = vst [vmem:[#allocation2 + $0x160] sm:$0xff] %v2089
      %2212 = vst [vmem:[#allocation2 + $0x168] sm:$0xff] %v1434
      %2213 = vst [vmem:[#allocation2 + $0x170] sm:$0xff] %v1436
      %2214 = vst [vmem:[#allocation2 + $0x178] sm:$0xff] %v2094
      %2215 = vst [vmem:[#allocation2 + $0x180] sm:$0xff] %v1440
      %2216 = vst [vmem:[#allocation2 + $0x188] sm:$0xff] %v1442
      %2217 = vst [vmem:[#allocation2 + $0x190] sm:$0xff] %v2099
      %2218 = vst [vmem:[#allocation2 + $0x198] sm:$0xff] %v1446
      %2219 = vst [vmem:[#allocation2 + $0x1a0] sm:$0xff] %v1448
      %2220 = vst [vmem:[#allocation2 + $0x1a8] sm:$0xff] %v2104
      %2221 = vst [vmem:[#allocation2 + $0x1b0] sm:$0xff] %v1452
      %2222 = vst [vmem:[#allocation2 + $0x1b8] sm:$0xff] %v1454
      %2223 = vst [vmem:[#allocation2 + $0x1c0] sm:$0xff] %v2109
      %2224 = vst [vmem:[#allocation2 + $0x1c8] sm:$0xff] %v1458
      %2225 = vst [vmem:[#allocation2 + $0x1d0] sm:$0xff] %v1460
      %2226 = vst [vmem:[#allocation2 + $0x1d8] sm:$0xff] %v2114
      %2227 = vst [vmem:[#allocation2 + $0x1e0] sm:$0xff] %v1464
      %2228 = vst [vmem:[#allocation2 + $0x1e8] sm:$0xff] %v1466
      %2229 = vst [vmem:[#allocation2 + $0x1f0] sm:$0xff] %v2119
      %2230 = vst [vmem:[#allocation2 + $0x1f8] sm:$0xff] %v1470
      %2231 = vst [vmem:[#allocation2 + $0x200] sm:$0xff] %v1472
      %2232 = vst [vmem:[#allocation2 + $0x208] sm:$0xff] %v2124
      %2233 = vst [vmem:[#allocation2 + $0x210] sm:$0xff] %v1476
      %2234 = vst [vmem:[#allocation2 + $0x218] sm:$0xff] %v1478
      %2235 = vst [vmem:[#allocation2 + $0x220] sm:$0xff] %v2129
      %2236 = vst [vmem:[#allocation2 + $0x228] sm:$0xff] %v1482
      %2237 = vst [vmem:[#allocation2 + $0x230] sm:$0xff] %v1484
      %2238 = vst [vmem:[#allocation2 + $0x238] sm:$0xff] %v2134
      %2239 = vst [vmem:[#allocation2 + $0x240] sm:$0xff] %v1488
      %2240 = vst [vmem:[#allocation2 + $0x248] sm:$0xff] %v1490
      %2241 = vst [vmem:[#allocation2 + $0x250] sm:$0xff] %v2139
      %2242 = vst [vmem:[#allocation2 + $0x258] sm:$0xff] %v1494
      %2243 = vst [vmem:[#allocation2 + $0x260] sm:$0xff] %v1496
      %2244 = vst [vmem:[#allocation2 + $0x268] sm:$0xff] %v2144
      %2245 = vst [vmem:[#allocation2 + $0x270] sm:$0xff] %v1500
      %2246 = vst [vmem:[#allocation2 + $0x278] sm:$0xff] %v1502
      %2247 = vst [vmem:[#allocation2 + $0x280] sm:$0xff] %v2149
      %2248 = vst [vmem:[#allocation2 + $0x288] sm:$0xff] %v1506
      %2249 = vst [vmem:[#allocation2 + $0x290] sm:$0xff] %v1508
      %2250 = vst [vmem:[#allocation2 + $0x298] sm:$0xff] %v2154
      %2251 = vst [vmem:[#allocation2 + $0x2a0] sm:$0xff] %v1512
      %2252 = vst [vmem:[#allocation2 + $0x2a8] sm:$0xff] %v1514
      %2253 = vst [vmem:[#allocation2 + $0x2b0] sm:$0xff] %v2159
      %2254 = vst [vmem:[#allocation2 + $0x2b8] sm:$0xff] %v1518
      %2255 = vst [vmem:[#allocation2 + $0x2c0] sm:$0xff] %v1520
      %2256 = vst [vmem:[#allocation2 + $0x2c8] sm:$0xff] %v2164
      %v2257 = vld [vmem:[%s4] sm:$0xff]
      %v2258 = vld [vmem:[%s4 + $0x8] sm:$0xff]
      %v2259 = vld [vmem:[%s4 + $0x10] sm:$0xff]
      %v2260 = vld [vmem:[%s4 + $0x18] sm:$0xff]
      %v2261 = vld [vmem:[%s4 + $0x20] sm:$0xff]
      %v2262 = vld [vmem:[%s4 + $0x28] sm:$0xff]
      %v2263 = vld [vmem:[%s4 + $0x30] sm:$0xff]
      %v2264 = vld [vmem:[%s4 + $0x38] sm:$0xff]
      %v2265 = vld [vmem:[%s4 + $0x40] sm:$0xff]
      %v2266 = vld [vmem:[%s4 + $0x48] sm:$0xff]
      %v2267 = vld [vmem:[%s4 + $0x50] sm:$0xff]
      %v2268 = vld [vmem:[%s4 + $0x58] sm:$0xff]
      %v2269 = vld [vmem:[%s4 + $0x60] sm:$0xff]
      %v2270 = vld [vmem:[%s4 + $0x68] sm:$0xff]
      %v2271 = vld [vmem:[%s4 + $0x70] sm:$0xff]
      %v2272 = vld [vmem:[%s4 + $0x78] sm:$0xff]
      %v2273 = vld [vmem:[%s4 + $0x80] sm:$0xff]
      %v2274 = vld [vmem:[%s4 + $0x88] sm:$0xff]
      %v2275 = vld [vmem:[%s4 + $0x90] sm:$0xff]
      %v2276 = vld [vmem:[%s4 + $0x98] sm:$0xff]
      %v2277 = vld [vmem:[%s4 + $0xa0] sm:$0xff]
      %v2278 = vld [vmem:[%s4 + $0xa8] sm:$0xff]
      %v2279 = vld [vmem:[%s4 + $0xb0] sm:$0xff]
      %v2280 = vld [vmem:[%s4 + $0xb8] sm:$0xff]
      %v2281 = vld [vmem:[%s4 + $0xc0] sm:$0xff]
      %v2282 = vld [vmem:[%s4 + $0xc8] sm:$0xff]
      %v2283 = vld [vmem:[%s4 + $0xd0] sm:$0xff]
      %v2284 = vld [vmem:[%s4 + $0xd8] sm:$0xff]
      %v2285 = vld [vmem:[%s4 + $0xe0] sm:$0xff]
      %v2286 = vld [vmem:[%s4 + $0xe8] sm:$0xff]
      %v2287 = vld [vmem:[%s4 + $0xf0] sm:$0xff]
      %v2288 = vld [vmem:[%s4 + $0xf8] sm:$0xff]
      %v2289 = vld [vmem:[%s4 + $0x100] sm:$0xff]
      %v2290 = vld [vmem:[%s4 + $0x108] sm:$0xff]
      %v2291 = vld [vmem:[%s4 + $0x110] sm:$0xff]
      %v2292 = vld [vmem:[%s4 + $0x118] sm:$0xff]
      %v2293 = vld [vmem:[%s4 + $0x120] sm:$0xff]
      %v2294 = vld [vmem:[%s4 + $0x128] sm:$0xff]
      %v2295 = vld [vmem:[%s4 + $0x130] sm:$0xff]
      %v2296 = vld [vmem:[%s4 + $0x138] sm:$0xff]
      %v2297 = vld [vmem:[%s4 + $0x140] sm:$0xff]
      %v2298 = vld [vmem:[%s4 + $0x148] sm:$0xff]
      %v2299 = vld [vmem:[%s4 + $0x150] sm:$0xff]
      %v2300 = vld [vmem:[%s4 + $0x158] sm:$0xff]
      %v2301 = vld [vmem:[%s4 + $0x160] sm:$0xff]
      %v2302 = vld [vmem:[%s4 + $0x168] sm:$0xff]
      %v2303 = vld [vmem:[%s4 + $0x170] sm:$0xff]
      %v2304 = vld [vmem:[%s4 + $0x178] sm:$0xff]
      %v2305 = vld [vmem:[%s5] sm:$0x7]
      %v2306 = vld [vmem:[%s1] sm:$0xff]
      %s2307 = smul.u32 %s19, 30
      %v2308 = vld [vmem:[#allocation3] sm:$0xff]
      %v2309 = vld [vmem:[#allocation4] sm:$0xff]
      %v2310 = vld [vmem:[#allocation2] sm:$0xff]
      %v2311 = vld [vmem:[#allocation2 + $0x8] sm:$0xff]
      %v2312 = vld [vmem:[#allocation2 + $0x10] sm:$0xff]
      %v2314 = vlaneseq
      %v2315 = vshrl.u32 %v2314, 7
      %v2316 = vsub.s32 0, %v2315
      %v2317 = vrot.slane %v2305, %v2316
      %v2318 = vlaneseq
      %v2319 = vshrl.u32 %v2318, 7
      %v2320 = vsub.s32 1, %v2319
      %v2321 = vrot.slane %v2305, %v2320
      %v2322 = vlaneseq
      %v2323 = vshrl.u32 %v2322, 7
      %v2324 = vsub.s32 2, %v2323
      %v2325 = vrot.slane %v2305, %v2324
      %2329 = vmatprep.subr.mxu0 %v2303
      %2330 = vmatpush1.msra.mxu0 %v2302
      %2331 = vmatprep.subr.mxu0 %v2300
      %2332 = vmatpush1.msra.mxu0 %v2299
      %2333 = vmatprep.subr.mxu0 %v2297
      %2334 = vmatpush1.msra.mxu0 %v2296
      %2335 = vmatprep.subr.mxu0 %v2294
      %2336 = vmatpush1.msra.mxu0 %v2293
      %2337 = vmatprep.subr.mxu0 %v2291
      %2338 = vmatpush1.msra.mxu0 %v2290
      %2339 = vmatprep.subr.mxu0 %v2288
      %2340 = vmatpush1.msra.mxu0 %v2287
      %2341 = vmatprep.subr.mxu0 %v2285
      %2342 = vmatpush1.msra.mxu0 %v2284
      %2343 = vmatprep.subr.mxu0 %v2282
      %2344 = vmatpush1.msra.mxu0 %v2281
      %2345 = vmatprep.subr.mxu0 %v2279
      %2346 = vmatpush1.msra.mxu0 %v2278
      %2347 = vmatprep.subr.mxu0 %v2276
      %2348 = vmatpush1.msra.mxu0 %v2275
      %2349 = vmatprep.subr.mxu0 %v2273
      %2350 = vmatpush1.msra.mxu0 %v2272
      %2351 = vmatprep.subr.mxu0 %v2270
      %2352 = vmatpush1.msra.mxu0 %v2269
      %2353 = vmatprep.subr.mxu0 %v2267
      %2354 = vmatpush1.msra.mxu0 %v2266
      %2355 = vmatprep.subr.mxu0 %v2264
      %2356 = vmatpush1.msra.mxu0 %v2263
      %2357 = vmatprep.subr.mxu0 %v2261
      %2358 = vmatpush1.msra.mxu0 %v2260
      %2359 = vmatprep.subr.mxu0 %v2258
      %2360 = vmatpush1.msra.mxu0 %v2257
      %2361 = vmatprep.subr.mxu0 0.0
      %2362 = vmatpush2.msra.mxu0 0.0
      %2363 = vmatprep.subr.mxu0 0.0
      %2364 = vmatpush2.msra.mxu0 0.0
      %2365 = vmatprep.subr.mxu0 0.0
      %2366 = vmatpush2.msra.mxu0 0.0
      %2367 = vmatprep.subr.mxu0 0.0
      %2368 = vmatpush2.msra.mxu0 0.0
      %2369 = vmatprep.subr.mxu0 0.0
      %2370 = vmatpush2.msra.mxu0 0.0
      %2371 = vmatprep.subr.mxu0 0.0
      %2372 = vmatpush2.msra.mxu0 0.0
      %2373 = vmatprep.subr.mxu0 0.0
      %2374 = vmatpush2.msra.mxu0 0.0
      %2375 = vmatprep.subr.mxu0 0.0
      %2376 = vmatpush2.msra.mxu0 0.0
      %2377 = vmatprep.subr.mxu0 0.0
      %2378 = vmatpush2.msra.mxu0 0.0
      %2379 = vmatprep.subr.mxu0 0.0
      %2380 = vmatpush2.msra.mxu0 0.0
      %2381 = vmatprep.subr.mxu0 0.0
      %2382 = vmatpush2.msra.mxu0 0.0
      %2383 = vmatprep.subr.mxu0 0.0
      %2384 = vmatpush2.msra.mxu0 0.0
      %2385 = vmatprep.subr.mxu0 0.0
      %2386 = vmatpush2.msra.mxu0 0.0
      %2387 = vmatprep.subr.mxu0 0.0
      %2388 = vmatpush2.msra.mxu0 0.0
      %2389 = vmatprep.subr.mxu0 0.0
      %2390 = vmatpush2.msra.mxu0 0.0
      %2391 = vmatprep.subr.mxu0 0.0
      %2392 = vmatpush2.msra.mxu0 0.0
      %2393 = vmatprep.mubr.f32.mxu0 0.0
      %2394 = vmatmul.mubr.f32.gmra.mxu0 %v2308
      %v2395 = vpop.f32.mrf.mxu0
      %v2396 = vadd.f32 %v2317, %v2395
      %v2397 = vpop.f32.mrf.mxu0
      %v2398 = vadd.f32 %v2321, %v2397
      %2399 = vdwg.mxu0
      %2400 = vmatprep.subr.mxu0 0.0
      %2401 = vmatpush1.msra.mxu0 %v2304
      %2402 = vmatprep.subr.mxu0 0.0
      %2403 = vmatpush1.msra.mxu0 %v2301
      %2404 = vmatprep.subr.mxu0 0.0
      %2405 = vmatpush1.msra.mxu0 %v2298
      %2406 = vmatprep.subr.mxu0 0.0
      %2407 = vmatpush1.msra.mxu0 %v2295
      %2408 = vmatprep.subr.mxu0 0.0
      %2409 = vmatpush1.msra.mxu0 %v2292
      %2410 = vmatprep.subr.mxu0 0.0
      %2411 = vmatpush1.msra.mxu0 %v2289
      %2412 = vmatprep.subr.mxu0 0.0
      %2413 = vmatpush1.msra.mxu0 %v2286
      %2414 = vmatprep.subr.mxu0 0.0
      %2415 = vmatpush1.msra.mxu0 %v2283
      %2416 = vmatprep.subr.mxu0 0.0
      %2417 = vmatpush1.msra.mxu0 %v2280
      %2418 = vmatprep.subr.mxu0 0.0
      %2419 = vmatpush1.msra.mxu0 %v2277
      %2420 = vmatprep.subr.mxu0 0.0
      %2421 = vmatpush1.msra.mxu0 %v2274
      %2422 = vmatprep.subr.mxu0 0.0
      %2423 = vmatpush1.msra.mxu0 %v2271
      %2424 = vmatprep.subr.mxu0 0.0
      %2425 = vmatpush1.msra.mxu0 %v2268
      %2426 = vmatprep.subr.mxu0 0.0
      %2427 = vmatpush1.msra.mxu0 %v2265
      %2428 = vmatprep.subr.mxu0 0.0
      %2429 = vmatpush1.msra.mxu0 %v2262
      %2430 = vmatprep.subr.mxu0 0.0
      %2431 = vmatpush1.msra.mxu0 %v2259
      %2432 = vmatprep.subr.mxu0 0.0
      %2433 = vmatpush2.msra.mxu0 0.0
      %2434 = vmatprep.subr.mxu0 0.0
      %2435 = vmatpush2.msra.mxu0 0.0
      %2436 = vmatprep.subr.mxu0 0.0
      %2437 = vmatpush2.msra.mxu0 0.0
      %2438 = vmatprep.subr.mxu0 0.0
      %2439 = vmatpush2.msra.mxu0 0.0
      %2440 = vmatprep.subr.mxu0 0.0
      %2441 = vmatpush2.msra.mxu0 0.0
      %2442 = vmatprep.subr.mxu0 0.0
      %2443 = vmatpush2.msra.mxu0 0.0
      %2444 = vmatprep.subr.mxu0 0.0
      %2445 = vmatpush2.msra.mxu0 0.0
      %2446 = vmatprep.subr.mxu0 0.0
      %2447 = vmatpush2.msra.mxu0 0.0
      %2448 = vmatprep.subr.mxu0 0.0
      %2449 = vmatpush2.msra.mxu0 0.0
      %2450 = vmatprep.subr.mxu0 0.0
      %2451 = vmatpush2.msra.mxu0 0.0
      %2452 = vmatprep.subr.mxu0 0.0
      %2453 = vmatpush2.msra.mxu0 0.0
      %2454 = vmatprep.subr.mxu0 0.0
      %2455 = vmatpush2.msra.mxu0 0.0
      %2456 = vmatprep.subr.mxu0 0.0
      %2457 = vmatpush2.msra.mxu0 0.0
      %2458 = vmatprep.subr.mxu0 0.0
      %2459 = vmatpush2.msra.mxu0 0.0
      %2460 = vmatprep.subr.mxu0 0.0
      %2461 = vmatpush2.msra.mxu0 0.0
      %2462 = vmatprep.subr.mxu0 0.0
      %2463 = vmatpush2.msra.mxu0 0.0
      %2464 = vmatprep.mubr.f32.mxu0 0.0
      %2465 = vmatmul.mubr.f32.gmra.mxu0 %v2308
      %v2466 = vpop.f32.mrf.mxu0
      %v2467 = vadd.f32 %v2325, %v2466
      %v2468 = vpop.f32.mrf.mxu0
      %2469 = vdwg.mxu0
      %v2470 = vadd.f32 %v2310, %v2396
      %v2471 = vxor.u32 %v2470, 2147483648
      %v2472 = vmul.f32 %v2471, 1.442695
      %v2473 = vpow.pop %v2472
      %v2474 = vadd.f32 %v2473, 1.0
      %v2475 = vrcp.pop %v2474
      %v2476 = vmul.f32 1.0, %v2475
      %v2477 = vadd.f32 %v2311, %v2398
      %v2478 = vxor.u32 %v2477, 2147483648
      %v2479 = vmul.f32 %v2478, 1.442695
      %v2480 = vpow.pop %v2479
      %v2481 = vadd.f32 %v2480, 1.0
      %v2482 = vrcp.pop %v2481
      %v2483 = vmul.f32 1.0, %v2482
      %v2484 = vmul.f32 %v2476, %v2467
      %v2485 = vadd.f32 %v2312, %v2484
      %v2486 = vtanh.pop %v2485
      %v2487 = vsub.f32 1.0, %v2483
      %v2488 = vmul.f32 %v2487, %v2486
      %v2489 = vmul.f32 %v2483, %v2308
      %v2490 = vadd.f32 %v2488, %v2489
      %s2491 = sadd.s32 %s2307, 1
      %v2492 = vstv %s2491
      %vm2493 = vcmp.eq.s32.totalorder %v2306, %v2492
      %v2494 = vsel %vm2493, 1, 0
      %2495 = vset.pattern.permute.xlu0 0
      %2496 = vperm.xlu0 %2495, %v2494
      %v2497 = vpop.permute.xlu0 %2496
      %vm2498 = vcmp.eq.s32.totalorder %v2497, 1
      %v2499 = vsel %vm2498, %v2490, %v2309
      %s2500 = scalar_lea.vmem [#allocation2], 24
      %v2501 = vld [vmem:[%s2500] sm:$0xff]
      %v2502 = vld [vmem:[%s2500 + $0x8] sm:$0xff]
      %v2503 = vld [vmem:[%s2500 + $0x10] sm:$0xff]
      %2504 = vmatprep.subr.mxu0 %v2303
      %2505 = vmatpush1.msra.mxu0 %v2302
      %2506 = vmatprep.subr.mxu0 %v2300
      %2507 = vmatpush1.msra.mxu0 %v2299
      %2508 = vmatprep.subr.mxu0 %v2297
      %2509 = vmatpush1.msra.mxu0 %v2296
      %2510 = vmatprep.subr.mxu0 %v2294
      %2511 = vmatpush1.msra.mxu0 %v2293
      %2512 = vmatprep.subr.mxu0 %v2291
      %2513 = vmatpush1.msra.mxu0 %v2290
      %2514 = vmatprep.subr.mxu0 %v2288
      %2515 = vmatpush1.msra.mxu0 %v2287
      %2516 = vmatprep.subr.mxu0 %v2285
      %2517 = vmatpush1.msra.mxu0 %v2284
      %2518 = vmatprep.subr.mxu0 %v2282
      %2519 = vmatpush1.msra.mxu0 %v2281
      %2520 = vmatprep.subr.mxu0 %v2279
      %2521 = vmatpush1.msra.mxu0 %v2278
      %2522 = vmatprep.subr.mxu0 %v2276
      %2523 = vmatpush1.msra.mxu0 %v2275
      %2524 = vmatprep.subr.mxu0 %v2273
      %2525 = vmatpush1.msra.mxu0 %v2272
      %2526 = vmatprep.subr.mxu0 %v2270
      %2527 = vmatpush1.msra.mxu0 %v2269
      %2528 = vmatprep.subr.mxu0 %v2267
      %2529 = vmatpush1.msra.mxu0 %v2266
      %2530 = vmatprep.subr.mxu0 %v2264
      %2531 = vmatpush1.msra.mxu0 %v2263
      %2532 = vmatprep.subr.mxu0 %v2261
      %2533 = vmatpush1.msra.mxu0 %v2260
      %2534 = vmatprep.subr.mxu0 %v2258
      %2535 = vmatpush1.msra.mxu0 %v2257
      %2536 = vmatprep.subr.mxu0 0.0
      %2537 = vmatpush2.msra.mxu0 0.0
      %2538 = vmatprep.subr.mxu0 0.0
      %2539 = vmatpush2.msra.mxu0 0.0
      %2540 = vmatprep.subr.mxu0 0.0
      %2541 = vmatpush2.msra.mxu0 0.0
      %2542 = vmatprep.subr.mxu0 0.0
      %2543 = vmatpush2.msra.mxu0 0.0
      %2544 = vmatprep.subr.mxu0 0.0
      %2545 = vmatpush2.msra.mxu0 0.0
      %2546 = vmatprep.subr.mxu0 0.0
      %2547 = vmatpush2.msra.mxu0 0.0
      %2548 = vmatprep.subr.mxu0 0.0
      %2549 = vmatpush2.msra.mxu0 0.0
      %2550 = vmatprep.subr.mxu0 0.0
      %2551 = vmatpush2.msra.mxu0 0.0
      %2552 = vmatprep.subr.mxu0 0.0
      %2553 = vmatpush2.msra.mxu0 0.0
      %2554 = vmatprep.subr.mxu0 0.0
      %2555 = vmatpush2.msra.mxu0 0.0
      %2556 = vmatprep.subr.mxu0 0.0
      %2557 = vmatpush2.msra.mxu0 0.0
      %2558 = vmatprep.subr.mxu0 0.0
      %2559 = vmatpush2.msra.mxu0 0.0
      %2560 = vmatprep.subr.mxu0 0.0
      %2561 = vmatpush2.msra.mxu0 0.0
      %2562 = vmatprep.subr.mxu0 0.0
      %2563 = vmatpush2.msra.mxu0 0.0
      %2564 = vmatprep.subr.mxu0 0.0
      %2565 = vmatpush2.msra.mxu0 0.0
      %2566 = vmatprep.subr.mxu0 0.0
      %2567 = vmatpush2.msra.mxu0 0.0
      %2568 = vmatprep.mubr.f32.mxu0 0.0
      %2569 = vmatmul.mubr.f32.gmra.mxu0 %v2490
      %v2570 = vpop.f32.mrf.mxu0
      %v2571 = vadd.f32 %v2317, %v2570
      %v2572 = vpop.f32.mrf.mxu0
      %v2573 = vadd.f32 %v2321, %v2572
      %2574 = vdwg.mxu0
      %2575 = vmatprep.subr.mxu0 0.0
      %2576 = vmatpush1.msra.mxu0 %v2304
      %2577 = vmatprep.subr.mxu0 0.0
      %2578 = vmatpush1.msra.mxu0 %v2301
      %2579 = vmatprep.subr.mxu0 0.0
      %2580 = vmatpush1.msra.mxu0 %v2298
      %2581 = vmatprep.subr.mxu0 0.0
      %2582 = vmatpush1.msra.mxu0 %v2295
      %2583 = vmatprep.subr.mxu0 0.0
      %2584 = vmatpush1.msra.mxu0 %v2292
      %2585 = vmatprep.subr.mxu0 0.0
      %2586 = vmatpush1.msra.mxu0 %v2289
      %2587 = vmatprep.subr.mxu0 0.0
      %2588 = vmatpush1.msra.mxu0 %v2286
      %2589 = vmatprep.subr.mxu0 0.0
      %2590 = vmatpush1.msra.mxu0 %v2283
      %2591 = vmatprep.subr.mxu0 0.0
      %2592 = vmatpush1.msra.mxu0 %v2280
      %2593 = vmatprep.subr.mxu0 0.0
      %2594 = vmatpush1.msra.mxu0 %v2277
      %2595 = vmatprep.subr.mxu0 0.0
      %2596 = vmatpush1.msra.mxu0 %v2274
      %2597 = vmatprep.subr.mxu0 0.0
      %2598 = vmatpush1.msra.mxu0 %v2271
      %2599 = vmatprep.subr.mxu0 0.0
      %2600 = vmatpush1.msra.mxu0 %v2268
      %2601 = vmatprep.subr.mxu0 0.0
      %2602 = vmatpush1.msra.mxu0 %v2265
      %2603 = vmatprep.subr.mxu0 0.0
      %2604 = vmatpush1.msra.mxu0 %v2262
      %2605 = vmatprep.subr.mxu0 0.0
      %2606 = vmatpush1.msra.mxu0 %v2259
      %2607 = vmatprep.subr.mxu0 0.0
      %2608 = vmatpush2.msra.mxu0 0.0
      %2609 = vmatprep.subr.mxu0 0.0
      %2610 = vmatpush2.msra.mxu0 0.0
      %2611 = vmatprep.subr.mxu0 0.0
      %2612 = vmatpush2.msra.mxu0 0.0
      %2613 = vmatprep.subr.mxu0 0.0
      %2614 = vmatpush2.msra.mxu0 0.0
      %2615 = vmatprep.subr.mxu0 0.0
      %2616 = vmatpush2.msra.mxu0 0.0
      %2617 = vmatprep.subr.mxu0 0.0
      %2618 = vmatpush2.msra.mxu0 0.0
      %2619 = vmatprep.subr.mxu0 0.0
      %2620 = vmatpush2.msra.mxu0 0.0
      %2621 = vmatprep.subr.mxu0 0.0
      %2622 = vmatpush2.msra.mxu0 0.0
      %2623 = vmatprep.subr.mxu0 0.0
      %2624 = vmatpush2.msra.mxu0 0.0
      %2625 = vmatprep.subr.mxu0 0.0
      %2626 = vmatpush2.msra.mxu0 0.0
      %2627 = vmatprep.subr.mxu0 0.0
      %2628 = vmatpush2.msra.mxu0 0.0
      %2629 = vmatprep.subr.mxu0 0.0
      %2630 = vmatpush2.msra.mxu0 0.0
      %2631 = vmatprep.subr.mxu0 0.0
      %2632 = vmatpush2.msra.mxu0 0.0
      %2633 = vmatprep.subr.mxu0 0.0
      %2634 = vmatpush2.msra.mxu0 0.0
      %2635 = vmatprep.subr.mxu0 0.0
      %2636 = vmatpush2.msra.mxu0 0.0
      %2637 = vmatprep.subr.mxu0 0.0
      %2638 = vmatpush2.msra.mxu0 0.0
      %2639 = vmatprep.mubr.f32.mxu0 0.0
      %2640 = vmatmul.mubr.f32.gmra.mxu0 %v2490
      %v2641 = vpop.f32.mrf.mxu0
      %v2642 = vadd.f32 %v2325, %v2641
      %v2643 = vpop.f32.mrf.mxu0
      %2644 = vdwg.mxu0
      %v2645 = vadd.f32 %v2501, %v2571
      %v2646 = vxor.u32 %v2645, 2147483648
      %v2647 = vmul.f32 %v2646, 1.442695
      %v2648 = vpow.pop %v2647
      %v2649 = vadd.f32 %v2648, 1.0
      %v2650 = vrcp.pop %v2649
      %v2651 = vmul.f32 1.0, %v2650
      %v2652 = vadd.f32 %v2502, %v2573
      %v2653 = vxor.u32 %v2652, 2147483648
      %v2654 = vmul.f32 %v2653, 1.442695
      %v2655 = vpow.pop %v2654
      %v2656 = vadd.f32 %v2655, 1.0
      %v2657 = vrcp.pop %v2656
      %v2658 = vmul.f32 1.0, %v2657
      %v2659 = vmul.f32 %v2651, %v2642
      %v2660 = vadd.f32 %v2503, %v2659
      %v2661 = vtanh.pop %v2660
      %v2662 = vsub.f32 1.0, %v2658
      %v2663 = vmul.f32 %v2662, %v2661
      %v2664 = vmul.f32 %v2658, %v2490
      %v2665 = vadd.f32 %v2663, %v2664
      %s2666 = sadd.s32 %s2307, 2
      %v2667 = vstv %s2666
      %vm2668 = vcmp.eq.s32.totalorder %v2306, %v2667
      %v2669 = vsel %vm2668, 1, 0
      %2670 = vset.pattern.permute.xlu0 0
      %2671 = vperm.xlu0 %2670, %v2669
      %v2672 = vpop.permute.xlu0 %2671
      %vm2673 = vcmp.eq.s32.totalorder %v2672, 1
      %v2674 = vsel %vm2673, %v2665, %v2499
      %s2675 = scalar_lea.vmem [#allocation2], 48
      %v2676 = vld [vmem:[%s2675] sm:$0xff]
      %v2677 = vld [vmem:[%s2675 + $0x8] sm:$0xff]
      %v2678 = vld [vmem:[%s2675 + $0x10] sm:$0xff]
      %2679 = vmatprep.subr.mxu0 %v2303
      %2680 = vmatpush1.msra.mxu0 %v2302
      %2681 = vmatprep.subr.mxu0 %v2300
      %2682 = vmatpush1.msra.mxu0 %v2299
      %2683 = vmatprep.subr.mxu0 %v2297
      %2684 = vmatpush1.msra.mxu0 %v2296
      %2685 = vmatprep.subr.mxu0 %v2294
      %2686 = vmatpush1.msra.mxu0 %v2293
      %2687 = vmatprep.subr.mxu0 %v2291
      %2688 = vmatpush1.msra.mxu0 %v2290
      %2689 = vmatprep.subr.mxu0 %v2288
      %2690 = vmatpush1.msra.mxu0 %v2287
      %2691 = vmatprep.subr.mxu0 %v2285
      %2692 = vmatpush1.msra.mxu0 %v2284
      %2693 = vmatprep.subr.mxu0 %v2282
      %2694 = vmatpush1.msra.mxu0 %v2281
      %2695 = vmatprep.subr.mxu0 %v2279
      %2696 = vmatpush1.msra.mxu0 %v2278
      %2697 = vmatprep.subr.mxu0 %v2276
      %2698 = vmatpush1.msra.mxu0 %v2275
      %2699 = vmatprep.subr.mxu0 %v2273
      %2700 = vmatpush1.msra.mxu0 %v2272
      %2701 = vmatprep.subr.mxu0 %v2270
      %2702 = vmatpush1.msra.mxu0 %v2269
      %2703 = vmatprep.subr.mxu0 %v2267
      %2704 = vmatpush1.msra.mxu0 %v2266
      %2705 = vmatprep.subr.mxu0 %v2264
      %2706 = vmatpush1.msra.mxu0 %v2263
      %2707 = vmatprep.subr.mxu0 %v2261
      %2708 = vmatpush1.msra.mxu0 %v2260
      %2709 = vmatprep.subr.mxu0 %v2258
      %2710 = vmatpush1.msra.mxu0 %v2257
      %2711 = vmatprep.subr.mxu0 0.0
      %2712 = vmatpush2.msra.mxu0 0.0
      %2713 = vmatprep.subr.mxu0 0.0
      %2714 = vmatpush2.msra.mxu0 0.0
      %2715 = vmatprep.subr.mxu0 0.0
      %2716 = vmatpush2.msra.mxu0 0.0
      %2717 = vmatprep.subr.mxu0 0.0
      %2718 = vmatpush2.msra.mxu0 0.0
      %2719 = vmatprep.subr.mxu0 0.0
      %2720 = vmatpush2.msra.mxu0 0.0
      %2721 = vmatprep.subr.mxu0 0.0
      %2722 = vmatpush2.msra.mxu0 0.0
      %2723 = vmatprep.subr.mxu0 0.0
      %2724 = vmatpush2.msra.mxu0 0.0
      %2725 = vmatprep.subr.mxu0 0.0
      %2726 = vmatpush2.msra.mxu0 0.0
      %2727 = vmatprep.subr.mxu0 0.0
      %2728 = vmatpush2.msra.mxu0 0.0
      %2729 = vmatprep.subr.mxu0 0.0
      %2730 = vmatpush2.msra.mxu0 0.0
      %2731 = vmatprep.subr.mxu0 0.0
      %2732 = vmatpush2.msra.mxu0 0.0
      %2733 = vmatprep.subr.mxu0 0.0
      %2734 = vmatpush2.msra.mxu0 0.0
      %2735 = vmatprep.subr.mxu0 0.0
      %2736 = vmatpush2.msra.mxu0 0.0
      %2737 = vmatprep.subr.mxu0 0.0
      %2738 = vmatpush2.msra.mxu0 0.0
      %2739 = vmatprep.subr.mxu0 0.0
      %2740 = vmatpush2.msra.mxu0 0.0
      %2741 = vmatprep.subr.mxu0 0.0
      %2742 = vmatpush2.msra.mxu0 0.0
      %2743 = vmatprep.mubr.f32.mxu0 0.0
      %2744 = vmatmul.mubr.f32.gmra.mxu0 %v2665
      %v2745 = vpop.f32.mrf.mxu0
      %v2746 = vadd.f32 %v2317, %v2745
      %v2747 = vpop.f32.mrf.mxu0
      %v2748 = vadd.f32 %v2321, %v2747
      %2749 = vdwg.mxu0
      %2750 = vmatprep.subr.mxu0 0.0
      %2751 = vmatpush1.msra.mxu0 %v2304
      %2752 = vmatprep.subr.mxu0 0.0
      %2753 = vmatpush1.msra.mxu0 %v2301
      %2754 = vmatprep.subr.mxu0 0.0
      %2755 = vmatpush1.msra.mxu0 %v2298
      %2756 = vmatprep.subr.mxu0 0.0
      %2757 = vmatpush1.msra.mxu0 %v2295
      %2758 = vmatprep.subr.mxu0 0.0
      %2759 = vmatpush1.msra.mxu0 %v2292
      %2760 = vmatprep.subr.mxu0 0.0
      %2761 = vmatpush1.msra.mxu0 %v2289
      %2762 = vmatprep.subr.mxu0 0.0
      %2763 = vmatpush1.msra.mxu0 %v2286
      %2764 = vmatprep.subr.mxu0 0.0
      %2765 = vmatpush1.msra.mxu0 %v2283
      %2766 = vmatprep.subr.mxu0 0.0
      %2767 = vmatpush1.msra.mxu0 %v2280
      %2768 = vmatprep.subr.mxu0 0.0
      %2769 = vmatpush1.msra.mxu0 %v2277
      %2770 = vmatprep.subr.mxu0 0.0
      %2771 = vmatpush1.msra.mxu0 %v2274
      %2772 = vmatprep.subr.mxu0 0.0
      %2773 = vmatpush1.msra.mxu0 %v2271
      %2774 = vmatprep.subr.mxu0 0.0
      %2775 = vmatpush1.msra.mxu0 %v2268
      %2776 = vmatprep.subr.mxu0 0.0
      %2777 = vmatpush1.msra.mxu0 %v2265
      %2778 = vmatprep.subr.mxu0 0.0
      %2779 = vmatpush1.msra.mxu0 %v2262
      %2780 = vmatprep.subr.mxu0 0.0
      %2781 = vmatpush1.msra.mxu0 %v2259
      %2782 = vmatprep.subr.mxu0 0.0
      %2783 = vmatpush2.msra.mxu0 0.0
      %2784 = vmatprep.subr.mxu0 0.0
      %2785 = vmatpush2.msra.mxu0 0.0
      %2786 = vmatprep.subr.mxu0 0.0
      %2787 = vmatpush2.msra.mxu0 0.0
      %2788 = vmatprep.subr.mxu0 0.0
      %2789 = vmatpush2.msra.mxu0 0.0
      %2790 = vmatprep.subr.mxu0 0.0
      %2791 = vmatpush2.msra.mxu0 0.0
      %2792 = vmatprep.subr.mxu0 0.0
      %2793 = vmatpush2.msra.mxu0 0.0
      %2794 = vmatprep.subr.mxu0 0.0
      %2795 = vmatpush2.msra.mxu0 0.0
      %2796 = vmatprep.subr.mxu0 0.0
      %2797 = vmatpush2.msra.mxu0 0.0
      %2798 = vmatprep.subr.mxu0 0.0
      %2799 = vmatpush2.msra.mxu0 0.0
      %2800 = vmatprep.subr.mxu0 0.0
      %2801 = vmatpush2.msra.mxu0 0.0
      %2802 = vmatprep.subr.mxu0 0.0
      %2803 = vmatpush2.msra.mxu0 0.0
      %2804 = vmatprep.subr.mxu0 0.0
      %2805 = vmatpush2.msra.mxu0 0.0
      %2806 = vmatprep.subr.mxu0 0.0
      %2807 = vmatpush2.msra.mxu0 0.0
      %2808 = vmatprep.subr.mxu0 0.0
      %2809 = vmatpush2.msra.mxu0 0.0
      %2810 = vmatprep.subr.mxu0 0.0
      %2811 = vmatpush2.msra.mxu0 0.0
      %2812 = vmatprep.subr.mxu0 0.0
      %2813 = vmatpush2.msra.mxu0 0.0
      %2814 = vmatprep.mubr.f32.mxu0 0.0
      %2815 = vmatmul.mubr.f32.gmra.mxu0 %v2665
      %v2816 = vpop.f32.mrf.mxu0
      %v2817 = vadd.f32 %v2325, %v2816
      %v2818 = vpop.f32.mrf.mxu0
      %2819 = vdwg.mxu0
      %v2820 = vadd.f32 %v2676, %v2746
      %v2821 = vxor.u32 %v2820, 2147483648
      %v2822 = vmul.f32 %v2821, 1.442695
      %v2823 = vpow.pop %v2822
      %v2824 = vadd.f32 %v2823, 1.0
      %v2825 = vrcp.pop %v2824
      %v2826 = vmul.f32 1.0, %v2825
      %v2827 = vadd.f32 %v2677, %v2748
      %v2828 = vxor.u32 %v2827, 2147483648
      %v2829 = vmul.f32 %v2828, 1.442695
      %v2830 = vpow.pop %v2829
      %v2831 = vadd.f32 %v2830, 1.0
      %v2832 = vrcp.pop %v2831
      %v2833 = vmul.f32 1.0, %v2832
      %v2834 = vmul.f32 %v2826, %v2817
      %v2835 = vadd.f32 %v2678, %v2834
      %v2836 = vtanh.pop %v2835
      %v2837 = vsub.f32 1.0, %v2833
      %v2838 = vmul.f32 %v2837, %v2836
      %v2839 = vmul.f32 %v2833, %v2665
      %v2840 = vadd.f32 %v2838, %v2839
      %s2841 = sadd.s32 %s2307, 3
      %v2842 = vstv %s2841
      %vm2843 = vcmp.eq.s32.totalorder %v2306, %v2842
      %v2844 = vsel %vm2843, 1, 0
      %2845 = vset.pattern.permute.xlu0 0
      %2846 = vperm.xlu0 %2845, %v2844
      %v2847 = vpop.permute.xlu0 %2846
      %vm2848 = vcmp.eq.s32.totalorder %v2847, 1
      %v2849 = vsel %vm2848, %v2840, %v2674
      %s2850 = scalar_lea.vmem [#allocation2], 72
      %v2851 = vld [vmem:[%s2850] sm:$0xff]
      %v2852 = vld [vmem:[%s2850 + $0x8] sm:$0xff]
      %v2853 = vld [vmem:[%s2850 + $0x10] sm:$0xff]
      %2854 = vmatprep.subr.mxu0 %v2303
      %2855 = vmatpush1.msra.mxu0 %v2302
      %2856 = vmatprep.subr.mxu0 %v2300
      %2857 = vmatpush1.msra.mxu0 %v2299
      %2858 = vmatprep.subr.mxu0 %v2297
      %2859 = vmatpush1.msra.mxu0 %v2296
      %2860 = vmatprep.subr.mxu0 %v2294
      %2861 = vmatpush1.msra.mxu0 %v2293
      %2862 = vmatprep.subr.mxu0 %v2291
      %2863 = vmatpush1.msra.mxu0 %v2290
      %2864 = vmatprep.subr.mxu0 %v2288
      %2865 = vmatpush1.msra.mxu0 %v2287
      %2866 = vmatprep.subr.mxu0 %v2285
      %2867 = vmatpush1.msra.mxu0 %v2284
      %2868 = vmatprep.subr.mxu0 %v2282
      %2869 = vmatpush1.msra.mxu0 %v2281
      %2870 = vmatprep.subr.mxu0 %v2279
      %2871 = vmatpush1.msra.mxu0 %v2278
      %2872 = vmatprep.subr.mxu0 %v2276
      %2873 = vmatpush1.msra.mxu0 %v2275
      %2874 = vmatprep.subr.mxu0 %v2273
      %2875 = vmatpush1.msra.mxu0 %v2272
      %2876 = vmatprep.subr.mxu0 %v2270
      %2877 = vmatpush1.msra.mxu0 %v2269
      %2878 = vmatprep.subr.mxu0 %v2267
      %2879 = vmatpush1.msra.mxu0 %v2266
      %2880 = vmatprep.subr.mxu0 %v2264
      %2881 = vmatpush1.msra.mxu0 %v2263
      %2882 = vmatprep.subr.mxu0 %v2261
      %2883 = vmatpush1.msra.mxu0 %v2260
      %2884 = vmatprep.subr.mxu0 %v2258
      %2885 = vmatpush1.msra.mxu0 %v2257
      %2886 = vmatprep.subr.mxu0 0.0
      %2887 = vmatpush2.msra.mxu0 0.0
      %2888 = vmatprep.subr.mxu0 0.0
      %2889 = vmatpush2.msra.mxu0 0.0
      %2890 = vmatprep.subr.mxu0 0.0
      %2891 = vmatpush2.msra.mxu0 0.0
      %2892 = vmatprep.subr.mxu0 0.0
      %2893 = vmatpush2.msra.mxu0 0.0
      %2894 = vmatprep.subr.mxu0 0.0
      %2895 = vmatpush2.msra.mxu0 0.0
      %2896 = vmatprep.subr.mxu0 0.0
      %2897 = vmatpush2.msra.mxu0 0.0
      %2898 = vmatprep.subr.mxu0 0.0
      %2899 = vmatpush2.msra.mxu0 0.0
      %2900 = vmatprep.subr.mxu0 0.0
      %2901 = vmatpush2.msra.mxu0 0.0
      %2902 = vmatprep.subr.mxu0 0.0
      %2903 = vmatpush2.msra.mxu0 0.0
      %2904 = vmatprep.subr.mxu0 0.0
      %2905 = vmatpush2.msra.mxu0 0.0
      %2906 = vmatprep.subr.mxu0 0.0
      %2907 = vmatpush2.msra.mxu0 0.0
      %2908 = vmatprep.subr.mxu0 0.0
      %2909 = vmatpush2.msra.mxu0 0.0
      %2910 = vmatprep.subr.mxu0 0.0
      %2911 = vmatpush2.msra.mxu0 0.0
      %2912 = vmatprep.subr.mxu0 0.0
      %2913 = vmatpush2.msra.mxu0 0.0
      %2914 = vmatprep.subr.mxu0 0.0
      %2915 = vmatpush2.msra.mxu0 0.0
      %2916 = vmatprep.subr.mxu0 0.0
      %2917 = vmatpush2.msra.mxu0 0.0
      %2918 = vmatprep.mubr.f32.mxu0 0.0
      %2919 = vmatmul.mubr.f32.gmra.mxu0 %v2840
      %v2920 = vpop.f32.mrf.mxu0
      %v2921 = vadd.f32 %v2317, %v2920
      %v2922 = vpop.f32.mrf.mxu0
      %v2923 = vadd.f32 %v2321, %v2922
      %2924 = vdwg.mxu0
      %2925 = vmatprep.subr.mxu0 0.0
      %2926 = vmatpush1.msra.mxu0 %v2304
      %2927 = vmatprep.subr.mxu0 0.0
      %2928 = vmatpush1.msra.mxu0 %v2301
      %2929 = vmatprep.subr.mxu0 0.0
      %2930 = vmatpush1.msra.mxu0 %v2298
      %2931 = vmatprep.subr.mxu0 0.0
      %2932 = vmatpush1.msra.mxu0 %v2295
      %2933 = vmatprep.subr.mxu0 0.0
      %2934 = vmatpush1.msra.mxu0 %v2292
      %2935 = vmatprep.subr.mxu0 0.0
      %2936 = vmatpush1.msra.mxu0 %v2289
      %2937 = vmatprep.subr.mxu0 0.0
      %2938 = vmatpush1.msra.mxu0 %v2286
      %2939 = vmatprep.subr.mxu0 0.0
      %2940 = vmatpush1.msra.mxu0 %v2283
      %2941 = vmatprep.subr.mxu0 0.0
      %2942 = vmatpush1.msra.mxu0 %v2280
      %2943 = vmatprep.subr.mxu0 0.0
      %2944 = vmatpush1.msra.mxu0 %v2277
      %2945 = vmatprep.subr.mxu0 0.0
      %2946 = vmatpush1.msra.mxu0 %v2274
      %2947 = vmatprep.subr.mxu0 0.0
      %2948 = vmatpush1.msra.mxu0 %v2271
      %2949 = vmatprep.subr.mxu0 0.0
      %2950 = vmatpush1.msra.mxu0 %v2268
      %2951 = vmatprep.subr.mxu0 0.0
      %2952 = vmatpush1.msra.mxu0 %v2265
      %2953 = vmatprep.subr.mxu0 0.0
      %2954 = vmatpush1.msra.mxu0 %v2262
      %2955 = vmatprep.subr.mxu0 0.0
      %2956 = vmatpush1.msra.mxu0 %v2259
      %2957 = vmatprep.subr.mxu0 0.0
      %2958 = vmatpush2.msra.mxu0 0.0
      %2959 = vmatprep.subr.mxu0 0.0
      %2960 = vmatpush2.msra.mxu0 0.0
      %2961 = vmatprep.subr.mxu0 0.0
      %2962 = vmatpush2.msra.mxu0 0.0
      %2963 = vmatprep.subr.mxu0 0.0
      %2964 = vmatpush2.msra.mxu0 0.0
      %2965 = vmatprep.subr.mxu0 0.0
      %2966 = vmatpush2.msra.mxu0 0.0
      %2967 = vmatprep.subr.mxu0 0.0
      %2968 = vmatpush2.msra.mxu0 0.0
      %2969 = vmatprep.subr.mxu0 0.0
      %2970 = vmatpush2.msra.mxu0 0.0
      %2971 = vmatprep.subr.mxu0 0.0
      %2972 = vmatpush2.msra.mxu0 0.0
      %2973 = vmatprep.subr.mxu0 0.0
      %2974 = vmatpush2.msra.mxu0 0.0
      %2975 = vmatprep.subr.mxu0 0.0
      %2976 = vmatpush2.msra.mxu0 0.0
      %2977 = vmatprep.subr.mxu0 0.0
      %2978 = vmatpush2.msra.mxu0 0.0
      %2979 = vmatprep.subr.mxu0 0.0
      %2980 = vmatpush2.msra.mxu0 0.0
      %2981 = vmatprep.subr.mxu0 0.0
      %2982 = vmatpush2.msra.mxu0 0.0
      %2983 = vmatprep.subr.mxu0 0.0
      %2984 = vmatpush2.msra.mxu0 0.0
      %2985 = vmatprep.subr.mxu0 0.0
      %2986 = vmatpush2.msra.mxu0 0.0
      %2987 = vmatprep.subr.mxu0 0.0
      %2988 = vmatpush2.msra.mxu0 0.0
      %2989 = vmatprep.mubr.f32.mxu0 0.0
      %2990 = vmatmul.mubr.f32.gmra.mxu0 %v2840
      %v2991 = vpop.f32.mrf.mxu0
      %v2992 = vadd.f32 %v2325, %v2991
      %v2993 = vpop.f32.mrf.mxu0
      %2994 = vdwg.mxu0
      %v2995 = vadd.f32 %v2851, %v2921
      %v2996 = vxor.u32 %v2995, 2147483648
      %v2997 = vmul.f32 %v2996, 1.442695
      %v2998 = vpow.pop %v2997
      %v2999 = vadd.f32 %v2998, 1.0
      %v3000 = vrcp.pop %v2999
      %v3001 = vmul.f32 1.0, %v3000
      %v3002 = vadd.f32 %v2852, %v2923
      %v3003 = vxor.u32 %v3002, 2147483648
      %v3004 = vmul.f32 %v3003, 1.442695
      %v3005 = vpow.pop %v3004
      %v3006 = vadd.f32 %v3005, 1.0
      %v3007 = vrcp.pop %v3006
      %v3008 = vmul.f32 1.0, %v3007
      %v3009 = vmul.f32 %v3001, %v2992
      %v3010 = vadd.f32 %v2853, %v3009
      %v3011 = vtanh.pop %v3010
      %v3012 = vsub.f32 1.0, %v3008
      %v3013 = vmul.f32 %v3012, %v3011
      %v3014 = vmul.f32 %v3008, %v2840
      %v3015 = vadd.f32 %v3013, %v3014
      %s3016 = sadd.s32 %s2307, 4
      %v3017 = vstv %s3016
      %vm3018 = vcmp.eq.s32.totalorder %v2306, %v3017
      %v3019 = vsel %vm3018, 1, 0
      %3020 = vset.pattern.permute.xlu0 0
      %3021 = vperm.xlu0 %3020, %v3019
      %v3022 = vpop.permute.xlu0 %3021
      %vm3023 = vcmp.eq.s32.totalorder %v3022, 1
      %v3024 = vsel %vm3023, %v3015, %v2849
      %s3025 = scalar_lea.vmem [#allocation2], 96
      %v3026 = vld [vmem:[%s3025] sm:$0xff]
      %v3027 = vld [vmem:[%s3025 + $0x8] sm:$0xff]
      %v3028 = vld [vmem:[%s3025 + $0x10] sm:$0xff]
      %3029 = vmatprep.subr.mxu0 %v2303
      %3030 = vmatpush1.msra.mxu0 %v2302
      %3031 = vmatprep.subr.mxu0 %v2300
      %3032 = vmatpush1.msra.mxu0 %v2299
      %3033 = vmatprep.subr.mxu0 %v2297
      %3034 = vmatpush1.msra.mxu0 %v2296
      %3035 = vmatprep.subr.mxu0 %v2294
      %3036 = vmatpush1.msra.mxu0 %v2293
      %3037 = vmatprep.subr.mxu0 %v2291
      %3038 = vmatpush1.msra.mxu0 %v2290
      %3039 = vmatprep.subr.mxu0 %v2288
      %3040 = vmatpush1.msra.mxu0 %v2287
      %3041 = vmatprep.subr.mxu0 %v2285
      %3042 = vmatpush1.msra.mxu0 %v2284
      %3043 = vmatprep.subr.mxu0 %v2282
      %3044 = vmatpush1.msra.mxu0 %v2281
      %3045 = vmatprep.subr.mxu0 %v2279
      %3046 = vmatpush1.msra.mxu0 %v2278
      %3047 = vmatprep.subr.mxu0 %v2276
      %3048 = vmatpush1.msra.mxu0 %v2275
      %3049 = vmatprep.subr.mxu0 %v2273
      %3050 = vmatpush1.msra.mxu0 %v2272
      %3051 = vmatprep.subr.mxu0 %v2270
      %3052 = vmatpush1.msra.mxu0 %v2269
      %3053 = vmatprep.subr.mxu0 %v2267
      %3054 = vmatpush1.msra.mxu0 %v2266
      %3055 = vmatprep.subr.mxu0 %v2264
      %3056 = vmatpush1.msra.mxu0 %v2263
      %3057 = vmatprep.subr.mxu0 %v2261
      %3058 = vmatpush1.msra.mxu0 %v2260
      %3059 = vmatprep.subr.mxu0 %v2258
      %3060 = vmatpush1.msra.mxu0 %v2257
      %3061 = vmatprep.subr.mxu0 0.0
      %3062 = vmatpush2.msra.mxu0 0.0
      %3063 = vmatprep.subr.mxu0 0.0
      %3064 = vmatpush2.msra.mxu0 0.0
      %3065 = vmatprep.subr.mxu0 0.0
      %3066 = vmatpush2.msra.mxu0 0.0
      %3067 = vmatprep.subr.mxu0 0.0
      %3068 = vmatpush2.msra.mxu0 0.0
      %3069 = vmatprep.subr.mxu0 0.0
      %3070 = vmatpush2.msra.mxu0 0.0
      %3071 = vmatprep.subr.mxu0 0.0
      %3072 = vmatpush2.msra.mxu0 0.0
      %3073 = vmatprep.subr.mxu0 0.0
      %3074 = vmatpush2.msra.mxu0 0.0
      %3075 = vmatprep.subr.mxu0 0.0
      %3076 = vmatpush2.msra.mxu0 0.0
      %3077 = vmatprep.subr.mxu0 0.0
      %3078 = vmatpush2.msra.mxu0 0.0
      %3079 = vmatprep.subr.mxu0 0.0
      %3080 = vmatpush2.msra.mxu0 0.0
      %3081 = vmatprep.subr.mxu0 0.0
      %3082 = vmatpush2.msra.mxu0 0.0
      %3083 = vmatprep.subr.mxu0 0.0
      %3084 = vmatpush2.msra.mxu0 0.0
      %3085 = vmatprep.subr.mxu0 0.0
      %3086 = vmatpush2.msra.mxu0 0.0
      %3087 = vmatprep.subr.mxu0 0.0
      %3088 = vmatpush2.msra.mxu0 0.0
      %3089 = vmatprep.subr.mxu0 0.0
      %3090 = vmatpush2.msra.mxu0 0.0
      %3091 = vmatprep.subr.mxu0 0.0
      %3092 = vmatpush2.msra.mxu0 0.0
      %3093 = vmatprep.mubr.f32.mxu0 0.0
      %3094 = vmatmul.mubr.f32.gmra.mxu0 %v3015
      %v3095 = vpop.f32.mrf.mxu0
      %v3096 = vadd.f32 %v2317, %v3095
      %v3097 = vpop.f32.mrf.mxu0
      %v3098 = vadd.f32 %v2321, %v3097
      %3099 = vdwg.mxu0
      %3100 = vmatprep.subr.mxu0 0.0
      %3101 = vmatpush1.msra.mxu0 %v2304
      %3102 = vmatprep.subr.mxu0 0.0
      %3103 = vmatpush1.msra.mxu0 %v2301
      %3104 = vmatprep.subr.mxu0 0.0
      %3105 = vmatpush1.msra.mxu0 %v2298
      %3106 = vmatprep.subr.mxu0 0.0
      %3107 = vmatpush1.msra.mxu0 %v2295
      %3108 = vmatprep.subr.mxu0 0.0
      %3109 = vmatpush1.msra.mxu0 %v2292
      %3110 = vmatprep.subr.mxu0 0.0
      %3111 = vmatpush1.msra.mxu0 %v2289
      %3112 = vmatprep.subr.mxu0 0.0
      %3113 = vmatpush1.msra.mxu0 %v2286
      %3114 = vmatprep.subr.mxu0 0.0
      %3115 = vmatpush1.msra.mxu0 %v2283
      %3116 = vmatprep.subr.mxu0 0.0
      %3117 = vmatpush1.msra.mxu0 %v2280
      %3118 = vmatprep.subr.mxu0 0.0
      %3119 = vmatpush1.msra.mxu0 %v2277
      %3120 = vmatprep.subr.mxu0 0.0
      %3121 = vmatpush1.msra.mxu0 %v2274
      %3122 = vmatprep.subr.mxu0 0.0
      %3123 = vmatpush1.msra.mxu0 %v2271
      %3124 = vmatprep.subr.mxu0 0.0
      %3125 = vmatpush1.msra.mxu0 %v2268
      %3126 = vmatprep.subr.mxu0 0.0
      %3127 = vmatpush1.msra.mxu0 %v2265
      %3128 = vmatprep.subr.mxu0 0.0
      %3129 = vmatpush1.msra.mxu0 %v2262
      %3130 = vmatprep.subr.mxu0 0.0
      %3131 = vmatpush1.msra.mxu0 %v2259
      %3132 = vmatprep.subr.mxu0 0.0
      %3133 = vmatpush2.msra.mxu0 0.0
      %3134 = vmatprep.subr.mxu0 0.0
      %3135 = vmatpush2.msra.mxu0 0.0
      %3136 = vmatprep.subr.mxu0 0.0
      %3137 = vmatpush2.msra.mxu0 0.0
      %3138 = vmatprep.subr.mxu0 0.0
      %3139 = vmatpush2.msra.mxu0 0.0
      %3140 = vmatprep.subr.mxu0 0.0
      %3141 = vmatpush2.msra.mxu0 0.0
      %3142 = vmatprep.subr.mxu0 0.0
      %3143 = vmatpush2.msra.mxu0 0.0
      %3144 = vmatprep.subr.mxu0 0.0
      %3145 = vmatpush2.msra.mxu0 0.0
      %3146 = vmatprep.subr.mxu0 0.0
      %3147 = vmatpush2.msra.mxu0 0.0
      %3148 = vmatprep.subr.mxu0 0.0
      %3149 = vmatpush2.msra.mxu0 0.0
      %3150 = vmatprep.subr.mxu0 0.0
      %3151 = vmatpush2.msra.mxu0 0.0
      %3152 = vmatprep.subr.mxu0 0.0
      %3153 = vmatpush2.msra.mxu0 0.0
      %3154 = vmatprep.subr.mxu0 0.0
      %3155 = vmatpush2.msra.mxu0 0.0
      %3156 = vmatprep.subr.mxu0 0.0
      %3157 = vmatpush2.msra.mxu0 0.0
      %3158 = vmatprep.subr.mxu0 0.0
      %3159 = vmatpush2.msra.mxu0 0.0
      %3160 = vmatprep.subr.mxu0 0.0
      %3161 = vmatpush2.msra.mxu0 0.0
      %3162 = vmatprep.subr.mxu0 0.0
      %3163 = vmatpush2.msra.mxu0 0.0
      %3164 = vmatprep.mubr.f32.mxu0 0.0
      %3165 = vmatmul.mubr.f32.gmra.mxu0 %v3015
      %v3166 = vpop.f32.mrf.mxu0
      %v3167 = vadd.f32 %v2325, %v3166
      %v3168 = vpop.f32.mrf.mxu0
      %3169 = vdwg.mxu0
      %v3170 = vadd.f32 %v3026, %v3096
      %v3171 = vxor.u32 %v3170, 2147483648
      %v3172 = vmul.f32 %v3171, 1.442695
      %v3173 = vpow.pop %v3172
      %v3174 = vadd.f32 %v3173, 1.0
      %v3175 = vrcp.pop %v3174
      %v3176 = vmul.f32 1.0, %v3175
      %v3177 = vadd.f32 %v3027, %v3098
      %v3178 = vxor.u32 %v3177, 2147483648
      %v3179 = vmul.f32 %v3178, 1.442695
      %v3180 = vpow.pop %v3179
      %v3181 = vadd.f32 %v3180, 1.0
      %v3182 = vrcp.pop %v3181
      %v3183 = vmul.f32 1.0, %v3182
      %v3184 = vmul.f32 %v3176, %v3167
      %v3185 = vadd.f32 %v3028, %v3184
      %v3186 = vtanh.pop %v3185
      %v3187 = vsub.f32 1.0, %v3183
      %v3188 = vmul.f32 %v3187, %v3186
      %v3189 = vmul.f32 %v3183, %v3015
      %v3190 = vadd.f32 %v3188, %v3189
      %s3191 = sadd.s32 %s2307, 5
      %v3192 = vstv %s3191
      %vm3193 = vcmp.eq.s32.totalorder %v2306, %v3192
      %v3194 = vsel %vm3193, 1, 0
      %3195 = vset.pattern.permute.xlu0 0
      %3196 = vperm.xlu0 %3195, %v3194
      %v3197 = vpop.permute.xlu0 %3196
      %vm3198 = vcmp.eq.s32.totalorder %v3197, 1
      %v3199 = vsel %vm3198, %v3190, %v3024
      %s3200 = scalar_lea.vmem [#allocation2], 120
      %v3201 = vld [vmem:[%s3200] sm:$0xff]
      %v3202 = vld [vmem:[%s3200 + $0x8] sm:$0xff]
      %v3203 = vld [vmem:[%s3200 + $0x10] sm:$0xff]
      %3204 = vmatprep.subr.mxu0 %v2303
      %3205 = vmatpush1.msra.mxu0 %v2302
      %3206 = vmatprep.subr.mxu0 %v2300
      %3207 = vmatpush1.msra.mxu0 %v2299
      %3208 = vmatprep.subr.mxu0 %v2297
      %3209 = vmatpush1.msra.mxu0 %v2296
      %3210 = vmatprep.subr.mxu0 %v2294
      %3211 = vmatpush1.msra.mxu0 %v2293
      %3212 = vmatprep.subr.mxu0 %v2291
      %3213 = vmatpush1.msra.mxu0 %v2290
      %3214 = vmatprep.subr.mxu0 %v2288
      %3215 = vmatpush1.msra.mxu0 %v2287
      %3216 = vmatprep.subr.mxu0 %v2285
      %3217 = vmatpush1.msra.mxu0 %v2284
      %3218 = vmatprep.subr.mxu0 %v2282
      %3219 = vmatpush1.msra.mxu0 %v2281
      %3220 = vmatprep.subr.mxu0 %v2279
      %3221 = vmatpush1.msra.mxu0 %v2278
      %3222 = vmatprep.subr.mxu0 %v2276
      %3223 = vmatpush1.msra.mxu0 %v2275
      %3224 = vmatprep.subr.mxu0 %v2273
      %3225 = vmatpush1.msra.mxu0 %v2272
      %3226 = vmatprep.subr.mxu0 %v2270
      %3227 = vmatpush1.msra.mxu0 %v2269
      %3228 = vmatprep.subr.mxu0 %v2267
      %3229 = vmatpush1.msra.mxu0 %v2266
      %3230 = vmatprep.subr.mxu0 %v2264
      %3231 = vmatpush1.msra.mxu0 %v2263
      %3232 = vmatprep.subr.mxu0 %v2261
      %3233 = vmatpush1.msra.mxu0 %v2260
      %3234 = vmatprep.subr.mxu0 %v2258
      %3235 = vmatpush1.msra.mxu0 %v2257
      %3236 = vmatprep.subr.mxu0 0.0
      %3237 = vmatpush2.msra.mxu0 0.0
      %3238 = vmatprep.subr.mxu0 0.0
      %3239 = vmatpush2.msra.mxu0 0.0
      %3240 = vmatprep.subr.mxu0 0.0
      %3241 = vmatpush2.msra.mxu0 0.0
      %3242 = vmatprep.subr.mxu0 0.0
      %3243 = vmatpush2.msra.mxu0 0.0
      %3244 = vmatprep.subr.mxu0 0.0
      %3245 = vmatpush2.msra.mxu0 0.0
      %3246 = vmatprep.subr.mxu0 0.0
      %3247 = vmatpush2.msra.mxu0 0.0
      %3248 = vmatprep.subr.mxu0 0.0
      %3249 = vmatpush2.msra.mxu0 0.0
      %3250 = vmatprep.subr.mxu0 0.0
      %3251 = vmatpush2.msra.mxu0 0.0
      %3252 = vmatprep.subr.mxu0 0.0
      %3253 = vmatpush2.msra.mxu0 0.0
      %3254 = vmatprep.subr.mxu0 0.0
      %3255 = vmatpush2.msra.mxu0 0.0
      %3256 = vmatprep.subr.mxu0 0.0
      %3257 = vmatpush2.msra.mxu0 0.0
      %3258 = vmatprep.subr.mxu0 0.0
      %3259 = vmatpush2.msra.mxu0 0.0
      %3260 = vmatprep.subr.mxu0 0.0
      %3261 = vmatpush2.msra.mxu0 0.0
      %3262 = vmatprep.subr.mxu0 0.0
      %3263 = vmatpush2.msra.mxu0 0.0
      %3264 = vmatprep.subr.mxu0 0.0
      %3265 = vmatpush2.msra.mxu0 0.0
      %3266 = vmatprep.subr.mxu0 0.0
      %3267 = vmatpush2.msra.mxu0 0.0
      %3268 = vmatprep.mubr.f32.mxu0 0.0
      %3269 = vmatmul.mubr.f32.gmra.mxu0 %v3190
      %v3270 = vpop.f32.mrf.mxu0
      %v3271 = vadd.f32 %v2317, %v3270
      %v3272 = vpop.f32.mrf.mxu0
      %v3273 = vadd.f32 %v2321, %v3272
      %3274 = vdwg.mxu0
      %3275 = vmatprep.subr.mxu0 0.0
      %3276 = vmatpush1.msra.mxu0 %v2304
      %3277 = vmatprep.subr.mxu0 0.0
      %3278 = vmatpush1.msra.mxu0 %v2301
      %3279 = vmatprep.subr.mxu0 0.0
      %3280 = vmatpush1.msra.mxu0 %v2298
      %3281 = vmatprep.subr.mxu0 0.0
      %3282 = vmatpush1.msra.mxu0 %v2295
      %3283 = vmatprep.subr.mxu0 0.0
      %3284 = vmatpush1.msra.mxu0 %v2292
      %3285 = vmatprep.subr.mxu0 0.0
      %3286 = vmatpush1.msra.mxu0 %v2289
      %3287 = vmatprep.subr.mxu0 0.0
      %3288 = vmatpush1.msra.mxu0 %v2286
      %3289 = vmatprep.subr.mxu0 0.0
      %3290 = vmatpush1.msra.mxu0 %v2283
      %3291 = vmatprep.subr.mxu0 0.0
      %3292 = vmatpush1.msra.mxu0 %v2280
      %3293 = vmatprep.subr.mxu0 0.0
      %3294 = vmatpush1.msra.mxu0 %v2277
      %3295 = vmatprep.subr.mxu0 0.0
      %3296 = vmatpush1.msra.mxu0 %v2274
      %3297 = vmatprep.subr.mxu0 0.0
      %3298 = vmatpush1.msra.mxu0 %v2271
      %3299 = vmatprep.subr.mxu0 0.0
      %3300 = vmatpush1.msra.mxu0 %v2268
      %3301 = vmatprep.subr.mxu0 0.0
      %3302 = vmatpush1.msra.mxu0 %v2265
      %3303 = vmatprep.subr.mxu0 0.0
      %3304 = vmatpush1.msra.mxu0 %v2262
      %3305 = vmatprep.subr.mxu0 0.0
      %3306 = vmatpush1.msra.mxu0 %v2259
      %3307 = vmatprep.subr.mxu0 0.0
      %3308 = vmatpush2.msra.mxu0 0.0
      %3309 = vmatprep.subr.mxu0 0.0
      %3310 = vmatpush2.msra.mxu0 0.0
      %3311 = vmatprep.subr.mxu0 0.0
      %3312 = vmatpush2.msra.mxu0 0.0
      %3313 = vmatprep.subr.mxu0 0.0
      %3314 = vmatpush2.msra.mxu0 0.0
      %3315 = vmatprep.subr.mxu0 0.0
      %3316 = vmatpush2.msra.mxu0 0.0
      %3317 = vmatprep.subr.mxu0 0.0
      %3318 = vmatpush2.msra.mxu0 0.0
      %3319 = vmatprep.subr.mxu0 0.0
      %3320 = vmatpush2.msra.mxu0 0.0
      %3321 = vmatprep.subr.mxu0 0.0
      %3322 = vmatpush2.msra.mxu0 0.0
      %3323 = vmatprep.subr.mxu0 0.0
      %3324 = vmatpush2.msra.mxu0 0.0
      %3325 = vmatprep.subr.mxu0 0.0
      %3326 = vmatpush2.msra.mxu0 0.0
      %3327 = vmatprep.subr.mxu0 0.0
      %3328 = vmatpush2.msra.mxu0 0.0
      %3329 = vmatprep.subr.mxu0 0.0
      %3330 = vmatpush2.msra.mxu0 0.0
      %3331 = vmatprep.subr.mxu0 0.0
      %3332 = vmatpush2.msra.mxu0 0.0
      %3333 = vmatprep.subr.mxu0 0.0
      %3334 = vmatpush2.msra.mxu0 0.0
      %3335 = vmatprep.subr.mxu0 0.0
      %3336 = vmatpush2.msra.mxu0 0.0
      %3337 = vmatprep.subr.mxu0 0.0
      %3338 = vmatpush2.msra.mxu0 0.0
      %3339 = vmatprep.mubr.f32.mxu0 0.0
      %3340 = vmatmul.mubr.f32.gmra.mxu0 %v3190
      %v3341 = vpop.f32.mrf.mxu0
      %v3342 = vadd.f32 %v2325, %v3341
      %v3343 = vpop.f32.mrf.mxu0
      %3344 = vdwg.mxu0
      %v3345 = vadd.f32 %v3201, %v3271
      %v3346 = vxor.u32 %v3345, 2147483648
      %v3347 = vmul.f32 %v3346, 1.442695
      %v3348 = vpow.pop %v3347
      %v3349 = vadd.f32 %v3348, 1.0
      %v3350 = vrcp.pop %v3349
      %v3351 = vmul.f32 1.0, %v3350
      %v3352 = vadd.f32 %v3202, %v3273
      %v3353 = vxor.u32 %v3352, 2147483648
      %v3354 = vmul.f32 %v3353, 1.442695
      %v3355 = vpow.pop %v3354
      %v3356 = vadd.f32 %v3355, 1.0
      %v3357 = vrcp.pop %v3356
      %v3358 = vmul.f32 1.0, %v3357
      %v3359 = vmul.f32 %v3351, %v3342
      %v3360 = vadd.f32 %v3203, %v3359
      %v3361 = vtanh.pop %v3360
      %v3362 = vsub.f32 1.0, %v3358
      %v3363 = vmul.f32 %v3362, %v3361
      %v3364 = vmul.f32 %v3358, %v3190
      %v3365 = vadd.f32 %v3363, %v3364
      %s3366 = sadd.s32 %s2307, 6
      %v3367 = vstv %s3366
      %vm3368 = vcmp.eq.s32.totalorder %v2306, %v3367
      %v3369 = vsel %vm3368, 1, 0
      %3370 = vset.pattern.permute.xlu0 0
      %3371 = vperm.xlu0 %3370, %v3369
      %v3372 = vpop.permute.xlu0 %3371
      %vm3373 = vcmp.eq.s32.totalorder %v3372, 1
      %v3374 = vsel %vm3373, %v3365, %v3199
      %s3375 = scalar_lea.vmem [#allocation2], 144
      %v3376 = vld [vmem:[%s3375] sm:$0xff]
      %v3377 = vld [vmem:[%s3375 + $0x8] sm:$0xff]
      %v3378 = vld [vmem:[%s3375 + $0x10] sm:$0xff]
      %3379 = vmatprep.subr.mxu0 %v2303
      %3380 = vmatpush1.msra.mxu0 %v2302
      %3381 = vmatprep.subr.mxu0 %v2300
      %3382 = vmatpush1.msra.mxu0 %v2299
      %3383 = vmatprep.subr.mxu0 %v2297
      %3384 = vmatpush1.msra.mxu0 %v2296
      %3385 = vmatprep.subr.mxu0 %v2294
      %3386 = vmatpush1.msra.mxu0 %v2293
      %3387 = vmatprep.subr.mxu0 %v2291
      %3388 = vmatpush1.msra.mxu0 %v2290
      %3389 = vmatprep.subr.mxu0 %v2288
      %3390 = vmatpush1.msra.mxu0 %v2287
      %3391 = vmatprep.subr.mxu0 %v2285
      %3392 = vmatpush1.msra.mxu0 %v2284
      %3393 = vmatprep.subr.mxu0 %v2282
      %3394 = vmatpush1.msra.mxu0 %v2281
      %3395 = vmatprep.subr.mxu0 %v2279
      %3396 = vmatpush1.msra.mxu0 %v2278
      %3397 = vmatprep.subr.mxu0 %v2276
      %3398 = vmatpush1.msra.mxu0 %v2275
      %3399 = vmatprep.subr.mxu0 %v2273
      %3400 = vmatpush1.msra.mxu0 %v2272
      %3401 = vmatprep.subr.mxu0 %v2270
      %3402 = vmatpush1.msra.mxu0 %v2269
      %3403 = vmatprep.subr.mxu0 %v2267
      %3404 = vmatpush1.msra.mxu0 %v2266
      %3405 = vmatprep.subr.mxu0 %v2264
      %3406 = vmatpush1.msra.mxu0 %v2263
      %3407 = vmatprep.subr.mxu0 %v2261
      %3408 = vmatpush1.msra.mxu0 %v2260
      %3409 = vmatprep.subr.mxu0 %v2258
      %3410 = vmatpush1.msra.mxu0 %v2257
      %3411 = vmatprep.subr.mxu0 0.0
      %3412 = vmatpush2.msra.mxu0 0.0
      %3413 = vmatprep.subr.mxu0 0.0
      %3414 = vmatpush2.msra.mxu0 0.0
      %3415 = vmatprep.subr.mxu0 0.0
      %3416 = vmatpush2.msra.mxu0 0.0
      %3417 = vmatprep.subr.mxu0 0.0
      %3418 = vmatpush2.msra.mxu0 0.0
      %3419 = vmatprep.subr.mxu0 0.0
      %3420 = vmatpush2.msra.mxu0 0.0
      %3421 = vmatprep.subr.mxu0 0.0
      %3422 = vmatpush2.msra.mxu0 0.0
      %3423 = vmatprep.subr.mxu0 0.0
      %3424 = vmatpush2.msra.mxu0 0.0
      %3425 = vmatprep.subr.mxu0 0.0
      %3426 = vmatpush2.msra.mxu0 0.0
      %3427 = vmatprep.subr.mxu0 0.0
      %3428 = vmatpush2.msra.mxu0 0.0
      %3429 = vmatprep.subr.mxu0 0.0
      %3430 = vmatpush2.msra.mxu0 0.0
      %3431 = vmatprep.subr.mxu0 0.0
      %3432 = vmatpush2.msra.mxu0 0.0
      %3433 = vmatprep.subr.mxu0 0.0
      %3434 = vmatpush2.msra.mxu0 0.0
      %3435 = vmatprep.subr.mxu0 0.0
      %3436 = vmatpush2.msra.mxu0 0.0
      %3437 = vmatprep.subr.mxu0 0.0
      %3438 = vmatpush2.msra.mxu0 0.0
      %3439 = vmatprep.subr.mxu0 0.0
      %3440 = vmatpush2.msra.mxu0 0.0
      %3441 = vmatprep.subr.mxu0 0.0
      %3442 = vmatpush2.msra.mxu0 0.0
      %3443 = vmatprep.mubr.f32.mxu0 0.0
      %3444 = vmatmul.mubr.f32.gmra.mxu0 %v3365
      %v3445 = vpop.f32.mrf.mxu0
      %v3446 = vadd.f32 %v2317, %v3445
      %v3447 = vpop.f32.mrf.mxu0
      %v3448 = vadd.f32 %v2321, %v3447
      %3449 = vdwg.mxu0
      %3450 = vmatprep.subr.mxu0 0.0
      %3451 = vmatpush1.msra.mxu0 %v2304
      %3452 = vmatprep.subr.mxu0 0.0
      %3453 = vmatpush1.msra.mxu0 %v2301
      %3454 = vmatprep.subr.mxu0 0.0
      %3455 = vmatpush1.msra.mxu0 %v2298
      %3456 = vmatprep.subr.mxu0 0.0
      %3457 = vmatpush1.msra.mxu0 %v2295
      %3458 = vmatprep.subr.mxu0 0.0
      %3459 = vmatpush1.msra.mxu0 %v2292
      %3460 = vmatprep.subr.mxu0 0.0
      %3461 = vmatpush1.msra.mxu0 %v2289
      %3462 = vmatprep.subr.mxu0 0.0
      %3463 = vmatpush1.msra.mxu0 %v2286
      %3464 = vmatprep.subr.mxu0 0.0
      %3465 = vmatpush1.msra.mxu0 %v2283
      %3466 = vmatprep.subr.mxu0 0.0
      %3467 = vmatpush1.msra.mxu0 %v2280
      %3468 = vmatprep.subr.mxu0 0.0
      %3469 = vmatpush1.msra.mxu0 %v2277
      %3470 = vmatprep.subr.mxu0 0.0
      %3471 = vmatpush1.msra.mxu0 %v2274
      %3472 = vmatprep.subr.mxu0 0.0
      %3473 = vmatpush1.msra.mxu0 %v2271
      %3474 = vmatprep.subr.mxu0 0.0
      %3475 = vmatpush1.msra.mxu0 %v2268
      %3476 = vmatprep.subr.mxu0 0.0
      %3477 = vmatpush1.msra.mxu0 %v2265
      %3478 = vmatprep.subr.mxu0 0.0
      %3479 = vmatpush1.msra.mxu0 %v2262
      %3480 = vmatprep.subr.mxu0 0.0
      %3481 = vmatpush1.msra.mxu0 %v2259
      %3482 = vmatprep.subr.mxu0 0.0
      %3483 = vmatpush2.msra.mxu0 0.0
      %3484 = vmatprep.subr.mxu0 0.0
      %3485 = vmatpush2.msra.mxu0 0.0
      %3486 = vmatprep.subr.mxu0 0.0
      %3487 = vmatpush2.msra.mxu0 0.0
      %3488 = vmatprep.subr.mxu0 0.0
      %3489 = vmatpush2.msra.mxu0 0.0
      %3490 = vmatprep.subr.mxu0 0.0
      %3491 = vmatpush2.msra.mxu0 0.0
      %3492 = vmatprep.subr.mxu0 0.0
      %3493 = vmatpush2.msra.mxu0 0.0
      %3494 = vmatprep.subr.mxu0 0.0
      %3495 = vmatpush2.msra.mxu0 0.0
      %3496 = vmatprep.subr.mxu0 0.0
      %3497 = vmatpush2.msra.mxu0 0.0
      %3498 = vmatprep.subr.mxu0 0.0
      %3499 = vmatpush2.msra.mxu0 0.0
      %3500 = vmatprep.subr.mxu0 0.0
      %3501 = vmatpush2.msra.mxu0 0.0
      %3502 = vmatprep.subr.mxu0 0.0
      %3503 = vmatpush2.msra.mxu0 0.0
      %3504 = vmatprep.subr.mxu0 0.0
      %3505 = vmatpush2.msra.mxu0 0.0
      %3506 = vmatprep.subr.mxu0 0.0
      %3507 = vmatpush2.msra.mxu0 0.0
      %3508 = vmatprep.subr.mxu0 0.0
      %3509 = vmatpush2.msra.mxu0 0.0
      %3510 = vmatprep.subr.mxu0 0.0
      %3511 = vmatpush2.msra.mxu0 0.0
      %3512 = vmatprep.subr.mxu0 0.0
      %3513 = vmatpush2.msra.mxu0 0.0
      %3514 = vmatprep.mubr.f32.mxu0 0.0
      %3515 = vmatmul.mubr.f32.gmra.mxu0 %v3365
      %v3516 = vpop.f32.mrf.mxu0
      %v3517 = vadd.f32 %v2325, %v3516
      %v3518 = vpop.f32.mrf.mxu0
      %3519 = vdwg.mxu0
      %v3520 = vadd.f32 %v3376, %v3446
      %v3521 = vxor.u32 %v3520, 2147483648
      %v3522 = vmul.f32 %v3521, 1.442695
      %v3523 = vpow.pop %v3522
      %v3524 = vadd.f32 %v3523, 1.0
      %v3525 = vrcp.pop %v3524
      %v3526 = vmul.f32 1.0, %v3525
      %v3527 = vadd.f32 %v3377, %v3448
      %v3528 = vxor.u32 %v3527, 2147483648
      %v3529 = vmul.f32 %v3528, 1.442695
      %v3530 = vpow.pop %v3529
      %v3531 = vadd.f32 %v3530, 1.0
      %v3532 = vrcp.pop %v3531
      %v3533 = vmul.f32 1.0, %v3532
      %v3534 = vmul.f32 %v3526, %v3517
      %v3535 = vadd.f32 %v3378, %v3534
      %v3536 = vtanh.pop %v3535
      %v3537 = vsub.f32 1.0, %v3533
      %v3538 = vmul.f32 %v3537, %v3536
      %v3539 = vmul.f32 %v3533, %v3365
      %v3540 = vadd.f32 %v3538, %v3539
      %s3541 = sadd.s32 %s2307, 7
      %v3542 = vstv %s3541
      %vm3543 = vcmp.eq.s32.totalorder %v2306, %v3542
      %v3544 = vsel %vm3543, 1, 0
      %3545 = vset.pattern.permute.xlu0 0
      %3546 = vperm.xlu0 %3545, %v3544
      %v3547 = vpop.permute.xlu0 %3546
      %vm3548 = vcmp.eq.s32.totalorder %v3547, 1
      %v3549 = vsel %vm3548, %v3540, %v3374
      %s3550 = scalar_lea.vmem [#allocation2], 168
      %v3551 = vld [vmem:[%s3550] sm:$0xff]
      %v3552 = vld [vmem:[%s3550 + $0x8] sm:$0xff]
      %v3553 = vld [vmem:[%s3550 + $0x10] sm:$0xff]
      %3554 = vmatprep.subr.mxu0 %v2303
      %3555 = vmatpush1.msra.mxu0 %v2302
      %3556 = vmatprep.subr.mxu0 %v2300
      %3557 = vmatpush1.msra.mxu0 %v2299
      %3558 = vmatprep.subr.mxu0 %v2297
      %3559 = vmatpush1.msra.mxu0 %v2296
      %3560 = vmatprep.subr.mxu0 %v2294
      %3561 = vmatpush1.msra.mxu0 %v2293
      %3562 = vmatprep.subr.mxu0 %v2291
      %3563 = vmatpush1.msra.mxu0 %v2290
      %3564 = vmatprep.subr.mxu0 %v2288
      %3565 = vmatpush1.msra.mxu0 %v2287
      %3566 = vmatprep.subr.mxu0 %v2285
      %3567 = vmatpush1.msra.mxu0 %v2284
      %3568 = vmatprep.subr.mxu0 %v2282
      %3569 = vmatpush1.msra.mxu0 %v2281
      %3570 = vmatprep.subr.mxu0 %v2279
      %3571 = vmatpush1.msra.mxu0 %v2278
      %3572 = vmatprep.subr.mxu0 %v2276
      %3573 = vmatpush1.msra.mxu0 %v2275
      %3574 = vmatprep.subr.mxu0 %v2273
      %3575 = vmatpush1.msra.mxu0 %v2272
      %3576 = vmatprep.subr.mxu0 %v2270
      %3577 = vmatpush1.msra.mxu0 %v2269
      %3578 = vmatprep.subr.mxu0 %v2267
      %3579 = vmatpush1.msra.mxu0 %v2266
      %3580 = vmatprep.subr.mxu0 %v2264
      %3581 = vmatpush1.msra.mxu0 %v2263
      %3582 = vmatprep.subr.mxu0 %v2261
      %3583 = vmatpush1.msra.mxu0 %v2260
      %3584 = vmatprep.subr.mxu0 %v2258
      %3585 = vmatpush1.msra.mxu0 %v2257
      %3586 = vmatprep.subr.mxu0 0.0
      %3587 = vmatpush2.msra.mxu0 0.0
      %3588 = vmatprep.subr.mxu0 0.0
      %3589 = vmatpush2.msra.mxu0 0.0
      %3590 = vmatprep.subr.mxu0 0.0
      %3591 = vmatpush2.msra.mxu0 0.0
      %3592 = vmatprep.subr.mxu0 0.0
      %3593 = vmatpush2.msra.mxu0 0.0
      %3594 = vmatprep.subr.mxu0 0.0
      %3595 = vmatpush2.msra.mxu0 0.0
      %3596 = vmatprep.subr.mxu0 0.0
      %3597 = vmatpush2.msra.mxu0 0.0
      %3598 = vmatprep.subr.mxu0 0.0
      %3599 = vmatpush2.msra.mxu0 0.0
      %3600 = vmatprep.subr.mxu0 0.0
      %3601 = vmatpush2.msra.mxu0 0.0
      %3602 = vmatprep.subr.mxu0 0.0
      %3603 = vmatpush2.msra.mxu0 0.0
      %3604 = vmatprep.subr.mxu0 0.0
      %3605 = vmatpush2.msra.mxu0 0.0
      %3606 = vmatprep.subr.mxu0 0.0
      %3607 = vmatpush2.msra.mxu0 0.0
      %3608 = vmatprep.subr.mxu0 0.0
      %3609 = vmatpush2.msra.mxu0 0.0
      %3610 = vmatprep.subr.mxu0 0.0
      %3611 = vmatpush2.msra.mxu0 0.0
      %3612 = vmatprep.subr.mxu0 0.0
      %3613 = vmatpush2.msra.mxu0 0.0
      %3614 = vmatprep.subr.mxu0 0.0
      %3615 = vmatpush2.msra.mxu0 0.0
      %3616 = vmatprep.subr.mxu0 0.0
      %3617 = vmatpush2.msra.mxu0 0.0
      %3618 = vmatprep.mubr.f32.mxu0 0.0
      %3619 = vmatmul.mubr.f32.gmra.mxu0 %v3540
      %v3620 = vpop.f32.mrf.mxu0
      %v3621 = vadd.f32 %v2317, %v3620
      %v3622 = vpop.f32.mrf.mxu0
      %v3623 = vadd.f32 %v2321, %v3622
      %3624 = vdwg.mxu0
      %3625 = vmatprep.subr.mxu0 0.0
      %3626 = vmatpush1.msra.mxu0 %v2304
      %3627 = vmatprep.subr.mxu0 0.0
      %3628 = vmatpush1.msra.mxu0 %v2301
      %3629 = vmatprep.subr.mxu0 0.0
      %3630 = vmatpush1.msra.mxu0 %v2298
      %3631 = vmatprep.subr.mxu0 0.0
      %3632 = vmatpush1.msra.mxu0 %v2295
      %3633 = vmatprep.subr.mxu0 0.0
      %3634 = vmatpush1.msra.mxu0 %v2292
      %3635 = vmatprep.subr.mxu0 0.0
      %3636 = vmatpush1.msra.mxu0 %v2289
      %3637 = vmatprep.subr.mxu0 0.0
      %3638 = vmatpush1.msra.mxu0 %v2286
      %3639 = vmatprep.subr.mxu0 0.0
      %3640 = vmatpush1.msra.mxu0 %v2283
      %3641 = vmatprep.subr.mxu0 0.0
      %3642 = vmatpush1.msra.mxu0 %v2280
      %3643 = vmatprep.subr.mxu0 0.0
      %3644 = vmatpush1.msra.mxu0 %v2277
      %3645 = vmatprep.subr.mxu0 0.0
      %3646 = vmatpush1.msra.mxu0 %v2274
      %3647 = vmatprep.subr.mxu0 0.0
      %3648 = vmatpush1.msra.mxu0 %v2271
      %3649 = vmatprep.subr.mxu0 0.0
      %3650 = vmatpush1.msra.mxu0 %v2268
      %3651 = vmatprep.subr.mxu0 0.0
      %3652 = vmatpush1.msra.mxu0 %v2265
      %3653 = vmatprep.subr.mxu0 0.0
      %3654 = vmatpush1.msra.mxu0 %v2262
      %3655 = vmatprep.subr.mxu0 0.0
      %3656 = vmatpush1.msra.mxu0 %v2259
      %3657 = vmatprep.subr.mxu0 0.0
      %3658 = vmatpush2.msra.mxu0 0.0
      %3659 = vmatprep.subr.mxu0 0.0
      %3660 = vmatpush2.msra.mxu0 0.0
      %3661 = vmatprep.subr.mxu0 0.0
      %3662 = vmatpush2.msra.mxu0 0.0
      %3663 = vmatprep.subr.mxu0 0.0
      %3664 = vmatpush2.msra.mxu0 0.0
      %3665 = vmatprep.subr.mxu0 0.0
      %3666 = vmatpush2.msra.mxu0 0.0
      %3667 = vmatprep.subr.mxu0 0.0
      %3668 = vmatpush2.msra.mxu0 0.0
      %3669 = vmatprep.subr.mxu0 0.0
      %3670 = vmatpush2.msra.mxu0 0.0
      %3671 = vmatprep.subr.mxu0 0.0
      %3672 = vmatpush2.msra.mxu0 0.0
      %3673 = vmatprep.subr.mxu0 0.0
      %3674 = vmatpush2.msra.mxu0 0.0
      %3675 = vmatprep.subr.mxu0 0.0
      %3676 = vmatpush2.msra.mxu0 0.0
      %3677 = vmatprep.subr.mxu0 0.0
      %3678 = vmatpush2.msra.mxu0 0.0
      %3679 = vmatprep.subr.mxu0 0.0
      %3680 = vmatpush2.msra.mxu0 0.0
      %3681 = vmatprep.subr.mxu0 0.0
      %3682 = vmatpush2.msra.mxu0 0.0
      %3683 = vmatprep.subr.mxu0 0.0
      %3684 = vmatpush2.msra.mxu0 0.0
      %3685 = vmatprep.subr.mxu0 0.0
      %3686 = vmatpush2.msra.mxu0 0.0
      %3687 = vmatprep.subr.mxu0 0.0
      %3688 = vmatpush2.msra.mxu0 0.0
      %3689 = vmatprep.mubr.f32.mxu0 0.0
      %3690 = vmatmul.mubr.f32.gmra.mxu0 %v3540
      %v3691 = vpop.f32.mrf.mxu0
      %v3692 = vadd.f32 %v2325, %v3691
      %v3693 = vpop.f32.mrf.mxu0
      %3694 = vdwg.mxu0
      %v3695 = vadd.f32 %v3551, %v3621
      %v3696 = vxor.u32 %v3695, 2147483648
      %v3697 = vmul.f32 %v3696, 1.442695
      %v3698 = vpow.pop %v3697
      %v3699 = vadd.f32 %v3698, 1.0
      %v3700 = vrcp.pop %v3699
      %v3701 = vmul.f32 1.0, %v3700
      %v3702 = vadd.f32 %v3552, %v3623
      %v3703 = vxor.u32 %v3702, 2147483648
      %v3704 = vmul.f32 %v3703, 1.442695
      %v3705 = vpow.pop %v3704
      %v3706 = vadd.f32 %v3705, 1.0
      %v3707 = vrcp.pop %v3706
      %v3708 = vmul.f32 1.0, %v3707
      %v3709 = vmul.f32 %v3701, %v3692
      %v3710 = vadd.f32 %v3553, %v3709
      %v3711 = vtanh.pop %v3710
      %v3712 = vsub.f32 1.0, %v3708
      %v3713 = vmul.f32 %v3712, %v3711
      %v3714 = vmul.f32 %v3708, %v3540
      %v3715 = vadd.f32 %v3713, %v3714
      %s3716 = sadd.s32 %s2307, 8
      %v3717 = vstv %s3716
      %vm3718 = vcmp.eq.s32.totalorder %v2306, %v3717
      %v3719 = vsel %vm3718, 1, 0
      %3720 = vset.pattern.permute.xlu0 0
      %3721 = vperm.xlu0 %3720, %v3719
      %v3722 = vpop.permute.xlu0 %3721
      %vm3723 = vcmp.eq.s32.totalorder %v3722, 1
      %v3724 = vsel %vm3723, %v3715, %v3549
      %s3725 = scalar_lea.vmem [#allocation2], 192
      %v3726 = vld [vmem:[%s3725] sm:$0xff]
      %v3727 = vld [vmem:[%s3725 + $0x8] sm:$0xff]
      %v3728 = vld [vmem:[%s3725 + $0x10] sm:$0xff]
      %3729 = vmatprep.subr.mxu0 %v2303
      %3730 = vmatpush1.msra.mxu0 %v2302
      %3731 = vmatprep.subr.mxu0 %v2300
      %3732 = vmatpush1.msra.mxu0 %v2299
      %3733 = vmatprep.subr.mxu0 %v2297
      %3734 = vmatpush1.msra.mxu0 %v2296
      %3735 = vmatprep.subr.mxu0 %v2294
      %3736 = vmatpush1.msra.mxu0 %v2293
      %3737 = vmatprep.subr.mxu0 %v2291
      %3738 = vmatpush1.msra.mxu0 %v2290
      %3739 = vmatprep.subr.mxu0 %v2288
      %3740 = vmatpush1.msra.mxu0 %v2287
      %3741 = vmatprep.subr.mxu0 %v2285
      %3742 = vmatpush1.msra.mxu0 %v2284
      %3743 = vmatprep.subr.mxu0 %v2282
      %3744 = vmatpush1.msra.mxu0 %v2281
      %3745 = vmatprep.subr.mxu0 %v2279
      %3746 = vmatpush1.msra.mxu0 %v2278
      %3747 = vmatprep.subr.mxu0 %v2276
      %3748 = vmatpush1.msra.mxu0 %v2275
      %3749 = vmatprep.subr.mxu0 %v2273
      %3750 = vmatpush1.msra.mxu0 %v2272
      %3751 = vmatprep.subr.mxu0 %v2270
      %3752 = vmatpush1.msra.mxu0 %v2269
      %3753 = vmatprep.subr.mxu0 %v2267
      %3754 = vmatpush1.msra.mxu0 %v2266
      %3755 = vmatprep.subr.mxu0 %v2264
      %3756 = vmatpush1.msra.mxu0 %v2263
      %3757 = vmatprep.subr.mxu0 %v2261
      %3758 = vmatpush1.msra.mxu0 %v2260
      %3759 = vmatprep.subr.mxu0 %v2258
      %3760 = vmatpush1.msra.mxu0 %v2257
      %3761 = vmatprep.subr.mxu0 0.0
      %3762 = vmatpush2.msra.mxu0 0.0
      %3763 = vmatprep.subr.mxu0 0.0
      %3764 = vmatpush2.msra.mxu0 0.0
      %3765 = vmatprep.subr.mxu0 0.0
      %3766 = vmatpush2.msra.mxu0 0.0
      %3767 = vmatprep.subr.mxu0 0.0
      %3768 = vmatpush2.msra.mxu0 0.0
      %3769 = vmatprep.subr.mxu0 0.0
      %3770 = vmatpush2.msra.mxu0 0.0
      %3771 = vmatprep.subr.mxu0 0.0
      %3772 = vmatpush2.msra.mxu0 0.0
      %3773 = vmatprep.subr.mxu0 0.0
      %3774 = vmatpush2.msra.mxu0 0.0
      %3775 = vmatprep.subr.mxu0 0.0
      %3776 = vmatpush2.msra.mxu0 0.0
      %3777 = vmatprep.subr.mxu0 0.0
      %3778 = vmatpush2.msra.mxu0 0.0
      %3779 = vmatprep.subr.mxu0 0.0
      %3780 = vmatpush2.msra.mxu0 0.0
      %3781 = vmatprep.subr.mxu0 0.0
      %3782 = vmatpush2.msra.mxu0 0.0
      %3783 = vmatprep.subr.mxu0 0.0
      %3784 = vmatpush2.msra.mxu0 0.0
      %3785 = vmatprep.subr.mxu0 0.0
      %3786 = vmatpush2.msra.mxu0 0.0
      %3787 = vmatprep.subr.mxu0 0.0
      %3788 = vmatpush2.msra.mxu0 0.0
      %3789 = vmatprep.subr.mxu0 0.0
      %3790 = vmatpush2.msra.mxu0 0.0
      %3791 = vmatprep.subr.mxu0 0.0
      %3792 = vmatpush2.msra.mxu0 0.0
      %3793 = vmatprep.mubr.f32.mxu0 0.0
      %3794 = vmatmul.mubr.f32.gmra.mxu0 %v3715
      %v3795 = vpop.f32.mrf.mxu0
      %v3796 = vadd.f32 %v2317, %v3795
      %v3797 = vpop.f32.mrf.mxu0
      %v3798 = vadd.f32 %v2321, %v3797
      %3799 = vdwg.mxu0
      %3800 = vmatprep.subr.mxu0 0.0
      %3801 = vmatpush1.msra.mxu0 %v2304
      %3802 = vmatprep.subr.mxu0 0.0
      %3803 = vmatpush1.msra.mxu0 %v2301
      %3804 = vmatprep.subr.mxu0 0.0
      %3805 = vmatpush1.msra.mxu0 %v2298
      %3806 = vmatprep.subr.mxu0 0.0
      %3807 = vmatpush1.msra.mxu0 %v2295
      %3808 = vmatprep.subr.mxu0 0.0
      %3809 = vmatpush1.msra.mxu0 %v2292
      %3810 = vmatprep.subr.mxu0 0.0
      %3811 = vmatpush1.msra.mxu0 %v2289
      %3812 = vmatprep.subr.mxu0 0.0
      %3813 = vmatpush1.msra.mxu0 %v2286
      %3814 = vmatprep.subr.mxu0 0.0
      %3815 = vmatpush1.msra.mxu0 %v2283
      %3816 = vmatprep.subr.mxu0 0.0
      %3817 = vmatpush1.msra.mxu0 %v2280
      %3818 = vmatprep.subr.mxu0 0.0
      %3819 = vmatpush1.msra.mxu0 %v2277
      %3820 = vmatprep.subr.mxu0 0.0
      %3821 = vmatpush1.msra.mxu0 %v2274
      %3822 = vmatprep.subr.mxu0 0.0
      %3823 = vmatpush1.msra.mxu0 %v2271
      %3824 = vmatprep.subr.mxu0 0.0
      %3825 = vmatpush1.msra.mxu0 %v2268
      %3826 = vmatprep.subr.mxu0 0.0
      %3827 = vmatpush1.msra.mxu0 %v2265
      %3828 = vmatprep.subr.mxu0 0.0
      %3829 = vmatpush1.msra.mxu0 %v2262
      %3830 = vmatprep.subr.mxu0 0.0
      %3831 = vmatpush1.msra.mxu0 %v2259
      %3832 = vmatprep.subr.mxu0 0.0
      %3833 = vmatpush2.msra.mxu0 0.0
      %3834 = vmatprep.subr.mxu0 0.0
      %3835 = vmatpush2.msra.mxu0 0.0
      %3836 = vmatprep.subr.mxu0 0.0
      %3837 = vmatpush2.msra.mxu0 0.0
      %3838 = vmatprep.subr.mxu0 0.0
      %3839 = vmatpush2.msra.mxu0 0.0
      %3840 = vmatprep.subr.mxu0 0.0
      %3841 = vmatpush2.msra.mxu0 0.0
      %3842 = vmatprep.subr.mxu0 0.0
      %3843 = vmatpush2.msra.mxu0 0.0
      %3844 = vmatprep.subr.mxu0 0.0
      %3845 = vmatpush2.msra.mxu0 0.0
      %3846 = vmatprep.subr.mxu0 0.0
      %3847 = vmatpush2.msra.mxu0 0.0
      %3848 = vmatprep.subr.mxu0 0.0
      %3849 = vmatpush2.msra.mxu0 0.0
      %3850 = vmatprep.subr.mxu0 0.0
      %3851 = vmatpush2.msra.mxu0 0.0
      %3852 = vmatprep.subr.mxu0 0.0
      %3853 = vmatpush2.msra.mxu0 0.0
      %3854 = vmatprep.subr.mxu0 0.0
      %3855 = vmatpush2.msra.mxu0 0.0
      %3856 = vmatprep.subr.mxu0 0.0
      %3857 = vmatpush2.msra.mxu0 0.0
      %3858 = vmatprep.subr.mxu0 0.0
      %3859 = vmatpush2.msra.mxu0 0.0
      %3860 = vmatprep.subr.mxu0 0.0
      %3861 = vmatpush2.msra.mxu0 0.0
      %3862 = vmatprep.subr.mxu0 0.0
      %3863 = vmatpush2.msra.mxu0 0.0
      %3864 = vmatprep.mubr.f32.mxu0 0.0
      %3865 = vmatmul.mubr.f32.gmra.mxu0 %v3715
      %v3866 = vpop.f32.mrf.mxu0
      %v3867 = vadd.f32 %v2325, %v3866
      %v3868 = vpop.f32.mrf.mxu0
      %3869 = vdwg.mxu0
      %v3870 = vadd.f32 %v3726, %v3796
      %v3871 = vxor.u32 %v3870, 2147483648
      %v3872 = vmul.f32 %v3871, 1.442695
      %v3873 = vpow.pop %v3872
      %v3874 = vadd.f32 %v3873, 1.0
      %v3875 = vrcp.pop %v3874
      %v3876 = vmul.f32 1.0, %v3875
      %v3877 = vadd.f32 %v3727, %v3798
      %v3878 = vxor.u32 %v3877, 2147483648
      %v3879 = vmul.f32 %v3878, 1.442695
      %v3880 = vpow.pop %v3879
      %v3881 = vadd.f32 %v3880, 1.0
      %v3882 = vrcp.pop %v3881
      %v3883 = vmul.f32 1.0, %v3882
      %v3884 = vmul.f32 %v3876, %v3867
      %v3885 = vadd.f32 %v3728, %v3884
      %v3886 = vtanh.pop %v3885
      %v3887 = vsub.f32 1.0, %v3883
      %v3888 = vmul.f32 %v3887, %v3886
      %v3889 = vmul.f32 %v3883, %v3715
      %v3890 = vadd.f32 %v3888, %v3889
      %s3891 = sadd.s32 %s2307, 9
      %v3892 = vstv %s3891
      %vm3893 = vcmp.eq.s32.totalorder %v2306, %v3892
      %v3894 = vsel %vm3893, 1, 0
      %3895 = vset.pattern.permute.xlu0 0
      %3896 = vperm.xlu0 %3895, %v3894
      %v3897 = vpop.permute.xlu0 %3896
      %vm3898 = vcmp.eq.s32.totalorder %v3897, 1
      %v3899 = vsel %vm3898, %v3890, %v3724
      %s3900 = scalar_lea.vmem [#allocation2], 216
      %v3901 = vld [vmem:[%s3900] sm:$0xff]
      %v3902 = vld [vmem:[%s3900 + $0x8] sm:$0xff]
      %v3903 = vld [vmem:[%s3900 + $0x10] sm:$0xff]
      %3904 = vmatprep.subr.mxu0 %v2303
      %3905 = vmatpush1.msra.mxu0 %v2302
      %3906 = vmatprep.subr.mxu0 %v2300
      %3907 = vmatpush1.msra.mxu0 %v2299
      %3908 = vmatprep.subr.mxu0 %v2297
      %3909 = vmatpush1.msra.mxu0 %v2296
      %3910 = vmatprep.subr.mxu0 %v2294
      %3911 = vmatpush1.msra.mxu0 %v2293
      %3912 = vmatprep.subr.mxu0 %v2291
      %3913 = vmatpush1.msra.mxu0 %v2290
      %3914 = vmatprep.subr.mxu0 %v2288
      %3915 = vmatpush1.msra.mxu0 %v2287
      %3916 = vmatprep.subr.mxu0 %v2285
      %3917 = vmatpush1.msra.mxu0 %v2284
      %3918 = vmatprep.subr.mxu0 %v2282
      %3919 = vmatpush1.msra.mxu0 %v2281
      %3920 = vmatprep.subr.mxu0 %v2279
      %3921 = vmatpush1.msra.mxu0 %v2278
      %3922 = vmatprep.subr.mxu0 %v2276
      %3923 = vmatpush1.msra.mxu0 %v2275
      %3924 = vmatprep.subr.mxu0 %v2273
      %3925 = vmatpush1.msra.mxu0 %v2272
      %3926 = vmatprep.subr.mxu0 %v2270
      %3927 = vmatpush1.msra.mxu0 %v2269
      %3928 = vmatprep.subr.mxu0 %v2267
      %3929 = vmatpush1.msra.mxu0 %v2266
      %3930 = vmatprep.subr.mxu0 %v2264
      %3931 = vmatpush1.msra.mxu0 %v2263
      %3932 = vmatprep.subr.mxu0 %v2261
      %3933 = vmatpush1.msra.mxu0 %v2260
      %3934 = vmatprep.subr.mxu0 %v2258
      %3935 = vmatpush1.msra.mxu0 %v2257
      %3936 = vmatprep.subr.mxu0 0.0
      %3937 = vmatpush2.msra.mxu0 0.0
      %3938 = vmatprep.subr.mxu0 0.0
      %3939 = vmatpush2.msra.mxu0 0.0
      %3940 = vmatprep.subr.mxu0 0.0
      %3941 = vmatpush2.msra.mxu0 0.0
      %3942 = vmatprep.subr.mxu0 0.0
      %3943 = vmatpush2.msra.mxu0 0.0
      %3944 = vmatprep.subr.mxu0 0.0
      %3945 = vmatpush2.msra.mxu0 0.0
      %3946 = vmatprep.subr.mxu0 0.0
      %3947 = vmatpush2.msra.mxu0 0.0
      %3948 = vmatprep.subr.mxu0 0.0
      %3949 = vmatpush2.msra.mxu0 0.0
      %3950 = vmatprep.subr.mxu0 0.0
      %3951 = vmatpush2.msra.mxu0 0.0
      %3952 = vmatprep.subr.mxu0 0.0
      %3953 = vmatpush2.msra.mxu0 0.0
      %3954 = vmatprep.subr.mxu0 0.0
      %3955 = vmatpush2.msra.mxu0 0.0
      %3956 = vmatprep.subr.mxu0 0.0
      %3957 = vmatpush2.msra.mxu0 0.0
      %3958 = vmatprep.subr.mxu0 0.0
      %3959 = vmatpush2.msra.mxu0 0.0
      %3960 = vmatprep.subr.mxu0 0.0
      %3961 = vmatpush2.msra.mxu0 0.0
      %3962 = vmatprep.subr.mxu0 0.0
      %3963 = vmatpush2.msra.mxu0 0.0
      %3964 = vmatprep.subr.mxu0 0.0
      %3965 = vmatpush2.msra.mxu0 0.0
      %3966 = vmatprep.subr.mxu0 0.0
      %3967 = vmatpush2.msra.mxu0 0.0
      %3968 = vmatprep.mubr.f32.mxu0 0.0
      %3969 = vmatmul.mubr.f32.gmra.mxu0 %v3890
      %v3970 = vpop.f32.mrf.mxu0
      %v3971 = vadd.f32 %v2317, %v3970
      %v3972 = vpop.f32.mrf.mxu0
      %v3973 = vadd.f32 %v2321, %v3972
      %3974 = vdwg.mxu0
      %3975 = vmatprep.subr.mxu0 0.0
      %3976 = vmatpush1.msra.mxu0 %v2304
      %3977 = vmatprep.subr.mxu0 0.0
      %3978 = vmatpush1.msra.mxu0 %v2301
      %3979 = vmatprep.subr.mxu0 0.0
      %3980 = vmatpush1.msra.mxu0 %v2298
      %3981 = vmatprep.subr.mxu0 0.0
      %3982 = vmatpush1.msra.mxu0 %v2295
      %3983 = vmatprep.subr.mxu0 0.0
      %3984 = vmatpush1.msra.mxu0 %v2292
      %3985 = vmatprep.subr.mxu0 0.0
      %3986 = vmatpush1.msra.mxu0 %v2289
      %3987 = vmatprep.subr.mxu0 0.0
      %3988 = vmatpush1.msra.mxu0 %v2286
      %3989 = vmatprep.subr.mxu0 0.0
      %3990 = vmatpush1.msra.mxu0 %v2283
      %3991 = vmatprep.subr.mxu0 0.0
      %3992 = vmatpush1.msra.mxu0 %v2280
      %3993 = vmatprep.subr.mxu0 0.0
      %3994 = vmatpush1.msra.mxu0 %v2277
      %3995 = vmatprep.subr.mxu0 0.0
      %3996 = vmatpush1.msra.mxu0 %v2274
      %3997 = vmatprep.subr.mxu0 0.0
      %3998 = vmatpush1.msra.mxu0 %v2271
      %3999 = vmatprep.subr.mxu0 0.0
      %4000 = vmatpush1.msra.mxu0 %v2268
      %4001 = vmatprep.subr.mxu0 0.0
      %4002 = vmatpush1.msra.mxu0 %v2265
      %4003 = vmatprep.subr.mxu0 0.0
      %4004 = vmatpush1.msra.mxu0 %v2262
      %4005 = vmatprep.subr.mxu0 0.0
      %4006 = vmatpush1.msra.mxu0 %v2259
      %4007 = vmatprep.subr.mxu0 0.0
      %4008 = vmatpush2.msra.mxu0 0.0
      %4009 = vmatprep.subr.mxu0 0.0
      %4010 = vmatpush2.msra.mxu0 0.0
      %4011 = vmatprep.subr.mxu0 0.0
      %4012 = vmatpush2.msra.mxu0 0.0
      %4013 = vmatprep.subr.mxu0 0.0
      %4014 = vmatpush2.msra.mxu0 0.0
      %4015 = vmatprep.subr.mxu0 0.0
      %4016 = vmatpush2.msra.mxu0 0.0
      %4017 = vmatprep.subr.mxu0 0.0
      %4018 = vmatpush2.msra.mxu0 0.0
      %4019 = vmatprep.subr.mxu0 0.0
      %4020 = vmatpush2.msra.mxu0 0.0
      %4021 = vmatprep.subr.mxu0 0.0
      %4022 = vmatpush2.msra.mxu0 0.0
      %4023 = vmatprep.subr.mxu0 0.0
      %4024 = vmatpush2.msra.mxu0 0.0
      %4025 = vmatprep.subr.mxu0 0.0
      %4026 = vmatpush2.msra.mxu0 0.0
      %4027 = vmatprep.subr.mxu0 0.0
      %4028 = vmatpush2.msra.mxu0 0.0
      %4029 = vmatprep.subr.mxu0 0.0
      %4030 = vmatpush2.msra.mxu0 0.0
      %4031 = vmatprep.subr.mxu0 0.0
      %4032 = vmatpush2.msra.mxu0 0.0
      %4033 = vmatprep.subr.mxu0 0.0
      %4034 = vmatpush2.msra.mxu0 0.0
      %4035 = vmatprep.subr.mxu0 0.0
      %4036 = vmatpush2.msra.mxu0 0.0
      %4037 = vmatprep.subr.mxu0 0.0
      %4038 = vmatpush2.msra.mxu0 0.0
      %4039 = vmatprep.mubr.f32.mxu0 0.0
      %4040 = vmatmul.mubr.f32.gmra.mxu0 %v3890
      %v4041 = vpop.f32.mrf.mxu0
      %v4042 = vadd.f32 %v2325, %v4041
      %v4043 = vpop.f32.mrf.mxu0
      %4044 = vdwg.mxu0
      %v4045 = vadd.f32 %v3901, %v3971
      %v4046 = vxor.u32 %v4045, 2147483648
      %v4047 = vmul.f32 %v4046, 1.442695
      %v4048 = vpow.pop %v4047
      %v4049 = vadd.f32 %v4048, 1.0
      %v4050 = vrcp.pop %v4049
      %v4051 = vmul.f32 1.0, %v4050
      %v4052 = vadd.f32 %v3902, %v3973
      %v4053 = vxor.u32 %v4052, 2147483648
      %v4054 = vmul.f32 %v4053, 1.442695
      %v4055 = vpow.pop %v4054
      %v4056 = vadd.f32 %v4055, 1.0
      %v4057 = vrcp.pop %v4056
      %v4058 = vmul.f32 1.0, %v4057
      %v4059 = vmul.f32 %v4051, %v4042
      %v4060 = vadd.f32 %v3903, %v4059
      %v4061 = vtanh.pop %v4060
      %v4062 = vsub.f32 1.0, %v4058
      %v4063 = vmul.f32 %v4062, %v4061
      %v4064 = vmul.f32 %v4058, %v3890
      %v4065 = vadd.f32 %v4063, %v4064
      %s4066 = sadd.s32 %s2307, 10
      %v4067 = vstv %s4066
      %vm4068 = vcmp.eq.s32.totalorder %v2306, %v4067
      %v4069 = vsel %vm4068, 1, 0
      %4070 = vset.pattern.permute.xlu0 0
      %4071 = vperm.xlu0 %4070, %v4069
      %v4072 = vpop.permute.xlu0 %4071
      %vm4073 = vcmp.eq.s32.totalorder %v4072, 1
      %v4074 = vsel %vm4073, %v4065, %v3899
      %s4075 = scalar_lea.vmem [#allocation2], 240
      %v4076 = vld [vmem:[%s4075] sm:$0xff]
      %v4077 = vld [vmem:[%s4075 + $0x8] sm:$0xff]
      %v4078 = vld [vmem:[%s4075 + $0x10] sm:$0xff]
      %4079 = vmatprep.subr.mxu0 %v2303
      %4080 = vmatpush1.msra.mxu0 %v2302
      %4081 = vmatprep.subr.mxu0 %v2300
      %4082 = vmatpush1.msra.mxu0 %v2299
      %4083 = vmatprep.subr.mxu0 %v2297
      %4084 = vmatpush1.msra.mxu0 %v2296
      %4085 = vmatprep.subr.mxu0 %v2294
      %4086 = vmatpush1.msra.mxu0 %v2293
      %4087 = vmatprep.subr.mxu0 %v2291
      %4088 = vmatpush1.msra.mxu0 %v2290
      %4089 = vmatprep.subr.mxu0 %v2288
      %4090 = vmatpush1.msra.mxu0 %v2287
      %4091 = vmatprep.subr.mxu0 %v2285
      %4092 = vmatpush1.msra.mxu0 %v2284
      %4093 = vmatprep.subr.mxu0 %v2282
      %4094 = vmatpush1.msra.mxu0 %v2281
      %4095 = vmatprep.subr.mxu0 %v2279
      %4096 = vmatpush1.msra.mxu0 %v2278
      %4097 = vmatprep.subr.mxu0 %v2276
      %4098 = vmatpush1.msra.mxu0 %v2275
      %4099 = vmatprep.subr.mxu0 %v2273
      %4100 = vmatpush1.msra.mxu0 %v2272
      %4101 = vmatprep.subr.mxu0 %v2270
      %4102 = vmatpush1.msra.mxu0 %v2269
      %4103 = vmatprep.subr.mxu0 %v2267
      %4104 = vmatpush1.msra.mxu0 %v2266
      %4105 = vmatprep.subr.mxu0 %v2264
      %4106 = vmatpush1.msra.mxu0 %v2263
      %4107 = vmatprep.subr.mxu0 %v2261
      %4108 = vmatpush1.msra.mxu0 %v2260
      %4109 = vmatprep.subr.mxu0 %v2258
      %4110 = vmatpush1.msra.mxu0 %v2257
      %4111 = vmatprep.subr.mxu0 0.0
      %4112 = vmatpush2.msra.mxu0 0.0
      %4113 = vmatprep.subr.mxu0 0.0
      %4114 = vmatpush2.msra.mxu0 0.0
      %4115 = vmatprep.subr.mxu0 0.0
      %4116 = vmatpush2.msra.mxu0 0.0
      %4117 = vmatprep.subr.mxu0 0.0
      %4118 = vmatpush2.msra.mxu0 0.0
      %4119 = vmatprep.subr.mxu0 0.0
      %4120 = vmatpush2.msra.mxu0 0.0
      %4121 = vmatprep.subr.mxu0 0.0
      %4122 = vmatpush2.msra.mxu0 0.0
      %4123 = vmatprep.subr.mxu0 0.0
      %4124 = vmatpush2.msra.mxu0 0.0
      %4125 = vmatprep.subr.mxu0 0.0
      %4126 = vmatpush2.msra.mxu0 0.0
      %4127 = vmatprep.subr.mxu0 0.0
      %4128 = vmatpush2.msra.mxu0 0.0
      %4129 = vmatprep.subr.mxu0 0.0
      %4130 = vmatpush2.msra.mxu0 0.0
      %4131 = vmatprep.subr.mxu0 0.0
      %4132 = vmatpush2.msra.mxu0 0.0
      %4133 = vmatprep.subr.mxu0 0.0
      %4134 = vmatpush2.msra.mxu0 0.0
      %4135 = vmatprep.subr.mxu0 0.0
      %4136 = vmatpush2.msra.mxu0 0.0
      %4137 = vmatprep.subr.mxu0 0.0
      %4138 = vmatpush2.msra.mxu0 0.0
      %4139 = vmatprep.subr.mxu0 0.0
      %4140 = vmatpush2.msra.mxu0 0.0
      %4141 = vmatprep.subr.mxu0 0.0
      %4142 = vmatpush2.msra.mxu0 0.0
      %4143 = vmatprep.mubr.f32.mxu0 0.0
      %4144 = vmatmul.mubr.f32.gmra.mxu0 %v4065
      %v4145 = vpop.f32.mrf.mxu0
      %v4146 = vadd.f32 %v2317, %v4145
      %v4147 = vpop.f32.mrf.mxu0
      %v4148 = vadd.f32 %v2321, %v4147
      %4149 = vdwg.mxu0
      %4150 = vmatprep.subr.mxu0 0.0
      %4151 = vmatpush1.msra.mxu0 %v2304
      %4152 = vmatprep.subr.mxu0 0.0
      %4153 = vmatpush1.msra.mxu0 %v2301
      %4154 = vmatprep.subr.mxu0 0.0
      %4155 = vmatpush1.msra.mxu0 %v2298
      %4156 = vmatprep.subr.mxu0 0.0
      %4157 = vmatpush1.msra.mxu0 %v2295
      %4158 = vmatprep.subr.mxu0 0.0
      %4159 = vmatpush1.msra.mxu0 %v2292
      %4160 = vmatprep.subr.mxu0 0.0
      %4161 = vmatpush1.msra.mxu0 %v2289
      %4162 = vmatprep.subr.mxu0 0.0
      %4163 = vmatpush1.msra.mxu0 %v2286
      %4164 = vmatprep.subr.mxu0 0.0
      %4165 = vmatpush1.msra.mxu0 %v2283
      %4166 = vmatprep.subr.mxu0 0.0
      %4167 = vmatpush1.msra.mxu0 %v2280
      %4168 = vmatprep.subr.mxu0 0.0
      %4169 = vmatpush1.msra.mxu0 %v2277
      %4170 = vmatprep.subr.mxu0 0.0
      %4171 = vmatpush1.msra.mxu0 %v2274
      %4172 = vmatprep.subr.mxu0 0.0
      %4173 = vmatpush1.msra.mxu0 %v2271
      %4174 = vmatprep.subr.mxu0 0.0
      %4175 = vmatpush1.msra.mxu0 %v2268
      %4176 = vmatprep.subr.mxu0 0.0
      %4177 = vmatpush1.msra.mxu0 %v2265
      %4178 = vmatprep.subr.mxu0 0.0
      %4179 = vmatpush1.msra.mxu0 %v2262
      %4180 = vmatprep.subr.mxu0 0.0
      %4181 = vmatpush1.msra.mxu0 %v2259
      %4182 = vmatprep.subr.mxu0 0.0
      %4183 = vmatpush2.msra.mxu0 0.0
      %4184 = vmatprep.subr.mxu0 0.0
      %4185 = vmatpush2.msra.mxu0 0.0
      %4186 = vmatprep.subr.mxu0 0.0
      %4187 = vmatpush2.msra.mxu0 0.0
      %4188 = vmatprep.subr.mxu0 0.0
      %4189 = vmatpush2.msra.mxu0 0.0
      %4190 = vmatprep.subr.mxu0 0.0
      %4191 = vmatpush2.msra.mxu0 0.0
      %4192 = vmatprep.subr.mxu0 0.0
      %4193 = vmatpush2.msra.mxu0 0.0
      %4194 = vmatprep.subr.mxu0 0.0
      %4195 = vmatpush2.msra.mxu0 0.0
      %4196 = vmatprep.subr.mxu0 0.0
      %4197 = vmatpush2.msra.mxu0 0.0
      %4198 = vmatprep.subr.mxu0 0.0
      %4199 = vmatpush2.msra.mxu0 0.0
      %4200 = vmatprep.subr.mxu0 0.0
      %4201 = vmatpush2.msra.mxu0 0.0
      %4202 = vmatprep.subr.mxu0 0.0
      %4203 = vmatpush2.msra.mxu0 0.0
      %4204 = vmatprep.subr.mxu0 0.0
      %4205 = vmatpush2.msra.mxu0 0.0
      %4206 = vmatprep.subr.mxu0 0.0
      %4207 = vmatpush2.msra.mxu0 0.0
      %4208 = vmatprep.subr.mxu0 0.0
      %4209 = vmatpush2.msra.mxu0 0.0
      %4210 = vmatprep.subr.mxu0 0.0
      %4211 = vmatpush2.msra.mxu0 0.0
      %4212 = vmatprep.subr.mxu0 0.0
      %4213 = vmatpush2.msra.mxu0 0.0
      %4214 = vmatprep.mubr.f32.mxu0 0.0
      %4215 = vmatmul.mubr.f32.gmra.mxu0 %v4065
      %v4216 = vpop.f32.mrf.mxu0
      %v4217 = vadd.f32 %v2325, %v4216
      %v4218 = vpop.f32.mrf.mxu0
      %4219 = vdwg.mxu0
      %v4220 = vadd.f32 %v4076, %v4146
      %v4221 = vxor.u32 %v4220, 2147483648
      %v4222 = vmul.f32 %v4221, 1.442695
      %v4223 = vpow.pop %v4222
      %v4224 = vadd.f32 %v4223, 1.0
      %v4225 = vrcp.pop %v4224
      %v4226 = vmul.f32 1.0, %v4225
      %v4227 = vadd.f32 %v4077, %v4148
      %v4228 = vxor.u32 %v4227, 2147483648
      %v4229 = vmul.f32 %v4228, 1.442695
      %v4230 = vpow.pop %v4229
      %v4231 = vadd.f32 %v4230, 1.0
      %v4232 = vrcp.pop %v4231
      %v4233 = vmul.f32 1.0, %v4232
      %v4234 = vmul.f32 %v4226, %v4217
      %v4235 = vadd.f32 %v4078, %v4234
      %v4236 = vtanh.pop %v4235
      %v4237 = vsub.f32 1.0, %v4233
      %v4238 = vmul.f32 %v4237, %v4236
      %v4239 = vmul.f32 %v4233, %v4065
      %v4240 = vadd.f32 %v4238, %v4239
      %s4241 = sadd.s32 %s2307, 11
      %v4242 = vstv %s4241
      %vm4243 = vcmp.eq.s32.totalorder %v2306, %v4242
      %v4244 = vsel %vm4243, 1, 0
      %4245 = vset.pattern.permute.xlu0 0
      %4246 = vperm.xlu0 %4245, %v4244
      %v4247 = vpop.permute.xlu0 %4246
      %vm4248 = vcmp.eq.s32.totalorder %v4247, 1
      %v4249 = vsel %vm4248, %v4240, %v4074
      %s4250 = scalar_lea.vmem [#allocation2], 264
      %v4251 = vld [vmem:[%s4250] sm:$0xff]
      %v4252 = vld [vmem:[%s4250 + $0x8] sm:$0xff]
      %v4253 = vld [vmem:[%s4250 + $0x10] sm:$0xff]
      %4254 = vmatprep.subr.mxu0 %v2303
      %4255 = vmatpush1.msra.mxu0 %v2302
      %4256 = vmatprep.subr.mxu0 %v2300
      %4257 = vmatpush1.msra.mxu0 %v2299
      %4258 = vmatprep.subr.mxu0 %v2297
      %4259 = vmatpush1.msra.mxu0 %v2296
      %4260 = vmatprep.subr.mxu0 %v2294
      %4261 = vmatpush1.msra.mxu0 %v2293
      %4262 = vmatprep.subr.mxu0 %v2291
      %4263 = vmatpush1.msra.mxu0 %v2290
      %4264 = vmatprep.subr.mxu0 %v2288
      %4265 = vmatpush1.msra.mxu0 %v2287
      %4266 = vmatprep.subr.mxu0 %v2285
      %4267 = vmatpush1.msra.mxu0 %v2284
      %4268 = vmatprep.subr.mxu0 %v2282
      %4269 = vmatpush1.msra.mxu0 %v2281
      %4270 = vmatprep.subr.mxu0 %v2279
      %4271 = vmatpush1.msra.mxu0 %v2278
      %4272 = vmatprep.subr.mxu0 %v2276
      %4273 = vmatpush1.msra.mxu0 %v2275
      %4274 = vmatprep.subr.mxu0 %v2273
      %4275 = vmatpush1.msra.mxu0 %v2272
      %4276 = vmatprep.subr.mxu0 %v2270
      %4277 = vmatpush1.msra.mxu0 %v2269
      %4278 = vmatprep.subr.mxu0 %v2267
      %4279 = vmatpush1.msra.mxu0 %v2266
      %4280 = vmatprep.subr.mxu0 %v2264
      %4281 = vmatpush1.msra.mxu0 %v2263
      %4282 = vmatprep.subr.mxu0 %v2261
      %4283 = vmatpush1.msra.mxu0 %v2260
      %4284 = vmatprep.subr.mxu0 %v2258
      %4285 = vmatpush1.msra.mxu0 %v2257
      %4286 = vmatprep.subr.mxu0 0.0
      %4287 = vmatpush2.msra.mxu0 0.0
      %4288 = vmatprep.subr.mxu0 0.0
      %4289 = vmatpush2.msra.mxu0 0.0
      %4290 = vmatprep.subr.mxu0 0.0
      %4291 = vmatpush2.msra.mxu0 0.0
      %4292 = vmatprep.subr.mxu0 0.0
      %4293 = vmatpush2.msra.mxu0 0.0
      %4294 = vmatprep.subr.mxu0 0.0
      %4295 = vmatpush2.msra.mxu0 0.0
      %4296 = vmatprep.subr.mxu0 0.0
      %4297 = vmatpush2.msra.mxu0 0.0
      %4298 = vmatprep.subr.mxu0 0.0
      %4299 = vmatpush2.msra.mxu0 0.0
      %4300 = vmatprep.subr.mxu0 0.0
      %4301 = vmatpush2.msra.mxu0 0.0
      %4302 = vmatprep.subr.mxu0 0.0
      %4303 = vmatpush2.msra.mxu0 0.0
      %4304 = vmatprep.subr.mxu0 0.0
      %4305 = vmatpush2.msra.mxu0 0.0
      %4306 = vmatprep.subr.mxu0 0.0
      %4307 = vmatpush2.msra.mxu0 0.0
      %4308 = vmatprep.subr.mxu0 0.0
      %4309 = vmatpush2.msra.mxu0 0.0
      %4310 = vmatprep.subr.mxu0 0.0
      %4311 = vmatpush2.msra.mxu0 0.0
      %4312 = vmatprep.subr.mxu0 0.0
      %4313 = vmatpush2.msra.mxu0 0.0
      %4314 = vmatprep.subr.mxu0 0.0
      %4315 = vmatpush2.msra.mxu0 0.0
      %4316 = vmatprep.subr.mxu0 0.0
      %4317 = vmatpush2.msra.mxu0 0.0
      %4318 = vmatprep.mubr.f32.mxu0 0.0
      %4319 = vmatmul.mubr.f32.gmra.mxu0 %v4240
      %v4320 = vpop.f32.mrf.mxu0
      %v4321 = vadd.f32 %v2317, %v4320
      %v4322 = vpop.f32.mrf.mxu0
      %v4323 = vadd.f32 %v2321, %v4322
      %4324 = vdwg.mxu0
      %4325 = vmatprep.subr.mxu0 0.0
      %4326 = vmatpush1.msra.mxu0 %v2304
      %4327 = vmatprep.subr.mxu0 0.0
      %4328 = vmatpush1.msra.mxu0 %v2301
      %4329 = vmatprep.subr.mxu0 0.0
      %4330 = vmatpush1.msra.mxu0 %v2298
      %4331 = vmatprep.subr.mxu0 0.0
      %4332 = vmatpush1.msra.mxu0 %v2295
      %4333 = vmatprep.subr.mxu0 0.0
      %4334 = vmatpush1.msra.mxu0 %v2292
      %4335 = vmatprep.subr.mxu0 0.0
      %4336 = vmatpush1.msra.mxu0 %v2289
      %4337 = vmatprep.subr.mxu0 0.0
      %4338 = vmatpush1.msra.mxu0 %v2286
      %4339 = vmatprep.subr.mxu0 0.0
      %4340 = vmatpush1.msra.mxu0 %v2283
      %4341 = vmatprep.subr.mxu0 0.0
      %4342 = vmatpush1.msra.mxu0 %v2280
      %4343 = vmatprep.subr.mxu0 0.0
      %4344 = vmatpush1.msra.mxu0 %v2277
      %4345 = vmatprep.subr.mxu0 0.0
      %4346 = vmatpush1.msra.mxu0 %v2274
      %4347 = vmatprep.subr.mxu0 0.0
      %4348 = vmatpush1.msra.mxu0 %v2271
      %4349 = vmatprep.subr.mxu0 0.0
      %4350 = vmatpush1.msra.mxu0 %v2268
      %4351 = vmatprep.subr.mxu0 0.0
      %4352 = vmatpush1.msra.mxu0 %v2265
      %4353 = vmatprep.subr.mxu0 0.0
      %4354 = vmatpush1.msra.mxu0 %v2262
      %4355 = vmatprep.subr.mxu0 0.0
      %4356 = vmatpush1.msra.mxu0 %v2259
      %4357 = vmatprep.subr.mxu0 0.0
      %4358 = vmatpush2.msra.mxu0 0.0
      %4359 = vmatprep.subr.mxu0 0.0
      %4360 = vmatpush2.msra.mxu0 0.0
      %4361 = vmatprep.subr.mxu0 0.0
      %4362 = vmatpush2.msra.mxu0 0.0
      %4363 = vmatprep.subr.mxu0 0.0
      %4364 = vmatpush2.msra.mxu0 0.0
      %4365 = vmatprep.subr.mxu0 0.0
      %4366 = vmatpush2.msra.mxu0 0.0
      %4367 = vmatprep.subr.mxu0 0.0
      %4368 = vmatpush2.msra.mxu0 0.0
      %4369 = vmatprep.subr.mxu0 0.0
      %4370 = vmatpush2.msra.mxu0 0.0
      %4371 = vmatprep.subr.mxu0 0.0
      %4372 = vmatpush2.msra.mxu0 0.0
      %4373 = vmatprep.subr.mxu0 0.0
      %4374 = vmatpush2.msra.mxu0 0.0
      %4375 = vmatprep.subr.mxu0 0.0
      %4376 = vmatpush2.msra.mxu0 0.0
      %4377 = vmatprep.subr.mxu0 0.0
      %4378 = vmatpush2.msra.mxu0 0.0
      %4379 = vmatprep.subr.mxu0 0.0
      %4380 = vmatpush2.msra.mxu0 0.0
      %4381 = vmatprep.subr.mxu0 0.0
      %4382 = vmatpush2.msra.mxu0 0.0
      %4383 = vmatprep.subr.mxu0 0.0
      %4384 = vmatpush2.msra.mxu0 0.0
      %4385 = vmatprep.subr.mxu0 0.0
      %4386 = vmatpush2.msra.mxu0 0.0
      %4387 = vmatprep.subr.mxu0 0.0
      %4388 = vmatpush2.msra.mxu0 0.0
      %4389 = vmatprep.mubr.f32.mxu0 0.0
      %4390 = vmatmul.mubr.f32.gmra.mxu0 %v4240
      %v4391 = vpop.f32.mrf.mxu0
      %v4392 = vadd.f32 %v2325, %v4391
      %v4393 = vpop.f32.mrf.mxu0
      %4394 = vdwg.mxu0
      %v4395 = vadd.f32 %v4251, %v4321
      %v4396 = vxor.u32 %v4395, 2147483648
      %v4397 = vmul.f32 %v4396, 1.442695
      %v4398 = vpow.pop %v4397
      %v4399 = vadd.f32 %v4398, 1.0
      %v4400 = vrcp.pop %v4399
      %v4401 = vmul.f32 1.0, %v4400
      %v4402 = vadd.f32 %v4252, %v4323
      %v4403 = vxor.u32 %v4402, 2147483648
      %v4404 = vmul.f32 %v4403, 1.442695
      %v4405 = vpow.pop %v4404
      %v4406 = vadd.f32 %v4405, 1.0
      %v4407 = vrcp.pop %v4406
      %v4408 = vmul.f32 1.0, %v4407
      %v4409 = vmul.f32 %v4401, %v4392
      %v4410 = vadd.f32 %v4253, %v4409
      %v4411 = vtanh.pop %v4410
      %v4412 = vsub.f32 1.0, %v4408
      %v4413 = vmul.f32 %v4412, %v4411
      %v4414 = vmul.f32 %v4408, %v4240
      %v4415 = vadd.f32 %v4413, %v4414
      %s4416 = sadd.s32 %s2307, 12
      %v4417 = vstv %s4416
      %vm4418 = vcmp.eq.s32.totalorder %v2306, %v4417
      %v4419 = vsel %vm4418, 1, 0
      %4420 = vset.pattern.permute.xlu0 0
      %4421 = vperm.xlu0 %4420, %v4419
      %v4422 = vpop.permute.xlu0 %4421
      %vm4423 = vcmp.eq.s32.totalorder %v4422, 1
      %v4424 = vsel %vm4423, %v4415, %v4249
      %s4425 = scalar_lea.vmem [#allocation2], 288
      %v4426 = vld [vmem:[%s4425] sm:$0xff]
      %v4427 = vld [vmem:[%s4425 + $0x8] sm:$0xff]
      %v4428 = vld [vmem:[%s4425 + $0x10] sm:$0xff]
      %4429 = vmatprep.subr.mxu0 %v2303
      %4430 = vmatpush1.msra.mxu0 %v2302
      %4431 = vmatprep.subr.mxu0 %v2300
      %4432 = vmatpush1.msra.mxu0 %v2299
      %4433 = vmatprep.subr.mxu0 %v2297
      %4434 = vmatpush1.msra.mxu0 %v2296
      %4435 = vmatprep.subr.mxu0 %v2294
      %4436 = vmatpush1.msra.mxu0 %v2293
      %4437 = vmatprep.subr.mxu0 %v2291
      %4438 = vmatpush1.msra.mxu0 %v2290
      %4439 = vmatprep.subr.mxu0 %v2288
      %4440 = vmatpush1.msra.mxu0 %v2287
      %4441 = vmatprep.subr.mxu0 %v2285
      %4442 = vmatpush1.msra.mxu0 %v2284
      %4443 = vmatprep.subr.mxu0 %v2282
      %4444 = vmatpush1.msra.mxu0 %v2281
      %4445 = vmatprep.subr.mxu0 %v2279
      %4446 = vmatpush1.msra.mxu0 %v2278
      %4447 = vmatprep.subr.mxu0 %v2276
      %4448 = vmatpush1.msra.mxu0 %v2275
      %4449 = vmatprep.subr.mxu0 %v2273
      %4450 = vmatpush1.msra.mxu0 %v2272
      %4451 = vmatprep.subr.mxu0 %v2270
      %4452 = vmatpush1.msra.mxu0 %v2269
      %4453 = vmatprep.subr.mxu0 %v2267
      %4454 = vmatpush1.msra.mxu0 %v2266
      %4455 = vmatprep.subr.mxu0 %v2264
      %4456 = vmatpush1.msra.mxu0 %v2263
      %4457 = vmatprep.subr.mxu0 %v2261
      %4458 = vmatpush1.msra.mxu0 %v2260
      %4459 = vmatprep.subr.mxu0 %v2258
      %4460 = vmatpush1.msra.mxu0 %v2257
      %4461 = vmatprep.subr.mxu0 0.0
      %4462 = vmatpush2.msra.mxu0 0.0
      %4463 = vmatprep.subr.mxu0 0.0
      %4464 = vmatpush2.msra.mxu0 0.0
      %4465 = vmatprep.subr.mxu0 0.0
      %4466 = vmatpush2.msra.mxu0 0.0
      %4467 = vmatprep.subr.mxu0 0.0
      %4468 = vmatpush2.msra.mxu0 0.0
      %4469 = vmatprep.subr.mxu0 0.0
      %4470 = vmatpush2.msra.mxu0 0.0
      %4471 = vmatprep.subr.mxu0 0.0
      %4472 = vmatpush2.msra.mxu0 0.0
      %4473 = vmatprep.subr.mxu0 0.0
      %4474 = vmatpush2.msra.mxu0 0.0
      %4475 = vmatprep.subr.mxu0 0.0
      %4476 = vmatpush2.msra.mxu0 0.0
      %4477 = vmatprep.subr.mxu0 0.0
      %4478 = vmatpush2.msra.mxu0 0.0
      %4479 = vmatprep.subr.mxu0 0.0
      %4480 = vmatpush2.msra.mxu0 0.0
      %4481 = vmatprep.subr.mxu0 0.0
      %4482 = vmatpush2.msra.mxu0 0.0
      %4483 = vmatprep.subr.mxu0 0.0
      %4484 = vmatpush2.msra.mxu0 0.0
      %4485 = vmatprep.subr.mxu0 0.0
      %4486 = vmatpush2.msra.mxu0 0.0
      %4487 = vmatprep.subr.mxu0 0.0
      %4488 = vmatpush2.msra.mxu0 0.0
      %4489 = vmatprep.subr.mxu0 0.0
      %4490 = vmatpush2.msra.mxu0 0.0
      %4491 = vmatprep.subr.mxu0 0.0
      %4492 = vmatpush2.msra.mxu0 0.0
      %4493 = vmatprep.mubr.f32.mxu0 0.0
      %4494 = vmatmul.mubr.f32.gmra.mxu0 %v4415
      %v4495 = vpop.f32.mrf.mxu0
      %v4496 = vadd.f32 %v2317, %v4495
      %v4497 = vpop.f32.mrf.mxu0
      %v4498 = vadd.f32 %v2321, %v4497
      %4499 = vdwg.mxu0
      %4500 = vmatprep.subr.mxu0 0.0
      %4501 = vmatpush1.msra.mxu0 %v2304
      %4502 = vmatprep.subr.mxu0 0.0
      %4503 = vmatpush1.msra.mxu0 %v2301
      %4504 = vmatprep.subr.mxu0 0.0
      %4505 = vmatpush1.msra.mxu0 %v2298
      %4506 = vmatprep.subr.mxu0 0.0
      %4507 = vmatpush1.msra.mxu0 %v2295
      %4508 = vmatprep.subr.mxu0 0.0
      %4509 = vmatpush1.msra.mxu0 %v2292
      %4510 = vmatprep.subr.mxu0 0.0
      %4511 = vmatpush1.msra.mxu0 %v2289
      %4512 = vmatprep.subr.mxu0 0.0
      %4513 = vmatpush1.msra.mxu0 %v2286
      %4514 = vmatprep.subr.mxu0 0.0
      %4515 = vmatpush1.msra.mxu0 %v2283
      %4516 = vmatprep.subr.mxu0 0.0
      %4517 = vmatpush1.msra.mxu0 %v2280
      %4518 = vmatprep.subr.mxu0 0.0
      %4519 = vmatpush1.msra.mxu0 %v2277
      %4520 = vmatprep.subr.mxu0 0.0
      %4521 = vmatpush1.msra.mxu0 %v2274
      %4522 = vmatprep.subr.mxu0 0.0
      %4523 = vmatpush1.msra.mxu0 %v2271
      %4524 = vmatprep.subr.mxu0 0.0
      %4525 = vmatpush1.msra.mxu0 %v2268
      %4526 = vmatprep.subr.mxu0 0.0
      %4527 = vmatpush1.msra.mxu0 %v2265
      %4528 = vmatprep.subr.mxu0 0.0
      %4529 = vmatpush1.msra.mxu0 %v2262
      %4530 = vmatprep.subr.mxu0 0.0
      %4531 = vmatpush1.msra.mxu0 %v2259
      %4532 = vmatprep.subr.mxu0 0.0
      %4533 = vmatpush2.msra.mxu0 0.0
      %4534 = vmatprep.subr.mxu0 0.0
      %4535 = vmatpush2.msra.mxu0 0.0
      %4536 = vmatprep.subr.mxu0 0.0
      %4537 = vmatpush2.msra.mxu0 0.0
      %4538 = vmatprep.subr.mxu0 0.0
      %4539 = vmatpush2.msra.mxu0 0.0
      %4540 = vmatprep.subr.mxu0 0.0
      %4541 = vmatpush2.msra.mxu0 0.0
      %4542 = vmatprep.subr.mxu0 0.0
      %4543 = vmatpush2.msra.mxu0 0.0
      %4544 = vmatprep.subr.mxu0 0.0
      %4545 = vmatpush2.msra.mxu0 0.0
      %4546 = vmatprep.subr.mxu0 0.0
      %4547 = vmatpush2.msra.mxu0 0.0
      %4548 = vmatprep.subr.mxu0 0.0
      %4549 = vmatpush2.msra.mxu0 0.0
      %4550 = vmatprep.subr.mxu0 0.0
      %4551 = vmatpush2.msra.mxu0 0.0
      %4552 = vmatprep.subr.mxu0 0.0
      %4553 = vmatpush2.msra.mxu0 0.0
      %4554 = vmatprep.subr.mxu0 0.0
      %4555 = vmatpush2.msra.mxu0 0.0
      %4556 = vmatprep.subr.mxu0 0.0
      %4557 = vmatpush2.msra.mxu0 0.0
      %4558 = vmatprep.subr.mxu0 0.0
      %4559 = vmatpush2.msra.mxu0 0.0
      %4560 = vmatprep.subr.mxu0 0.0
      %4561 = vmatpush2.msra.mxu0 0.0
      %4562 = vmatprep.subr.mxu0 0.0
      %4563 = vmatpush2.msra.mxu0 0.0
      %4564 = vmatprep.mubr.f32.mxu0 0.0
      %4565 = vmatmul.mubr.f32.gmra.mxu0 %v4415
      %v4566 = vpop.f32.mrf.mxu0
      %v4567 = vadd.f32 %v2325, %v4566
      %v4568 = vpop.f32.mrf.mxu0
      %4569 = vdwg.mxu0
      %v4570 = vadd.f32 %v4426, %v4496
      %v4571 = vxor.u32 %v4570, 2147483648
      %v4572 = vmul.f32 %v4571, 1.442695
      %v4573 = vpow.pop %v4572
      %v4574 = vadd.f32 %v4573, 1.0
      %v4575 = vrcp.pop %v4574
      %v4576 = vmul.f32 1.0, %v4575
      %v4577 = vadd.f32 %v4427, %v4498
      %v4578 = vxor.u32 %v4577, 2147483648
      %v4579 = vmul.f32 %v4578, 1.442695
      %v4580 = vpow.pop %v4579
      %v4581 = vadd.f32 %v4580, 1.0
      %v4582 = vrcp.pop %v4581
      %v4583 = vmul.f32 1.0, %v4582
      %v4584 = vmul.f32 %v4576, %v4567
      %v4585 = vadd.f32 %v4428, %v4584
      %v4586 = vtanh.pop %v4585
      %v4587 = vsub.f32 1.0, %v4583
      %v4588 = vmul.f32 %v4587, %v4586
      %v4589 = vmul.f32 %v4583, %v4415
      %v4590 = vadd.f32 %v4588, %v4589
      %s4591 = sadd.s32 %s2307, 13
      %v4592 = vstv %s4591
      %vm4593 = vcmp.eq.s32.totalorder %v2306, %v4592
      %v4594 = vsel %vm4593, 1, 0
      %4595 = vset.pattern.permute.xlu0 0
      %4596 = vperm.xlu0 %4595, %v4594
      %v4597 = vpop.permute.xlu0 %4596
      %vm4598 = vcmp.eq.s32.totalorder %v4597, 1
      %v4599 = vsel %vm4598, %v4590, %v4424
      %s4600 = scalar_lea.vmem [#allocation2], 312
      %v4601 = vld [vmem:[%s4600] sm:$0xff]
      %v4602 = vld [vmem:[%s4600 + $0x8] sm:$0xff]
      %v4603 = vld [vmem:[%s4600 + $0x10] sm:$0xff]
      %4604 = vmatprep.subr.mxu0 %v2303
      %4605 = vmatpush1.msra.mxu0 %v2302
      %4606 = vmatprep.subr.mxu0 %v2300
      %4607 = vmatpush1.msra.mxu0 %v2299
      %4608 = vmatprep.subr.mxu0 %v2297
      %4609 = vmatpush1.msra.mxu0 %v2296
      %4610 = vmatprep.subr.mxu0 %v2294
      %4611 = vmatpush1.msra.mxu0 %v2293
      %4612 = vmatprep.subr.mxu0 %v2291
      %4613 = vmatpush1.msra.mxu0 %v2290
      %4614 = vmatprep.subr.mxu0 %v2288
      %4615 = vmatpush1.msra.mxu0 %v2287
      %4616 = vmatprep.subr.mxu0 %v2285
      %4617 = vmatpush1.msra.mxu0 %v2284
      %4618 = vmatprep.subr.mxu0 %v2282
      %4619 = vmatpush1.msra.mxu0 %v2281
      %4620 = vmatprep.subr.mxu0 %v2279
      %4621 = vmatpush1.msra.mxu0 %v2278
      %4622 = vmatprep.subr.mxu0 %v2276
      %4623 = vmatpush1.msra.mxu0 %v2275
      %4624 = vmatprep.subr.mxu0 %v2273
      %4625 = vmatpush1.msra.mxu0 %v2272
      %4626 = vmatprep.subr.mxu0 %v2270
      %4627 = vmatpush1.msra.mxu0 %v2269
      %4628 = vmatprep.subr.mxu0 %v2267
      %4629 = vmatpush1.msra.mxu0 %v2266
      %4630 = vmatprep.subr.mxu0 %v2264
      %4631 = vmatpush1.msra.mxu0 %v2263
      %4632 = vmatprep.subr.mxu0 %v2261
      %4633 = vmatpush1.msra.mxu0 %v2260
      %4634 = vmatprep.subr.mxu0 %v2258
      %4635 = vmatpush1.msra.mxu0 %v2257
      %4636 = vmatprep.subr.mxu0 0.0
      %4637 = vmatpush2.msra.mxu0 0.0
      %4638 = vmatprep.subr.mxu0 0.0
      %4639 = vmatpush2.msra.mxu0 0.0
      %4640 = vmatprep.subr.mxu0 0.0
      %4641 = vmatpush2.msra.mxu0 0.0
      %4642 = vmatprep.subr.mxu0 0.0
      %4643 = vmatpush2.msra.mxu0 0.0
      %4644 = vmatprep.subr.mxu0 0.0
      %4645 = vmatpush2.msra.mxu0 0.0
      %4646 = vmatprep.subr.mxu0 0.0
      %4647 = vmatpush2.msra.mxu0 0.0
      %4648 = vmatprep.subr.mxu0 0.0
      %4649 = vmatpush2.msra.mxu0 0.0
      %4650 = vmatprep.subr.mxu0 0.0
      %4651 = vmatpush2.msra.mxu0 0.0
      %4652 = vmatprep.subr.mxu0 0.0
      %4653 = vmatpush2.msra.mxu0 0.0
      %4654 = vmatprep.subr.mxu0 0.0
      %4655 = vmatpush2.msra.mxu0 0.0
      %4656 = vmatprep.subr.mxu0 0.0
      %4657 = vmatpush2.msra.mxu0 0.0
      %4658 = vmatprep.subr.mxu0 0.0
      %4659 = vmatpush2.msra.mxu0 0.0
      %4660 = vmatprep.subr.mxu0 0.0
      %4661 = vmatpush2.msra.mxu0 0.0
      %4662 = vmatprep.subr.mxu0 0.0
      %4663 = vmatpush2.msra.mxu0 0.0
      %4664 = vmatprep.subr.mxu0 0.0
      %4665 = vmatpush2.msra.mxu0 0.0
      %4666 = vmatprep.subr.mxu0 0.0
      %4667 = vmatpush2.msra.mxu0 0.0
      %4668 = vmatprep.mubr.f32.mxu0 0.0
      %4669 = vmatmul.mubr.f32.gmra.mxu0 %v4590
      %v4670 = vpop.f32.mrf.mxu0
      %v4671 = vadd.f32 %v2317, %v4670
      %v4672 = vpop.f32.mrf.mxu0
      %v4673 = vadd.f32 %v2321, %v4672
      %4674 = vdwg.mxu0
      %4675 = vmatprep.subr.mxu0 0.0
      %4676 = vmatpush1.msra.mxu0 %v2304
      %4677 = vmatprep.subr.mxu0 0.0
      %4678 = vmatpush1.msra.mxu0 %v2301
      %4679 = vmatprep.subr.mxu0 0.0
      %4680 = vmatpush1.msra.mxu0 %v2298
      %4681 = vmatprep.subr.mxu0 0.0
      %4682 = vmatpush1.msra.mxu0 %v2295
      %4683 = vmatprep.subr.mxu0 0.0
      %4684 = vmatpush1.msra.mxu0 %v2292
      %4685 = vmatprep.subr.mxu0 0.0
      %4686 = vmatpush1.msra.mxu0 %v2289
      %4687 = vmatprep.subr.mxu0 0.0
      %4688 = vmatpush1.msra.mxu0 %v2286
      %4689 = vmatprep.subr.mxu0 0.0
      %4690 = vmatpush1.msra.mxu0 %v2283
      %4691 = vmatprep.subr.mxu0 0.0
      %4692 = vmatpush1.msra.mxu0 %v2280
      %4693 = vmatprep.subr.mxu0 0.0
      %4694 = vmatpush1.msra.mxu0 %v2277
      %4695 = vmatprep.subr.mxu0 0.0
      %4696 = vmatpush1.msra.mxu0 %v2274
      %4697 = vmatprep.subr.mxu0 0.0
      %4698 = vmatpush1.msra.mxu0 %v2271
      %4699 = vmatprep.subr.mxu0 0.0
      %4700 = vmatpush1.msra.mxu0 %v2268
      %4701 = vmatprep.subr.mxu0 0.0
      %4702 = vmatpush1.msra.mxu0 %v2265
      %4703 = vmatprep.subr.mxu0 0.0
      %4704 = vmatpush1.msra.mxu0 %v2262
      %4705 = vmatprep.subr.mxu0 0.0
      %4706 = vmatpush1.msra.mxu0 %v2259
      %4707 = vmatprep.subr.mxu0 0.0
      %4708 = vmatpush2.msra.mxu0 0.0
      %4709 = vmatprep.subr.mxu0 0.0
      %4710 = vmatpush2.msra.mxu0 0.0
      %4711 = vmatprep.subr.mxu0 0.0
      %4712 = vmatpush2.msra.mxu0 0.0
      %4713 = vmatprep.subr.mxu0 0.0
      %4714 = vmatpush2.msra.mxu0 0.0
      %4715 = vmatprep.subr.mxu0 0.0
      %4716 = vmatpush2.msra.mxu0 0.0
      %4717 = vmatprep.subr.mxu0 0.0
      %4718 = vmatpush2.msra.mxu0 0.0
      %4719 = vmatprep.subr.mxu0 0.0
      %4720 = vmatpush2.msra.mxu0 0.0
      %4721 = vmatprep.subr.mxu0 0.0
      %4722 = vmatpush2.msra.mxu0 0.0
      %4723 = vmatprep.subr.mxu0 0.0
      %4724 = vmatpush2.msra.mxu0 0.0
      %4725 = vmatprep.subr.mxu0 0.0
      %4726 = vmatpush2.msra.mxu0 0.0
      %4727 = vmatprep.subr.mxu0 0.0
      %4728 = vmatpush2.msra.mxu0 0.0
      %4729 = vmatprep.subr.mxu0 0.0
      %4730 = vmatpush2.msra.mxu0 0.0
      %4731 = vmatprep.subr.mxu0 0.0
      %4732 = vmatpush2.msra.mxu0 0.0
      %4733 = vmatprep.subr.mxu0 0.0
      %4734 = vmatpush2.msra.mxu0 0.0
      %4735 = vmatprep.subr.mxu0 0.0
      %4736 = vmatpush2.msra.mxu0 0.0
      %4737 = vmatprep.subr.mxu0 0.0
      %4738 = vmatpush2.msra.mxu0 0.0
      %4739 = vmatprep.mubr.f32.mxu0 0.0
      %4740 = vmatmul.mubr.f32.gmra.mxu0 %v4590
      %v4741 = vpop.f32.mrf.mxu0
      %v4742 = vadd.f32 %v2325, %v4741
      %v4743 = vpop.f32.mrf.mxu0
      %4744 = vdwg.mxu0
      %v4745 = vadd.f32 %v4601, %v4671
      %v4746 = vxor.u32 %v4745, 2147483648
      %v4747 = vmul.f32 %v4746, 1.442695
      %v4748 = vpow.pop %v4747
      %v4749 = vadd.f32 %v4748, 1.0
      %v4750 = vrcp.pop %v4749
      %v4751 = vmul.f32 1.0, %v4750
      %v4752 = vadd.f32 %v4602, %v4673
      %v4753 = vxor.u32 %v4752, 2147483648
      %v4754 = vmul.f32 %v4753, 1.442695
      %v4755 = vpow.pop %v4754
      %v4756 = vadd.f32 %v4755, 1.0
      %v4757 = vrcp.pop %v4756
      %v4758 = vmul.f32 1.0, %v4757
      %v4759 = vmul.f32 %v4751, %v4742
      %v4760 = vadd.f32 %v4603, %v4759
      %v4761 = vtanh.pop %v4760
      %v4762 = vsub.f32 1.0, %v4758
      %v4763 = vmul.f32 %v4762, %v4761
      %v4764 = vmul.f32 %v4758, %v4590
      %v4765 = vadd.f32 %v4763, %v4764
      %s4766 = sadd.s32 %s2307, 14
      %v4767 = vstv %s4766
      %vm4768 = vcmp.eq.s32.totalorder %v2306, %v4767
      %v4769 = vsel %vm4768, 1, 0
      %4770 = vset.pattern.permute.xlu0 0
      %4771 = vperm.xlu0 %4770, %v4769
      %v4772 = vpop.permute.xlu0 %4771
      %vm4773 = vcmp.eq.s32.totalorder %v4772, 1
      %v4774 = vsel %vm4773, %v4765, %v4599
      %s4775 = scalar_lea.vmem [#allocation2], 336
      %v4776 = vld [vmem:[%s4775] sm:$0xff]
      %v4777 = vld [vmem:[%s4775 + $0x8] sm:$0xff]
      %v4778 = vld [vmem:[%s4775 + $0x10] sm:$0xff]
      %4779 = vmatprep.subr.mxu0 %v2303
      %4780 = vmatpush1.msra.mxu0 %v2302
      %4781 = vmatprep.subr.mxu0 %v2300
      %4782 = vmatpush1.msra.mxu0 %v2299
      %4783 = vmatprep.subr.mxu0 %v2297
      %4784 = vmatpush1.msra.mxu0 %v2296
      %4785 = vmatprep.subr.mxu0 %v2294
      %4786 = vmatpush1.msra.mxu0 %v2293
      %4787 = vmatprep.subr.mxu0 %v2291
      %4788 = vmatpush1.msra.mxu0 %v2290
      %4789 = vmatprep.subr.mxu0 %v2288
      %4790 = vmatpush1.msra.mxu0 %v2287
      %4791 = vmatprep.subr.mxu0 %v2285
      %4792 = vmatpush1.msra.mxu0 %v2284
      %4793 = vmatprep.subr.mxu0 %v2282
      %4794 = vmatpush1.msra.mxu0 %v2281
      %4795 = vmatprep.subr.mxu0 %v2279
      %4796 = vmatpush1.msra.mxu0 %v2278
      %4797 = vmatprep.subr.mxu0 %v2276
      %4798 = vmatpush1.msra.mxu0 %v2275
      %4799 = vmatprep.subr.mxu0 %v2273
      %4800 = vmatpush1.msra.mxu0 %v2272
      %4801 = vmatprep.subr.mxu0 %v2270
      %4802 = vmatpush1.msra.mxu0 %v2269
      %4803 = vmatprep.subr.mxu0 %v2267
      %4804 = vmatpush1.msra.mxu0 %v2266
      %4805 = vmatprep.subr.mxu0 %v2264
      %4806 = vmatpush1.msra.mxu0 %v2263
      %4807 = vmatprep.subr.mxu0 %v2261
      %4808 = vmatpush1.msra.mxu0 %v2260
      %4809 = vmatprep.subr.mxu0 %v2258
      %4810 = vmatpush1.msra.mxu0 %v2257
      %4811 = vmatprep.subr.mxu0 0.0
      %4812 = vmatpush2.msra.mxu0 0.0
      %4813 = vmatprep.subr.mxu0 0.0
      %4814 = vmatpush2.msra.mxu0 0.0
      %4815 = vmatprep.subr.mxu0 0.0
      %4816 = vmatpush2.msra.mxu0 0.0
      %4817 = vmatprep.subr.mxu0 0.0
      %4818 = vmatpush2.msra.mxu0 0.0
      %4819 = vmatprep.subr.mxu0 0.0
      %4820 = vmatpush2.msra.mxu0 0.0
      %4821 = vmatprep.subr.mxu0 0.0
      %4822 = vmatpush2.msra.mxu0 0.0
      %4823 = vmatprep.subr.mxu0 0.0
      %4824 = vmatpush2.msra.mxu0 0.0
      %4825 = vmatprep.subr.mxu0 0.0
      %4826 = vmatpush2.msra.mxu0 0.0
      %4827 = vmatprep.subr.mxu0 0.0
      %4828 = vmatpush2.msra.mxu0 0.0
      %4829 = vmatprep.subr.mxu0 0.0
      %4830 = vmatpush2.msra.mxu0 0.0
      %4831 = vmatprep.subr.mxu0 0.0
      %4832 = vmatpush2.msra.mxu0 0.0
      %4833 = vmatprep.subr.mxu0 0.0
      %4834 = vmatpush2.msra.mxu0 0.0
      %4835 = vmatprep.subr.mxu0 0.0
      %4836 = vmatpush2.msra.mxu0 0.0
      %4837 = vmatprep.subr.mxu0 0.0
      %4838 = vmatpush2.msra.mxu0 0.0
      %4839 = vmatprep.subr.mxu0 0.0
      %4840 = vmatpush2.msra.mxu0 0.0
      %4841 = vmatprep.subr.mxu0 0.0
      %4842 = vmatpush2.msra.mxu0 0.0
      %4843 = vmatprep.mubr.f32.mxu0 0.0
      %4844 = vmatmul.mubr.f32.gmra.mxu0 %v4765
      %v4845 = vpop.f32.mrf.mxu0
      %v4846 = vadd.f32 %v2317, %v4845
      %v4847 = vpop.f32.mrf.mxu0
      %v4848 = vadd.f32 %v2321, %v4847
      %4849 = vdwg.mxu0
      %4850 = vmatprep.subr.mxu0 0.0
      %4851 = vmatpush1.msra.mxu0 %v2304
      %4852 = vmatprep.subr.mxu0 0.0
      %4853 = vmatpush1.msra.mxu0 %v2301
      %4854 = vmatprep.subr.mxu0 0.0
      %4855 = vmatpush1.msra.mxu0 %v2298
      %4856 = vmatprep.subr.mxu0 0.0
      %4857 = vmatpush1.msra.mxu0 %v2295
      %4858 = vmatprep.subr.mxu0 0.0
      %4859 = vmatpush1.msra.mxu0 %v2292
      %4860 = vmatprep.subr.mxu0 0.0
      %4861 = vmatpush1.msra.mxu0 %v2289
      %4862 = vmatprep.subr.mxu0 0.0
      %4863 = vmatpush1.msra.mxu0 %v2286
      %4864 = vmatprep.subr.mxu0 0.0
      %4865 = vmatpush1.msra.mxu0 %v2283
      %4866 = vmatprep.subr.mxu0 0.0
      %4867 = vmatpush1.msra.mxu0 %v2280
      %4868 = vmatprep.subr.mxu0 0.0
      %4869 = vmatpush1.msra.mxu0 %v2277
      %4870 = vmatprep.subr.mxu0 0.0
      %4871 = vmatpush1.msra.mxu0 %v2274
      %4872 = vmatprep.subr.mxu0 0.0
      %4873 = vmatpush1.msra.mxu0 %v2271
      %4874 = vmatprep.subr.mxu0 0.0
      %4875 = vmatpush1.msra.mxu0 %v2268
      %4876 = vmatprep.subr.mxu0 0.0
      %4877 = vmatpush1.msra.mxu0 %v2265
      %4878 = vmatprep.subr.mxu0 0.0
      %4879 = vmatpush1.msra.mxu0 %v2262
      %4880 = vmatprep.subr.mxu0 0.0
      %4881 = vmatpush1.msra.mxu0 %v2259
      %4882 = vmatprep.subr.mxu0 0.0
      %4883 = vmatpush2.msra.mxu0 0.0
      %4884 = vmatprep.subr.mxu0 0.0
      %4885 = vmatpush2.msra.mxu0 0.0
      %4886 = vmatprep.subr.mxu0 0.0
      %4887 = vmatpush2.msra.mxu0 0.0
      %4888 = vmatprep.subr.mxu0 0.0
      %4889 = vmatpush2.msra.mxu0 0.0
      %4890 = vmatprep.subr.mxu0 0.0
      %4891 = vmatpush2.msra.mxu0 0.0
      %4892 = vmatprep.subr.mxu0 0.0
      %4893 = vmatpush2.msra.mxu0 0.0
      %4894 = vmatprep.subr.mxu0 0.0
      %4895 = vmatpush2.msra.mxu0 0.0
      %4896 = vmatprep.subr.mxu0 0.0
      %4897 = vmatpush2.msra.mxu0 0.0
      %4898 = vmatprep.subr.mxu0 0.0
      %4899 = vmatpush2.msra.mxu0 0.0
      %4900 = vmatprep.subr.mxu0 0.0
      %4901 = vmatpush2.msra.mxu0 0.0
      %4902 = vmatprep.subr.mxu0 0.0
      %4903 = vmatpush2.msra.mxu0 0.0
      %4904 = vmatprep.subr.mxu0 0.0
      %4905 = vmatpush2.msra.mxu0 0.0
      %4906 = vmatprep.subr.mxu0 0.0
      %4907 = vmatpush2.msra.mxu0 0.0
      %4908 = vmatprep.subr.mxu0 0.0
      %4909 = vmatpush2.msra.mxu0 0.0
      %4910 = vmatprep.subr.mxu0 0.0
      %4911 = vmatpush2.msra.mxu0 0.0
      %4912 = vmatprep.subr.mxu0 0.0
      %4913 = vmatpush2.msra.mxu0 0.0
      %4914 = vmatprep.mubr.f32.mxu0 0.0
      %4915 = vmatmul.mubr.f32.gmra.mxu0 %v4765
      %v4916 = vpop.f32.mrf.mxu0
      %v4917 = vadd.f32 %v2325, %v4916
      %v4918 = vpop.f32.mrf.mxu0
      %4919 = vdwg.mxu0
      %v4920 = vadd.f32 %v4776, %v4846
      %v4921 = vxor.u32 %v4920, 2147483648
      %v4922 = vmul.f32 %v4921, 1.442695
      %v4923 = vpow.pop %v4922
      %v4924 = vadd.f32 %v4923, 1.0
      %v4925 = vrcp.pop %v4924
      %v4926 = vmul.f32 1.0, %v4925
      %v4927 = vadd.f32 %v4777, %v4848
      %v4928 = vxor.u32 %v4927, 2147483648
      %v4929 = vmul.f32 %v4928, 1.442695
      %v4930 = vpow.pop %v4929
      %v4931 = vadd.f32 %v4930, 1.0
      %v4932 = vrcp.pop %v4931
      %v4933 = vmul.f32 1.0, %v4932
      %v4934 = vmul.f32 %v4926, %v4917
      %v4935 = vadd.f32 %v4778, %v4934
      %v4936 = vtanh.pop %v4935
      %v4937 = vsub.f32 1.0, %v4933
      %v4938 = vmul.f32 %v4937, %v4936
      %v4939 = vmul.f32 %v4933, %v4765
      %v4940 = vadd.f32 %v4938, %v4939
      %s4941 = sadd.s32 %s2307, 15
      %v4942 = vstv %s4941
      %vm4943 = vcmp.eq.s32.totalorder %v2306, %v4942
      %v4944 = vsel %vm4943, 1, 0
      %4945 = vset.pattern.permute.xlu0 0
      %4946 = vperm.xlu0 %4945, %v4944
      %v4947 = vpop.permute.xlu0 %4946
      %vm4948 = vcmp.eq.s32.totalorder %v4947, 1
      %v4949 = vsel %vm4948, %v4940, %v4774
      %s4950 = scalar_lea.vmem [#allocation2], 360
      %v4951 = vld [vmem:[%s4950] sm:$0xff]
      %v4952 = vld [vmem:[%s4950 + $0x8] sm:$0xff]
      %v4953 = vld [vmem:[%s4950 + $0x10] sm:$0xff]
      %4954 = vmatprep.subr.mxu0 %v2303
      %4955 = vmatpush1.msra.mxu0 %v2302
      %4956 = vmatprep.subr.mxu0 %v2300
      %4957 = vmatpush1.msra.mxu0 %v2299
      %4958 = vmatprep.subr.mxu0 %v2297
      %4959 = vmatpush1.msra.mxu0 %v2296
      %4960 = vmatprep.subr.mxu0 %v2294
      %4961 = vmatpush1.msra.mxu0 %v2293
      %4962 = vmatprep.subr.mxu0 %v2291
      %4963 = vmatpush1.msra.mxu0 %v2290
      %4964 = vmatprep.subr.mxu0 %v2288
      %4965 = vmatpush1.msra.mxu0 %v2287
      %4966 = vmatprep.subr.mxu0 %v2285
      %4967 = vmatpush1.msra.mxu0 %v2284
      %4968 = vmatprep.subr.mxu0 %v2282
      %4969 = vmatpush1.msra.mxu0 %v2281
      %4970 = vmatprep.subr.mxu0 %v2279
      %4971 = vmatpush1.msra.mxu0 %v2278
      %4972 = vmatprep.subr.mxu0 %v2276
      %4973 = vmatpush1.msra.mxu0 %v2275
      %4974 = vmatprep.subr.mxu0 %v2273
      %4975 = vmatpush1.msra.mxu0 %v2272
      %4976 = vmatprep.subr.mxu0 %v2270
      %4977 = vmatpush1.msra.mxu0 %v2269
      %4978 = vmatprep.subr.mxu0 %v2267
      %4979 = vmatpush1.msra.mxu0 %v2266
      %4980 = vmatprep.subr.mxu0 %v2264
      %4981 = vmatpush1.msra.mxu0 %v2263
      %4982 = vmatprep.subr.mxu0 %v2261
      %4983 = vmatpush1.msra.mxu0 %v2260
      %4984 = vmatprep.subr.mxu0 %v2258
      %4985 = vmatpush1.msra.mxu0 %v2257
      %4986 = vmatprep.subr.mxu0 0.0
      %4987 = vmatpush2.msra.mxu0 0.0
      %4988 = vmatprep.subr.mxu0 0.0
      %4989 = vmatpush2.msra.mxu0 0.0
      %4990 = vmatprep.subr.mxu0 0.0
      %4991 = vmatpush2.msra.mxu0 0.0
      %4992 = vmatprep.subr.mxu0 0.0
      %4993 = vmatpush2.msra.mxu0 0.0
      %4994 = vmatprep.subr.mxu0 0.0
      %4995 = vmatpush2.msra.mxu0 0.0
      %4996 = vmatprep.subr.mxu0 0.0
      %4997 = vmatpush2.msra.mxu0 0.0
      %4998 = vmatprep.subr.mxu0 0.0
      %4999 = vmatpush2.msra.mxu0 0.0
      %5000 = vmatprep.subr.mxu0 0.0
      %5001 = vmatpush2.msra.mxu0 0.0
      %5002 = vmatprep.subr.mxu0 0.0
      %5003 = vmatpush2.msra.mxu0 0.0
      %5004 = vmatprep.subr.mxu0 0.0
      %5005 = vmatpush2.msra.mxu0 0.0
      %5006 = vmatprep.subr.mxu0 0.0
      %5007 = vmatpush2.msra.mxu0 0.0
      %5008 = vmatprep.subr.mxu0 0.0
      %5009 = vmatpush2.msra.mxu0 0.0
      %5010 = vmatprep.subr.mxu0 0.0
      %5011 = vmatpush2.msra.mxu0 0.0
      %5012 = vmatprep.subr.mxu0 0.0
      %5013 = vmatpush2.msra.mxu0 0.0
      %5014 = vmatprep.subr.mxu0 0.0
      %5015 = vmatpush2.msra.mxu0 0.0
      %5016 = vmatprep.subr.mxu0 0.0
      %5017 = vmatpush2.msra.mxu0 0.0
      %5018 = vmatprep.mubr.f32.mxu0 0.0
      %5019 = vmatmul.mubr.f32.gmra.mxu0 %v4940
      %v5020 = vpop.f32.mrf.mxu0
      %v5021 = vadd.f32 %v2317, %v5020
      %v5022 = vpop.f32.mrf.mxu0
      %v5023 = vadd.f32 %v2321, %v5022
      %5024 = vdwg.mxu0
      %5025 = vmatprep.subr.mxu0 0.0
      %5026 = vmatpush1.msra.mxu0 %v2304
      %5027 = vmatprep.subr.mxu0 0.0
      %5028 = vmatpush1.msra.mxu0 %v2301
      %5029 = vmatprep.subr.mxu0 0.0
      %5030 = vmatpush1.msra.mxu0 %v2298
      %5031 = vmatprep.subr.mxu0 0.0
      %5032 = vmatpush1.msra.mxu0 %v2295
      %5033 = vmatprep.subr.mxu0 0.0
      %5034 = vmatpush1.msra.mxu0 %v2292
      %5035 = vmatprep.subr.mxu0 0.0
      %5036 = vmatpush1.msra.mxu0 %v2289
      %5037 = vmatprep.subr.mxu0 0.0
      %5038 = vmatpush1.msra.mxu0 %v2286
      %5039 = vmatprep.subr.mxu0 0.0
      %5040 = vmatpush1.msra.mxu0 %v2283
      %5041 = vmatprep.subr.mxu0 0.0
      %5042 = vmatpush1.msra.mxu0 %v2280
      %5043 = vmatprep.subr.mxu0 0.0
      %5044 = vmatpush1.msra.mxu0 %v2277
      %5045 = vmatprep.subr.mxu0 0.0
      %5046 = vmatpush1.msra.mxu0 %v2274
      %5047 = vmatprep.subr.mxu0 0.0
      %5048 = vmatpush1.msra.mxu0 %v2271
      %5049 = vmatprep.subr.mxu0 0.0
      %5050 = vmatpush1.msra.mxu0 %v2268
      %5051 = vmatprep.subr.mxu0 0.0
      %5052 = vmatpush1.msra.mxu0 %v2265
      %5053 = vmatprep.subr.mxu0 0.0
      %5054 = vmatpush1.msra.mxu0 %v2262
      %5055 = vmatprep.subr.mxu0 0.0
      %5056 = vmatpush1.msra.mxu0 %v2259
      %5057 = vmatprep.subr.mxu0 0.0
      %5058 = vmatpush2.msra.mxu0 0.0
      %5059 = vmatprep.subr.mxu0 0.0
      %5060 = vmatpush2.msra.mxu0 0.0
      %5061 = vmatprep.subr.mxu0 0.0
      %5062 = vmatpush2.msra.mxu0 0.0
      %5063 = vmatprep.subr.mxu0 0.0
      %5064 = vmatpush2.msra.mxu0 0.0
      %5065 = vmatprep.subr.mxu0 0.0
      %5066 = vmatpush2.msra.mxu0 0.0
      %5067 = vmatprep.subr.mxu0 0.0
      %5068 = vmatpush2.msra.mxu0 0.0
      %5069 = vmatprep.subr.mxu0 0.0
      %5070 = vmatpush2.msra.mxu0 0.0
      %5071 = vmatprep.subr.mxu0 0.0
      %5072 = vmatpush2.msra.mxu0 0.0
      %5073 = vmatprep.subr.mxu0 0.0
      %5074 = vmatpush2.msra.mxu0 0.0
      %5075 = vmatprep.subr.mxu0 0.0
      %5076 = vmatpush2.msra.mxu0 0.0
      %5077 = vmatprep.subr.mxu0 0.0
      %5078 = vmatpush2.msra.mxu0 0.0
      %5079 = vmatprep.subr.mxu0 0.0
      %5080 = vmatpush2.msra.mxu0 0.0
      %5081 = vmatprep.subr.mxu0 0.0
      %5082 = vmatpush2.msra.mxu0 0.0
      %5083 = vmatprep.subr.mxu0 0.0
      %5084 = vmatpush2.msra.mxu0 0.0
      %5085 = vmatprep.subr.mxu0 0.0
      %5086 = vmatpush2.msra.mxu0 0.0
      %5087 = vmatprep.subr.mxu0 0.0
      %5088 = vmatpush2.msra.mxu0 0.0
      %5089 = vmatprep.mubr.f32.mxu0 0.0
      %5090 = vmatmul.mubr.f32.gmra.mxu0 %v4940
      %v5091 = vpop.f32.mrf.mxu0
      %v5092 = vadd.f32 %v2325, %v5091
      %v5093 = vpop.f32.mrf.mxu0
      %5094 = vdwg.mxu0
      %v5095 = vadd.f32 %v4951, %v5021
      %v5096 = vxor.u32 %v5095, 2147483648
      %v5097 = vmul.f32 %v5096, 1.442695
      %v5098 = vpow.pop %v5097
      %v5099 = vadd.f32 %v5098, 1.0
      %v5100 = vrcp.pop %v5099
      %v5101 = vmul.f32 1.0, %v5100
      %v5102 = vadd.f32 %v4952, %v5023
      %v5103 = vxor.u32 %v5102, 2147483648
      %v5104 = vmul.f32 %v5103, 1.442695
      %v5105 = vpow.pop %v5104
      %v5106 = vadd.f32 %v5105, 1.0
      %v5107 = vrcp.pop %v5106
      %v5108 = vmul.f32 1.0, %v5107
      %v5109 = vmul.f32 %v5101, %v5092
      %v5110 = vadd.f32 %v4953, %v5109
      %v5111 = vtanh.pop %v5110
      %v5112 = vsub.f32 1.0, %v5108
      %v5113 = vmul.f32 %v5112, %v5111
      %v5114 = vmul.f32 %v5108, %v4940
      %v5115 = vadd.f32 %v5113, %v5114
      %s5116 = sadd.s32 %s2307, 16
      %v5117 = vstv %s5116
      %vm5118 = vcmp.eq.s32.totalorder %v2306, %v5117
      %v5119 = vsel %vm5118, 1, 0
      %5120 = vset.pattern.permute.xlu0 0
      %5121 = vperm.xlu0 %5120, %v5119
      %v5122 = vpop.permute.xlu0 %5121
      %vm5123 = vcmp.eq.s32.totalorder %v5122, 1
      %v5124 = vsel %vm5123, %v5115, %v4949
      %s5125 = scalar_lea.vmem [#allocation2], 384
      %v5126 = vld [vmem:[%s5125] sm:$0xff]
      %v5127 = vld [vmem:[%s5125 + $0x8] sm:$0xff]
      %v5128 = vld [vmem:[%s5125 + $0x10] sm:$0xff]
      %5129 = vmatprep.subr.mxu0 %v2303
      %5130 = vmatpush1.msra.mxu0 %v2302
      %5131 = vmatprep.subr.mxu0 %v2300
      %5132 = vmatpush1.msra.mxu0 %v2299
      %5133 = vmatprep.subr.mxu0 %v2297
      %5134 = vmatpush1.msra.mxu0 %v2296
      %5135 = vmatprep.subr.mxu0 %v2294
      %5136 = vmatpush1.msra.mxu0 %v2293
      %5137 = vmatprep.subr.mxu0 %v2291
      %5138 = vmatpush1.msra.mxu0 %v2290
      %5139 = vmatprep.subr.mxu0 %v2288
      %5140 = vmatpush1.msra.mxu0 %v2287
      %5141 = vmatprep.subr.mxu0 %v2285
      %5142 = vmatpush1.msra.mxu0 %v2284
      %5143 = vmatprep.subr.mxu0 %v2282
      %5144 = vmatpush1.msra.mxu0 %v2281
      %5145 = vmatprep.subr.mxu0 %v2279
      %5146 = vmatpush1.msra.mxu0 %v2278
      %5147 = vmatprep.subr.mxu0 %v2276
      %5148 = vmatpush1.msra.mxu0 %v2275
      %5149 = vmatprep.subr.mxu0 %v2273
      %5150 = vmatpush1.msra.mxu0 %v2272
      %5151 = vmatprep.subr.mxu0 %v2270
      %5152 = vmatpush1.msra.mxu0 %v2269
      %5153 = vmatprep.subr.mxu0 %v2267
      %5154 = vmatpush1.msra.mxu0 %v2266
      %5155 = vmatprep.subr.mxu0 %v2264
      %5156 = vmatpush1.msra.mxu0 %v2263
      %5157 = vmatprep.subr.mxu0 %v2261
      %5158 = vmatpush1.msra.mxu0 %v2260
      %5159 = vmatprep.subr.mxu0 %v2258
      %5160 = vmatpush1.msra.mxu0 %v2257
      %5161 = vmatprep.subr.mxu0 0.0
      %5162 = vmatpush2.msra.mxu0 0.0
      %5163 = vmatprep.subr.mxu0 0.0
      %5164 = vmatpush2.msra.mxu0 0.0
      %5165 = vmatprep.subr.mxu0 0.0
      %5166 = vmatpush2.msra.mxu0 0.0
      %5167 = vmatprep.subr.mxu0 0.0
      %5168 = vmatpush2.msra.mxu0 0.0
      %5169 = vmatprep.subr.mxu0 0.0
      %5170 = vmatpush2.msra.mxu0 0.0
      %5171 = vmatprep.subr.mxu0 0.0
      %5172 = vmatpush2.msra.mxu0 0.0
      %5173 = vmatprep.subr.mxu0 0.0
      %5174 = vmatpush2.msra.mxu0 0.0
      %5175 = vmatprep.subr.mxu0 0.0
      %5176 = vmatpush2.msra.mxu0 0.0
      %5177 = vmatprep.subr.mxu0 0.0
      %5178 = vmatpush2.msra.mxu0 0.0
      %5179 = vmatprep.subr.mxu0 0.0
      %5180 = vmatpush2.msra.mxu0 0.0
      %5181 = vmatprep.subr.mxu0 0.0
      %5182 = vmatpush2.msra.mxu0 0.0
      %5183 = vmatprep.subr.mxu0 0.0
      %5184 = vmatpush2.msra.mxu0 0.0
      %5185 = vmatprep.subr.mxu0 0.0
      %5186 = vmatpush2.msra.mxu0 0.0
      %5187 = vmatprep.subr.mxu0 0.0
      %5188 = vmatpush2.msra.mxu0 0.0
      %5189 = vmatprep.subr.mxu0 0.0
      %5190 = vmatpush2.msra.mxu0 0.0
      %5191 = vmatprep.subr.mxu0 0.0
      %5192 = vmatpush2.msra.mxu0 0.0
      %5193 = vmatprep.mubr.f32.mxu0 0.0
      %5194 = vmatmul.mubr.f32.gmra.mxu0 %v5115
      %v5195 = vpop.f32.mrf.mxu0
      %v5196 = vadd.f32 %v2317, %v5195
      %v5197 = vpop.f32.mrf.mxu0
      %v5198 = vadd.f32 %v2321, %v5197
      %5199 = vdwg.mxu0
      %5200 = vmatprep.subr.mxu0 0.0
      %5201 = vmatpush1.msra.mxu0 %v2304
      %5202 = vmatprep.subr.mxu0 0.0
      %5203 = vmatpush1.msra.mxu0 %v2301
      %5204 = vmatprep.subr.mxu0 0.0
      %5205 = vmatpush1.msra.mxu0 %v2298
      %5206 = vmatprep.subr.mxu0 0.0
      %5207 = vmatpush1.msra.mxu0 %v2295
      %5208 = vmatprep.subr.mxu0 0.0
      %5209 = vmatpush1.msra.mxu0 %v2292
      %5210 = vmatprep.subr.mxu0 0.0
      %5211 = vmatpush1.msra.mxu0 %v2289
      %5212 = vmatprep.subr.mxu0 0.0
      %5213 = vmatpush1.msra.mxu0 %v2286
      %5214 = vmatprep.subr.mxu0 0.0
      %5215 = vmatpush1.msra.mxu0 %v2283
      %5216 = vmatprep.subr.mxu0 0.0
      %5217 = vmatpush1.msra.mxu0 %v2280
      %5218 = vmatprep.subr.mxu0 0.0
      %5219 = vmatpush1.msra.mxu0 %v2277
      %5220 = vmatprep.subr.mxu0 0.0
      %5221 = vmatpush1.msra.mxu0 %v2274
      %5222 = vmatprep.subr.mxu0 0.0
      %5223 = vmatpush1.msra.mxu0 %v2271
      %5224 = vmatprep.subr.mxu0 0.0
      %5225 = vmatpush1.msra.mxu0 %v2268
      %5226 = vmatprep.subr.mxu0 0.0
      %5227 = vmatpush1.msra.mxu0 %v2265
      %5228 = vmatprep.subr.mxu0 0.0
      %5229 = vmatpush1.msra.mxu0 %v2262
      %5230 = vmatprep.subr.mxu0 0.0
      %5231 = vmatpush1.msra.mxu0 %v2259
      %5232 = vmatprep.subr.mxu0 0.0
      %5233 = vmatpush2.msra.mxu0 0.0
      %5234 = vmatprep.subr.mxu0 0.0
      %5235 = vmatpush2.msra.mxu0 0.0
      %5236 = vmatprep.subr.mxu0 0.0
      %5237 = vmatpush2.msra.mxu0 0.0
      %5238 = vmatprep.subr.mxu0 0.0
      %5239 = vmatpush2.msra.mxu0 0.0
      %5240 = vmatprep.subr.mxu0 0.0
      %5241 = vmatpush2.msra.mxu0 0.0
      %5242 = vmatprep.subr.mxu0 0.0
      %5243 = vmatpush2.msra.mxu0 0.0
      %5244 = vmatprep.subr.mxu0 0.0
      %5245 = vmatpush2.msra.mxu0 0.0
      %5246 = vmatprep.subr.mxu0 0.0
      %5247 = vmatpush2.msra.mxu0 0.0
      %5248 = vmatprep.subr.mxu0 0.0
      %5249 = vmatpush2.msra.mxu0 0.0
      %5250 = vmatprep.subr.mxu0 0.0
      %5251 = vmatpush2.msra.mxu0 0.0
      %5252 = vmatprep.subr.mxu0 0.0
      %5253 = vmatpush2.msra.mxu0 0.0
      %5254 = vmatprep.subr.mxu0 0.0
      %5255 = vmatpush2.msra.mxu0 0.0
      %5256 = vmatprep.subr.mxu0 0.0
      %5257 = vmatpush2.msra.mxu0 0.0
      %5258 = vmatprep.subr.mxu0 0.0
      %5259 = vmatpush2.msra.mxu0 0.0
      %5260 = vmatprep.subr.mxu0 0.0
      %5261 = vmatpush2.msra.mxu0 0.0
      %5262 = vmatprep.subr.mxu0 0.0
      %5263 = vmatpush2.msra.mxu0 0.0
      %5264 = vmatprep.mubr.f32.mxu0 0.0
      %5265 = vmatmul.mubr.f32.gmra.mxu0 %v5115
      %v5266 = vpop.f32.mrf.mxu0
      %v5267 = vadd.f32 %v2325, %v5266
      %v5268 = vpop.f32.mrf.mxu0
      %5269 = vdwg.mxu0
      %v5270 = vadd.f32 %v5126, %v5196
      %v5271 = vxor.u32 %v5270, 2147483648
      %v5272 = vmul.f32 %v5271, 1.442695
      %v5273 = vpow.pop %v5272
      %v5274 = vadd.f32 %v5273, 1.0
      %v5275 = vrcp.pop %v5274
      %v5276 = vmul.f32 1.0, %v5275
      %v5277 = vadd.f32 %v5127, %v5198
      %v5278 = vxor.u32 %v5277, 2147483648
      %v5279 = vmul.f32 %v5278, 1.442695
      %v5280 = vpow.pop %v5279
      %v5281 = vadd.f32 %v5280, 1.0
      %v5282 = vrcp.pop %v5281
      %v5283 = vmul.f32 1.0, %v5282
      %v5284 = vmul.f32 %v5276, %v5267
      %v5285 = vadd.f32 %v5128, %v5284
      %v5286 = vtanh.pop %v5285
      %v5287 = vsub.f32 1.0, %v5283
      %v5288 = vmul.f32 %v5287, %v5286
      %v5289 = vmul.f32 %v5283, %v5115
      %v5290 = vadd.f32 %v5288, %v5289
      %s5291 = sadd.s32 %s2307, 17
      %v5292 = vstv %s5291
      %vm5293 = vcmp.eq.s32.totalorder %v2306, %v5292
      %v5294 = vsel %vm5293, 1, 0
      %5295 = vset.pattern.permute.xlu0 0
      %5296 = vperm.xlu0 %5295, %v5294
      %v5297 = vpop.permute.xlu0 %5296
      %vm5298 = vcmp.eq.s32.totalorder %v5297, 1
      %v5299 = vsel %vm5298, %v5290, %v5124
      %s5300 = scalar_lea.vmem [#allocation2], 408
      %v5301 = vld [vmem:[%s5300] sm:$0xff]
      %v5302 = vld [vmem:[%s5300 + $0x8] sm:$0xff]
      %v5303 = vld [vmem:[%s5300 + $0x10] sm:$0xff]
      %5304 = vmatprep.subr.mxu0 %v2303
      %5305 = vmatpush1.msra.mxu0 %v2302
      %5306 = vmatprep.subr.mxu0 %v2300
      %5307 = vmatpush1.msra.mxu0 %v2299
      %5308 = vmatprep.subr.mxu0 %v2297
      %5309 = vmatpush1.msra.mxu0 %v2296
      %5310 = vmatprep.subr.mxu0 %v2294
      %5311 = vmatpush1.msra.mxu0 %v2293
      %5312 = vmatprep.subr.mxu0 %v2291
      %5313 = vmatpush1.msra.mxu0 %v2290
      %5314 = vmatprep.subr.mxu0 %v2288
      %5315 = vmatpush1.msra.mxu0 %v2287
      %5316 = vmatprep.subr.mxu0 %v2285
      %5317 = vmatpush1.msra.mxu0 %v2284
      %5318 = vmatprep.subr.mxu0 %v2282
      %5319 = vmatpush1.msra.mxu0 %v2281
      %5320 = vmatprep.subr.mxu0 %v2279
      %5321 = vmatpush1.msra.mxu0 %v2278
      %5322 = vmatprep.subr.mxu0 %v2276
      %5323 = vmatpush1.msra.mxu0 %v2275
      %5324 = vmatprep.subr.mxu0 %v2273
      %5325 = vmatpush1.msra.mxu0 %v2272
      %5326 = vmatprep.subr.mxu0 %v2270
      %5327 = vmatpush1.msra.mxu0 %v2269
      %5328 = vmatprep.subr.mxu0 %v2267
      %5329 = vmatpush1.msra.mxu0 %v2266
      %5330 = vmatprep.subr.mxu0 %v2264
      %5331 = vmatpush1.msra.mxu0 %v2263
      %5332 = vmatprep.subr.mxu0 %v2261
      %5333 = vmatpush1.msra.mxu0 %v2260
      %5334 = vmatprep.subr.mxu0 %v2258
      %5335 = vmatpush1.msra.mxu0 %v2257
      %5336 = vmatprep.subr.mxu0 0.0
      %5337 = vmatpush2.msra.mxu0 0.0
      %5338 = vmatprep.subr.mxu0 0.0
      %5339 = vmatpush2.msra.mxu0 0.0
      %5340 = vmatprep.subr.mxu0 0.0
      %5341 = vmatpush2.msra.mxu0 0.0
      %5342 = vmatprep.subr.mxu0 0.0
      %5343 = vmatpush2.msra.mxu0 0.0
      %5344 = vmatprep.subr.mxu0 0.0
      %5345 = vmatpush2.msra.mxu0 0.0
      %5346 = vmatprep.subr.mxu0 0.0
      %5347 = vmatpush2.msra.mxu0 0.0
      %5348 = vmatprep.subr.mxu0 0.0
      %5349 = vmatpush2.msra.mxu0 0.0
      %5350 = vmatprep.subr.mxu0 0.0
      %5351 = vmatpush2.msra.mxu0 0.0
      %5352 = vmatprep.subr.mxu0 0.0
      %5353 = vmatpush2.msra.mxu0 0.0
      %5354 = vmatprep.subr.mxu0 0.0
      %5355 = vmatpush2.msra.mxu0 0.0
      %5356 = vmatprep.subr.mxu0 0.0
      %5357 = vmatpush2.msra.mxu0 0.0
      %5358 = vmatprep.subr.mxu0 0.0
      %5359 = vmatpush2.msra.mxu0 0.0
      %5360 = vmatprep.subr.mxu0 0.0
      %5361 = vmatpush2.msra.mxu0 0.0
      %5362 = vmatprep.subr.mxu0 0.0
      %5363 = vmatpush2.msra.mxu0 0.0
      %5364 = vmatprep.subr.mxu0 0.0
      %5365 = vmatpush2.msra.mxu0 0.0
      %5366 = vmatprep.subr.mxu0 0.0
      %5367 = vmatpush2.msra.mxu0 0.0
      %5368 = vmatprep.mubr.f32.mxu0 0.0
      %5369 = vmatmul.mubr.f32.gmra.mxu0 %v5290
      %v5370 = vpop.f32.mrf.mxu0
      %v5371 = vadd.f32 %v2317, %v5370
      %v5372 = vpop.f32.mrf.mxu0
      %v5373 = vadd.f32 %v2321, %v5372
      %5374 = vdwg.mxu0
      %5375 = vmatprep.subr.mxu0 0.0
      %5376 = vmatpush1.msra.mxu0 %v2304
      %5377 = vmatprep.subr.mxu0 0.0
      %5378 = vmatpush1.msra.mxu0 %v2301
      %5379 = vmatprep.subr.mxu0 0.0
      %5380 = vmatpush1.msra.mxu0 %v2298
      %5381 = vmatprep.subr.mxu0 0.0
      %5382 = vmatpush1.msra.mxu0 %v2295
      %5383 = vmatprep.subr.mxu0 0.0
      %5384 = vmatpush1.msra.mxu0 %v2292
      %5385 = vmatprep.subr.mxu0 0.0
      %5386 = vmatpush1.msra.mxu0 %v2289
      %5387 = vmatprep.subr.mxu0 0.0
      %5388 = vmatpush1.msra.mxu0 %v2286
      %5389 = vmatprep.subr.mxu0 0.0
      %5390 = vmatpush1.msra.mxu0 %v2283
      %5391 = vmatprep.subr.mxu0 0.0
      %5392 = vmatpush1.msra.mxu0 %v2280
      %5393 = vmatprep.subr.mxu0 0.0
      %5394 = vmatpush1.msra.mxu0 %v2277
      %5395 = vmatprep.subr.mxu0 0.0
      %5396 = vmatpush1.msra.mxu0 %v2274
      %5397 = vmatprep.subr.mxu0 0.0
      %5398 = vmatpush1.msra.mxu0 %v2271
      %5399 = vmatprep.subr.mxu0 0.0
      %5400 = vmatpush1.msra.mxu0 %v2268
      %5401 = vmatprep.subr.mxu0 0.0
      %5402 = vmatpush1.msra.mxu0 %v2265
      %5403 = vmatprep.subr.mxu0 0.0
      %5404 = vmatpush1.msra.mxu0 %v2262
      %5405 = vmatprep.subr.mxu0 0.0
      %5406 = vmatpush1.msra.mxu0 %v2259
      %5407 = vmatprep.subr.mxu0 0.0
      %5408 = vmatpush2.msra.mxu0 0.0
      %5409 = vmatprep.subr.mxu0 0.0
      %5410 = vmatpush2.msra.mxu0 0.0
      %5411 = vmatprep.subr.mxu0 0.0
      %5412 = vmatpush2.msra.mxu0 0.0
      %5413 = vmatprep.subr.mxu0 0.0
      %5414 = vmatpush2.msra.mxu0 0.0
      %5415 = vmatprep.subr.mxu0 0.0
      %5416 = vmatpush2.msra.mxu0 0.0
      %5417 = vmatprep.subr.mxu0 0.0
      %5418 = vmatpush2.msra.mxu0 0.0
      %5419 = vmatprep.subr.mxu0 0.0
      %5420 = vmatpush2.msra.mxu0 0.0
      %5421 = vmatprep.subr.mxu0 0.0
      %5422 = vmatpush2.msra.mxu0 0.0
      %5423 = vmatprep.subr.mxu0 0.0
      %5424 = vmatpush2.msra.mxu0 0.0
      %5425 = vmatprep.subr.mxu0 0.0
      %5426 = vmatpush2.msra.mxu0 0.0
      %5427 = vmatprep.subr.mxu0 0.0
      %5428 = vmatpush2.msra.mxu0 0.0
      %5429 = vmatprep.subr.mxu0 0.0
      %5430 = vmatpush2.msra.mxu0 0.0
      %5431 = vmatprep.subr.mxu0 0.0
      %5432 = vmatpush2.msra.mxu0 0.0
      %5433 = vmatprep.subr.mxu0 0.0
      %5434 = vmatpush2.msra.mxu0 0.0
      %5435 = vmatprep.subr.mxu0 0.0
      %5436 = vmatpush2.msra.mxu0 0.0
      %5437 = vmatprep.subr.mxu0 0.0
      %5438 = vmatpush2.msra.mxu0 0.0
      %5439 = vmatprep.mubr.f32.mxu0 0.0
      %5440 = vmatmul.mubr.f32.gmra.mxu0 %v5290
      %v5441 = vpop.f32.mrf.mxu0
      %v5442 = vadd.f32 %v2325, %v5441
      %v5443 = vpop.f32.mrf.mxu0
      %5444 = vdwg.mxu0
      %v5445 = vadd.f32 %v5301, %v5371
      %v5446 = vxor.u32 %v5445, 2147483648
      %v5447 = vmul.f32 %v5446, 1.442695
      %v5448 = vpow.pop %v5447
      %v5449 = vadd.f32 %v5448, 1.0
      %v5450 = vrcp.pop %v5449
      %v5451 = vmul.f32 1.0, %v5450
      %v5452 = vadd.f32 %v5302, %v5373
      %v5453 = vxor.u32 %v5452, 2147483648
      %v5454 = vmul.f32 %v5453, 1.442695
      %v5455 = vpow.pop %v5454
      %v5456 = vadd.f32 %v5455, 1.0
      %v5457 = vrcp.pop %v5456
      %v5458 = vmul.f32 1.0, %v5457
      %v5459 = vmul.f32 %v5451, %v5442
      %v5460 = vadd.f32 %v5303, %v5459
      %v5461 = vtanh.pop %v5460
      %v5462 = vsub.f32 1.0, %v5458
      %v5463 = vmul.f32 %v5462, %v5461
      %v5464 = vmul.f32 %v5458, %v5290
      %v5465 = vadd.f32 %v5463, %v5464
      %s5466 = sadd.s32 %s2307, 18
      %v5467 = vstv %s5466
      %vm5468 = vcmp.eq.s32.totalorder %v2306, %v5467
      %v5469 = vsel %vm5468, 1, 0
      %5470 = vset.pattern.permute.xlu0 0
      %5471 = vperm.xlu0 %5470, %v5469
      %v5472 = vpop.permute.xlu0 %5471
      %vm5473 = vcmp.eq.s32.totalorder %v5472, 1
      %v5474 = vsel %vm5473, %v5465, %v5299
      %s5475 = scalar_lea.vmem [#allocation2], 432
      %v5476 = vld [vmem:[%s5475] sm:$0xff]
      %v5477 = vld [vmem:[%s5475 + $0x8] sm:$0xff]
      %v5478 = vld [vmem:[%s5475 + $0x10] sm:$0xff]
      %5479 = vmatprep.subr.mxu0 %v2303
      %5480 = vmatpush1.msra.mxu0 %v2302
      %5481 = vmatprep.subr.mxu0 %v2300
      %5482 = vmatpush1.msra.mxu0 %v2299
      %5483 = vmatprep.subr.mxu0 %v2297
      %5484 = vmatpush1.msra.mxu0 %v2296
      %5485 = vmatprep.subr.mxu0 %v2294
      %5486 = vmatpush1.msra.mxu0 %v2293
      %5487 = vmatprep.subr.mxu0 %v2291
      %5488 = vmatpush1.msra.mxu0 %v2290
      %5489 = vmatprep.subr.mxu0 %v2288
      %5490 = vmatpush1.msra.mxu0 %v2287
      %5491 = vmatprep.subr.mxu0 %v2285
      %5492 = vmatpush1.msra.mxu0 %v2284
      %5493 = vmatprep.subr.mxu0 %v2282
      %5494 = vmatpush1.msra.mxu0 %v2281
      %5495 = vmatprep.subr.mxu0 %v2279
      %5496 = vmatpush1.msra.mxu0 %v2278
      %5497 = vmatprep.subr.mxu0 %v2276
      %5498 = vmatpush1.msra.mxu0 %v2275
      %5499 = vmatprep.subr.mxu0 %v2273
      %5500 = vmatpush1.msra.mxu0 %v2272
      %5501 = vmatprep.subr.mxu0 %v2270
      %5502 = vmatpush1.msra.mxu0 %v2269
      %5503 = vmatprep.subr.mxu0 %v2267
      %5504 = vmatpush1.msra.mxu0 %v2266
      %5505 = vmatprep.subr.mxu0 %v2264
      %5506 = vmatpush1.msra.mxu0 %v2263
      %5507 = vmatprep.subr.mxu0 %v2261
      %5508 = vmatpush1.msra.mxu0 %v2260
      %5509 = vmatprep.subr.mxu0 %v2258
      %5510 = vmatpush1.msra.mxu0 %v2257
      %5511 = vmatprep.subr.mxu0 0.0
      %5512 = vmatpush2.msra.mxu0 0.0
      %5513 = vmatprep.subr.mxu0 0.0
      %5514 = vmatpush2.msra.mxu0 0.0
      %5515 = vmatprep.subr.mxu0 0.0
      %5516 = vmatpush2.msra.mxu0 0.0
      %5517 = vmatprep.subr.mxu0 0.0
      %5518 = vmatpush2.msra.mxu0 0.0
      %5519 = vmatprep.subr.mxu0 0.0
      %5520 = vmatpush2.msra.mxu0 0.0
      %5521 = vmatprep.subr.mxu0 0.0
      %5522 = vmatpush2.msra.mxu0 0.0
      %5523 = vmatprep.subr.mxu0 0.0
      %5524 = vmatpush2.msra.mxu0 0.0
      %5525 = vmatprep.subr.mxu0 0.0
      %5526 = vmatpush2.msra.mxu0 0.0
      %5527 = vmatprep.subr.mxu0 0.0
      %5528 = vmatpush2.msra.mxu0 0.0
      %5529 = vmatprep.subr.mxu0 0.0
      %5530 = vmatpush2.msra.mxu0 0.0
      %5531 = vmatprep.subr.mxu0 0.0
      %5532 = vmatpush2.msra.mxu0 0.0
      %5533 = vmatprep.subr.mxu0 0.0
      %5534 = vmatpush2.msra.mxu0 0.0
      %5535 = vmatprep.subr.mxu0 0.0
      %5536 = vmatpush2.msra.mxu0 0.0
      %5537 = vmatprep.subr.mxu0 0.0
      %5538 = vmatpush2.msra.mxu0 0.0
      %5539 = vmatprep.subr.mxu0 0.0
      %5540 = vmatpush2.msra.mxu0 0.0
      %5541 = vmatprep.subr.mxu0 0.0
      %5542 = vmatpush2.msra.mxu0 0.0
      %5543 = vmatprep.mubr.f32.mxu0 0.0
      %5544 = vmatmul.mubr.f32.gmra.mxu0 %v5465
      %v5545 = vpop.f32.mrf.mxu0
      %v5546 = vadd.f32 %v2317, %v5545
      %v5547 = vpop.f32.mrf.mxu0
      %v5548 = vadd.f32 %v2321, %v5547
      %5549 = vdwg.mxu0
      %5550 = vmatprep.subr.mxu0 0.0
      %5551 = vmatpush1.msra.mxu0 %v2304
      %5552 = vmatprep.subr.mxu0 0.0
      %5553 = vmatpush1.msra.mxu0 %v2301
      %5554 = vmatprep.subr.mxu0 0.0
      %5555 = vmatpush1.msra.mxu0 %v2298
      %5556 = vmatprep.subr.mxu0 0.0
      %5557 = vmatpush1.msra.mxu0 %v2295
      %5558 = vmatprep.subr.mxu0 0.0
      %5559 = vmatpush1.msra.mxu0 %v2292
      %5560 = vmatprep.subr.mxu0 0.0
      %5561 = vmatpush1.msra.mxu0 %v2289
      %5562 = vmatprep.subr.mxu0 0.0
      %5563 = vmatpush1.msra.mxu0 %v2286
      %5564 = vmatprep.subr.mxu0 0.0
      %5565 = vmatpush1.msra.mxu0 %v2283
      %5566 = vmatprep.subr.mxu0 0.0
      %5567 = vmatpush1.msra.mxu0 %v2280
      %5568 = vmatprep.subr.mxu0 0.0
      %5569 = vmatpush1.msra.mxu0 %v2277
      %5570 = vmatprep.subr.mxu0 0.0
      %5571 = vmatpush1.msra.mxu0 %v2274
      %5572 = vmatprep.subr.mxu0 0.0
      %5573 = vmatpush1.msra.mxu0 %v2271
      %5574 = vmatprep.subr.mxu0 0.0
      %5575 = vmatpush1.msra.mxu0 %v2268
      %5576 = vmatprep.subr.mxu0 0.0
      %5577 = vmatpush1.msra.mxu0 %v2265
      %5578 = vmatprep.subr.mxu0 0.0
      %5579 = vmatpush1.msra.mxu0 %v2262
      %5580 = vmatprep.subr.mxu0 0.0
      %5581 = vmatpush1.msra.mxu0 %v2259
      %5582 = vmatprep.subr.mxu0 0.0
      %5583 = vmatpush2.msra.mxu0 0.0
      %5584 = vmatprep.subr.mxu0 0.0
      %5585 = vmatpush2.msra.mxu0 0.0
      %5586 = vmatprep.subr.mxu0 0.0
      %5587 = vmatpush2.msra.mxu0 0.0
      %5588 = vmatprep.subr.mxu0 0.0
      %5589 = vmatpush2.msra.mxu0 0.0
      %5590 = vmatprep.subr.mxu0 0.0
      %5591 = vmatpush2.msra.mxu0 0.0
      %5592 = vmatprep.subr.mxu0 0.0
      %5593 = vmatpush2.msra.mxu0 0.0
      %5594 = vmatprep.subr.mxu0 0.0
      %5595 = vmatpush2.msra.mxu0 0.0
      %5596 = vmatprep.subr.mxu0 0.0
      %5597 = vmatpush2.msra.mxu0 0.0
      %5598 = vmatprep.subr.mxu0 0.0
      %5599 = vmatpush2.msra.mxu0 0.0
      %5600 = vmatprep.subr.mxu0 0.0
      %5601 = vmatpush2.msra.mxu0 0.0
      %5602 = vmatprep.subr.mxu0 0.0
      %5603 = vmatpush2.msra.mxu0 0.0
      %5604 = vmatprep.subr.mxu0 0.0
      %5605 = vmatpush2.msra.mxu0 0.0
      %5606 = vmatprep.subr.mxu0 0.0
      %5607 = vmatpush2.msra.mxu0 0.0
      %5608 = vmatprep.subr.mxu0 0.0
      %5609 = vmatpush2.msra.mxu0 0.0
      %5610 = vmatprep.subr.mxu0 0.0
      %5611 = vmatpush2.msra.mxu0 0.0
      %5612 = vmatprep.subr.mxu0 0.0
      %5613 = vmatpush2.msra.mxu0 0.0
      %5614 = vmatprep.mubr.f32.mxu0 0.0
      %5615 = vmatmul.mubr.f32.gmra.mxu0 %v5465
      %v5616 = vpop.f32.mrf.mxu0
      %v5617 = vadd.f32 %v2325, %v5616
      %v5618 = vpop.f32.mrf.mxu0
      %5619 = vdwg.mxu0
      %v5620 = vadd.f32 %v5476, %v5546
      %v5621 = vxor.u32 %v5620, 2147483648
      %v5622 = vmul.f32 %v5621, 1.442695
      %v5623 = vpow.pop %v5622
      %v5624 = vadd.f32 %v5623, 1.0
      %v5625 = vrcp.pop %v5624
      %v5626 = vmul.f32 1.0, %v5625
      %v5627 = vadd.f32 %v5477, %v5548
      %v5628 = vxor.u32 %v5627, 2147483648
      %v5629 = vmul.f32 %v5628, 1.442695
      %v5630 = vpow.pop %v5629
      %v5631 = vadd.f32 %v5630, 1.0
      %v5632 = vrcp.pop %v5631
      %v5633 = vmul.f32 1.0, %v5632
      %v5634 = vmul.f32 %v5626, %v5617
      %v5635 = vadd.f32 %v5478, %v5634
      %v5636 = vtanh.pop %v5635
      %v5637 = vsub.f32 1.0, %v5633
      %v5638 = vmul.f32 %v5637, %v5636
      %v5639 = vmul.f32 %v5633, %v5465
      %v5640 = vadd.f32 %v5638, %v5639
      %s5641 = sadd.s32 %s2307, 19
      %v5642 = vstv %s5641
      %vm5643 = vcmp.eq.s32.totalorder %v2306, %v5642
      %v5644 = vsel %vm5643, 1, 0
      %5645 = vset.pattern.permute.xlu0 0
      %5646 = vperm.xlu0 %5645, %v5644
      %v5647 = vpop.permute.xlu0 %5646
      %vm5648 = vcmp.eq.s32.totalorder %v5647, 1
      %v5649 = vsel %vm5648, %v5640, %v5474
      %s5650 = scalar_lea.vmem [#allocation2], 456
      %v5651 = vld [vmem:[%s5650] sm:$0xff]
      %v5652 = vld [vmem:[%s5650 + $0x8] sm:$0xff]
      %v5653 = vld [vmem:[%s5650 + $0x10] sm:$0xff]
      %5654 = vmatprep.subr.mxu0 %v2303
      %5655 = vmatpush1.msra.mxu0 %v2302
      %5656 = vmatprep.subr.mxu0 %v2300
      %5657 = vmatpush1.msra.mxu0 %v2299
      %5658 = vmatprep.subr.mxu0 %v2297
      %5659 = vmatpush1.msra.mxu0 %v2296
      %5660 = vmatprep.subr.mxu0 %v2294
      %5661 = vmatpush1.msra.mxu0 %v2293
      %5662 = vmatprep.subr.mxu0 %v2291
      %5663 = vmatpush1.msra.mxu0 %v2290
      %5664 = vmatprep.subr.mxu0 %v2288
      %5665 = vmatpush1.msra.mxu0 %v2287
      %5666 = vmatprep.subr.mxu0 %v2285
      %5667 = vmatpush1.msra.mxu0 %v2284
      %5668 = vmatprep.subr.mxu0 %v2282
      %5669 = vmatpush1.msra.mxu0 %v2281
      %5670 = vmatprep.subr.mxu0 %v2279
      %5671 = vmatpush1.msra.mxu0 %v2278
      %5672 = vmatprep.subr.mxu0 %v2276
      %5673 = vmatpush1.msra.mxu0 %v2275
      %5674 = vmatprep.subr.mxu0 %v2273
      %5675 = vmatpush1.msra.mxu0 %v2272
      %5676 = vmatprep.subr.mxu0 %v2270
      %5677 = vmatpush1.msra.mxu0 %v2269
      %5678 = vmatprep.subr.mxu0 %v2267
      %5679 = vmatpush1.msra.mxu0 %v2266
      %5680 = vmatprep.subr.mxu0 %v2264
      %5681 = vmatpush1.msra.mxu0 %v2263
      %5682 = vmatprep.subr.mxu0 %v2261
      %5683 = vmatpush1.msra.mxu0 %v2260
      %5684 = vmatprep.subr.mxu0 %v2258
      %5685 = vmatpush1.msra.mxu0 %v2257
      %5686 = vmatprep.subr.mxu0 0.0
      %5687 = vmatpush2.msra.mxu0 0.0
      %5688 = vmatprep.subr.mxu0 0.0
      %5689 = vmatpush2.msra.mxu0 0.0
      %5690 = vmatprep.subr.mxu0 0.0
      %5691 = vmatpush2.msra.mxu0 0.0
      %5692 = vmatprep.subr.mxu0 0.0
      %5693 = vmatpush2.msra.mxu0 0.0
      %5694 = vmatprep.subr.mxu0 0.0
      %5695 = vmatpush2.msra.mxu0 0.0
      %5696 = vmatprep.subr.mxu0 0.0
      %5697 = vmatpush2.msra.mxu0 0.0
      %5698 = vmatprep.subr.mxu0 0.0
      %5699 = vmatpush2.msra.mxu0 0.0
      %5700 = vmatprep.subr.mxu0 0.0
      %5701 = vmatpush2.msra.mxu0 0.0
      %5702 = vmatprep.subr.mxu0 0.0
      %5703 = vmatpush2.msra.mxu0 0.0
      %5704 = vmatprep.subr.mxu0 0.0
      %5705 = vmatpush2.msra.mxu0 0.0
      %5706 = vmatprep.subr.mxu0 0.0
      %5707 = vmatpush2.msra.mxu0 0.0
      %5708 = vmatprep.subr.mxu0 0.0
      %5709 = vmatpush2.msra.mxu0 0.0
      %5710 = vmatprep.subr.mxu0 0.0
      %5711 = vmatpush2.msra.mxu0 0.0
      %5712 = vmatprep.subr.mxu0 0.0
      %5713 = vmatpush2.msra.mxu0 0.0
      %5714 = vmatprep.subr.mxu0 0.0
      %5715 = vmatpush2.msra.mxu0 0.0
      %5716 = vmatprep.subr.mxu0 0.0
      %5717 = vmatpush2.msra.mxu0 0.0
      %5718 = vmatprep.mubr.f32.mxu0 0.0
      %5719 = vmatmul.mubr.f32.gmra.mxu0 %v5640
      %v5720 = vpop.f32.mrf.mxu0
      %v5721 = vadd.f32 %v2317, %v5720
      %v5722 = vpop.f32.mrf.mxu0
      %v5723 = vadd.f32 %v2321, %v5722
      %5724 = vdwg.mxu0
      %5725 = vmatprep.subr.mxu0 0.0
      %5726 = vmatpush1.msra.mxu0 %v2304
      %5727 = vmatprep.subr.mxu0 0.0
      %5728 = vmatpush1.msra.mxu0 %v2301
      %5729 = vmatprep.subr.mxu0 0.0
      %5730 = vmatpush1.msra.mxu0 %v2298
      %5731 = vmatprep.subr.mxu0 0.0
      %5732 = vmatpush1.msra.mxu0 %v2295
      %5733 = vmatprep.subr.mxu0 0.0
      %5734 = vmatpush1.msra.mxu0 %v2292
      %5735 = vmatprep.subr.mxu0 0.0
      %5736 = vmatpush1.msra.mxu0 %v2289
      %5737 = vmatprep.subr.mxu0 0.0
      %5738 = vmatpush1.msra.mxu0 %v2286
      %5739 = vmatprep.subr.mxu0 0.0
      %5740 = vmatpush1.msra.mxu0 %v2283
      %5741 = vmatprep.subr.mxu0 0.0
      %5742 = vmatpush1.msra.mxu0 %v2280
      %5743 = vmatprep.subr.mxu0 0.0
      %5744 = vmatpush1.msra.mxu0 %v2277
      %5745 = vmatprep.subr.mxu0 0.0
      %5746 = vmatpush1.msra.mxu0 %v2274
      %5747 = vmatprep.subr.mxu0 0.0
      %5748 = vmatpush1.msra.mxu0 %v2271
      %5749 = vmatprep.subr.mxu0 0.0
      %5750 = vmatpush1.msra.mxu0 %v2268
      %5751 = vmatprep.subr.mxu0 0.0
      %5752 = vmatpush1.msra.mxu0 %v2265
      %5753 = vmatprep.subr.mxu0 0.0
      %5754 = vmatpush1.msra.mxu0 %v2262
      %5755 = vmatprep.subr.mxu0 0.0
      %5756 = vmatpush1.msra.mxu0 %v2259
      %5757 = vmatprep.subr.mxu0 0.0
      %5758 = vmatpush2.msra.mxu0 0.0
      %5759 = vmatprep.subr.mxu0 0.0
      %5760 = vmatpush2.msra.mxu0 0.0
      %5761 = vmatprep.subr.mxu0 0.0
      %5762 = vmatpush2.msra.mxu0 0.0
      %5763 = vmatprep.subr.mxu0 0.0
      %5764 = vmatpush2.msra.mxu0 0.0
      %5765 = vmatprep.subr.mxu0 0.0
      %5766 = vmatpush2.msra.mxu0 0.0
      %5767 = vmatprep.subr.mxu0 0.0
      %5768 = vmatpush2.msra.mxu0 0.0
      %5769 = vmatprep.subr.mxu0 0.0
      %5770 = vmatpush2.msra.mxu0 0.0
      %5771 = vmatprep.subr.mxu0 0.0
      %5772 = vmatpush2.msra.mxu0 0.0
      %5773 = vmatprep.subr.mxu0 0.0
      %5774 = vmatpush2.msra.mxu0 0.0
      %5775 = vmatprep.subr.mxu0 0.0
      %5776 = vmatpush2.msra.mxu0 0.0
      %5777 = vmatprep.subr.mxu0 0.0
      %5778 = vmatpush2.msra.mxu0 0.0
      %5779 = vmatprep.subr.mxu0 0.0
      %5780 = vmatpush2.msra.mxu0 0.0
      %5781 = vmatprep.subr.mxu0 0.0
      %5782 = vmatpush2.msra.mxu0 0.0
      %5783 = vmatprep.subr.mxu0 0.0
      %5784 = vmatpush2.msra.mxu0 0.0
      %5785 = vmatprep.subr.mxu0 0.0
      %5786 = vmatpush2.msra.mxu0 0.0
      %5787 = vmatprep.subr.mxu0 0.0
      %5788 = vmatpush2.msra.mxu0 0.0
      %5789 = vmatprep.mubr.f32.mxu0 0.0
      %5790 = vmatmul.mubr.f32.gmra.mxu0 %v5640
      %v5791 = vpop.f32.mrf.mxu0
      %v5792 = vadd.f32 %v2325, %v5791
      %v5793 = vpop.f32.mrf.mxu0
      %5794 = vdwg.mxu0
      %v5795 = vadd.f32 %v5651, %v5721
      %v5796 = vxor.u32 %v5795, 2147483648
      %v5797 = vmul.f32 %v5796, 1.442695
      %v5798 = vpow.pop %v5797
      %v5799 = vadd.f32 %v5798, 1.0
      %v5800 = vrcp.pop %v5799
      %v5801 = vmul.f32 1.0, %v5800
      %v5802 = vadd.f32 %v5652, %v5723
      %v5803 = vxor.u32 %v5802, 2147483648
      %v5804 = vmul.f32 %v5803, 1.442695
      %v5805 = vpow.pop %v5804
      %v5806 = vadd.f32 %v5805, 1.0
      %v5807 = vrcp.pop %v5806
      %v5808 = vmul.f32 1.0, %v5807
      %v5809 = vmul.f32 %v5801, %v5792
      %v5810 = vadd.f32 %v5653, %v5809
      %v5811 = vtanh.pop %v5810
      %v5812 = vsub.f32 1.0, %v5808
      %v5813 = vmul.f32 %v5812, %v5811
      %v5814 = vmul.f32 %v5808, %v5640
      %v5815 = vadd.f32 %v5813, %v5814
      %s5816 = sadd.s32 %s2307, 20
      %v5817 = vstv %s5816
      %vm5818 = vcmp.eq.s32.totalorder %v2306, %v5817
      %v5819 = vsel %vm5818, 1, 0
      %5820 = vset.pattern.permute.xlu0 0
      %5821 = vperm.xlu0 %5820, %v5819
      %v5822 = vpop.permute.xlu0 %5821
      %vm5823 = vcmp.eq.s32.totalorder %v5822, 1
      %v5824 = vsel %vm5823, %v5815, %v5649
      %s5825 = scalar_lea.vmem [#allocation2], 480
      %v5826 = vld [vmem:[%s5825] sm:$0xff]
      %v5827 = vld [vmem:[%s5825 + $0x8] sm:$0xff]
      %v5828 = vld [vmem:[%s5825 + $0x10] sm:$0xff]
      %5829 = vmatprep.subr.mxu0 %v2303
      %5830 = vmatpush1.msra.mxu0 %v2302
      %5831 = vmatprep.subr.mxu0 %v2300
      %5832 = vmatpush1.msra.mxu0 %v2299
      %5833 = vmatprep.subr.mxu0 %v2297
      %5834 = vmatpush1.msra.mxu0 %v2296
      %5835 = vmatprep.subr.mxu0 %v2294
      %5836 = vmatpush1.msra.mxu0 %v2293
      %5837 = vmatprep.subr.mxu0 %v2291
      %5838 = vmatpush1.msra.mxu0 %v2290
      %5839 = vmatprep.subr.mxu0 %v2288
      %5840 = vmatpush1.msra.mxu0 %v2287
      %5841 = vmatprep.subr.mxu0 %v2285
      %5842 = vmatpush1.msra.mxu0 %v2284
      %5843 = vmatprep.subr.mxu0 %v2282
      %5844 = vmatpush1.msra.mxu0 %v2281
      %5845 = vmatprep.subr.mxu0 %v2279
      %5846 = vmatpush1.msra.mxu0 %v2278
      %5847 = vmatprep.subr.mxu0 %v2276
      %5848 = vmatpush1.msra.mxu0 %v2275
      %5849 = vmatprep.subr.mxu0 %v2273
      %5850 = vmatpush1.msra.mxu0 %v2272
      %5851 = vmatprep.subr.mxu0 %v2270
      %5852 = vmatpush1.msra.mxu0 %v2269
      %5853 = vmatprep.subr.mxu0 %v2267
      %5854 = vmatpush1.msra.mxu0 %v2266
      %5855 = vmatprep.subr.mxu0 %v2264
      %5856 = vmatpush1.msra.mxu0 %v2263
      %5857 = vmatprep.subr.mxu0 %v2261
      %5858 = vmatpush1.msra.mxu0 %v2260
      %5859 = vmatprep.subr.mxu0 %v2258
      %5860 = vmatpush1.msra.mxu0 %v2257
      %5861 = vmatprep.subr.mxu0 0.0
      %5862 = vmatpush2.msra.mxu0 0.0
      %5863 = vmatprep.subr.mxu0 0.0
      %5864 = vmatpush2.msra.mxu0 0.0
      %5865 = vmatprep.subr.mxu0 0.0
      %5866 = vmatpush2.msra.mxu0 0.0
      %5867 = vmatprep.subr.mxu0 0.0
      %5868 = vmatpush2.msra.mxu0 0.0
      %5869 = vmatprep.subr.mxu0 0.0
      %5870 = vmatpush2.msra.mxu0 0.0
      %5871 = vmatprep.subr.mxu0 0.0
      %5872 = vmatpush2.msra.mxu0 0.0
      %5873 = vmatprep.subr.mxu0 0.0
      %5874 = vmatpush2.msra.mxu0 0.0
      %5875 = vmatprep.subr.mxu0 0.0
      %5876 = vmatpush2.msra.mxu0 0.0
      %5877 = vmatprep.subr.mxu0 0.0
      %5878 = vmatpush2.msra.mxu0 0.0
      %5879 = vmatprep.subr.mxu0 0.0
      %5880 = vmatpush2.msra.mxu0 0.0
      %5881 = vmatprep.subr.mxu0 0.0
      %5882 = vmatpush2.msra.mxu0 0.0
      %5883 = vmatprep.subr.mxu0 0.0
      %5884 = vmatpush2.msra.mxu0 0.0
      %5885 = vmatprep.subr.mxu0 0.0
      %5886 = vmatpush2.msra.mxu0 0.0
      %5887 = vmatprep.subr.mxu0 0.0
      %5888 = vmatpush2.msra.mxu0 0.0
      %5889 = vmatprep.subr.mxu0 0.0
      %5890 = vmatpush2.msra.mxu0 0.0
      %5891 = vmatprep.subr.mxu0 0.0
      %5892 = vmatpush2.msra.mxu0 0.0
      %5893 = vmatprep.mubr.f32.mxu0 0.0
      %5894 = vmatmul.mubr.f32.gmra.mxu0 %v5815
      %v5895 = vpop.f32.mrf.mxu0
      %v5896 = vadd.f32 %v2317, %v5895
      %v5897 = vpop.f32.mrf.mxu0
      %v5898 = vadd.f32 %v2321, %v5897
      %5899 = vdwg.mxu0
      %5900 = vmatprep.subr.mxu0 0.0
      %5901 = vmatpush1.msra.mxu0 %v2304
      %5902 = vmatprep.subr.mxu0 0.0
      %5903 = vmatpush1.msra.mxu0 %v2301
      %5904 = vmatprep.subr.mxu0 0.0
      %5905 = vmatpush1.msra.mxu0 %v2298
      %5906 = vmatprep.subr.mxu0 0.0
      %5907 = vmatpush1.msra.mxu0 %v2295
      %5908 = vmatprep.subr.mxu0 0.0
      %5909 = vmatpush1.msra.mxu0 %v2292
      %5910 = vmatprep.subr.mxu0 0.0
      %5911 = vmatpush1.msra.mxu0 %v2289
      %5912 = vmatprep.subr.mxu0 0.0
      %5913 = vmatpush1.msra.mxu0 %v2286
      %5914 = vmatprep.subr.mxu0 0.0
      %5915 = vmatpush1.msra.mxu0 %v2283
      %5916 = vmatprep.subr.mxu0 0.0
      %5917 = vmatpush1.msra.mxu0 %v2280
      %5918 = vmatprep.subr.mxu0 0.0
      %5919 = vmatpush1.msra.mxu0 %v2277
      %5920 = vmatprep.subr.mxu0 0.0
      %5921 = vmatpush1.msra.mxu0 %v2274
      %5922 = vmatprep.subr.mxu0 0.0
      %5923 = vmatpush1.msra.mxu0 %v2271
      %5924 = vmatprep.subr.mxu0 0.0
      %5925 = vmatpush1.msra.mxu0 %v2268
      %5926 = vmatprep.subr.mxu0 0.0
      %5927 = vmatpush1.msra.mxu0 %v2265
      %5928 = vmatprep.subr.mxu0 0.0
      %5929 = vmatpush1.msra.mxu0 %v2262
      %5930 = vmatprep.subr.mxu0 0.0
      %5931 = vmatpush1.msra.mxu0 %v2259
      %5932 = vmatprep.subr.mxu0 0.0
      %5933 = vmatpush2.msra.mxu0 0.0
      %5934 = vmatprep.subr.mxu0 0.0
      %5935 = vmatpush2.msra.mxu0 0.0
      %5936 = vmatprep.subr.mxu0 0.0
      %5937 = vmatpush2.msra.mxu0 0.0
      %5938 = vmatprep.subr.mxu0 0.0
      %5939 = vmatpush2.msra.mxu0 0.0
      %5940 = vmatprep.subr.mxu0 0.0
      %5941 = vmatpush2.msra.mxu0 0.0
      %5942 = vmatprep.subr.mxu0 0.0
      %5943 = vmatpush2.msra.mxu0 0.0
      %5944 = vmatprep.subr.mxu0 0.0
      %5945 = vmatpush2.msra.mxu0 0.0
      %5946 = vmatprep.subr.mxu0 0.0
      %5947 = vmatpush2.msra.mxu0 0.0
      %5948 = vmatprep.subr.mxu0 0.0
      %5949 = vmatpush2.msra.mxu0 0.0
      %5950 = vmatprep.subr.mxu0 0.0
      %5951 = vmatpush2.msra.mxu0 0.0
      %5952 = vmatprep.subr.mxu0 0.0
      %5953 = vmatpush2.msra.mxu0 0.0
      %5954 = vmatprep.subr.mxu0 0.0
      %5955 = vmatpush2.msra.mxu0 0.0
      %5956 = vmatprep.subr.mxu0 0.0
      %5957 = vmatpush2.msra.mxu0 0.0
      %5958 = vmatprep.subr.mxu0 0.0
      %5959 = vmatpush2.msra.mxu0 0.0
      %5960 = vmatprep.subr.mxu0 0.0
      %5961 = vmatpush2.msra.mxu0 0.0
      %5962 = vmatprep.subr.mxu0 0.0
      %5963 = vmatpush2.msra.mxu0 0.0
      %5964 = vmatprep.mubr.f32.mxu0 0.0
      %5965 = vmatmul.mubr.f32.gmra.mxu0 %v5815
      %v5966 = vpop.f32.mrf.mxu0
      %v5967 = vadd.f32 %v2325, %v5966
      %v5968 = vpop.f32.mrf.mxu0
      %5969 = vdwg.mxu0
      %v5970 = vadd.f32 %v5826, %v5896
      %v5971 = vxor.u32 %v5970, 2147483648
      %v5972 = vmul.f32 %v5971, 1.442695
      %v5973 = vpow.pop %v5972
      %v5974 = vadd.f32 %v5973, 1.0
      %v5975 = vrcp.pop %v5974
      %v5976 = vmul.f32 1.0, %v5975
      %v5977 = vadd.f32 %v5827, %v5898
      %v5978 = vxor.u32 %v5977, 2147483648
      %v5979 = vmul.f32 %v5978, 1.442695
      %v5980 = vpow.pop %v5979
      %v5981 = vadd.f32 %v5980, 1.0
      %v5982 = vrcp.pop %v5981
      %v5983 = vmul.f32 1.0, %v5982
      %v5984 = vmul.f32 %v5976, %v5967
      %v5985 = vadd.f32 %v5828, %v5984
      %v5986 = vtanh.pop %v5985
      %v5987 = vsub.f32 1.0, %v5983
      %v5988 = vmul.f32 %v5987, %v5986
      %v5989 = vmul.f32 %v5983, %v5815
      %v5990 = vadd.f32 %v5988, %v5989
      %s5991 = sadd.s32 %s2307, 21
      %v5992 = vstv %s5991
      %vm5993 = vcmp.eq.s32.totalorder %v2306, %v5992
      %v5994 = vsel %vm5993, 1, 0
      %5995 = vset.pattern.permute.xlu0 0
      %5996 = vperm.xlu0 %5995, %v5994
      %v5997 = vpop.permute.xlu0 %5996
      %vm5998 = vcmp.eq.s32.totalorder %v5997, 1
      %v5999 = vsel %vm5998, %v5990, %v5824
      %s6000 = scalar_lea.vmem [#allocation2], 504
      %v6001 = vld [vmem:[%s6000] sm:$0xff]
      %v6002 = vld [vmem:[%s6000 + $0x8] sm:$0xff]
      %v6003 = vld [vmem:[%s6000 + $0x10] sm:$0xff]
      %6004 = vmatprep.subr.mxu0 %v2303
      %6005 = vmatpush1.msra.mxu0 %v2302
      %6006 = vmatprep.subr.mxu0 %v2300
      %6007 = vmatpush1.msra.mxu0 %v2299
      %6008 = vmatprep.subr.mxu0 %v2297
      %6009 = vmatpush1.msra.mxu0 %v2296
      %6010 = vmatprep.subr.mxu0 %v2294
      %6011 = vmatpush1.msra.mxu0 %v2293
      %6012 = vmatprep.subr.mxu0 %v2291
      %6013 = vmatpush1.msra.mxu0 %v2290
      %6014 = vmatprep.subr.mxu0 %v2288
      %6015 = vmatpush1.msra.mxu0 %v2287
      %6016 = vmatprep.subr.mxu0 %v2285
      %6017 = vmatpush1.msra.mxu0 %v2284
      %6018 = vmatprep.subr.mxu0 %v2282
      %6019 = vmatpush1.msra.mxu0 %v2281
      %6020 = vmatprep.subr.mxu0 %v2279
      %6021 = vmatpush1.msra.mxu0 %v2278
      %6022 = vmatprep.subr.mxu0 %v2276
      %6023 = vmatpush1.msra.mxu0 %v2275
      %6024 = vmatprep.subr.mxu0 %v2273
      %6025 = vmatpush1.msra.mxu0 %v2272
      %6026 = vmatprep.subr.mxu0 %v2270
      %6027 = vmatpush1.msra.mxu0 %v2269
      %6028 = vmatprep.subr.mxu0 %v2267
      %6029 = vmatpush1.msra.mxu0 %v2266
      %6030 = vmatprep.subr.mxu0 %v2264
      %6031 = vmatpush1.msra.mxu0 %v2263
      %6032 = vmatprep.subr.mxu0 %v2261
      %6033 = vmatpush1.msra.mxu0 %v2260
      %6034 = vmatprep.subr.mxu0 %v2258
      %6035 = vmatpush1.msra.mxu0 %v2257
      %6036 = vmatprep.subr.mxu0 0.0
      %6037 = vmatpush2.msra.mxu0 0.0
      %6038 = vmatprep.subr.mxu0 0.0
      %6039 = vmatpush2.msra.mxu0 0.0
      %6040 = vmatprep.subr.mxu0 0.0
      %6041 = vmatpush2.msra.mxu0 0.0
      %6042 = vmatprep.subr.mxu0 0.0
      %6043 = vmatpush2.msra.mxu0 0.0
      %6044 = vmatprep.subr.mxu0 0.0
      %6045 = vmatpush2.msra.mxu0 0.0
      %6046 = vmatprep.subr.mxu0 0.0
      %6047 = vmatpush2.msra.mxu0 0.0
      %6048 = vmatprep.subr.mxu0 0.0
      %6049 = vmatpush2.msra.mxu0 0.0
      %6050 = vmatprep.subr.mxu0 0.0
      %6051 = vmatpush2.msra.mxu0 0.0
      %6052 = vmatprep.subr.mxu0 0.0
      %6053 = vmatpush2.msra.mxu0 0.0
      %6054 = vmatprep.subr.mxu0 0.0
      %6055 = vmatpush2.msra.mxu0 0.0
      %6056 = vmatprep.subr.mxu0 0.0
      %6057 = vmatpush2.msra.mxu0 0.0
      %6058 = vmatprep.subr.mxu0 0.0
      %6059 = vmatpush2.msra.mxu0 0.0
      %6060 = vmatprep.subr.mxu0 0.0
      %6061 = vmatpush2.msra.mxu0 0.0
      %6062 = vmatprep.subr.mxu0 0.0
      %6063 = vmatpush2.msra.mxu0 0.0
      %6064 = vmatprep.subr.mxu0 0.0
      %6065 = vmatpush2.msra.mxu0 0.0
      %6066 = vmatprep.subr.mxu0 0.0
      %6067 = vmatpush2.msra.mxu0 0.0
      %6068 = vmatprep.mubr.f32.mxu0 0.0
      %6069 = vmatmul.mubr.f32.gmra.mxu0 %v5990
      %v6070 = vpop.f32.mrf.mxu0
      %v6071 = vadd.f32 %v2317, %v6070
      %v6072 = vpop.f32.mrf.mxu0
      %v6073 = vadd.f32 %v2321, %v6072
      %6074 = vdwg.mxu0
      %6075 = vmatprep.subr.mxu0 0.0
      %6076 = vmatpush1.msra.mxu0 %v2304
      %6077 = vmatprep.subr.mxu0 0.0
      %6078 = vmatpush1.msra.mxu0 %v2301
      %6079 = vmatprep.subr.mxu0 0.0
      %6080 = vmatpush1.msra.mxu0 %v2298
      %6081 = vmatprep.subr.mxu0 0.0
      %6082 = vmatpush1.msra.mxu0 %v2295
      %6083 = vmatprep.subr.mxu0 0.0
      %6084 = vmatpush1.msra.mxu0 %v2292
      %6085 = vmatprep.subr.mxu0 0.0
      %6086 = vmatpush1.msra.mxu0 %v2289
      %6087 = vmatprep.subr.mxu0 0.0
      %6088 = vmatpush1.msra.mxu0 %v2286
      %6089 = vmatprep.subr.mxu0 0.0
      %6090 = vmatpush1.msra.mxu0 %v2283
      %6091 = vmatprep.subr.mxu0 0.0
      %6092 = vmatpush1.msra.mxu0 %v2280
      %6093 = vmatprep.subr.mxu0 0.0
      %6094 = vmatpush1.msra.mxu0 %v2277
      %6095 = vmatprep.subr.mxu0 0.0
      %6096 = vmatpush1.msra.mxu0 %v2274
      %6097 = vmatprep.subr.mxu0 0.0
      %6098 = vmatpush1.msra.mxu0 %v2271
      %6099 = vmatprep.subr.mxu0 0.0
      %6100 = vmatpush1.msra.mxu0 %v2268
      %6101 = vmatprep.subr.mxu0 0.0
      %6102 = vmatpush1.msra.mxu0 %v2265
      %6103 = vmatprep.subr.mxu0 0.0
      %6104 = vmatpush1.msra.mxu0 %v2262
      %6105 = vmatprep.subr.mxu0 0.0
      %6106 = vmatpush1.msra.mxu0 %v2259
      %6107 = vmatprep.subr.mxu0 0.0
      %6108 = vmatpush2.msra.mxu0 0.0
      %6109 = vmatprep.subr.mxu0 0.0
      %6110 = vmatpush2.msra.mxu0 0.0
      %6111 = vmatprep.subr.mxu0 0.0
      %6112 = vmatpush2.msra.mxu0 0.0
      %6113 = vmatprep.subr.mxu0 0.0
      %6114 = vmatpush2.msra.mxu0 0.0
      %6115 = vmatprep.subr.mxu0 0.0
      %6116 = vmatpush2.msra.mxu0 0.0
      %6117 = vmatprep.subr.mxu0 0.0
      %6118 = vmatpush2.msra.mxu0 0.0
      %6119 = vmatprep.subr.mxu0 0.0
      %6120 = vmatpush2.msra.mxu0 0.0
      %6121 = vmatprep.subr.mxu0 0.0
      %6122 = vmatpush2.msra.mxu0 0.0
      %6123 = vmatprep.subr.mxu0 0.0
      %6124 = vmatpush2.msra.mxu0 0.0
      %6125 = vmatprep.subr.mxu0 0.0
      %6126 = vmatpush2.msra.mxu0 0.0
      %6127 = vmatprep.subr.mxu0 0.0
      %6128 = vmatpush2.msra.mxu0 0.0
      %6129 = vmatprep.subr.mxu0 0.0
      %6130 = vmatpush2.msra.mxu0 0.0
      %6131 = vmatprep.subr.mxu0 0.0
      %6132 = vmatpush2.msra.mxu0 0.0
      %6133 = vmatprep.subr.mxu0 0.0
      %6134 = vmatpush2.msra.mxu0 0.0
      %6135 = vmatprep.subr.mxu0 0.0
      %6136 = vmatpush2.msra.mxu0 0.0
      %6137 = vmatprep.subr.mxu0 0.0
      %6138 = vmatpush2.msra.mxu0 0.0
      %6139 = vmatprep.mubr.f32.mxu0 0.0
      %6140 = vmatmul.mubr.f32.gmra.mxu0 %v5990
      %v6141 = vpop.f32.mrf.mxu0
      %v6142 = vadd.f32 %v2325, %v6141
      %v6143 = vpop.f32.mrf.mxu0
      %6144 = vdwg.mxu0
      %v6145 = vadd.f32 %v6001, %v6071
      %v6146 = vxor.u32 %v6145, 2147483648
      %v6147 = vmul.f32 %v6146, 1.442695
      %v6148 = vpow.pop %v6147
      %v6149 = vadd.f32 %v6148, 1.0
      %v6150 = vrcp.pop %v6149
      %v6151 = vmul.f32 1.0, %v6150
      %v6152 = vadd.f32 %v6002, %v6073
      %v6153 = vxor.u32 %v6152, 2147483648
      %v6154 = vmul.f32 %v6153, 1.442695
      %v6155 = vpow.pop %v6154
      %v6156 = vadd.f32 %v6155, 1.0
      %v6157 = vrcp.pop %v6156
      %v6158 = vmul.f32 1.0, %v6157
      %v6159 = vmul.f32 %v6151, %v6142
      %v6160 = vadd.f32 %v6003, %v6159
      %v6161 = vtanh.pop %v6160
      %v6162 = vsub.f32 1.0, %v6158
      %v6163 = vmul.f32 %v6162, %v6161
      %v6164 = vmul.f32 %v6158, %v5990
      %v6165 = vadd.f32 %v6163, %v6164
      %s6166 = sadd.s32 %s2307, 22
      %v6167 = vstv %s6166
      %vm6168 = vcmp.eq.s32.totalorder %v2306, %v6167
      %v6169 = vsel %vm6168, 1, 0
      %6170 = vset.pattern.permute.xlu0 0
      %6171 = vperm.xlu0 %6170, %v6169
      %v6172 = vpop.permute.xlu0 %6171
      %vm6173 = vcmp.eq.s32.totalorder %v6172, 1
      %v6174 = vsel %vm6173, %v6165, %v5999
      %s6175 = scalar_lea.vmem [#allocation2], 528
      %v6176 = vld [vmem:[%s6175] sm:$0xff]
      %v6177 = vld [vmem:[%s6175 + $0x8] sm:$0xff]
      %v6178 = vld [vmem:[%s6175 + $0x10] sm:$0xff]
      %6179 = vmatprep.subr.mxu0 %v2303
      %6180 = vmatpush1.msra.mxu0 %v2302
      %6181 = vmatprep.subr.mxu0 %v2300
      %6182 = vmatpush1.msra.mxu0 %v2299
      %6183 = vmatprep.subr.mxu0 %v2297
      %6184 = vmatpush1.msra.mxu0 %v2296
      %6185 = vmatprep.subr.mxu0 %v2294
      %6186 = vmatpush1.msra.mxu0 %v2293
      %6187 = vmatprep.subr.mxu0 %v2291
      %6188 = vmatpush1.msra.mxu0 %v2290
      %6189 = vmatprep.subr.mxu0 %v2288
      %6190 = vmatpush1.msra.mxu0 %v2287
      %6191 = vmatprep.subr.mxu0 %v2285
      %6192 = vmatpush1.msra.mxu0 %v2284
      %6193 = vmatprep.subr.mxu0 %v2282
      %6194 = vmatpush1.msra.mxu0 %v2281
      %6195 = vmatprep.subr.mxu0 %v2279
      %6196 = vmatpush1.msra.mxu0 %v2278
      %6197 = vmatprep.subr.mxu0 %v2276
      %6198 = vmatpush1.msra.mxu0 %v2275
      %6199 = vmatprep.subr.mxu0 %v2273
      %6200 = vmatpush1.msra.mxu0 %v2272
      %6201 = vmatprep.subr.mxu0 %v2270
      %6202 = vmatpush1.msra.mxu0 %v2269
      %6203 = vmatprep.subr.mxu0 %v2267
      %6204 = vmatpush1.msra.mxu0 %v2266
      %6205 = vmatprep.subr.mxu0 %v2264
      %6206 = vmatpush1.msra.mxu0 %v2263
      %6207 = vmatprep.subr.mxu0 %v2261
      %6208 = vmatpush1.msra.mxu0 %v2260
      %6209 = vmatprep.subr.mxu0 %v2258
      %6210 = vmatpush1.msra.mxu0 %v2257
      %6211 = vmatprep.subr.mxu0 0.0
      %6212 = vmatpush2.msra.mxu0 0.0
      %6213 = vmatprep.subr.mxu0 0.0
      %6214 = vmatpush2.msra.mxu0 0.0
      %6215 = vmatprep.subr.mxu0 0.0
      %6216 = vmatpush2.msra.mxu0 0.0
      %6217 = vmatprep.subr.mxu0 0.0
      %6218 = vmatpush2.msra.mxu0 0.0
      %6219 = vmatprep.subr.mxu0 0.0
      %6220 = vmatpush2.msra.mxu0 0.0
      %6221 = vmatprep.subr.mxu0 0.0
      %6222 = vmatpush2.msra.mxu0 0.0
      %6223 = vmatprep.subr.mxu0 0.0
      %6224 = vmatpush2.msra.mxu0 0.0
      %6225 = vmatprep.subr.mxu0 0.0
      %6226 = vmatpush2.msra.mxu0 0.0
      %6227 = vmatprep.subr.mxu0 0.0
      %6228 = vmatpush2.msra.mxu0 0.0
      %6229 = vmatprep.subr.mxu0 0.0
      %6230 = vmatpush2.msra.mxu0 0.0
      %6231 = vmatprep.subr.mxu0 0.0
      %6232 = vmatpush2.msra.mxu0 0.0
      %6233 = vmatprep.subr.mxu0 0.0
      %6234 = vmatpush2.msra.mxu0 0.0
      %6235 = vmatprep.subr.mxu0 0.0
      %6236 = vmatpush2.msra.mxu0 0.0
      %6237 = vmatprep.subr.mxu0 0.0
      %6238 = vmatpush2.msra.mxu0 0.0
      %6239 = vmatprep.subr.mxu0 0.0
      %6240 = vmatpush2.msra.mxu0 0.0
      %6241 = vmatprep.subr.mxu0 0.0
      %6242 = vmatpush2.msra.mxu0 0.0
      %6243 = vmatprep.mubr.f32.mxu0 0.0
      %6244 = vmatmul.mubr.f32.gmra.mxu0 %v6165
      %v6245 = vpop.f32.mrf.mxu0
      %v6246 = vadd.f32 %v2317, %v6245
      %v6247 = vpop.f32.mrf.mxu0
      %v6248 = vadd.f32 %v2321, %v6247
      %6249 = vdwg.mxu0
      %6250 = vmatprep.subr.mxu0 0.0
      %6251 = vmatpush1.msra.mxu0 %v2304
      %6252 = vmatprep.subr.mxu0 0.0
      %6253 = vmatpush1.msra.mxu0 %v2301
      %6254 = vmatprep.subr.mxu0 0.0
      %6255 = vmatpush1.msra.mxu0 %v2298
      %6256 = vmatprep.subr.mxu0 0.0
      %6257 = vmatpush1.msra.mxu0 %v2295
      %6258 = vmatprep.subr.mxu0 0.0
      %6259 = vmatpush1.msra.mxu0 %v2292
      %6260 = vmatprep.subr.mxu0 0.0
      %6261 = vmatpush1.msra.mxu0 %v2289
      %6262 = vmatprep.subr.mxu0 0.0
      %6263 = vmatpush1.msra.mxu0 %v2286
      %6264 = vmatprep.subr.mxu0 0.0
      %6265 = vmatpush1.msra.mxu0 %v2283
      %6266 = vmatprep.subr.mxu0 0.0
      %6267 = vmatpush1.msra.mxu0 %v2280
      %6268 = vmatprep.subr.mxu0 0.0
      %6269 = vmatpush1.msra.mxu0 %v2277
      %6270 = vmatprep.subr.mxu0 0.0
      %6271 = vmatpush1.msra.mxu0 %v2274
      %6272 = vmatprep.subr.mxu0 0.0
      %6273 = vmatpush1.msra.mxu0 %v2271
      %6274 = vmatprep.subr.mxu0 0.0
      %6275 = vmatpush1.msra.mxu0 %v2268
      %6276 = vmatprep.subr.mxu0 0.0
      %6277 = vmatpush1.msra.mxu0 %v2265
      %6278 = vmatprep.subr.mxu0 0.0
      %6279 = vmatpush1.msra.mxu0 %v2262
      %6280 = vmatprep.subr.mxu0 0.0
      %6281 = vmatpush1.msra.mxu0 %v2259
      %6282 = vmatprep.subr.mxu0 0.0
      %6283 = vmatpush2.msra.mxu0 0.0
      %6284 = vmatprep.subr.mxu0 0.0
      %6285 = vmatpush2.msra.mxu0 0.0
      %6286 = vmatprep.subr.mxu0 0.0
      %6287 = vmatpush2.msra.mxu0 0.0
      %6288 = vmatprep.subr.mxu0 0.0
      %6289 = vmatpush2.msra.mxu0 0.0
      %6290 = vmatprep.subr.mxu0 0.0
      %6291 = vmatpush2.msra.mxu0 0.0
      %6292 = vmatprep.subr.mxu0 0.0
      %6293 = vmatpush2.msra.mxu0 0.0
      %6294 = vmatprep.subr.mxu0 0.0
      %6295 = vmatpush2.msra.mxu0 0.0
      %6296 = vmatprep.subr.mxu0 0.0
      %6297 = vmatpush2.msra.mxu0 0.0
      %6298 = vmatprep.subr.mxu0 0.0
      %6299 = vmatpush2.msra.mxu0 0.0
      %6300 = vmatprep.subr.mxu0 0.0
      %6301 = vmatpush2.msra.mxu0 0.0
      %6302 = vmatprep.subr.mxu0 0.0
      %6303 = vmatpush2.msra.mxu0 0.0
      %6304 = vmatprep.subr.mxu0 0.0
      %6305 = vmatpush2.msra.mxu0 0.0
      %6306 = vmatprep.subr.mxu0 0.0
      %6307 = vmatpush2.msra.mxu0 0.0
      %6308 = vmatprep.subr.mxu0 0.0
      %6309 = vmatpush2.msra.mxu0 0.0
      %6310 = vmatprep.subr.mxu0 0.0
      %6311 = vmatpush2.msra.mxu0 0.0
      %6312 = vmatprep.subr.mxu0 0.0
      %6313 = vmatpush2.msra.mxu0 0.0
      %6314 = vmatprep.mubr.f32.mxu0 0.0
      %6315 = vmatmul.mubr.f32.gmra.mxu0 %v6165
      %v6316 = vpop.f32.mrf.mxu0
      %v6317 = vadd.f32 %v2325, %v6316
      %v6318 = vpop.f32.mrf.mxu0
      %6319 = vdwg.mxu0
      %v6320 = vadd.f32 %v6176, %v6246
      %v6321 = vxor.u32 %v6320, 2147483648
      %v6322 = vmul.f32 %v6321, 1.442695
      %v6323 = vpow.pop %v6322
      %v6324 = vadd.f32 %v6323, 1.0
      %v6325 = vrcp.pop %v6324
      %v6326 = vmul.f32 1.0, %v6325
      %v6327 = vadd.f32 %v6177, %v6248
      %v6328 = vxor.u32 %v6327, 2147483648
      %v6329 = vmul.f32 %v6328, 1.442695
      %v6330 = vpow.pop %v6329
      %v6331 = vadd.f32 %v6330, 1.0
      %v6332 = vrcp.pop %v6331
      %v6333 = vmul.f32 1.0, %v6332
      %v6334 = vmul.f32 %v6326, %v6317
      %v6335 = vadd.f32 %v6178, %v6334
      %v6336 = vtanh.pop %v6335
      %v6337 = vsub.f32 1.0, %v6333
      %v6338 = vmul.f32 %v6337, %v6336
      %v6339 = vmul.f32 %v6333, %v6165
      %v6340 = vadd.f32 %v6338, %v6339
      %s6341 = sadd.s32 %s2307, 23
      %v6342 = vstv %s6341
      %vm6343 = vcmp.eq.s32.totalorder %v2306, %v6342
      %v6344 = vsel %vm6343, 1, 0
      %6345 = vset.pattern.permute.xlu0 0
      %6346 = vperm.xlu0 %6345, %v6344
      %v6347 = vpop.permute.xlu0 %6346
      %vm6348 = vcmp.eq.s32.totalorder %v6347, 1
      %v6349 = vsel %vm6348, %v6340, %v6174
      %s6350 = scalar_lea.vmem [#allocation2], 552
      %v6351 = vld [vmem:[%s6350] sm:$0xff]
      %v6352 = vld [vmem:[%s6350 + $0x8] sm:$0xff]
      %v6353 = vld [vmem:[%s6350 + $0x10] sm:$0xff]
      %6354 = vmatprep.subr.mxu0 %v2303
      %6355 = vmatpush1.msra.mxu0 %v2302
      %6356 = vmatprep.subr.mxu0 %v2300
      %6357 = vmatpush1.msra.mxu0 %v2299
      %6358 = vmatprep.subr.mxu0 %v2297
      %6359 = vmatpush1.msra.mxu0 %v2296
      %6360 = vmatprep.subr.mxu0 %v2294
      %6361 = vmatpush1.msra.mxu0 %v2293
      %6362 = vmatprep.subr.mxu0 %v2291
      %6363 = vmatpush1.msra.mxu0 %v2290
      %6364 = vmatprep.subr.mxu0 %v2288
      %6365 = vmatpush1.msra.mxu0 %v2287
      %6366 = vmatprep.subr.mxu0 %v2285
      %6367 = vmatpush1.msra.mxu0 %v2284
      %6368 = vmatprep.subr.mxu0 %v2282
      %6369 = vmatpush1.msra.mxu0 %v2281
      %6370 = vmatprep.subr.mxu0 %v2279
      %6371 = vmatpush1.msra.mxu0 %v2278
      %6372 = vmatprep.subr.mxu0 %v2276
      %6373 = vmatpush1.msra.mxu0 %v2275
      %6374 = vmatprep.subr.mxu0 %v2273
      %6375 = vmatpush1.msra.mxu0 %v2272
      %6376 = vmatprep.subr.mxu0 %v2270
      %6377 = vmatpush1.msra.mxu0 %v2269
      %6378 = vmatprep.subr.mxu0 %v2267
      %6379 = vmatpush1.msra.mxu0 %v2266
      %6380 = vmatprep.subr.mxu0 %v2264
      %6381 = vmatpush1.msra.mxu0 %v2263
      %6382 = vmatprep.subr.mxu0 %v2261
      %6383 = vmatpush1.msra.mxu0 %v2260
      %6384 = vmatprep.subr.mxu0 %v2258
      %6385 = vmatpush1.msra.mxu0 %v2257
      %6386 = vmatprep.subr.mxu0 0.0
      %6387 = vmatpush2.msra.mxu0 0.0
      %6388 = vmatprep.subr.mxu0 0.0
      %6389 = vmatpush2.msra.mxu0 0.0
      %6390 = vmatprep.subr.mxu0 0.0
      %6391 = vmatpush2.msra.mxu0 0.0
      %6392 = vmatprep.subr.mxu0 0.0
      %6393 = vmatpush2.msra.mxu0 0.0
      %6394 = vmatprep.subr.mxu0 0.0
      %6395 = vmatpush2.msra.mxu0 0.0
      %6396 = vmatprep.subr.mxu0 0.0
      %6397 = vmatpush2.msra.mxu0 0.0
      %6398 = vmatprep.subr.mxu0 0.0
      %6399 = vmatpush2.msra.mxu0 0.0
      %6400 = vmatprep.subr.mxu0 0.0
      %6401 = vmatpush2.msra.mxu0 0.0
      %6402 = vmatprep.subr.mxu0 0.0
      %6403 = vmatpush2.msra.mxu0 0.0
      %6404 = vmatprep.subr.mxu0 0.0
      %6405 = vmatpush2.msra.mxu0 0.0
      %6406 = vmatprep.subr.mxu0 0.0
      %6407 = vmatpush2.msra.mxu0 0.0
      %6408 = vmatprep.subr.mxu0 0.0
      %6409 = vmatpush2.msra.mxu0 0.0
      %6410 = vmatprep.subr.mxu0 0.0
      %6411 = vmatpush2.msra.mxu0 0.0
      %6412 = vmatprep.subr.mxu0 0.0
      %6413 = vmatpush2.msra.mxu0 0.0
      %6414 = vmatprep.subr.mxu0 0.0
      %6415 = vmatpush2.msra.mxu0 0.0
      %6416 = vmatprep.subr.mxu0 0.0
      %6417 = vmatpush2.msra.mxu0 0.0
      %6418 = vmatprep.mubr.f32.mxu0 0.0
      %6419 = vmatmul.mubr.f32.gmra.mxu0 %v6340
      %v6420 = vpop.f32.mrf.mxu0
      %v6421 = vadd.f32 %v2317, %v6420
      %v6422 = vpop.f32.mrf.mxu0
      %v6423 = vadd.f32 %v2321, %v6422
      %6424 = vdwg.mxu0
      %6425 = vmatprep.subr.mxu0 0.0
      %6426 = vmatpush1.msra.mxu0 %v2304
      %6427 = vmatprep.subr.mxu0 0.0
      %6428 = vmatpush1.msra.mxu0 %v2301
      %6429 = vmatprep.subr.mxu0 0.0
      %6430 = vmatpush1.msra.mxu0 %v2298
      %6431 = vmatprep.subr.mxu0 0.0
      %6432 = vmatpush1.msra.mxu0 %v2295
      %6433 = vmatprep.subr.mxu0 0.0
      %6434 = vmatpush1.msra.mxu0 %v2292
      %6435 = vmatprep.subr.mxu0 0.0
      %6436 = vmatpush1.msra.mxu0 %v2289
      %6437 = vmatprep.subr.mxu0 0.0
      %6438 = vmatpush1.msra.mxu0 %v2286
      %6439 = vmatprep.subr.mxu0 0.0
      %6440 = vmatpush1.msra.mxu0 %v2283
      %6441 = vmatprep.subr.mxu0 0.0
      %6442 = vmatpush1.msra.mxu0 %v2280
      %6443 = vmatprep.subr.mxu0 0.0
      %6444 = vmatpush1.msra.mxu0 %v2277
      %6445 = vmatprep.subr.mxu0 0.0
      %6446 = vmatpush1.msra.mxu0 %v2274
      %6447 = vmatprep.subr.mxu0 0.0
      %6448 = vmatpush1.msra.mxu0 %v2271
      %6449 = vmatprep.subr.mxu0 0.0
      %6450 = vmatpush1.msra.mxu0 %v2268
      %6451 = vmatprep.subr.mxu0 0.0
      %6452 = vmatpush1.msra.mxu0 %v2265
      %6453 = vmatprep.subr.mxu0 0.0
      %6454 = vmatpush1.msra.mxu0 %v2262
      %6455 = vmatprep.subr.mxu0 0.0
      %6456 = vmatpush1.msra.mxu0 %v2259
      %6457 = vmatprep.subr.mxu0 0.0
      %6458 = vmatpush2.msra.mxu0 0.0
      %6459 = vmatprep.subr.mxu0 0.0
      %6460 = vmatpush2.msra.mxu0 0.0
      %6461 = vmatprep.subr.mxu0 0.0
      %6462 = vmatpush2.msra.mxu0 0.0
      %6463 = vmatprep.subr.mxu0 0.0
      %6464 = vmatpush2.msra.mxu0 0.0
      %6465 = vmatprep.subr.mxu0 0.0
      %6466 = vmatpush2.msra.mxu0 0.0
      %6467 = vmatprep.subr.mxu0 0.0
      %6468 = vmatpush2.msra.mxu0 0.0
      %6469 = vmatprep.subr.mxu0 0.0
      %6470 = vmatpush2.msra.mxu0 0.0
      %6471 = vmatprep.subr.mxu0 0.0
      %6472 = vmatpush2.msra.mxu0 0.0
      %6473 = vmatprep.subr.mxu0 0.0
      %6474 = vmatpush2.msra.mxu0 0.0
      %6475 = vmatprep.subr.mxu0 0.0
      %6476 = vmatpush2.msra.mxu0 0.0
      %6477 = vmatprep.subr.mxu0 0.0
      %6478 = vmatpush2.msra.mxu0 0.0
      %6479 = vmatprep.subr.mxu0 0.0
      %6480 = vmatpush2.msra.mxu0 0.0
      %6481 = vmatprep.subr.mxu0 0.0
      %6482 = vmatpush2.msra.mxu0 0.0
      %6483 = vmatprep.subr.mxu0 0.0
      %6484 = vmatpush2.msra.mxu0 0.0
      %6485 = vmatprep.subr.mxu0 0.0
      %6486 = vmatpush2.msra.mxu0 0.0
      %6487 = vmatprep.subr.mxu0 0.0
      %6488 = vmatpush2.msra.mxu0 0.0
      %6489 = vmatprep.mubr.f32.mxu0 0.0
      %6490 = vmatmul.mubr.f32.gmra.mxu0 %v6340
      %v6491 = vpop.f32.mrf.mxu0
      %v6492 = vadd.f32 %v2325, %v6491
      %v6493 = vpop.f32.mrf.mxu0
      %6494 = vdwg.mxu0
      %v6495 = vadd.f32 %v6351, %v6421
      %v6496 = vxor.u32 %v6495, 2147483648
      %v6497 = vmul.f32 %v6496, 1.442695
      %v6498 = vpow.pop %v6497
      %v6499 = vadd.f32 %v6498, 1.0
      %v6500 = vrcp.pop %v6499
      %v6501 = vmul.f32 1.0, %v6500
      %v6502 = vadd.f32 %v6352, %v6423
      %v6503 = vxor.u32 %v6502, 2147483648
      %v6504 = vmul.f32 %v6503, 1.442695
      %v6505 = vpow.pop %v6504
      %v6506 = vadd.f32 %v6505, 1.0
      %v6507 = vrcp.pop %v6506
      %v6508 = vmul.f32 1.0, %v6507
      %v6509 = vmul.f32 %v6501, %v6492
      %v6510 = vadd.f32 %v6353, %v6509
      %v6511 = vtanh.pop %v6510
      %v6512 = vsub.f32 1.0, %v6508
      %v6513 = vmul.f32 %v6512, %v6511
      %v6514 = vmul.f32 %v6508, %v6340
      %v6515 = vadd.f32 %v6513, %v6514
      %s6516 = sadd.s32 %s2307, 24
      %v6517 = vstv %s6516
      %vm6518 = vcmp.eq.s32.totalorder %v2306, %v6517
      %v6519 = vsel %vm6518, 1, 0
      %6520 = vset.pattern.permute.xlu0 0
      %6521 = vperm.xlu0 %6520, %v6519
      %v6522 = vpop.permute.xlu0 %6521
      %vm6523 = vcmp.eq.s32.totalorder %v6522, 1
      %v6524 = vsel %vm6523, %v6515, %v6349
      %s6525 = scalar_lea.vmem [#allocation2], 576
      %v6526 = vld [vmem:[%s6525] sm:$0xff]
      %v6527 = vld [vmem:[%s6525 + $0x8] sm:$0xff]
      %v6528 = vld [vmem:[%s6525 + $0x10] sm:$0xff]
      %6529 = vmatprep.subr.mxu0 %v2303
      %6530 = vmatpush1.msra.mxu0 %v2302
      %6531 = vmatprep.subr.mxu0 %v2300
      %6532 = vmatpush1.msra.mxu0 %v2299
      %6533 = vmatprep.subr.mxu0 %v2297
      %6534 = vmatpush1.msra.mxu0 %v2296
      %6535 = vmatprep.subr.mxu0 %v2294
      %6536 = vmatpush1.msra.mxu0 %v2293
      %6537 = vmatprep.subr.mxu0 %v2291
      %6538 = vmatpush1.msra.mxu0 %v2290
      %6539 = vmatprep.subr.mxu0 %v2288
      %6540 = vmatpush1.msra.mxu0 %v2287
      %6541 = vmatprep.subr.mxu0 %v2285
      %6542 = vmatpush1.msra.mxu0 %v2284
      %6543 = vmatprep.subr.mxu0 %v2282
      %6544 = vmatpush1.msra.mxu0 %v2281
      %6545 = vmatprep.subr.mxu0 %v2279
      %6546 = vmatpush1.msra.mxu0 %v2278
      %6547 = vmatprep.subr.mxu0 %v2276
      %6548 = vmatpush1.msra.mxu0 %v2275
      %6549 = vmatprep.subr.mxu0 %v2273
      %6550 = vmatpush1.msra.mxu0 %v2272
      %6551 = vmatprep.subr.mxu0 %v2270
      %6552 = vmatpush1.msra.mxu0 %v2269
      %6553 = vmatprep.subr.mxu0 %v2267
      %6554 = vmatpush1.msra.mxu0 %v2266
      %6555 = vmatprep.subr.mxu0 %v2264
      %6556 = vmatpush1.msra.mxu0 %v2263
      %6557 = vmatprep.subr.mxu0 %v2261
      %6558 = vmatpush1.msra.mxu0 %v2260
      %6559 = vmatprep.subr.mxu0 %v2258
      %6560 = vmatpush1.msra.mxu0 %v2257
      %6561 = vmatprep.subr.mxu0 0.0
      %6562 = vmatpush2.msra.mxu0 0.0
      %6563 = vmatprep.subr.mxu0 0.0
      %6564 = vmatpush2.msra.mxu0 0.0
      %6565 = vmatprep.subr.mxu0 0.0
      %6566 = vmatpush2.msra.mxu0 0.0
      %6567 = vmatprep.subr.mxu0 0.0
      %6568 = vmatpush2.msra.mxu0 0.0
      %6569 = vmatprep.subr.mxu0 0.0
      %6570 = vmatpush2.msra.mxu0 0.0
      %6571 = vmatprep.subr.mxu0 0.0
      %6572 = vmatpush2.msra.mxu0 0.0
      %6573 = vmatprep.subr.mxu0 0.0
      %6574 = vmatpush2.msra.mxu0 0.0
      %6575 = vmatprep.subr.mxu0 0.0
      %6576 = vmatpush2.msra.mxu0 0.0
      %6577 = vmatprep.subr.mxu0 0.0
      %6578 = vmatpush2.msra.mxu0 0.0
      %6579 = vmatprep.subr.mxu0 0.0
      %6580 = vmatpush2.msra.mxu0 0.0
      %6581 = vmatprep.subr.mxu0 0.0
      %6582 = vmatpush2.msra.mxu0 0.0
      %6583 = vmatprep.subr.mxu0 0.0
      %6584 = vmatpush2.msra.mxu0 0.0
      %6585 = vmatprep.subr.mxu0 0.0
      %6586 = vmatpush2.msra.mxu0 0.0
      %6587 = vmatprep.subr.mxu0 0.0
      %6588 = vmatpush2.msra.mxu0 0.0
      %6589 = vmatprep.subr.mxu0 0.0
      %6590 = vmatpush2.msra.mxu0 0.0
      %6591 = vmatprep.subr.mxu0 0.0
      %6592 = vmatpush2.msra.mxu0 0.0
      %6593 = vmatprep.mubr.f32.mxu0 0.0
      %6594 = vmatmul.mubr.f32.gmra.mxu0 %v6515
      %v6595 = vpop.f32.mrf.mxu0
      %v6596 = vadd.f32 %v2317, %v6595
      %v6597 = vpop.f32.mrf.mxu0
      %v6598 = vadd.f32 %v2321, %v6597
      %6599 = vdwg.mxu0
      %6600 = vmatprep.subr.mxu0 0.0
      %6601 = vmatpush1.msra.mxu0 %v2304
      %6602 = vmatprep.subr.mxu0 0.0
      %6603 = vmatpush1.msra.mxu0 %v2301
      %6604 = vmatprep.subr.mxu0 0.0
      %6605 = vmatpush1.msra.mxu0 %v2298
      %6606 = vmatprep.subr.mxu0 0.0
      %6607 = vmatpush1.msra.mxu0 %v2295
      %6608 = vmatprep.subr.mxu0 0.0
      %6609 = vmatpush1.msra.mxu0 %v2292
      %6610 = vmatprep.subr.mxu0 0.0
      %6611 = vmatpush1.msra.mxu0 %v2289
      %6612 = vmatprep.subr.mxu0 0.0
      %6613 = vmatpush1.msra.mxu0 %v2286
      %6614 = vmatprep.subr.mxu0 0.0
      %6615 = vmatpush1.msra.mxu0 %v2283
      %6616 = vmatprep.subr.mxu0 0.0
      %6617 = vmatpush1.msra.mxu0 %v2280
      %6618 = vmatprep.subr.mxu0 0.0
      %6619 = vmatpush1.msra.mxu0 %v2277
      %6620 = vmatprep.subr.mxu0 0.0
      %6621 = vmatpush1.msra.mxu0 %v2274
      %6622 = vmatprep.subr.mxu0 0.0
      %6623 = vmatpush1.msra.mxu0 %v2271
      %6624 = vmatprep.subr.mxu0 0.0
      %6625 = vmatpush1.msra.mxu0 %v2268
      %6626 = vmatprep.subr.mxu0 0.0
      %6627 = vmatpush1.msra.mxu0 %v2265
      %6628 = vmatprep.subr.mxu0 0.0
      %6629 = vmatpush1.msra.mxu0 %v2262
      %6630 = vmatprep.subr.mxu0 0.0
      %6631 = vmatpush1.msra.mxu0 %v2259
      %6632 = vmatprep.subr.mxu0 0.0
      %6633 = vmatpush2.msra.mxu0 0.0
      %6634 = vmatprep.subr.mxu0 0.0
      %6635 = vmatpush2.msra.mxu0 0.0
      %6636 = vmatprep.subr.mxu0 0.0
      %6637 = vmatpush2.msra.mxu0 0.0
      %6638 = vmatprep.subr.mxu0 0.0
      %6639 = vmatpush2.msra.mxu0 0.0
      %6640 = vmatprep.subr.mxu0 0.0
      %6641 = vmatpush2.msra.mxu0 0.0
      %6642 = vmatprep.subr.mxu0 0.0
      %6643 = vmatpush2.msra.mxu0 0.0
      %6644 = vmatprep.subr.mxu0 0.0
      %6645 = vmatpush2.msra.mxu0 0.0
      %6646 = vmatprep.subr.mxu0 0.0
      %6647 = vmatpush2.msra.mxu0 0.0
      %6648 = vmatprep.subr.mxu0 0.0
      %6649 = vmatpush2.msra.mxu0 0.0
      %6650 = vmatprep.subr.mxu0 0.0
      %6651 = vmatpush2.msra.mxu0 0.0
      %6652 = vmatprep.subr.mxu0 0.0
      %6653 = vmatpush2.msra.mxu0 0.0
      %6654 = vmatprep.subr.mxu0 0.0
      %6655 = vmatpush2.msra.mxu0 0.0
      %6656 = vmatprep.subr.mxu0 0.0
      %6657 = vmatpush2.msra.mxu0 0.0
      %6658 = vmatprep.subr.mxu0 0.0
      %6659 = vmatpush2.msra.mxu0 0.0
      %6660 = vmatprep.subr.mxu0 0.0
      %6661 = vmatpush2.msra.mxu0 0.0
      %6662 = vmatprep.subr.mxu0 0.0
      %6663 = vmatpush2.msra.mxu0 0.0
      %6664 = vmatprep.mubr.f32.mxu0 0.0
      %6665 = vmatmul.mubr.f32.gmra.mxu0 %v6515
      %v6666 = vpop.f32.mrf.mxu0
      %v6667 = vadd.f32 %v2325, %v6666
      %v6668 = vpop.f32.mrf.mxu0
      %6669 = vdwg.mxu0
      %v6670 = vadd.f32 %v6526, %v6596
      %v6671 = vxor.u32 %v6670, 2147483648
      %v6672 = vmul.f32 %v6671, 1.442695
      %v6673 = vpow.pop %v6672
      %v6674 = vadd.f32 %v6673, 1.0
      %v6675 = vrcp.pop %v6674
      %v6676 = vmul.f32 1.0, %v6675
      %v6677 = vadd.f32 %v6527, %v6598
      %v6678 = vxor.u32 %v6677, 2147483648
      %v6679 = vmul.f32 %v6678, 1.442695
      %v6680 = vpow.pop %v6679
      %v6681 = vadd.f32 %v6680, 1.0
      %v6682 = vrcp.pop %v6681
      %v6683 = vmul.f32 1.0, %v6682
      %v6684 = vmul.f32 %v6676, %v6667
      %v6685 = vadd.f32 %v6528, %v6684
      %v6686 = vtanh.pop %v6685
      %v6687 = vsub.f32 1.0, %v6683
      %v6688 = vmul.f32 %v6687, %v6686
      %v6689 = vmul.f32 %v6683, %v6515
      %v6690 = vadd.f32 %v6688, %v6689
      %s6691 = sadd.s32 %s2307, 25
      %v6692 = vstv %s6691
      %vm6693 = vcmp.eq.s32.totalorder %v2306, %v6692
      %v6694 = vsel %vm6693, 1, 0
      %6695 = vset.pattern.permute.xlu0 0
      %6696 = vperm.xlu0 %6695, %v6694
      %v6697 = vpop.permute.xlu0 %6696
      %vm6698 = vcmp.eq.s32.totalorder %v6697, 1
      %v6699 = vsel %vm6698, %v6690, %v6524
      %s6700 = scalar_lea.vmem [#allocation2], 600
      %v6701 = vld [vmem:[%s6700] sm:$0xff]
      %v6702 = vld [vmem:[%s6700 + $0x8] sm:$0xff]
      %v6703 = vld [vmem:[%s6700 + $0x10] sm:$0xff]
      %6704 = vmatprep.subr.mxu0 %v2303
      %6705 = vmatpush1.msra.mxu0 %v2302
      %6706 = vmatprep.subr.mxu0 %v2300
      %6707 = vmatpush1.msra.mxu0 %v2299
      %6708 = vmatprep.subr.mxu0 %v2297
      %6709 = vmatpush1.msra.mxu0 %v2296
      %6710 = vmatprep.subr.mxu0 %v2294
      %6711 = vmatpush1.msra.mxu0 %v2293
      %6712 = vmatprep.subr.mxu0 %v2291
      %6713 = vmatpush1.msra.mxu0 %v2290
      %6714 = vmatprep.subr.mxu0 %v2288
      %6715 = vmatpush1.msra.mxu0 %v2287
      %6716 = vmatprep.subr.mxu0 %v2285
      %6717 = vmatpush1.msra.mxu0 %v2284
      %6718 = vmatprep.subr.mxu0 %v2282
      %6719 = vmatpush1.msra.mxu0 %v2281
      %6720 = vmatprep.subr.mxu0 %v2279
      %6721 = vmatpush1.msra.mxu0 %v2278
      %6722 = vmatprep.subr.mxu0 %v2276
      %6723 = vmatpush1.msra.mxu0 %v2275
      %6724 = vmatprep.subr.mxu0 %v2273
      %6725 = vmatpush1.msra.mxu0 %v2272
      %6726 = vmatprep.subr.mxu0 %v2270
      %6727 = vmatpush1.msra.mxu0 %v2269
      %6728 = vmatprep.subr.mxu0 %v2267
      %6729 = vmatpush1.msra.mxu0 %v2266
      %6730 = vmatprep.subr.mxu0 %v2264
      %6731 = vmatpush1.msra.mxu0 %v2263
      %6732 = vmatprep.subr.mxu0 %v2261
      %6733 = vmatpush1.msra.mxu0 %v2260
      %6734 = vmatprep.subr.mxu0 %v2258
      %6735 = vmatpush1.msra.mxu0 %v2257
      %6736 = vmatprep.subr.mxu0 0.0
      %6737 = vmatpush2.msra.mxu0 0.0
      %6738 = vmatprep.subr.mxu0 0.0
      %6739 = vmatpush2.msra.mxu0 0.0
      %6740 = vmatprep.subr.mxu0 0.0
      %6741 = vmatpush2.msra.mxu0 0.0
      %6742 = vmatprep.subr.mxu0 0.0
      %6743 = vmatpush2.msra.mxu0 0.0
      %6744 = vmatprep.subr.mxu0 0.0
      %6745 = vmatpush2.msra.mxu0 0.0
      %6746 = vmatprep.subr.mxu0 0.0
      %6747 = vmatpush2.msra.mxu0 0.0
      %6748 = vmatprep.subr.mxu0 0.0
      %6749 = vmatpush2.msra.mxu0 0.0
      %6750 = vmatprep.subr.mxu0 0.0
      %6751 = vmatpush2.msra.mxu0 0.0
      %6752 = vmatprep.subr.mxu0 0.0
      %6753 = vmatpush2.msra.mxu0 0.0
      %6754 = vmatprep.subr.mxu0 0.0
      %6755 = vmatpush2.msra.mxu0 0.0
      %6756 = vmatprep.subr.mxu0 0.0
      %6757 = vmatpush2.msra.mxu0 0.0
      %6758 = vmatprep.subr.mxu0 0.0
      %6759 = vmatpush2.msra.mxu0 0.0
      %6760 = vmatprep.subr.mxu0 0.0
      %6761 = vmatpush2.msra.mxu0 0.0
      %6762 = vmatprep.subr.mxu0 0.0
      %6763 = vmatpush2.msra.mxu0 0.0
      %6764 = vmatprep.subr.mxu0 0.0
      %6765 = vmatpush2.msra.mxu0 0.0
      %6766 = vmatprep.subr.mxu0 0.0
      %6767 = vmatpush2.msra.mxu0 0.0
      %6768 = vmatprep.mubr.f32.mxu0 0.0
      %6769 = vmatmul.mubr.f32.gmra.mxu0 %v6690
      %v6770 = vpop.f32.mrf.mxu0
      %v6771 = vadd.f32 %v2317, %v6770
      %v6772 = vpop.f32.mrf.mxu0
      %v6773 = vadd.f32 %v2321, %v6772
      %6774 = vdwg.mxu0
      %6775 = vmatprep.subr.mxu0 0.0
      %6776 = vmatpush1.msra.mxu0 %v2304
      %6777 = vmatprep.subr.mxu0 0.0
      %6778 = vmatpush1.msra.mxu0 %v2301
      %6779 = vmatprep.subr.mxu0 0.0
      %6780 = vmatpush1.msra.mxu0 %v2298
      %6781 = vmatprep.subr.mxu0 0.0
      %6782 = vmatpush1.msra.mxu0 %v2295
      %6783 = vmatprep.subr.mxu0 0.0
      %6784 = vmatpush1.msra.mxu0 %v2292
      %6785 = vmatprep.subr.mxu0 0.0
      %6786 = vmatpush1.msra.mxu0 %v2289
      %6787 = vmatprep.subr.mxu0 0.0
      %6788 = vmatpush1.msra.mxu0 %v2286
      %6789 = vmatprep.subr.mxu0 0.0
      %6790 = vmatpush1.msra.mxu0 %v2283
      %6791 = vmatprep.subr.mxu0 0.0
      %6792 = vmatpush1.msra.mxu0 %v2280
      %6793 = vmatprep.subr.mxu0 0.0
      %6794 = vmatpush1.msra.mxu0 %v2277
      %6795 = vmatprep.subr.mxu0 0.0
      %6796 = vmatpush1.msra.mxu0 %v2274
      %6797 = vmatprep.subr.mxu0 0.0
      %6798 = vmatpush1.msra.mxu0 %v2271
      %6799 = vmatprep.subr.mxu0 0.0
      %6800 = vmatpush1.msra.mxu0 %v2268
      %6801 = vmatprep.subr.mxu0 0.0
      %6802 = vmatpush1.msra.mxu0 %v2265
      %6803 = vmatprep.subr.mxu0 0.0
      %6804 = vmatpush1.msra.mxu0 %v2262
      %6805 = vmatprep.subr.mxu0 0.0
      %6806 = vmatpush1.msra.mxu0 %v2259
      %6807 = vmatprep.subr.mxu0 0.0
      %6808 = vmatpush2.msra.mxu0 0.0
      %6809 = vmatprep.subr.mxu0 0.0
      %6810 = vmatpush2.msra.mxu0 0.0
      %6811 = vmatprep.subr.mxu0 0.0
      %6812 = vmatpush2.msra.mxu0 0.0
      %6813 = vmatprep.subr.mxu0 0.0
      %6814 = vmatpush2.msra.mxu0 0.0
      %6815 = vmatprep.subr.mxu0 0.0
      %6816 = vmatpush2.msra.mxu0 0.0
      %6817 = vmatprep.subr.mxu0 0.0
      %6818 = vmatpush2.msra.mxu0 0.0
      %6819 = vmatprep.subr.mxu0 0.0
      %6820 = vmatpush2.msra.mxu0 0.0
      %6821 = vmatprep.subr.mxu0 0.0
      %6822 = vmatpush2.msra.mxu0 0.0
      %6823 = vmatprep.subr.mxu0 0.0
      %6824 = vmatpush2.msra.mxu0 0.0
      %6825 = vmatprep.subr.mxu0 0.0
      %6826 = vmatpush2.msra.mxu0 0.0
      %6827 = vmatprep.subr.mxu0 0.0
      %6828 = vmatpush2.msra.mxu0 0.0
      %6829 = vmatprep.subr.mxu0 0.0
      %6830 = vmatpush2.msra.mxu0 0.0
      %6831 = vmatprep.subr.mxu0 0.0
      %6832 = vmatpush2.msra.mxu0 0.0
      %6833 = vmatprep.subr.mxu0 0.0
      %6834 = vmatpush2.msra.mxu0 0.0
      %6835 = vmatprep.subr.mxu0 0.0
      %6836 = vmatpush2.msra.mxu0 0.0
      %6837 = vmatprep.subr.mxu0 0.0
      %6838 = vmatpush2.msra.mxu0 0.0
      %6839 = vmatprep.mubr.f32.mxu0 0.0
      %6840 = vmatmul.mubr.f32.gmra.mxu0 %v6690
      %v6841 = vpop.f32.mrf.mxu0
      %v6842 = vadd.f32 %v2325, %v6841
      %v6843 = vpop.f32.mrf.mxu0
      %6844 = vdwg.mxu0
      %v6845 = vadd.f32 %v6701, %v6771
      %v6846 = vxor.u32 %v6845, 2147483648
      %v6847 = vmul.f32 %v6846, 1.442695
      %v6848 = vpow.pop %v6847
      %v6849 = vadd.f32 %v6848, 1.0
      %v6850 = vrcp.pop %v6849
      %v6851 = vmul.f32 1.0, %v6850
      %v6852 = vadd.f32 %v6702, %v6773
      %v6853 = vxor.u32 %v6852, 2147483648
      %v6854 = vmul.f32 %v6853, 1.442695
      %v6855 = vpow.pop %v6854
      %v6856 = vadd.f32 %v6855, 1.0
      %v6857 = vrcp.pop %v6856
      %v6858 = vmul.f32 1.0, %v6857
      %v6859 = vmul.f32 %v6851, %v6842
      %v6860 = vadd.f32 %v6703, %v6859
      %v6861 = vtanh.pop %v6860
      %v6862 = vsub.f32 1.0, %v6858
      %v6863 = vmul.f32 %v6862, %v6861
      %v6864 = vmul.f32 %v6858, %v6690
      %v6865 = vadd.f32 %v6863, %v6864
      %s6866 = sadd.s32 %s2307, 26
      %v6867 = vstv %s6866
      %vm6868 = vcmp.eq.s32.totalorder %v2306, %v6867
      %v6869 = vsel %vm6868, 1, 0
      %6870 = vset.pattern.permute.xlu0 0
      %6871 = vperm.xlu0 %6870, %v6869
      %v6872 = vpop.permute.xlu0 %6871
      %vm6873 = vcmp.eq.s32.totalorder %v6872, 1
      %v6874 = vsel %vm6873, %v6865, %v6699
      %s6875 = scalar_lea.vmem [#allocation2], 624
      %v6876 = vld [vmem:[%s6875] sm:$0xff]
      %v6877 = vld [vmem:[%s6875 + $0x8] sm:$0xff]
      %v6878 = vld [vmem:[%s6875 + $0x10] sm:$0xff]
      %6879 = vmatprep.subr.mxu0 %v2303
      %6880 = vmatpush1.msra.mxu0 %v2302
      %6881 = vmatprep.subr.mxu0 %v2300
      %6882 = vmatpush1.msra.mxu0 %v2299
      %6883 = vmatprep.subr.mxu0 %v2297
      %6884 = vmatpush1.msra.mxu0 %v2296
      %6885 = vmatprep.subr.mxu0 %v2294
      %6886 = vmatpush1.msra.mxu0 %v2293
      %6887 = vmatprep.subr.mxu0 %v2291
      %6888 = vmatpush1.msra.mxu0 %v2290
      %6889 = vmatprep.subr.mxu0 %v2288
      %6890 = vmatpush1.msra.mxu0 %v2287
      %6891 = vmatprep.subr.mxu0 %v2285
      %6892 = vmatpush1.msra.mxu0 %v2284
      %6893 = vmatprep.subr.mxu0 %v2282
      %6894 = vmatpush1.msra.mxu0 %v2281
      %6895 = vmatprep.subr.mxu0 %v2279
      %6896 = vmatpush1.msra.mxu0 %v2278
      %6897 = vmatprep.subr.mxu0 %v2276
      %6898 = vmatpush1.msra.mxu0 %v2275
      %6899 = vmatprep.subr.mxu0 %v2273
      %6900 = vmatpush1.msra.mxu0 %v2272
      %6901 = vmatprep.subr.mxu0 %v2270
      %6902 = vmatpush1.msra.mxu0 %v2269
      %6903 = vmatprep.subr.mxu0 %v2267
      %6904 = vmatpush1.msra.mxu0 %v2266
      %6905 = vmatprep.subr.mxu0 %v2264
      %6906 = vmatpush1.msra.mxu0 %v2263
      %6907 = vmatprep.subr.mxu0 %v2261
      %6908 = vmatpush1.msra.mxu0 %v2260
      %6909 = vmatprep.subr.mxu0 %v2258
      %6910 = vmatpush1.msra.mxu0 %v2257
      %6911 = vmatprep.subr.mxu0 0.0
      %6912 = vmatpush2.msra.mxu0 0.0
      %6913 = vmatprep.subr.mxu0 0.0
      %6914 = vmatpush2.msra.mxu0 0.0
      %6915 = vmatprep.subr.mxu0 0.0
      %6916 = vmatpush2.msra.mxu0 0.0
      %6917 = vmatprep.subr.mxu0 0.0
      %6918 = vmatpush2.msra.mxu0 0.0
      %6919 = vmatprep.subr.mxu0 0.0
      %6920 = vmatpush2.msra.mxu0 0.0
      %6921 = vmatprep.subr.mxu0 0.0
      %6922 = vmatpush2.msra.mxu0 0.0
      %6923 = vmatprep.subr.mxu0 0.0
      %6924 = vmatpush2.msra.mxu0 0.0
      %6925 = vmatprep.subr.mxu0 0.0
      %6926 = vmatpush2.msra.mxu0 0.0
      %6927 = vmatprep.subr.mxu0 0.0
      %6928 = vmatpush2.msra.mxu0 0.0
      %6929 = vmatprep.subr.mxu0 0.0
      %6930 = vmatpush2.msra.mxu0 0.0
      %6931 = vmatprep.subr.mxu0 0.0
      %6932 = vmatpush2.msra.mxu0 0.0
      %6933 = vmatprep.subr.mxu0 0.0
      %6934 = vmatpush2.msra.mxu0 0.0
      %6935 = vmatprep.subr.mxu0 0.0
      %6936 = vmatpush2.msra.mxu0 0.0
      %6937 = vmatprep.subr.mxu0 0.0
      %6938 = vmatpush2.msra.mxu0 0.0
      %6939 = vmatprep.subr.mxu0 0.0
      %6940 = vmatpush2.msra.mxu0 0.0
      %6941 = vmatprep.subr.mxu0 0.0
      %6942 = vmatpush2.msra.mxu0 0.0
      %6943 = vmatprep.mubr.f32.mxu0 0.0
      %6944 = vmatmul.mubr.f32.gmra.mxu0 %v6865
      %v6945 = vpop.f32.mrf.mxu0
      %v6946 = vadd.f32 %v2317, %v6945
      %v6947 = vpop.f32.mrf.mxu0
      %v6948 = vadd.f32 %v2321, %v6947
      %6949 = vdwg.mxu0
      %6950 = vmatprep.subr.mxu0 0.0
      %6951 = vmatpush1.msra.mxu0 %v2304
      %6952 = vmatprep.subr.mxu0 0.0
      %6953 = vmatpush1.msra.mxu0 %v2301
      %6954 = vmatprep.subr.mxu0 0.0
      %6955 = vmatpush1.msra.mxu0 %v2298
      %6956 = vmatprep.subr.mxu0 0.0
      %6957 = vmatpush1.msra.mxu0 %v2295
      %6958 = vmatprep.subr.mxu0 0.0
      %6959 = vmatpush1.msra.mxu0 %v2292
      %6960 = vmatprep.subr.mxu0 0.0
      %6961 = vmatpush1.msra.mxu0 %v2289
      %6962 = vmatprep.subr.mxu0 0.0
      %6963 = vmatpush1.msra.mxu0 %v2286
      %6964 = vmatprep.subr.mxu0 0.0
      %6965 = vmatpush1.msra.mxu0 %v2283
      %6966 = vmatprep.subr.mxu0 0.0
      %6967 = vmatpush1.msra.mxu0 %v2280
      %6968 = vmatprep.subr.mxu0 0.0
      %6969 = vmatpush1.msra.mxu0 %v2277
      %6970 = vmatprep.subr.mxu0 0.0
      %6971 = vmatpush1.msra.mxu0 %v2274
      %6972 = vmatprep.subr.mxu0 0.0
      %6973 = vmatpush1.msra.mxu0 %v2271
      %6974 = vmatprep.subr.mxu0 0.0
      %6975 = vmatpush1.msra.mxu0 %v2268
      %6976 = vmatprep.subr.mxu0 0.0
      %6977 = vmatpush1.msra.mxu0 %v2265
      %6978 = vmatprep.subr.mxu0 0.0
      %6979 = vmatpush1.msra.mxu0 %v2262
      %6980 = vmatprep.subr.mxu0 0.0
      %6981 = vmatpush1.msra.mxu0 %v2259
      %6982 = vmatprep.subr.mxu0 0.0
      %6983 = vmatpush2.msra.mxu0 0.0
      %6984 = vmatprep.subr.mxu0 0.0
      %6985 = vmatpush2.msra.mxu0 0.0
      %6986 = vmatprep.subr.mxu0 0.0
      %6987 = vmatpush2.msra.mxu0 0.0
      %6988 = vmatprep.subr.mxu0 0.0
      %6989 = vmatpush2.msra.mxu0 0.0
      %6990 = vmatprep.subr.mxu0 0.0
      %6991 = vmatpush2.msra.mxu0 0.0
      %6992 = vmatprep.subr.mxu0 0.0
      %6993 = vmatpush2.msra.mxu0 0.0
      %6994 = vmatprep.subr.mxu0 0.0
      %6995 = vmatpush2.msra.mxu0 0.0
      %6996 = vmatprep.subr.mxu0 0.0
      %6997 = vmatpush2.msra.mxu0 0.0
      %6998 = vmatprep.subr.mxu0 0.0
      %6999 = vmatpush2.msra.mxu0 0.0
      %7000 = vmatprep.subr.mxu0 0.0
      %7001 = vmatpush2.msra.mxu0 0.0
      %7002 = vmatprep.subr.mxu0 0.0
      %7003 = vmatpush2.msra.mxu0 0.0
      %7004 = vmatprep.subr.mxu0 0.0
      %7005 = vmatpush2.msra.mxu0 0.0
      %7006 = vmatprep.subr.mxu0 0.0
      %7007 = vmatpush2.msra.mxu0 0.0
      %7008 = vmatprep.subr.mxu0 0.0
      %7009 = vmatpush2.msra.mxu0 0.0
      %7010 = vmatprep.subr.mxu0 0.0
      %7011 = vmatpush2.msra.mxu0 0.0
      %7012 = vmatprep.subr.mxu0 0.0
      %7013 = vmatpush2.msra.mxu0 0.0
      %7014 = vmatprep.mubr.f32.mxu0 0.0
      %7015 = vmatmul.mubr.f32.gmra.mxu0 %v6865
      %v7016 = vpop.f32.mrf.mxu0
      %v7017 = vadd.f32 %v2325, %v7016
      %v7018 = vpop.f32.mrf.mxu0
      %7019 = vdwg.mxu0
      %v7020 = vadd.f32 %v6876, %v6946
      %v7021 = vxor.u32 %v7020, 2147483648
      %v7022 = vmul.f32 %v7021, 1.442695
      %v7023 = vpow.pop %v7022
      %v7024 = vadd.f32 %v7023, 1.0
      %v7025 = vrcp.pop %v7024
      %v7026 = vmul.f32 1.0, %v7025
      %v7027 = vadd.f32 %v6877, %v6948
      %v7028 = vxor.u32 %v7027, 2147483648
      %v7029 = vmul.f32 %v7028, 1.442695
      %v7030 = vpow.pop %v7029
      %v7031 = vadd.f32 %v7030, 1.0
      %v7032 = vrcp.pop %v7031
      %v7033 = vmul.f32 1.0, %v7032
      %v7034 = vmul.f32 %v7026, %v7017
      %v7035 = vadd.f32 %v6878, %v7034
      %v7036 = vtanh.pop %v7035
      %v7037 = vsub.f32 1.0, %v7033
      %v7038 = vmul.f32 %v7037, %v7036
      %v7039 = vmul.f32 %v7033, %v6865
      %v7040 = vadd.f32 %v7038, %v7039
      %s7041 = sadd.s32 %s2307, 27
      %v7042 = vstv %s7041
      %vm7043 = vcmp.eq.s32.totalorder %v2306, %v7042
      %v7044 = vsel %vm7043, 1, 0
      %7045 = vset.pattern.permute.xlu0 0
      %7046 = vperm.xlu0 %7045, %v7044
      %v7047 = vpop.permute.xlu0 %7046
      %vm7048 = vcmp.eq.s32.totalorder %v7047, 1
      %v7049 = vsel %vm7048, %v7040, %v6874
      %s7050 = scalar_lea.vmem [#allocation2], 648
      %v7051 = vld [vmem:[%s7050] sm:$0xff]
      %v7052 = vld [vmem:[%s7050 + $0x8] sm:$0xff]
      %v7053 = vld [vmem:[%s7050 + $0x10] sm:$0xff]
      %7054 = vmatprep.subr.mxu0 %v2303
      %7055 = vmatpush1.msra.mxu0 %v2302
      %7056 = vmatprep.subr.mxu0 %v2300
      %7057 = vmatpush1.msra.mxu0 %v2299
      %7058 = vmatprep.subr.mxu0 %v2297
      %7059 = vmatpush1.msra.mxu0 %v2296
      %7060 = vmatprep.subr.mxu0 %v2294
      %7061 = vmatpush1.msra.mxu0 %v2293
      %7062 = vmatprep.subr.mxu0 %v2291
      %7063 = vmatpush1.msra.mxu0 %v2290
      %7064 = vmatprep.subr.mxu0 %v2288
      %7065 = vmatpush1.msra.mxu0 %v2287
      %7066 = vmatprep.subr.mxu0 %v2285
      %7067 = vmatpush1.msra.mxu0 %v2284
      %7068 = vmatprep.subr.mxu0 %v2282
      %7069 = vmatpush1.msra.mxu0 %v2281
      %7070 = vmatprep.subr.mxu0 %v2279
      %7071 = vmatpush1.msra.mxu0 %v2278
      %7072 = vmatprep.subr.mxu0 %v2276
      %7073 = vmatpush1.msra.mxu0 %v2275
      %7074 = vmatprep.subr.mxu0 %v2273
      %7075 = vmatpush1.msra.mxu0 %v2272
      %7076 = vmatprep.subr.mxu0 %v2270
      %7077 = vmatpush1.msra.mxu0 %v2269
      %7078 = vmatprep.subr.mxu0 %v2267
      %7079 = vmatpush1.msra.mxu0 %v2266
      %7080 = vmatprep.subr.mxu0 %v2264
      %7081 = vmatpush1.msra.mxu0 %v2263
      %7082 = vmatprep.subr.mxu0 %v2261
      %7083 = vmatpush1.msra.mxu0 %v2260
      %7084 = vmatprep.subr.mxu0 %v2258
      %7085 = vmatpush1.msra.mxu0 %v2257
      %7086 = vmatprep.subr.mxu0 0.0
      %7087 = vmatpush2.msra.mxu0 0.0
      %7088 = vmatprep.subr.mxu0 0.0
      %7089 = vmatpush2.msra.mxu0 0.0
      %7090 = vmatprep.subr.mxu0 0.0
      %7091 = vmatpush2.msra.mxu0 0.0
      %7092 = vmatprep.subr.mxu0 0.0
      %7093 = vmatpush2.msra.mxu0 0.0
      %7094 = vmatprep.subr.mxu0 0.0
      %7095 = vmatpush2.msra.mxu0 0.0
      %7096 = vmatprep.subr.mxu0 0.0
      %7097 = vmatpush2.msra.mxu0 0.0
      %7098 = vmatprep.subr.mxu0 0.0
      %7099 = vmatpush2.msra.mxu0 0.0
      %7100 = vmatprep.subr.mxu0 0.0
      %7101 = vmatpush2.msra.mxu0 0.0
      %7102 = vmatprep.subr.mxu0 0.0
      %7103 = vmatpush2.msra.mxu0 0.0
      %7104 = vmatprep.subr.mxu0 0.0
      %7105 = vmatpush2.msra.mxu0 0.0
      %7106 = vmatprep.subr.mxu0 0.0
      %7107 = vmatpush2.msra.mxu0 0.0
      %7108 = vmatprep.subr.mxu0 0.0
      %7109 = vmatpush2.msra.mxu0 0.0
      %7110 = vmatprep.subr.mxu0 0.0
      %7111 = vmatpush2.msra.mxu0 0.0
      %7112 = vmatprep.subr.mxu0 0.0
      %7113 = vmatpush2.msra.mxu0 0.0
      %7114 = vmatprep.subr.mxu0 0.0
      %7115 = vmatpush2.msra.mxu0 0.0
      %7116 = vmatprep.subr.mxu0 0.0
      %7117 = vmatpush2.msra.mxu0 0.0
      %7118 = vmatprep.mubr.f32.mxu0 0.0
      %7119 = vmatmul.mubr.f32.gmra.mxu0 %v7040
      %v7120 = vpop.f32.mrf.mxu0
      %v7121 = vadd.f32 %v2317, %v7120
      %v7122 = vpop.f32.mrf.mxu0
      %v7123 = vadd.f32 %v2321, %v7122
      %7124 = vdwg.mxu0
      %7125 = vmatprep.subr.mxu0 0.0
      %7126 = vmatpush1.msra.mxu0 %v2304
      %7127 = vmatprep.subr.mxu0 0.0
      %7128 = vmatpush1.msra.mxu0 %v2301
      %7129 = vmatprep.subr.mxu0 0.0
      %7130 = vmatpush1.msra.mxu0 %v2298
      %7131 = vmatprep.subr.mxu0 0.0
      %7132 = vmatpush1.msra.mxu0 %v2295
      %7133 = vmatprep.subr.mxu0 0.0
      %7134 = vmatpush1.msra.mxu0 %v2292
      %7135 = vmatprep.subr.mxu0 0.0
      %7136 = vmatpush1.msra.mxu0 %v2289
      %7137 = vmatprep.subr.mxu0 0.0
      %7138 = vmatpush1.msra.mxu0 %v2286
      %7139 = vmatprep.subr.mxu0 0.0
      %7140 = vmatpush1.msra.mxu0 %v2283
      %7141 = vmatprep.subr.mxu0 0.0
      %7142 = vmatpush1.msra.mxu0 %v2280
      %7143 = vmatprep.subr.mxu0 0.0
      %7144 = vmatpush1.msra.mxu0 %v2277
      %7145 = vmatprep.subr.mxu0 0.0
      %7146 = vmatpush1.msra.mxu0 %v2274
      %7147 = vmatprep.subr.mxu0 0.0
      %7148 = vmatpush1.msra.mxu0 %v2271
      %7149 = vmatprep.subr.mxu0 0.0
      %7150 = vmatpush1.msra.mxu0 %v2268
      %7151 = vmatprep.subr.mxu0 0.0
      %7152 = vmatpush1.msra.mxu0 %v2265
      %7153 = vmatprep.subr.mxu0 0.0
      %7154 = vmatpush1.msra.mxu0 %v2262
      %7155 = vmatprep.subr.mxu0 0.0
      %7156 = vmatpush1.msra.mxu0 %v2259
      %7157 = vmatprep.subr.mxu0 0.0
      %7158 = vmatpush2.msra.mxu0 0.0
      %7159 = vmatprep.subr.mxu0 0.0
      %7160 = vmatpush2.msra.mxu0 0.0
      %7161 = vmatprep.subr.mxu0 0.0
      %7162 = vmatpush2.msra.mxu0 0.0
      %7163 = vmatprep.subr.mxu0 0.0
      %7164 = vmatpush2.msra.mxu0 0.0
      %7165 = vmatprep.subr.mxu0 0.0
      %7166 = vmatpush2.msra.mxu0 0.0
      %7167 = vmatprep.subr.mxu0 0.0
      %7168 = vmatpush2.msra.mxu0 0.0
      %7169 = vmatprep.subr.mxu0 0.0
      %7170 = vmatpush2.msra.mxu0 0.0
      %7171 = vmatprep.subr.mxu0 0.0
      %7172 = vmatpush2.msra.mxu0 0.0
      %7173 = vmatprep.subr.mxu0 0.0
      %7174 = vmatpush2.msra.mxu0 0.0
      %7175 = vmatprep.subr.mxu0 0.0
      %7176 = vmatpush2.msra.mxu0 0.0
      %7177 = vmatprep.subr.mxu0 0.0
      %7178 = vmatpush2.msra.mxu0 0.0
      %7179 = vmatprep.subr.mxu0 0.0
      %7180 = vmatpush2.msra.mxu0 0.0
      %7181 = vmatprep.subr.mxu0 0.0
      %7182 = vmatpush2.msra.mxu0 0.0
      %7183 = vmatprep.subr.mxu0 0.0
      %7184 = vmatpush2.msra.mxu0 0.0
      %7185 = vmatprep.subr.mxu0 0.0
      %7186 = vmatpush2.msra.mxu0 0.0
      %7187 = vmatprep.subr.mxu0 0.0
      %7188 = vmatpush2.msra.mxu0 0.0
      %7189 = vmatprep.mubr.f32.mxu0 0.0
      %7190 = vmatmul.mubr.f32.gmra.mxu0 %v7040
      %v7191 = vpop.f32.mrf.mxu0
      %v7192 = vadd.f32 %v2325, %v7191
      %v7193 = vpop.f32.mrf.mxu0
      %7194 = vdwg.mxu0
      %v7195 = vadd.f32 %v7051, %v7121
      %v7196 = vxor.u32 %v7195, 2147483648
      %v7197 = vmul.f32 %v7196, 1.442695
      %v7198 = vpow.pop %v7197
      %v7199 = vadd.f32 %v7198, 1.0
      %v7200 = vrcp.pop %v7199
      %v7201 = vmul.f32 1.0, %v7200
      %v7202 = vadd.f32 %v7052, %v7123
      %v7203 = vxor.u32 %v7202, 2147483648
      %v7204 = vmul.f32 %v7203, 1.442695
      %v7205 = vpow.pop %v7204
      %v7206 = vadd.f32 %v7205, 1.0
      %v7207 = vrcp.pop %v7206
      %v7208 = vmul.f32 1.0, %v7207
      %v7209 = vmul.f32 %v7201, %v7192
      %v7210 = vadd.f32 %v7053, %v7209
      %v7211 = vtanh.pop %v7210
      %v7212 = vsub.f32 1.0, %v7208
      %v7213 = vmul.f32 %v7212, %v7211
      %v7214 = vmul.f32 %v7208, %v7040
      %v7215 = vadd.f32 %v7213, %v7214
      %s7216 = sadd.s32 %s2307, 28
      %v7217 = vstv %s7216
      %vm7218 = vcmp.eq.s32.totalorder %v2306, %v7217
      %v7219 = vsel %vm7218, 1, 0
      %7220 = vset.pattern.permute.xlu0 0
      %7221 = vperm.xlu0 %7220, %v7219
      %v7222 = vpop.permute.xlu0 %7221
      %vm7223 = vcmp.eq.s32.totalorder %v7222, 1
      %v7224 = vsel %vm7223, %v7215, %v7049
      %s7225 = scalar_lea.vmem [#allocation2], 672
      %v7226 = vld [vmem:[%s7225] sm:$0xff]
      %v7227 = vld [vmem:[%s7225 + $0x8] sm:$0xff]
      %v7228 = vld [vmem:[%s7225 + $0x10] sm:$0xff]
      %7229 = vmatprep.subr.mxu0 %v2303
      %7230 = vmatpush1.msra.mxu0 %v2302
      %7231 = vmatprep.subr.mxu0 %v2300
      %7232 = vmatpush1.msra.mxu0 %v2299
      %7233 = vmatprep.subr.mxu0 %v2297
      %7234 = vmatpush1.msra.mxu0 %v2296
      %7235 = vmatprep.subr.mxu0 %v2294
      %7236 = vmatpush1.msra.mxu0 %v2293
      %7237 = vmatprep.subr.mxu0 %v2291
      %7238 = vmatpush1.msra.mxu0 %v2290
      %7239 = vmatprep.subr.mxu0 %v2288
      %7240 = vmatpush1.msra.mxu0 %v2287
      %7241 = vmatprep.subr.mxu0 %v2285
      %7242 = vmatpush1.msra.mxu0 %v2284
      %7243 = vmatprep.subr.mxu0 %v2282
      %7244 = vmatpush1.msra.mxu0 %v2281
      %7245 = vmatprep.subr.mxu0 %v2279
      %7246 = vmatpush1.msra.mxu0 %v2278
      %7247 = vmatprep.subr.mxu0 %v2276
      %7248 = vmatpush1.msra.mxu0 %v2275
      %7249 = vmatprep.subr.mxu0 %v2273
      %7250 = vmatpush1.msra.mxu0 %v2272
      %7251 = vmatprep.subr.mxu0 %v2270
      %7252 = vmatpush1.msra.mxu0 %v2269
      %7253 = vmatprep.subr.mxu0 %v2267
      %7254 = vmatpush1.msra.mxu0 %v2266
      %7255 = vmatprep.subr.mxu0 %v2264
      %7256 = vmatpush1.msra.mxu0 %v2263
      %7257 = vmatprep.subr.mxu0 %v2261
      %7258 = vmatpush1.msra.mxu0 %v2260
      %7259 = vmatprep.subr.mxu0 %v2258
      %7260 = vmatpush1.msra.mxu0 %v2257
      %7261 = vmatprep.subr.mxu0 0.0
      %7262 = vmatpush2.msra.mxu0 0.0
      %7263 = vmatprep.subr.mxu0 0.0
      %7264 = vmatpush2.msra.mxu0 0.0
      %7265 = vmatprep.subr.mxu0 0.0
      %7266 = vmatpush2.msra.mxu0 0.0
      %7267 = vmatprep.subr.mxu0 0.0
      %7268 = vmatpush2.msra.mxu0 0.0
      %7269 = vmatprep.subr.mxu0 0.0
      %7270 = vmatpush2.msra.mxu0 0.0
      %7271 = vmatprep.subr.mxu0 0.0
      %7272 = vmatpush2.msra.mxu0 0.0
      %7273 = vmatprep.subr.mxu0 0.0
      %7274 = vmatpush2.msra.mxu0 0.0
      %7275 = vmatprep.subr.mxu0 0.0
      %7276 = vmatpush2.msra.mxu0 0.0
      %7277 = vmatprep.subr.mxu0 0.0
      %7278 = vmatpush2.msra.mxu0 0.0
      %7279 = vmatprep.subr.mxu0 0.0
      %7280 = vmatpush2.msra.mxu0 0.0
      %7281 = vmatprep.subr.mxu0 0.0
      %7282 = vmatpush2.msra.mxu0 0.0
      %7283 = vmatprep.subr.mxu0 0.0
      %7284 = vmatpush2.msra.mxu0 0.0
      %7285 = vmatprep.subr.mxu0 0.0
      %7286 = vmatpush2.msra.mxu0 0.0
      %7287 = vmatprep.subr.mxu0 0.0
      %7288 = vmatpush2.msra.mxu0 0.0
      %7289 = vmatprep.subr.mxu0 0.0
      %7290 = vmatpush2.msra.mxu0 0.0
      %7291 = vmatprep.subr.mxu0 0.0
      %7292 = vmatpush2.msra.mxu0 0.0
      %7293 = vmatprep.mubr.f32.mxu0 0.0
      %7294 = vmatmul.mubr.f32.gmra.mxu0 %v7215
      %v7295 = vpop.f32.mrf.mxu0
      %v7296 = vadd.f32 %v2317, %v7295
      %v7297 = vpop.f32.mrf.mxu0
      %v7298 = vadd.f32 %v2321, %v7297
      %7299 = vdwg.mxu0
      %7300 = vmatprep.subr.mxu0 0.0
      %7301 = vmatpush1.msra.mxu0 %v2304
      %7302 = vmatprep.subr.mxu0 0.0
      %7303 = vmatpush1.msra.mxu0 %v2301
      %7304 = vmatprep.subr.mxu0 0.0
      %7305 = vmatpush1.msra.mxu0 %v2298
      %7306 = vmatprep.subr.mxu0 0.0
      %7307 = vmatpush1.msra.mxu0 %v2295
      %7308 = vmatprep.subr.mxu0 0.0
      %7309 = vmatpush1.msra.mxu0 %v2292
      %7310 = vmatprep.subr.mxu0 0.0
      %7311 = vmatpush1.msra.mxu0 %v2289
      %7312 = vmatprep.subr.mxu0 0.0
      %7313 = vmatpush1.msra.mxu0 %v2286
      %7314 = vmatprep.subr.mxu0 0.0
      %7315 = vmatpush1.msra.mxu0 %v2283
      %7316 = vmatprep.subr.mxu0 0.0
      %7317 = vmatpush1.msra.mxu0 %v2280
      %7318 = vmatprep.subr.mxu0 0.0
      %7319 = vmatpush1.msra.mxu0 %v2277
      %7320 = vmatprep.subr.mxu0 0.0
      %7321 = vmatpush1.msra.mxu0 %v2274
      %7322 = vmatprep.subr.mxu0 0.0
      %7323 = vmatpush1.msra.mxu0 %v2271
      %7324 = vmatprep.subr.mxu0 0.0
      %7325 = vmatpush1.msra.mxu0 %v2268
      %7326 = vmatprep.subr.mxu0 0.0
      %7327 = vmatpush1.msra.mxu0 %v2265
      %7328 = vmatprep.subr.mxu0 0.0
      %7329 = vmatpush1.msra.mxu0 %v2262
      %7330 = vmatprep.subr.mxu0 0.0
      %7331 = vmatpush1.msra.mxu0 %v2259
      %7332 = vmatprep.subr.mxu0 0.0
      %7333 = vmatpush2.msra.mxu0 0.0
      %7334 = vmatprep.subr.mxu0 0.0
      %7335 = vmatpush2.msra.mxu0 0.0
      %7336 = vmatprep.subr.mxu0 0.0
      %7337 = vmatpush2.msra.mxu0 0.0
      %7338 = vmatprep.subr.mxu0 0.0
      %7339 = vmatpush2.msra.mxu0 0.0
      %7340 = vmatprep.subr.mxu0 0.0
      %7341 = vmatpush2.msra.mxu0 0.0
      %7342 = vmatprep.subr.mxu0 0.0
      %7343 = vmatpush2.msra.mxu0 0.0
      %7344 = vmatprep.subr.mxu0 0.0
      %7345 = vmatpush2.msra.mxu0 0.0
      %7346 = vmatprep.subr.mxu0 0.0
      %7347 = vmatpush2.msra.mxu0 0.0
      %7348 = vmatprep.subr.mxu0 0.0
      %7349 = vmatpush2.msra.mxu0 0.0
      %7350 = vmatprep.subr.mxu0 0.0
      %7351 = vmatpush2.msra.mxu0 0.0
      %7352 = vmatprep.subr.mxu0 0.0
      %7353 = vmatpush2.msra.mxu0 0.0
      %7354 = vmatprep.subr.mxu0 0.0
      %7355 = vmatpush2.msra.mxu0 0.0
      %7356 = vmatprep.subr.mxu0 0.0
      %7357 = vmatpush2.msra.mxu0 0.0
      %7358 = vmatprep.subr.mxu0 0.0
      %7359 = vmatpush2.msra.mxu0 0.0
      %7360 = vmatprep.subr.mxu0 0.0
      %7361 = vmatpush2.msra.mxu0 0.0
      %7362 = vmatprep.subr.mxu0 0.0
      %7363 = vmatpush2.msra.mxu0 0.0
      %7364 = vmatprep.mubr.f32.mxu0 0.0
      %7365 = vmatmul.mubr.f32.gmra.mxu0 %v7215
      %v7366 = vpop.f32.mrf.mxu0
      %v7367 = vadd.f32 %v2325, %v7366
      %v7368 = vpop.f32.mrf.mxu0
      %7369 = vdwg.mxu0
      %v7370 = vadd.f32 %v7226, %v7296
      %v7371 = vxor.u32 %v7370, 2147483648
      %v7372 = vmul.f32 %v7371, 1.442695
      %v7373 = vpow.pop %v7372
      %v7374 = vadd.f32 %v7373, 1.0
      %v7375 = vrcp.pop %v7374
      %v7376 = vmul.f32 1.0, %v7375
      %v7377 = vadd.f32 %v7227, %v7298
      %v7378 = vxor.u32 %v7377, 2147483648
      %v7379 = vmul.f32 %v7378, 1.442695
      %v7380 = vpow.pop %v7379
      %v7381 = vadd.f32 %v7380, 1.0
      %v7382 = vrcp.pop %v7381
      %v7383 = vmul.f32 1.0, %v7382
      %v7384 = vmul.f32 %v7376, %v7367
      %v7385 = vadd.f32 %v7228, %v7384
      %v7386 = vtanh.pop %v7385
      %v7387 = vsub.f32 1.0, %v7383
      %v7388 = vmul.f32 %v7387, %v7386
      %v7389 = vmul.f32 %v7383, %v7215
      %v7390 = vadd.f32 %v7388, %v7389
      %s7391 = sadd.s32 %s2307, 29
      %v7392 = vstv %s7391
      %vm7393 = vcmp.eq.s32.totalorder %v2306, %v7392
      %v7394 = vsel %vm7393, 1, 0
      %7395 = vset.pattern.permute.xlu0 0
      %7396 = vperm.xlu0 %7395, %v7394
      %v7397 = vpop.permute.xlu0 %7396
      %vm7398 = vcmp.eq.s32.totalorder %v7397, 1
      %v7399 = vsel %vm7398, %v7390, %v7224
      %s7400 = scalar_lea.vmem [#allocation2], 696
      %v7401 = vld [vmem:[%s7400] sm:$0xff]
      %v7402 = vld [vmem:[%s7400 + $0x8] sm:$0xff]
      %v7403 = vld [vmem:[%s7400 + $0x10] sm:$0xff]
      %7404 = vmatprep.subr.mxu0 %v2303
      %7405 = vmatpush1.msra.mxu0 %v2302
      %7406 = vmatprep.subr.mxu0 %v2300
      %7407 = vmatpush1.msra.mxu0 %v2299
      %7408 = vmatprep.subr.mxu0 %v2297
      %7409 = vmatpush1.msra.mxu0 %v2296
      %7410 = vmatprep.subr.mxu0 %v2294
      %7411 = vmatpush1.msra.mxu0 %v2293
      %7412 = vmatprep.subr.mxu0 %v2291
      %7413 = vmatpush1.msra.mxu0 %v2290
      %7414 = vmatprep.subr.mxu0 %v2288
      %7415 = vmatpush1.msra.mxu0 %v2287
      %7416 = vmatprep.subr.mxu0 %v2285
      %7417 = vmatpush1.msra.mxu0 %v2284
      %7418 = vmatprep.subr.mxu0 %v2282
      %7419 = vmatpush1.msra.mxu0 %v2281
      %7420 = vmatprep.subr.mxu0 %v2279
      %7421 = vmatpush1.msra.mxu0 %v2278
      %7422 = vmatprep.subr.mxu0 %v2276
      %7423 = vmatpush1.msra.mxu0 %v2275
      %7424 = vmatprep.subr.mxu0 %v2273
      %7425 = vmatpush1.msra.mxu0 %v2272
      %7426 = vmatprep.subr.mxu0 %v2270
      %7427 = vmatpush1.msra.mxu0 %v2269
      %7428 = vmatprep.subr.mxu0 %v2267
      %7429 = vmatpush1.msra.mxu0 %v2266
      %7430 = vmatprep.subr.mxu0 %v2264
      %7431 = vmatpush1.msra.mxu0 %v2263
      %7432 = vmatprep.subr.mxu0 %v2261
      %7433 = vmatpush1.msra.mxu0 %v2260
      %7434 = vmatprep.subr.mxu0 %v2258
      %7435 = vmatpush1.msra.mxu0 %v2257
      %7436 = vmatprep.subr.mxu0 0.0
      %7437 = vmatpush2.msra.mxu0 0.0
      %7438 = vmatprep.subr.mxu0 0.0
      %7439 = vmatpush2.msra.mxu0 0.0
      %7440 = vmatprep.subr.mxu0 0.0
      %7441 = vmatpush2.msra.mxu0 0.0
      %7442 = vmatprep.subr.mxu0 0.0
      %7443 = vmatpush2.msra.mxu0 0.0
      %7444 = vmatprep.subr.mxu0 0.0
      %7445 = vmatpush2.msra.mxu0 0.0
      %7446 = vmatprep.subr.mxu0 0.0
      %7447 = vmatpush2.msra.mxu0 0.0
      %7448 = vmatprep.subr.mxu0 0.0
      %7449 = vmatpush2.msra.mxu0 0.0
      %7450 = vmatprep.subr.mxu0 0.0
      %7451 = vmatpush2.msra.mxu0 0.0
      %7452 = vmatprep.subr.mxu0 0.0
      %7453 = vmatpush2.msra.mxu0 0.0
      %7454 = vmatprep.subr.mxu0 0.0
      %7455 = vmatpush2.msra.mxu0 0.0
      %7456 = vmatprep.subr.mxu0 0.0
      %7457 = vmatpush2.msra.mxu0 0.0
      %7458 = vmatprep.subr.mxu0 0.0
      %7459 = vmatpush2.msra.mxu0 0.0
      %7460 = vmatprep.subr.mxu0 0.0
      %7461 = vmatpush2.msra.mxu0 0.0
      %7462 = vmatprep.subr.mxu0 0.0
      %7463 = vmatpush2.msra.mxu0 0.0
      %7464 = vmatprep.subr.mxu0 0.0
      %7465 = vmatpush2.msra.mxu0 0.0
      %7466 = vmatprep.subr.mxu0 0.0
      %7467 = vmatpush2.msra.mxu0 0.0
      %7468 = vmatprep.mubr.f32.mxu0 0.0
      %7469 = vmatmul.mubr.f32.gmra.mxu0 %v7390
      %v7470 = vpop.f32.mrf.mxu0
      %v7471 = vadd.f32 %v2317, %v7470
      %v7472 = vpop.f32.mrf.mxu0
      %v7473 = vadd.f32 %v2321, %v7472
      %7474 = vdwg.mxu0
      %7475 = vmatprep.subr.mxu0 0.0
      %7476 = vmatpush1.msra.mxu0 %v2304
      %7477 = vmatprep.subr.mxu0 0.0
      %7478 = vmatpush1.msra.mxu0 %v2301
      %7479 = vmatprep.subr.mxu0 0.0
      %7480 = vmatpush1.msra.mxu0 %v2298
      %7481 = vmatprep.subr.mxu0 0.0
      %7482 = vmatpush1.msra.mxu0 %v2295
      %7483 = vmatprep.subr.mxu0 0.0
      %7484 = vmatpush1.msra.mxu0 %v2292
      %7485 = vmatprep.subr.mxu0 0.0
      %7486 = vmatpush1.msra.mxu0 %v2289
      %7487 = vmatprep.subr.mxu0 0.0
      %7488 = vmatpush1.msra.mxu0 %v2286
      %7489 = vmatprep.subr.mxu0 0.0
      %7490 = vmatpush1.msra.mxu0 %v2283
      %7491 = vmatprep.subr.mxu0 0.0
      %7492 = vmatpush1.msra.mxu0 %v2280
      %7493 = vmatprep.subr.mxu0 0.0
      %7494 = vmatpush1.msra.mxu0 %v2277
      %7495 = vmatprep.subr.mxu0 0.0
      %7496 = vmatpush1.msra.mxu0 %v2274
      %7497 = vmatprep.subr.mxu0 0.0
      %7498 = vmatpush1.msra.mxu0 %v2271
      %7499 = vmatprep.subr.mxu0 0.0
      %7500 = vmatpush1.msra.mxu0 %v2268
      %7501 = vmatprep.subr.mxu0 0.0
      %7502 = vmatpush1.msra.mxu0 %v2265
      %7503 = vmatprep.subr.mxu0 0.0
      %7504 = vmatpush1.msra.mxu0 %v2262
      %7505 = vmatprep.subr.mxu0 0.0
      %7506 = vmatpush1.msra.mxu0 %v2259
      %7507 = vmatprep.subr.mxu0 0.0
      %7508 = vmatpush2.msra.mxu0 0.0
      %7509 = vmatprep.subr.mxu0 0.0
      %7510 = vmatpush2.msra.mxu0 0.0
      %7511 = vmatprep.subr.mxu0 0.0
      %7512 = vmatpush2.msra.mxu0 0.0
      %7513 = vmatprep.subr.mxu0 0.0
      %7514 = vmatpush2.msra.mxu0 0.0
      %7515 = vmatprep.subr.mxu0 0.0
      %7516 = vmatpush2.msra.mxu0 0.0
      %7517 = vmatprep.subr.mxu0 0.0
      %7518 = vmatpush2.msra.mxu0 0.0
      %7519 = vmatprep.subr.mxu0 0.0
      %7520 = vmatpush2.msra.mxu0 0.0
      %7521 = vmatprep.subr.mxu0 0.0
      %7522 = vmatpush2.msra.mxu0 0.0
      %7523 = vmatprep.subr.mxu0 0.0
      %7524 = vmatpush2.msra.mxu0 0.0
      %7525 = vmatprep.subr.mxu0 0.0
      %7526 = vmatpush2.msra.mxu0 0.0
      %7527 = vmatprep.subr.mxu0 0.0
      %7528 = vmatpush2.msra.mxu0 0.0
      %7529 = vmatprep.subr.mxu0 0.0
      %7530 = vmatpush2.msra.mxu0 0.0
      %7531 = vmatprep.subr.mxu0 0.0
      %7532 = vmatpush2.msra.mxu0 0.0
      %7533 = vmatprep.subr.mxu0 0.0
      %7534 = vmatpush2.msra.mxu0 0.0
      %7535 = vmatprep.subr.mxu0 0.0
      %7536 = vmatpush2.msra.mxu0 0.0
      %7537 = vmatprep.subr.mxu0 0.0
      %7538 = vmatpush2.msra.mxu0 0.0
      %7539 = vmatprep.mubr.f32.mxu0 0.0
      %7540 = vmatmul.mubr.f32.gmra.mxu0 %v7390
      %v7541 = vpop.f32.mrf.mxu0
      %v7542 = vadd.f32 %v2325, %v7541
      %v7543 = vpop.f32.mrf.mxu0
      %7544 = vdwg.mxu0
      %v7545 = vadd.f32 %v7401, %v7471
      %v7546 = vxor.u32 %v7545, 2147483648
      %v7547 = vmul.f32 %v7546, 1.442695
      %v7548 = vpow.pop %v7547
      %v7549 = vadd.f32 %v7548, 1.0
      %v7550 = vrcp.pop %v7549
      %v7551 = vmul.f32 1.0, %v7550
      %v7552 = vadd.f32 %v7402, %v7473
      %v7553 = vxor.u32 %v7552, 2147483648
      %v7554 = vmul.f32 %v7553, 1.442695
      %v7555 = vpow.pop %v7554
      %v7556 = vadd.f32 %v7555, 1.0
      %v7557 = vrcp.pop %v7556
      %v7558 = vmul.f32 1.0, %v7557
      %v7559 = vmul.f32 %v7551, %v7542
      %v7560 = vadd.f32 %v7403, %v7559
      %v7561 = vtanh.pop %v7560
      %v7562 = vsub.f32 1.0, %v7558
      %v7563 = vmul.f32 %v7562, %v7561
      %v7564 = vmul.f32 %v7558, %v7390
      %v7565 = vadd.f32 %v7563, %v7564
      %s7566 = sadd.s32 %s2307, 30
      %v7567 = vstv %s7566
      %vm7568 = vcmp.eq.s32.totalorder %v2306, %v7567
      %v7569 = vsel %vm7568, 1, 0
      %7570 = vset.pattern.permute.xlu0 0
      %7571 = vperm.xlu0 %7570, %v7569
      %v7572 = vpop.permute.xlu0 %7571
      %vm7573 = vcmp.eq.s32.totalorder %v7572, 1
      %v7574 = vsel %vm7573, %v7565, %v7399
      %7575 = vst [vmem:[#allocation3] sm:$0xff] %v7565
      %7576 = vst [vmem:[#allocation4] sm:$0xff] %v7574
      %p7577 = scmp.eq.s32.totalorder %s19, 4
      // Predicated region
      $region57: #{post_predictive_forward.1} parent=51 // pred_check
        %p7578 = pneg %p7577
      $region58: #{post_predictive_forward.1} parent=51 // pred_check_branch
        %7580 = sbr.rel (%p7578) target = $region60
      $region59: #{post_predictive_forward.1} parent=51 // pred_region
        %v7581 = vld [vmem:[%s6] sm:$0xff]
        %v7582 = vld [vmem:[%s6 + $0x8] sm:$0xff]
        %v7583 = vld [vmem:[%s6 + $0x10] sm:$0xff]
        %v7584 = vld [vmem:[%s6 + $0x18] sm:$0xff]
        %v7585 = vld [vmem:[%s6 + $0x20] sm:$0xff]
        %v7586 = vld [vmem:[%s6 + $0x28] sm:$0xff]
        %v7587 = vld [vmem:[%s6 + $0x30] sm:$0xff]
        %v7588 = vld [vmem:[%s6 + $0x38] sm:$0xff]
        %v7589 = vld [vmem:[%s6 + $0x40] sm:$0xff]
        %v7590 = vld [vmem:[%s6 + $0x48] sm:$0xff]
        %v7591 = vld [vmem:[%s6 + $0x50] sm:$0xff]
        %v7592 = vld [vmem:[%s6 + $0x58] sm:$0xff]
        %v7593 = vld [vmem:[%s6 + $0x60] sm:$0xff]
        %v7594 = vld [vmem:[%s6 + $0x68] sm:$0xff]
        %v7595 = vld [vmem:[%s6 + $0x70] sm:$0xff]
        %v7596 = vld [vmem:[%s6 + $0x78] sm:$0xff]
        %v7597 = vld [vmem:[%s7] sm:$0x1]
        %v7599 = vlaneseq
        %v7600 = vshrl.u32 %v7599, 7
        %v7601 = vsub.s32 0, %v7600
        %v7602 = vrot.slane %v7597, %v7601
        %7604 = vmatprep.subr.mxu0 0.0
        %7605 = vmatpush1.msra.mxu0 %v7596
        %7606 = vmatprep.subr.mxu0 0.0
        %7607 = vmatpush1.msra.mxu0 %v7595
        %7608 = vmatprep.subr.mxu0 0.0
        %7609 = vmatpush1.msra.mxu0 %v7594
        %7610 = vmatprep.subr.mxu0 0.0
        %7611 = vmatpush1.msra.mxu0 %v7593
        %7612 = vmatprep.subr.mxu0 0.0
        %7613 = vmatpush1.msra.mxu0 %v7592
        %7614 = vmatprep.subr.mxu0 0.0
        %7615 = vmatpush1.msra.mxu0 %v7591
        %7616 = vmatprep.subr.mxu0 0.0
        %7617 = vmatpush1.msra.mxu0 %v7590
        %7618 = vmatprep.subr.mxu0 0.0
        %7619 = vmatpush1.msra.mxu0 %v7589
        %7620 = vmatprep.subr.mxu0 0.0
        %7621 = vmatpush1.msra.mxu0 %v7588
        %7622 = vmatprep.subr.mxu0 0.0
        %7623 = vmatpush1.msra.mxu0 %v7587
        %7624 = vmatprep.subr.mxu0 0.0
        %7625 = vmatpush1.msra.mxu0 %v7586
        %7626 = vmatprep.subr.mxu0 0.0
        %7627 = vmatpush1.msra.mxu0 %v7585
        %7628 = vmatprep.subr.mxu0 0.0
        %7629 = vmatpush1.msra.mxu0 %v7584
        %7630 = vmatprep.subr.mxu0 0.0
        %7631 = vmatpush1.msra.mxu0 %v7583
        %7632 = vmatprep.subr.mxu0 0.0
        %7633 = vmatpush1.msra.mxu0 %v7582
        %7634 = vmatprep.subr.mxu0 0.0
        %7635 = vmatpush1.msra.mxu0 %v7581
        %7636 = vmatprep.subr.mxu0 0.0
        %7637 = vmatpush2.msra.mxu0 0.0
        %7638 = vmatprep.subr.mxu0 0.0
        %7639 = vmatpush2.msra.mxu0 0.0
        %7640 = vmatprep.subr.mxu0 0.0
        %7641 = vmatpush2.msra.mxu0 0.0
        %7642 = vmatprep.subr.mxu0 0.0
        %7643 = vmatpush2.msra.mxu0 0.0
        %7644 = vmatprep.subr.mxu0 0.0
        %7645 = vmatpush2.msra.mxu0 0.0
        %7646 = vmatprep.subr.mxu0 0.0
        %7647 = vmatpush2.msra.mxu0 0.0
        %7648 = vmatprep.subr.mxu0 0.0
        %7649 = vmatpush2.msra.mxu0 0.0
        %7650 = vmatprep.subr.mxu0 0.0
        %7651 = vmatpush2.msra.mxu0 0.0
        %7652 = vmatprep.subr.mxu0 0.0
        %7653 = vmatpush2.msra.mxu0 0.0
        %7654 = vmatprep.subr.mxu0 0.0
        %7655 = vmatpush2.msra.mxu0 0.0
        %7656 = vmatprep.subr.mxu0 0.0
        %7657 = vmatpush2.msra.mxu0 0.0
        %7658 = vmatprep.subr.mxu0 0.0
        %7659 = vmatpush2.msra.mxu0 0.0
        %7660 = vmatprep.subr.mxu0 0.0
        %7661 = vmatpush2.msra.mxu0 0.0
        %7662 = vmatprep.subr.mxu0 0.0
        %7663 = vmatpush2.msra.mxu0 0.0
        %7664 = vmatprep.subr.mxu0 0.0
        %7665 = vmatpush2.msra.mxu0 0.0
        %7666 = vmatprep.subr.mxu0 0.0
        %7667 = vmatpush2.msra.mxu0 0.0
        %7668 = vmatprep.mubr.f32.mxu0 0.0
        %7669 = vmatmul.mubr.f32.gmra.mxu0 %v7574
        %v7670 = vpop.f32.mrf.mxu0
        %v7671 = vadd.f32 %v7602, %v7670
        %v7672 = vpop.f32.mrf.mxu0
        %7673 = vdwg.mxu0
        %7674 = vst [vmem:[%s8] sm:$0xff] %v7671
      $region60: #{post_predictive_forward.1} parent=51 // pred_fallthru
        _
      // Predicated region
      $region61: #{post_predictive_forward.1} parent=51 // pred_check
        %p7675 = pneg %p205
      $region62: #{post_predictive_forward.1} parent=51 // pred_check_branch
        %7677 = sbr.rel (%p7675) target = $region64
      $region63: #{post_predictive_forward.1} parent=51 // pred_region
        _
      $region64: #{post_predictive_forward.1} parent=51 // pred_fallthru
        _
      // Predicated region
      $region65: #{post_predictive_forward.1} parent=51 // pred_check
        %p7678 = pneg %p205
      $region66: #{post_predictive_forward.1} parent=51 // pred_check_branch
        %7680 = sbr.rel (%p7678) target = $region68
      $region67: #{post_predictive_forward.1} parent=51 // pred_region
        _
      $region68: #{post_predictive_forward.1} parent=51 // pred_fallthru
        _
    $region52: #{post_predictive_forward.1} parent=5 // pred_fallthru
      _
    %p7681 = scmp.le.s32.totalorder 2, %s14
    // Predicated region
    $region69: #{post_predictive_forward.1} parent=5 // pred_check
      %p7682 = pneg %p7681
    $region70: #{post_predictive_forward.1} parent=5 // pred_check_branch
      %7684 = sbr.rel (%p7682) target = $region72
    $region71: #{post_predictive_forward.1} parent=5 // pred_region
      %s7685 = ssub.s32 %s14, 2
    $region72: #{post_predictive_forward.1} parent=5 // pred_fallthru
      _
  $region6: #{post_predictive_forward.1} parent=0 // loop_footer
    %s18 = sadd.s32 1, %s14
  $region7: #{post_predictive_forward.1} parent=0 // loop_footer_branch
    %13 = sbr.rel target = $region3
  $region8: #{post_predictive_forward.1} parent=0 // loop_exit
    _

</llo_original>
